<compile_context>
chip_gen: v7x
topology: tpu7x:2x2x1
jax: 0.10.0
libtpu: 0.0.40
codegen_flags: <defaults>
</compile_context>

<pallas_src>
import jax
import jax.numpy as jnp
from jax import lax
from jax.experimental import pallas as pl
from jax.experimental.pallas import tpu as pltpu

LN_EPS = 1e-5        # PyTorch LayerNorm default eps
NEG_FILL = -1e30     # logit fill for padded softmax lanes (exp underflows to 0)


def _vmem_spec():
    return pl.BlockSpec(memory_space=pltpu.MemorySpace.VMEM)


def _layernorm2d(y, g, b):
    mean = jnp.mean(y, axis=-1, keepdims=True)
    var = jnp.mean(jnp.square(y - mean), axis=-1, keepdims=True)
    return (y - mean) * lax.rsqrt(var + LN_EPS) * g + b


# ---------------------------------------------------------------------------
# Single fused kernel: conv+ReLU+LN -> (GRU+tanh+LN) x L -> dense+softmax
# ---------------------------------------------------------------------------
def make_fused_kernel(B, S, num_layers, o_pad):
    n_layer_refs = 6 * num_layers

    def kernel(*refs):
        cols_ref, wc_ref, bc_ref, g1_ref, b1_ref = refs[:5]
        layer_refs = refs[5:5 + n_layer_refs]
        wd_ref, bd_ref = refs[5 + n_layer_refs:7 + n_layer_refs]
        out_ref = refs[7 + n_layer_refs]
        y_scr = refs[8 + n_layer_refs]                      # VMEM (S, B, H)

        # ---- Stage 1: Conv1d('same') as one im2col matmul + ReLU + LN ------
        y = jnp.dot(cols_ref[...], wc_ref[...],
                    preferred_element_type=jnp.float32) + bc_ref[...]
        y = jnp.maximum(y, 0.0)
        y = _layernorm2d(y, g1_ref[...], b1_ref[...])        # (S*B, Co)

        # ---- Stage 2: GRU stack, each followed by tanh + LayerNorm ---------
        for l in range(num_layers):
            wi_ref, wh_ref, bi_ref, bh_ref, lg_ref, lb_ref = \
                layer_refs[6 * l:6 * l + 6]
            H = wh_ref.shape[-1]

            # Hoisted input projection: one full-sequence matmul per gate,
            # off the sequential critical path (gate order r|z|n).
            gi_r = jnp.dot(y, wi_ref[0], preferred_element_type=jnp.float32) + bi_ref[0]
            gi_z = jnp.dot(y, wi_ref[1], preferred_element_type=jnp.float32) + bi_ref[1]
            gi_n = jnp.dot(y, wi_ref[2], preferred_element_type=jnp.float32) + bi_ref[2]

            # Recurrent weights / biases loaded + broadcast once (hoisted).
            wh_r, wh_z, wh_n = wh_ref[0], wh_ref[1], wh_ref[2]
            bh_r = jnp.broadcast_to(bh_ref[0], (B, H))
            bh_z = jnp.broadcast_to(bh_ref[1], (B, H))
            bh_n = jnp.broadcast_to(bh_ref[2], (B, H))

            h = jnp.zeros((B, H), jnp.float32)               # vreg-resident
            for t in range(S):                               # static unroll
                lo = t * B
                gh_r = jnp.dot(h, wh_r, preferred_element_type=jnp.float32) + bh_r
                gh_z = jnp.dot(h, wh_z, preferred_element_type=jnp.float32) + bh_z
                gh_n = jnp.dot(h, wh_n, preferred_element_type=jnp.float32) + bh_n
                r = jax.nn.sigmoid(gi_r[lo:lo + B, :] + gh_r)
                z = jax.nn.sigmoid(gi_z[lo:lo + B, :] + gh_z)
                n = jnp.tanh(gi_n[lo:lo + B, :] + r * gh_n)
                h = (1.0 - z) * n + z * h
                y_scr[t] = h                                 # one small store/step

            # fused epilogue: read scratch once, tanh + LayerNorm
            y = jnp.tanh(y_scr[...]).reshape(S * B, H)
            y = _layernorm2d(y, lg_ref[...], lb_ref[...])

        # ---- Stage 3: Dense (lane-padded to o_pad) + softmax ----------------
        logits = jnp.dot(y, wd_ref[...],
                         preferred_element_type=jnp.float32) + bd_ref[...]
        m = jnp.max(logits, axis=-1, keepdims=True)
        e = jnp.exp(logits - m)
        probs = e / jnp.sum(e, axis=-1, keepdims=True)
        out_ref[...] = probs.reshape(S, B, o_pad)            # lane-dense store

    return kernel


# ---------------------------------------------------------------------------
# Wrapper: tiny input/weight prep + single pallas_call
# ---------------------------------------------------------------------------
def model_forward(x, params):
    B, S, Ci = x.shape
    conv_w = params["conv_w"]                 # (K, Ci, Co)
    K, _, Co = conv_w.shape
    layers = params["layers"]
    num_layers = len(layers)
    H = layers[0]["wh"].shape[-1]
    O = params["dense_w"].shape[-1]
    o_pad = ((O + 127) // 128) * 128

    # 'same' padding + im2col + time-major row order (one tiny XLA fusion on
    # the ~1 KiB input), so the conv inside the kernel is a single matmul.
    pad_l = (K - 1) // 2
    pad_r = K - 1 - pad_l
    xp = jnp.pad(x, ((0, 0), (pad_l, pad_r), (0, 0)))
    cols = jnp.concatenate([xp[:, k:k + S, :] for k in range(K)], axis=-1)
    cols = jnp.swapaxes(cols, 0, 1).reshape(S * B, K * Ci)   # rows = s*B + b

    wc = conv_w.reshape(K * Ci, Co)
    bc = params["conv_b"].reshape(1, Co)
    g1 = params["ln1_g"].reshape(1, Co)
    b1 = params["ln1_b"].reshape(1, Co)

    layer_args = []
    for lp in layers:
        layer_args += [lp["wi"], lp["wh"],
                       lp["bi"][:, None, :], lp["bh"][:, None, :],
                       lp["ln_g"].reshape(1, H), lp["ln_b"].reshape(1, H)]

    wd = jnp.pad(params["dense_w"], ((0, 0), (0, o_pad - O)))
    bd = jnp.pad(params["dense_b"], ((0, o_pad - O),),
                 constant_values=NEG_FILL).reshape(1, o_pad)

    n_in = 7 + 6 * num_layers
    out_tm = pl.pallas_call(
        make_fused_kernel(B, S, num_layers, o_pad),
        out_shape=jax.ShapeDtypeStruct((S, B, o_pad), jnp.float32),
        in_specs=[_vmem_spec()] * n_in,
        out_specs=_vmem_spec(),
        scratch_shapes=[pltpu.VMEM((S, B, H), jnp.float32)],
    )(cols, wc, bc, g1, b1, *layer_args, wd, bd)

    # back to (B, S, output_dim); padded softmax lanes are exactly zero.
    return jnp.swapaxes(out_tm, 0, 1)[..., :O]


# ---------------------------------------------------------------------------
# Pure-JAX reference for verification
# ---------------------------------------------------------------------------
def _layernorm_ref(y, g, b):
    mean = jnp.mean(y, axis=-1, keepdims=True)
    var = jnp.mean(jnp.square(y - mean), axis=-1, keepdims=True)
    return (y - mean) * lax.rsqrt(var + LN_EPS) * g + b


def _gru_ref(x, lp):
    B = x.shape[0]
    H = lp["wh"].shape[-1]
    wi_r, wi_z, wi_n = lp["wi"][0], lp["wi"][1], lp["wi"][2]
    wh_r, wh_z, wh_n = lp["wh"][0], lp["wh"][1], lp["wh"][2]
    bi_r, bi_z, bi_n = lp["bi"][0], lp["bi"][1], lp["bi"][2]
    bh_r, bh_z, bh_n = lp["bh"][0], lp["bh"][1], lp["bh"][2]

    def step(h, x_t):
        r = jax.nn.sigmoid(x_t @ wi_r + bi_r + h @ wh_r + bh_r)
        z = jax.nn.sigmoid(x_t @ wi_z + bi_z + h @ wh_z + bh_z)
        n = jnp.tanh(x_t @ wi_n + bi_n + r * (h @ wh_n + bh_n))
        h_new = (1.0 - z) * n + z * h
        return h_new, h_new

    h0 = jnp.zeros((B, H), jnp.float32)
    _, ys = lax.scan(step, h0, jnp.transpose(x, (1, 0, 2)))
    return jnp.transpose(ys, (1, 0, 2))


def reference_forward(x, params):
    B, S, _ = x.shape
    conv_w = params["conv_w"]
    K = conv_w.shape[0]
    pad_l = (K - 1) // 2
    xp = jnp.pad(x, ((0, 0), (pad_l, K - 1 - pad_l), (0, 0)))
    y = params["conv_b"][None, None, :]
    for k in range(K):
        y = y + jnp.einsum("bsc,co->bso", xp[:, k:k + S, :], conv_w[k])
    y = jax.nn.relu(y)
    y = _layernorm_ref(y, params["ln1_g"], params["ln1_b"])
    for lp in params["layers"]:
        y = _gru_ref(y, lp)
        y = jnp.tanh(y)
        y = _layernorm_ref(y, lp["ln_g"], lp["ln_b"])
    logits = y @ params["dense_w"] + params["dense_b"]
    return jax.nn.softmax(logits, axis=-1)


def init_params(key, input_dim, conv_filters, kernel_size, hidden_dim,
                num_layers, output_dim):
    keys = iter(jax.random.split(key, 4 + 4 * num_layers))
    p = {
        "conv_w": 0.2 * jax.random.normal(next(keys), (kernel_size, input_dim, conv_filters), jnp.float32),
        "conv_b": 0.1 * jax.random.normal(next(keys), (conv_filters,), jnp.float32),
        "ln1_g": jnp.ones((conv_filters,), jnp.float32),
        "ln1_b": jnp.zeros((conv_filters,), jnp.float32),
        "layers": [],
    }
    in_size = conv_filters
    for _ in range(num_layers):
        lp = {
            # gate-major [r | z | n] on the leading axis (PyTorch GRU gate order)
            "wi": 0.2 * jax.random.normal(next(keys), (3, in_size, hidden_dim), jnp.float32),
            "wh": 0.2 * jax.random.normal(next(keys), (3, hidden_dim, hidden_dim), jnp.float32),
            "bi": 0.1 * jax.random.normal(next(keys), (3, hidden_dim), jnp.float32),
            "bh": 0.1 * jax.random.normal(next(keys), (3, hidden_dim), jnp.float32),
            "ln_g": jnp.ones((hidden_dim,), jnp.float32),
            "ln_b": jnp.zeros((hidden_dim,), jnp.float32),
        }
        p["layers"].append(lp)
        in_size = hidden_dim
    p["dense_w"] = 0.2 * jax.random.normal(next(keys), (hidden_dim, output_dim), jnp.float32)
    p["dense_b"] = 0.1 * jax.random.normal(next(keys), (output_dim,), jnp.float32)
    return p


if __name__ == "__main__":
    # Model config: input_dim=8, conv_filters=16, kernel_size=3, stride=1,
    # padding='same', hidden_dim=32, num_layers=2, cell='gru',
    # activation='tanh', output_dim=29. Dropout is a no-op (see header).
    B, S, INPUT_DIM = 2, 16, 8
    CONV_FILTERS, KERNEL_SIZE = 16, 3
    HIDDEN_DIM, NUM_LAYERS, OUTPUT_DIM = 32, 2, 29

    key = jax.random.PRNGKey(0)
    kx, kp = jax.random.split(key)
    x = jax.random.normal(kx, (B, S, INPUT_DIM), jnp.float32)
    params = init_params(kp, INPUT_DIM, CONV_FILTERS, KERNEL_SIZE,
                         HIDDEN_DIM, NUM_LAYERS, OUTPUT_DIM)

    out = jax.jit(model_forward)(x, params)
    out = jax.block_until_ready(out)

    ref = reference_forward(x, params)
    assert out.shape == (B, S, OUTPUT_DIM)
    assert jnp.allclose(out, ref, atol=1e-4, rtol=1e-4), "mismatch vs JAX reference"
    assert jnp.allclose(jnp.sum(out, axis=-1), 1.0, atol=1e-4), "softmax rows must sum to 1"

    print("KERNEL_OK")
</pallas_src>

<mosaic_0001>
module attributes {stable_mosaic.version = 11 : i64} {
  func.func @kernel(%arg0: memref<32x24xf32, #tpu.memory_space<vmem>>, %arg1: memref<24x16xf32, #tpu.memory_space<vmem>>, %arg2: memref<1x16xf32, #tpu.memory_space<vmem>>, %arg3: memref<1x16xf32, #tpu.memory_space<vmem>>, %arg4: memref<1x16xf32, #tpu.memory_space<vmem>>, %arg5: memref<3x16x32xf32, #tpu.memory_space<vmem>>, %arg6: memref<3x32x32xf32, #tpu.memory_space<vmem>>, %arg7: memref<3x1x32xf32, #tpu.memory_space<vmem>>, %arg8: memref<3x1x32xf32, #tpu.memory_space<vmem>>, %arg9: memref<1x32xf32, #tpu.memory_space<vmem>>, %arg10: memref<1x32xf32, #tpu.memory_space<vmem>>, %arg11: memref<3x32x32xf32, #tpu.memory_space<vmem>>, %arg12: memref<3x32x32xf32, #tpu.memory_space<vmem>>, %arg13: memref<3x1x32xf32, #tpu.memory_space<vmem>>, %arg14: memref<3x1x32xf32, #tpu.memory_space<vmem>>, %arg15: memref<1x32xf32, #tpu.memory_space<vmem>>, %arg16: memref<1x32xf32, #tpu.memory_space<vmem>>, %arg17: memref<32x128xf32, #tpu.memory_space<vmem>>, %arg18: memref<1x128xf32, #tpu.memory_space<vmem>>, %arg19: memref<16x2x128xf32, #tpu.memory_space<vmem>>, %arg20: memref<16x2x32xf32, #tpu.memory_space<vmem>>) attributes {dimension_semantics = [], scalar_prefetch = 0 : i64, scratch_operands = 1 : i64, tpu.core_type = #tpu.core_type<tc>} {
    %c0 = arith.constant 0 : index
    %c0_0 = arith.constant 0 : index
    %0 = vector.load %arg0[%c0, %c0_0] : memref<32x24xf32, #tpu.memory_space<vmem>>, vector<32x24xf32>
    %c0_1 = arith.constant 0 : index
    %c0_2 = arith.constant 0 : index
    %1 = vector.load %arg1[%c0_1, %c0_2] : memref<24x16xf32, #tpu.memory_space<vmem>>, vector<24x16xf32>
    %cst = arith.constant dense<0.000000e+00> : vector<32x16xf32>
    %2 = tpu.matmul %0, %1, %cst {dimension_numbers = #tpu.dot_dimension_numbers<[1], [0], [0], [1], [0, 0, 1, 1], [], []>} : vector<32x24xf32>, vector<24x16xf32>, vector<32x16xf32> -> vector<32x16xf32>
    %c0_3 = arith.constant 0 : index
    %c0_4 = arith.constant 0 : index
    %3 = vector.load %arg2[%c0_3, %c0_4] : memref<1x16xf32, #tpu.memory_space<vmem>>, vector<1x16xf32>
    %4 = vector.broadcast %3 : vector<1x16xf32> to vector<32x16xf32>
    %5 = arith.addf %2, %4 : vector<32x16xf32>
    %cst_5 = arith.constant 0.000000e+00 : f32
    %6 = vector.broadcast %cst_5 : f32 to vector<32x16xf32>
    %7 = arith.maximumf %5, %6 : vector<32x16xf32>
    %c0_6 = arith.constant 0 : index
    %c0_7 = arith.constant 0 : index
    %8 = vector.load %arg3[%c0_6, %c0_7] : memref<1x16xf32, #tpu.memory_space<vmem>>, vector<1x16xf32>
    %c0_8 = arith.constant 0 : index
    %c0_9 = arith.constant 0 : index
    %9 = vector.load %arg4[%c0_8, %c0_9] : memref<1x16xf32, #tpu.memory_space<vmem>>, vector<1x16xf32>
    %cst_10 = arith.constant dense<0.000000e+00> : vector<32xf32>
    %10 = vector.multi_reduction <add>, %7, %cst_10 [1] : vector<32x16xf32> to vector<32xf32>
    %11 = vector.shape_cast %10 : vector<32xf32> to vector<32x1xf32>
    %cst_11 = arith.constant 1.600000e+01 : f32
    %12 = vector.broadcast %cst_11 : f32 to vector<32x1xf32>
    %13 = arith.divf %11, %12 : vector<32x1xf32>
    %14 = vector.broadcast %13 : vector<32x1xf32> to vector<32x16xf32>
    %15 = arith.subf %7, %14 : vector<32x16xf32>
    %16 = arith.mulf %15, %15 : vector<32x16xf32>
    %cst_12 = arith.constant dense<0.000000e+00> : vector<32xf32>
    %17 = vector.multi_reduction <add>, %16, %cst_12 [1] : vector<32x16xf32> to vector<32xf32>
    %18 = vector.shape_cast %17 : vector<32xf32> to vector<32x1xf32>
    %cst_13 = arith.constant 1.600000e+01 : f32
    %19 = vector.broadcast %cst_13 : f32 to vector<32x1xf32>
    %20 = arith.divf %18, %19 : vector<32x1xf32>
    %21 = vector.broadcast %13 : vector<32x1xf32> to vector<32x16xf32>
    %22 = arith.subf %7, %21 : vector<32x16xf32>
    %cst_14 = arith.constant 9.99999974E-6 : f32
    %23 = vector.broadcast %cst_14 : f32 to vector<32x1xf32>
    %24 = arith.addf %20, %23 : vector<32x1xf32>
    %25 = math.rsqrt %24 : vector<32x1xf32>
    %26 = vector.broadcast %25 : vector<32x1xf32> to vector<32x16xf32>
    %27 = arith.mulf %22, %26 : vector<32x16xf32>
    %28 = vector.broadcast %8 : vector<1x16xf32> to vector<32x16xf32>
    %29 = arith.mulf %27, %28 : vector<32x16xf32>
    %30 = vector.broadcast %9 : vector<1x16xf32> to vector<32x16xf32>
    %31 = arith.addf %29, %30 : vector<32x16xf32>
    %c0_15 = arith.constant 0 : index
    %c0_16 = arith.constant 0 : index
    %c0_17 = arith.constant 0 : index
    %32 = vector.load %arg5[%c0_15, %c0_16, %c0_17] : memref<3x16x32xf32, #tpu.memory_space<vmem>>, vector<1x16x32xf32>
    %33 = vector.shape_cast %32 : vector<1x16x32xf32> to vector<16x32xf32>
    %cst_18 = arith.constant dense<0.000000e+00> : vector<32x32xf32>
    %34 = tpu.matmul %31, %33, %cst_18 {dimension_numbers = #tpu.dot_dimension_numbers<[1], [0], [0], [1], [0, 0, 1, 1], [], []>} : vector<32x16xf32>, vector<16x32xf32>, vector<32x32xf32> -> vector<32x32xf32>
    %c0_19 = arith.constant 0 : index
    %c0_20 = arith.constant 0 : index
    %c0_21 = arith.constant 0 : index
    %35 = vector.load %arg7[%c0_19, %c0_20, %c0_21] : memref<3x1x32xf32, #tpu.memory_space<vmem>>, vector<1x1x32xf32>
    %36 = vector.shape_cast %35 : vector<1x1x32xf32> to vector<1x32xf32>
    %37 = vector.broadcast %36 : vector<1x32xf32> to vector<32x32xf32>
    %38 = arith.addf %34, %37 : vector<32x32xf32>
    %c1 = arith.constant 1 : index
    %c0_22 = arith.constant 0 : index
    %c0_23 = arith.constant 0 : index
    %39 = vector.load %arg5[%c1, %c0_22, %c0_23] : memref<3x16x32xf32, #tpu.memory_space<vmem>>, vector<1x16x32xf32>
    %40 = vector.shape_cast %39 : vector<1x16x32xf32> to vector<16x32xf32>
    %cst_24 = arith.constant dense<0.000000e+00> : vector<32x32xf32>
    %41 = tpu.matmul %31, %40, %cst_24 {dimension_numbers = #tpu.dot_dimension_numbers<[1], [0], [0], [1], [0, 0, 1, 1], [], []>} : vector<32x16xf32>, vector<16x32xf32>, vector<32x32xf32> -> vector<32x32xf32>
    %c1_25 = arith.constant 1 : index
    %c0_26 = arith.constant 0 : index
    %c0_27 = arith.constant 0 : index
    %42 = vector.load %arg7[%c1_25, %c0_26, %c0_27] : memref<3x1x32xf32, #tpu.memory_space<vmem>>, vector<1x1x32xf32>
    %43 = vector.shape_cast %42 : vector<1x1x32xf32> to vector<1x32xf32>
    %44 = vector.broadcast %43 : vector<1x32xf32> to vector<32x32xf32>
    %45 = arith.addf %41, %44 : vector<32x32xf32>
    %c2 = arith.constant 2 : index
    %c0_28 = arith.constant 0 : index
    %c0_29 = arith.constant 0 : index
    %46 = vector.load %arg5[%c2, %c0_28, %c0_29] : memref<3x16x32xf32, #tpu.memory_space<vmem>>, vector<1x16x32xf32>
    %47 = vector.shape_cast %46 : vector<1x16x32xf32> to vector<16x32xf32>
    %cst_30 = arith.constant dense<0.000000e+00> : vector<32x32xf32>
    %48 = tpu.matmul %31, %47, %cst_30 {dimension_numbers = #tpu.dot_dimension_numbers<[1], [0], [0], [1], [0, 0, 1, 1], [], []>} : vector<32x16xf32>, vector<16x32xf32>, vector<32x32xf32> -> vector<32x32xf32>
    %c2_31 = arith.constant 2 : index
    %c0_32 = arith.constant 0 : index
    %c0_33 = arith.constant 0 : index
    %49 = vector.load %arg7[%c2_31, %c0_32, %c0_33] : memref<3x1x32xf32, #tpu.memory_space<vmem>>, vector<1x1x32xf32>
    %50 = vector.shape_cast %49 : vector<1x1x32xf32> to vector<1x32xf32>
    %51 = vector.broadcast %50 : vector<1x32xf32> to vector<32x32xf32>
    %52 = arith.addf %48, %51 : vector<32x32xf32>
    %c0_34 = arith.constant 0 : index
    %c0_35 = arith.constant 0 : index
    %c0_36 = arith.constant 0 : index
    %53 = vector.load %arg6[%c0_34, %c0_35, %c0_36] : memref<3x32x32xf32, #tpu.memory_space<vmem>>, vector<1x32x32xf32>
    %54 = vector.shape_cast %53 : vector<1x32x32xf32> to vector<32x32xf32>
    %c1_37 = arith.constant 1 : index
    %c0_38 = arith.constant 0 : index
    %c0_39 = arith.constant 0 : index
    %55 = vector.load %arg6[%c1_37, %c0_38, %c0_39] : memref<3x32x32xf32, #tpu.memory_space<vmem>>, vector<1x32x32xf32>
    %56 = vector.shape_cast %55 : vector<1x32x32xf32> to vector<32x32xf32>
    %c2_40 = arith.constant 2 : index
    %c0_41 = arith.constant 0 : index
    %c0_42 = arith.constant 0 : index
    %57 = vector.load %arg6[%c2_40, %c0_41, %c0_42] : memref<3x32x32xf32, #tpu.memory_space<vmem>>, vector<1x32x32xf32>
    %58 = vector.shape_cast %57 : vector<1x32x32xf32> to vector<32x32xf32>
    %c0_43 = arith.constant 0 : index
    %c0_44 = arith.constant 0 : index
    %c0_45 = arith.constant 0 : index
    %59 = vector.load %arg8[%c0_43, %c0_44, %c0_45] : memref<3x1x32xf32, #tpu.memory_space<vmem>>, vector<1x1x32xf32>
    %60 = vector.shape_cast %59 : vector<1x1x32xf32> to vector<1x32xf32>
    %61 = vector.shape_cast %60 : vector<1x32xf32> to vector<1x32xf32>
    %62 = vector.broadcast %61 : vector<1x32xf32> to vector<2x32xf32>
    %c1_46 = arith.constant 1 : index
    %c0_47 = arith.constant 0 : index
    %c0_48 = arith.constant 0 : index
    %63 = vector.load %arg8[%c1_46, %c0_47, %c0_48] : memref<3x1x32xf32, #tpu.memory_space<vmem>>, vector<1x1x32xf32>
    %64 = vector.shape_cast %63 : vector<1x1x32xf32> to vector<1x32xf32>
    %65 = vector.shape_cast %64 : vector<1x32xf32> to vector<1x32xf32>
    %66 = vector.broadcast %65 : vector<1x32xf32> to vector<2x32xf32>
    %c2_49 = arith.constant 2 : index
    %c0_50 = arith.constant 0 : index
    %c0_51 = arith.constant 0 : index
    %67 = vector.load %arg8[%c2_49, %c0_50, %c0_51] : memref<3x1x32xf32, #tpu.memory_space<vmem>>, vector<1x1x32xf32>
    %68 = vector.shape_cast %67 : vector<1x1x32xf32> to vector<1x32xf32>
    %69 = vector.shape_cast %68 : vector<1x32xf32> to vector<1x32xf32>
    %70 = vector.broadcast %69 : vector<1x32xf32> to vector<2x32xf32>
    %cst_52 = arith.constant 0.000000e+00 : f32
    %71 = vector.broadcast %cst_52 : f32 to vector<2x32xf32>
    %cst_53 = arith.constant dense<0.000000e+00> : vector<2x32xf32>
    %72 = tpu.matmul %71, %54, %cst_53 {dimension_numbers = #tpu.dot_dimension_numbers<[1], [0], [0], [1], [0, 0, 1, 1], [], []>} : vector<2x32xf32>, vector<32x32xf32>, vector<2x32xf32> -> vector<2x32xf32>
    %73 = arith.addf %72, %62 : vector<2x32xf32>
    %cst_54 = arith.constant dense<0.000000e+00> : vector<2x32xf32>
    %74 = tpu.matmul %71, %56, %cst_54 {dimension_numbers = #tpu.dot_dimension_numbers<[1], [0], [0], [1], [0, 0, 1, 1], [], []>} : vector<2x32xf32>, vector<32x32xf32>, vector<2x32xf32> -> vector<2x32xf32>
    %75 = arith.addf %74, %66 : vector<2x32xf32>
    %cst_55 = arith.constant dense<0.000000e+00> : vector<2x32xf32>
    %76 = tpu.matmul %71, %58, %cst_55 {dimension_numbers = #tpu.dot_dimension_numbers<[1], [0], [0], [1], [0, 0, 1, 1], [], []>} : vector<2x32xf32>, vector<32x32xf32>, vector<2x32xf32> -> vector<2x32xf32>
    %77 = arith.addf %76, %70 : vector<2x32xf32>
    %78 = vector.extract_strided_slice %38 {offsets = [0, 0], sizes = [2, 32], strides = [1, 1]} : vector<32x32xf32> to vector<2x32xf32>
    %79 = arith.addf %78, %73 : vector<2x32xf32>
    %80 = arith.negf %79 : vector<2x32xf32>
    %81 = math.exp %80 : vector<2x32xf32>
    %cst_56 = arith.constant 1.000000e+00 : f32
    %82 = vector.broadcast %cst_56 : f32 to vector<2x32xf32>
    %83 = arith.addf %82, %81 : vector<2x32xf32>
    %84 = arith.divf %82, %83 : vector<2x32xf32>
    %85 = vector.extract_strided_slice %45 {offsets = [0, 0], sizes = [2, 32], strides = [1, 1]} : vector<32x32xf32> to vector<2x32xf32>
    %86 = arith.addf %85, %75 : vector<2x32xf32>
    %87 = arith.negf %86 : vector<2x32xf32>
    %88 = math.exp %87 : vector<2x32xf32>
    %cst_57 = arith.constant 1.000000e+00 : f32
    %89 = vector.broadcast %cst_57 : f32 to vector<2x32xf32>
    %90 = arith.addf %89, %88 : vector<2x32xf32>
    %91 = arith.divf %89, %90 : vector<2x32xf32>
    %92 = vector.extract_strided_slice %52 {offsets = [0, 0], sizes = [2, 32], strides = [1, 1]} : vector<32x32xf32> to vector<2x32xf32>
    %93 = arith.mulf %84, %77 : vector<2x32xf32>
    %94 = arith.addf %92, %93 : vector<2x32xf32>
    %95 = math.tanh %94 : vector<2x32xf32>
    %cst_58 = arith.constant 1.000000e+00 : f32
    %96 = vector.broadcast %cst_58 : f32 to vector<2x32xf32>
    %97 = arith.subf %96, %91 : vector<2x32xf32>
    %98 = arith.mulf %97, %95 : vector<2x32xf32>
    %99 = arith.mulf %91, %71 : vector<2x32xf32>
    %100 = arith.addf %98, %99 : vector<2x32xf32>
    %c0_59 = arith.constant 0 : index
    %c0_60 = arith.constant 0 : index
    %c0_61 = arith.constant 0 : index
    %101 = vector.load %arg20[%c0_59, %c0_60, %c0_61] : memref<16x2x32xf32, #tpu.memory_space<vmem>>, vector<1x2x32xf32>
    %102 = vector.shape_cast %101 : vector<1x2x32xf32> to vector<2x32xf32>
    %103 = vector.shape_cast %100 : vector<2x32xf32> to vector<1x2x32xf32>
    tpu.vector_store %arg20[%c0_59, %c0_60, %c0_61], %103 {strides = array<i32>} : memref<16x2x32xf32, #tpu.memory_space<vmem>>, vector<1x2x32xf32>,
    %cst_62 = arith.constant dense<0.000000e+00> : vector<2x32xf32>
    %104 = tpu.matmul %100, %54, %cst_62 {dimension_numbers = #tpu.dot_dimension_numbers<[1], [0], [0], [1], [0, 0, 1, 1], [], []>} : vector<2x32xf32>, vector<32x32xf32>, vector<2x32xf32> -> vector<2x32xf32>
    %105 = arith.addf %104, %62 : vector<2x32xf32>
    %cst_63 = arith.constant dense<0.000000e+00> : vector<2x32xf32>
    %106 = tpu.matmul %100, %56, %cst_63 {dimension_numbers = #tpu.dot_dimension_numbers<[1], [0], [0], [1], [0, 0, 1, 1], [], []>} : vector<2x32xf32>, vector<32x32xf32>, vector<2x32xf32> -> vector<2x32xf32>
    %107 = arith.addf %106, %66 : vector<2x32xf32>
    %cst_64 = arith.constant dense<0.000000e+00> : vector<2x32xf32>
    %108 = tpu.matmul %100, %58, %cst_64 {dimension_numbers = #tpu.dot_dimension_numbers<[1], [0], [0], [1], [0, 0, 1, 1], [], []>} : vector<2x32xf32>, vector<32x32xf32>, vector<2x32xf32> -> vector<2x32xf32>
    %109 = arith.addf %108, %70 : vector<2x32xf32>
    %110 = vector.extract_strided_slice %38 {offsets = [2, 0], sizes = [2, 32], strides = [1, 1]} : vector<32x32xf32> to vector<2x32xf32>
    %111 = arith.addf %110, %105 : vector<2x32xf32>
    %112 = arith.negf %111 : vector<2x32xf32>
    %113 = math.exp %112 : vector<2x32xf32>
    %cst_65 = arith.constant 1.000000e+00 : f32
    %114 = vector.broadcast %cst_65 : f32 to vector<2x32xf32>
    %115 = arith.addf %114, %113 : vector<2x32xf32>
    %116 = arith.divf %114, %115 : vector<2x32xf32>
    %117 = vector.extract_strided_slice %45 {offsets = [2, 0], sizes = [2, 32], strides = [1, 1]} : vector<32x32xf32> to vector<2x32xf32>
    %118 = arith.addf %117, %107 : vector<2x32xf32>
    %119 = arith.negf %118 : vector<2x32xf32>
    %120 = math.exp %119 : vector<2x32xf32>
    %cst_66 = arith.constant 1.000000e+00 : f32
    %121 = vector.broadcast %cst_66 : f32 to vector<2x32xf32>
    %122 = arith.addf %121, %120 : vector<2x32xf32>
    %123 = arith.divf %121, %122 : vector<2x32xf32>
    %124 = vector.extract_strided_slice %52 {offsets = [2, 0], sizes = [2, 32], strides = [1, 1]} : vector<32x32xf32> to vector<2x32xf32>
    %125 = arith.mulf %116, %109 : vector<2x32xf32>
    %126 = arith.addf %124, %125 : vector<2x32xf32>
    %127 = math.tanh %126 : vector<2x32xf32>
    %cst_67 = arith.constant 1.000000e+00 : f32
    %128 = vector.broadcast %cst_67 : f32 to vector<2x32xf32>
    %129 = arith.subf %128, %123 : vector<2x32xf32>
    %130 = arith.mulf %129, %127 : vector<2x32xf32>
    %131 = arith.mulf %123, %100 : vector<2x32xf32>
    %132 = arith.addf %130, %131 : vector<2x32xf32>
    %c1_68 = arith.constant 1 : index
    %c0_69 = arith.constant 0 : index
    %c0_70 = arith.constant 0 : index
    %133 = vector.load %arg20[%c1_68, %c0_69, %c0_70] : memref<16x2x32xf32, #tpu.memory_space<vmem>>, vector<1x2x32xf32>
    %134 = vector.shape_cast %133 : vector<1x2x32xf32> to vector<2x32xf32>
    %135 = vector.shape_cast %132 : vector<2x32xf32> to vector<1x2x32xf32>
    tpu.vector_store %arg20[%c1_68, %c0_69, %c0_70], %135 {strides = array<i32>} : memref<16x2x32xf32, #tpu.memory_space<vmem>>, vector<1x2x32xf32>,
    %cst_71 = arith.constant dense<0.000000e+00> : vector<2x32xf32>
    %136 = tpu.matmul %132, %54, %cst_71 {dimension_numbers = #tpu.dot_dimension_numbers<[1], [0], [0], [1], [0, 0, 1, 1], [], []>} : vector<2x32xf32>, vector<32x32xf32>, vector<2x32xf32> -> vector<2x32xf32>
    %137 = arith.addf %136, %62 : vector<2x32xf32>
    %cst_72 = arith.constant dense<0.000000e+00> : vector<2x32xf32>
    %138 = tpu.matmul %132, %56, %cst_72 {dimension_numbers = #tpu.dot_dimension_numbers<[1], [0], [0], [1], [0, 0, 1, 1], [], []>} : vector<2x32xf32>, vector<32x32xf32>, vector<2x32xf32> -> vector<2x32xf32>
    %139 = arith.addf %138, %66 : vector<2x32xf32>
    %cst_73 = arith.constant dense<0.000000e+00> : vector<2x32xf32>
    %140 = tpu.matmul %132, %58, %cst_73 {dimension_numbers = #tpu.dot_dimension_numbers<[1], [0], [0], [1], [0, 0, 1, 1], [], []>} : vector<2x32xf32>, vector<32x32xf32>, vector<2x32xf32> -> vector<2x32xf32>
    %141 = arith.addf %140, %70 : vector<2x32xf32>
    %142 = vector.extract_strided_slice %38 {offsets = [4, 0], sizes = [2, 32], strides = [1, 1]} : vector<32x32xf32> to vector<2x32xf32>
    %143 = arith.addf %142, %137 : vector<2x32xf32>
    %144 = arith.negf %143 : vector<2x32xf32>
    %145 = math.exp %144 : vector<2x32xf32>
    %cst_74 = arith.constant 1.000000e+00 : f32
    %146 = vector.broadcast %cst_74 : f32 to vector<2x32xf32>
    %147 = arith.addf %146, %145 : vector<2x32xf32>
    %148 = arith.divf %146, %147 : vector<2x32xf32>
    %149 = vector.extract_strided_slice %45 {offsets = [4, 0], sizes = [2, 32], strides = [1, 1]} : vector<32x32xf32> to vector<2x32xf32>
    %150 = arith.addf %149, %139 : vector<2x32xf32>
    %151 = arith.negf %150 : vector<2x32xf32>
    %152 = math.exp %151 : vector<2x32xf32>
    %cst_75 = arith.constant 1.000000e+00 : f32
    %153 = vector.broadcast %cst_75 : f32 to vector<2x32xf32>
    %154 = arith.addf %153, %152 : vector<2x32xf32>
    %155 = arith.divf %153, %154 : vector<2x32xf32>
    %156 = vector.extract_strided_slice %52 {offsets = [4, 0], sizes = [2, 32], strides = [1, 1]} : vector<32x32xf32> to vector<2x32xf32>
    %157 = arith.mulf %148, %141 : vector<2x32xf32>
    %158 = arith.addf %156, %157 : vector<2x32xf32>
    %159 = math.tanh %158 : vector<2x32xf32>
    %cst_76 = arith.constant 1.000000e+00 : f32
    %160 = vector.broadcast %cst_76 : f32 to vector<2x32xf32>
    %161 = arith.subf %160, %155 : vector<2x32xf32>
    %162 = arith.mulf %161, %159 : vector<2x32xf32>
    %163 = arith.mulf %155, %132 : vector<2x32xf32>
    %164 = arith.addf %162, %163 : vector<2x32xf32>
    %c2_77 = arith.constant 2 : index
    %c0_78 = arith.constant 0 : index
    %c0_79 = arith.constant 0 : index
    %165 = vector.load %arg20[%c2_77, %c0_78, %c0_79] : memref<16x2x32xf32, #tpu.memory_space<vmem>>, vector<1x2x32xf32>
    %166 = vector.shape_cast %165 : vector<1x2x32xf32> to vector<2x32xf32>
    %167 = vector.shape_cast %164 : vector<2x32xf32> to vector<1x2x32xf32>
    tpu.vector_store %arg20[%c2_77, %c0_78, %c0_79], %167 {strides = array<i32>} : memref<16x2x32xf32, #tpu.memory_space<vmem>>, vector<1x2x32xf32>,
    %cst_80 = arith.constant dense<0.000000e+00> : vector<2x32xf32>
    %168 = tpu.matmul %164, %54, %cst_80 {dimension_numbers = #tpu.dot_dimension_numbers<[1], [0], [0], [1], [0, 0, 1, 1], [], []>} : vector<2x32xf32>, vector<32x32xf32>, vector<2x32xf32> -> vector<2x32xf32>
    %169 = arith.addf %168, %62 : vector<2x32xf32>
    %cst_81 = arith.constant dense<0.000000e+00> : vector<2x32xf32>
    %170 = tpu.matmul %164, %56, %cst_81 {dimension_numbers = #tpu.dot_dimension_numbers<[1], [0], [0], [1], [0, 0, 1, 1], [], []>} : vector<2x32xf32>, vector<32x32xf32>, vector<2x32xf32> -> vector<2x32xf32>
    %171 = arith.addf %170, %66 : vector<2x32xf32>
    %cst_82 = arith.constant dense<0.000000e+00> : vector<2x32xf32>
    %172 = tpu.matmul %164, %58, %cst_82 {dimension_numbers = #tpu.dot_dimension_numbers<[1], [0], [0], [1], [0, 0, 1, 1], [], []>} : vector<2x32xf32>, vector<32x32xf32>, vector<2x32xf32> -> vector<2x32xf32>
    %173 = arith.addf %172, %70 : vector<2x32xf32>
    %174 = vector.extract_strided_slice %38 {offsets = [6, 0], sizes = [2, 32], strides = [1, 1]} : vector<32x32xf32> to vector<2x32xf32>
    %175 = arith.addf %174, %169 : vector<2x32xf32>
    %176 = arith.negf %175 : vector<2x32xf32>
    %177 = math.exp %176 : vector<2x32xf32>
    %cst_83 = arith.constant 1.000000e+00 : f32
    %178 = vector.broadcast %cst_83 : f32 to vector<2x32xf32>
    %179 = arith.addf %178, %177 : vector<2x32xf32>
    %180 = arith.divf %178, %179 : vector<2x32xf32>
    %181 = vector.extract_strided_slice %45 {offsets = [6, 0], sizes = [2, 32], strides = [1, 1]} : vector<32x32xf32> to vector<2x32xf32>
    %182 = arith.addf %181, %171 : vector<2x32xf32>
    %183 = arith.negf %182 : vector<2x32xf32>
    %184 = math.exp %183 : vector<2x32xf32>
    %cst_84 = arith.constant 1.000000e+00 : f32
    %185 = vector.broadcast %cst_84 : f32 to vector<2x32xf32>
    %186 = arith.addf %185, %184 : vector<2x32xf32>
    %187 = arith.divf %185, %186 : vector<2x32xf32>
    %188 = vector.extract_strided_slice %52 {offsets = [6, 0], sizes = [2, 32], strides = [1, 1]} : vector<32x32xf32> to vector<2x32xf32>
    %189 = arith.mulf %180, %173 : vector<2x32xf32>
    %190 = arith.addf %188, %189 : vector<2x32xf32>
    %191 = math.tanh %190 : vector<2x32xf32>
    %cst_85 = arith.constant 1.000000e+00 : f32
    %192 = vector.broadcast %cst_85 : f32 to vector<2x32xf32>
    %193 = arith.subf %192, %187 : vector<2x32xf32>
    %194 = arith.mulf %193, %191 : vector<2x32xf32>
    %195 = arith.mulf %187, %164 : vector<2x32xf32>
    %196 = arith.addf %194, %195 : vector<2x32xf32>
    %c3 = arith.constant 3 : index
    %c0_86 = arith.constant 0 : index
    %c0_87 = arith.constant 0 : index
    %197 = vector.load %arg20[%c3, %c0_86, %c0_87] : memref<16x2x32xf32, #tpu.memory_space<vmem>>, vector<1x2x32xf32>
    %198 = vector.shape_cast %197 : vector<1x2x32xf32> to vector<2x32xf32>
    %199 = vector.shape_cast %196 : vector<2x32xf32> to vector<1x2x32xf32>
    tpu.vector_store %arg20[%c3, %c0_86, %c0_87], %199 {strides = array<i32>} : memref<16x2x32xf32, #tpu.memory_space<vmem>>, vector<1x2x32xf32>,
    %cst_88 = arith.constant dense<0.000000e+00> : vector<2x32xf32>
    %200 = tpu.matmul %196, %54, %cst_88 {dimension_numbers = #tpu.dot_dimension_numbers<[1], [0], [0], [1], [0, 0, 1, 1], [], []>} : vector<2x32xf32>, vector<32x32xf32>, vector<2x32xf32> -> vector<2x32xf32>
    %201 = arith.addf %200, %62 : vector<2x32xf32>
    %cst_89 = arith.constant dense<0.000000e+00> : vector<2x32xf32>
    %202 = tpu.matmul %196, %56, %cst_89 {dimension_numbers = #tpu.dot_dimension_numbers<[1], [0], [0], [1], [0, 0, 1, 1], [], []>} : vector<2x32xf32>, vector<32x32xf32>, vector<2x32xf32> -> vector<2x32xf32>
    %203 = arith.addf %202, %66 : vector<2x32xf32>
    %cst_90 = arith.constant dense<0.000000e+00> : vector<2x32xf32>
    %204 = tpu.matmul %196, %58, %cst_90 {dimension_numbers = #tpu.dot_dimension_numbers<[1], [0], [0], [1], [0, 0, 1, 1], [], []>} : vector<2x32xf32>, vector<32x32xf32>, vector<2x32xf32> -> vector<2x32xf32>
    %205 = arith.addf %204, %70 : vector<2x32xf32>
    %206 = vector.extract_strided_slice %38 {offsets = [8, 0], sizes = [2, 32], strides = [1, 1]} : vector<32x32xf32> to vector<2x32xf32>
    %207 = arith.addf %206, %201 : vector<2x32xf32>
    %208 = arith.negf %207 : vector<2x32xf32>
    %209 = math.exp %208 : vector<2x32xf32>
    %cst_91 = arith.constant 1.000000e+00 : f32
    %210 = vector.broadcast %cst_91 : f32 to vector<2x32xf32>
    %211 = arith.addf %210, %209 : vector<2x32xf32>
    %212 = arith.divf %210, %211 : vector<2x32xf32>
    %213 = vector.extract_strided_slice %45 {offsets = [8, 0], sizes = [2, 32], strides = [1, 1]} : vector<32x32xf32> to vector<2x32xf32>
    %214 = arith.addf %213, %203 : vector<2x32xf32>
    %215 = arith.negf %214 : vector<2x32xf32>
    %216 = math.exp %215 : vector<2x32xf32>
    %cst_92 = arith.constant 1.000000e+00 : f32
    %217 = vector.broadcast %cst_92 : f32 to vector<2x32xf32>
    %218 = arith.addf %217, %216 : vector<2x32xf32>
    %219 = arith.divf %217, %218 : vector<2x32xf32>
    %220 = vector.extract_strided_slice %52 {offsets = [8, 0], sizes = [2, 32], strides = [1, 1]} : vector<32x32xf32> to vector<2x32xf32>
    %221 = arith.mulf %212, %205 : vector<2x32xf32>
    %222 = arith.addf %220, %221 : vector<2x32xf32>
    %223 = math.tanh %222 : vector<2x32xf32>
    %cst_93 = arith.constant 1.000000e+00 : f32
    %224 = vector.broadcast %cst_93 : f32 to vector<2x32xf32>
    %225 = arith.subf %224, %219 : vector<2x32xf32>
    %226 = arith.mulf %225, %223 : vector<2x32xf32>
    %227 = arith.mulf %219, %196 : vector<2x32xf32>
    %228 = arith.addf %226, %227 : vector<2x32xf32>
    %c4 = arith.constant 4 : index
    %c0_94 = arith.constant 0 : index
    %c0_95 = arith.constant 0 : index
    %229 = vector.load %arg20[%c4, %c0_94, %c0_95] : memref<16x2x32xf32, #tpu.memory_space<vmem>>, vector<1x2x32xf32>
    %230 = vector.shape_cast %229 : vector<1x2x32xf32> to vector<2x32xf32>
    %231 = vector.shape_cast %228 : vector<2x32xf32> to vector<1x2x32xf32>
    tpu.vector_store %arg20[%c4, %c0_94, %c0_95], %231 {strides = array<i32>} : memref<16x2x32xf32, #tpu.memory_space<vmem>>, vector<1x2x32xf32>,
    %cst_96 = arith.constant dense<0.000000e+00> : vector<2x32xf32>
    %232 = tpu.matmul %228, %54, %cst_96 {dimension_numbers = #tpu.dot_dimension_numbers<[1], [0], [0], [1], [0, 0, 1, 1], [], []>} : vector<2x32xf32>, vector<32x32xf32>, vector<2x32xf32> -> vector<2x32xf32>
    %233 = arith.addf %232, %62 : vector<2x32xf32>
    %cst_97 = arith.constant dense<0.000000e+00> : vector<2x32xf32>
    %234 = tpu.matmul %228, %56, %cst_97 {dimension_numbers = #tpu.dot_dimension_numbers<[1], [0], [0], [1], [0, 0, 1, 1], [], []>} : vector<2x32xf32>, vector<32x32xf32>, vector<2x32xf32> -> vector<2x32xf32>
    %235 = arith.addf %234, %66 : vector<2x32xf32>
    %cst_98 = arith.constant dense<0.000000e+00> : vector<2x32xf32>
    %236 = tpu.matmul %228, %58, %cst_98 {dimension_numbers = #tpu.dot_dimension_numbers<[1], [0], [0], [1], [0, 0, 1, 1], [], []>} : vector<2x32xf32>, vector<32x32xf32>, vector<2x32xf32> -> vector<2x32xf32>
    %237 = arith.addf %236, %70 : vector<2x32xf32>
    %238 = vector.extract_strided_slice %38 {offsets = [10, 0], sizes = [2, 32], strides = [1, 1]} : vector<32x32xf32> to vector<2x32xf32>
    %239 = arith.addf %238, %233 : vector<2x32xf32>
    %240 = arith.negf %239 : vector<2x32xf32>
    %241 = math.exp %240 : vector<2x32xf32>
    %cst_99 = arith.constant 1.000000e+00 : f32
    %242 = vector.broadcast %cst_99 : f32 to vector<2x32xf32>
    %243 = arith.addf %242, %241 : vector<2x32xf32>
    %244 = arith.divf %242, %243 : vector<2x32xf32>
    %245 = vector.extract_strided_slice %45 {offsets = [10, 0], sizes = [2, 32], strides = [1, 1]} : vector<32x32xf32> to vector<2x32xf32>
    %246 = arith.addf %245, %235 : vector<2x32xf32>
    %247 = arith.negf %246 : vector<2x32xf32>
    %248 = math.exp %247 : vector<2x32xf32>
    %cst_100 = arith.constant 1.000000e+00 : f32
    %249 = vector.broadcast %cst_100 : f32 to vector<2x32xf32>
    %250 = arith.addf %249, %248 : vector<2x32xf32>
    %251 = arith.divf %249, %250 : vector<2x32xf32>
    %252 = vector.extract_strided_slice %52 {offsets = [10, 0], sizes = [2, 32], strides = [1, 1]} : vector<32x32xf32> to vector<2x32xf32>
    %253 = arith.mulf %244, %237 : vector<2x32xf32>
    %254 = arith.addf %252, %253 : vector<2x32xf32>
    %255 = math.tanh %254 : vector<2x32xf32>
    %cst_101 = arith.constant 1.000000e+00 : f32
    %256 = vector.broadcast %cst_101 : f32 to vector<2x32xf32>
    %257 = arith.subf %256, %251 : vector<2x32xf32>
    %258 = arith.mulf %257, %255 : vector<2x32xf32>
    %259 = arith.mulf %251, %228 : vector<2x32xf32>
    %260 = arith.addf %258, %259 : vector<2x32xf32>
    %c5 = arith.constant 5 : index
    %c0_102 = arith.constant 0 : index
    %c0_103 = arith.constant 0 : index
    %261 = vector.load %arg20[%c5, %c0_102, %c0_103] : memref<16x2x32xf32, #tpu.memory_space<vmem>>, vector<1x2x32xf32>
    %262 = vector.shape_cast %261 : vector<1x2x32xf32> to vector<2x32xf32>
    %263 = vector.shape_cast %260 : vector<2x32xf32> to vector<1x2x32xf32>
    tpu.vector_store %arg20[%c5, %c0_102, %c0_103], %263 {strides = array<i32>} : memref<16x2x32xf32, #tpu.memory_space<vmem>>, vector<1x2x32xf32>,
    %cst_104 = arith.constant dense<0.000000e+00> : vector<2x32xf32>
    %264 = tpu.matmul %260, %54, %cst_104 {dimension_numbers = #tpu.dot_dimension_numbers<[1], [0], [0], [1], [0, 0, 1, 1], [], []>} : vector<2x32xf32>, vector<32x32xf32>, vector<2x32xf32> -> vector<2x32xf32>
    %265 = arith.addf %264, %62 : vector<2x32xf32>
    %cst_105 = arith.constant dense<0.000000e+00> : vector<2x32xf32>
    %266 = tpu.matmul %260, %56, %cst_105 {dimension_numbers = #tpu.dot_dimension_numbers<[1], [0], [0], [1], [0, 0, 1, 1], [], []>} : vector<2x32xf32>, vector<32x32xf32>, vector<2x32xf32> -> vector<2x32xf32>
    %267 = arith.addf %266, %66 : vector<2x32xf32>
    %cst_106 = arith.constant dense<0.000000e+00> : vector<2x32xf32>
    %268 = tpu.matmul %260, %58, %cst_106 {dimension_numbers = #tpu.dot_dimension_numbers<[1], [0], [0], [1], [0, 0, 1, 1], [], []>} : vector<2x32xf32>, vector<32x32xf32>, vector<2x32xf32> -> vector<2x32xf32>
    %269 = arith.addf %268, %70 : vector<2x32xf32>
    %270 = vector.extract_strided_slice %38 {offsets = [12, 0], sizes = [2, 32], strides = [1, 1]} : vector<32x32xf32> to vector<2x32xf32>
    %271 = arith.addf %270, %265 : vector<2x32xf32>
    %272 = arith.negf %271 : vector<2x32xf32>
    %273 = math.exp %272 : vector<2x32xf32>
    %cst_107 = arith.constant 1.000000e+00 : f32
    %274 = vector.broadcast %cst_107 : f32 to vector<2x32xf32>
    %275 = arith.addf %274, %273 : vector<2x32xf32>
    %276 = arith.divf %274, %275 : vector<2x32xf32>
    %277 = vector.extract_strided_slice %45 {offsets = [12, 0], sizes = [2, 32], strides = [1, 1]} : vector<32x32xf32> to vector<2x32xf32>
    %278 = arith.addf %277, %267 : vector<2x32xf32>
    %279 = arith.negf %278 : vector<2x32xf32>
    %280 = math.exp %279 : vector<2x32xf32>
    %cst_108 = arith.constant 1.000000e+00 : f32
    %281 = vector.broadcast %cst_108 : f32 to vector<2x32xf32>
    %282 = arith.addf %281, %280 : vector<2x32xf32>
    %283 = arith.divf %281, %282 : vector<2x32xf32>
    %284 = vector.extract_strided_slice %52 {offsets = [12, 0], sizes = [2, 32], strides = [1, 1]} : vector<32x32xf32> to vector<2x32xf32>
    %285 = arith.mulf %276, %269 : vector<2x32xf32>
    %286 = arith.addf %284, %285 : vector<2x32xf32>
    %287 = math.tanh %286 : vector<2x32xf32>
    %cst_109 = arith.constant 1.000000e+00 : f32
    %288 = vector.broadcast %cst_109 : f32 to vector<2x32xf32>
    %289 = arith.subf %288, %283 : vector<2x32xf32>
    %290 = arith.mulf %289, %287 : vector<2x32xf32>
    %291 = arith.mulf %283, %260 : vector<2x32xf32>
    %292 = arith.addf %290, %291 : vector<2x32xf32>
    %c6 = arith.constant 6 : index
    %c0_110 = arith.constant 0 : index
    %c0_111 = arith.constant 0 : index
    %293 = vector.load %arg20[%c6, %c0_110, %c0_111] : memref<16x2x32xf32, #tpu.memory_space<vmem>>, vector<1x2x32xf32>
    %294 = vector.shape_cast %293 : vector<1x2x32xf32> to vector<2x32xf32>
    %295 = vector.shape_cast %292 : vector<2x32xf32> to vector<1x2x32xf32>
    tpu.vector_store %arg20[%c6, %c0_110, %c0_111], %295 {strides = array<i32>} : memref<16x2x32xf32, #tpu.memory_space<vmem>>, vector<1x2x32xf32>,
    %cst_112 = arith.constant dense<0.000000e+00> : vector<2x32xf32>
    %296 = tpu.matmul %292, %54, %cst_112 {dimension_numbers = #tpu.dot_dimension_numbers<[1], [0], [0], [1], [0, 0, 1, 1], [], []>} : vector<2x32xf32>, vector<32x32xf32>, vector<2x32xf32> -> vector<2x32xf32>
    %297 = arith.addf %296, %62 : vector<2x32xf32>
    %cst_113 = arith.constant dense<0.000000e+00> : vector<2x32xf32>
    %298 = tpu.matmul %292, %56, %cst_113 {dimension_numbers = #tpu.dot_dimension_numbers<[1], [0], [0], [1], [0, 0, 1, 1], [], []>} : vector<2x32xf32>, vector<32x32xf32>, vector<2x32xf32> -> vector<2x32xf32>
    %299 = arith.addf %298, %66 : vector<2x32xf32>
    %cst_114 = arith.constant dense<0.000000e+00> : vector<2x32xf32>
    %300 = tpu.matmul %292, %58, %cst_114 {dimension_numbers = #tpu.dot_dimension_numbers<[1], [0], [0], [1], [0, 0, 1, 1], [], []>} : vector<2x32xf32>, vector<32x32xf32>, vector<2x32xf32> -> vector<2x32xf32>
    %301 = arith.addf %300, %70 : vector<2x32xf32>
    %302 = vector.extract_strided_slice %38 {offsets = [14, 0], sizes = [2, 32], strides = [1, 1]} : vector<32x32xf32> to vector<2x32xf32>
    %303 = arith.addf %302, %297 : vector<2x32xf32>
    %304 = arith.negf %303 : vector<2x32xf32>
    %305 = math.exp %304 : vector<2x32xf32>
    %cst_115 = arith.constant 1.000000e+00 : f32
    %306 = vector.broadcast %cst_115 : f32 to vector<2x32xf32>
    %307 = arith.addf %306, %305 : vector<2x32xf32>
    %308 = arith.divf %306, %307 : vector<2x32xf32>
    %309 = vector.extract_strided_slice %45 {offsets = [14, 0], sizes = [2, 32], strides = [1, 1]} : vector<32x32xf32> to vector<2x32xf32>
    %310 = arith.addf %309, %299 : vector<2x32xf32>
    %311 = arith.negf %310 : vector<2x32xf32>
    %312 = math.exp %311 : vector<2x32xf32>
    %cst_116 = arith.constant 1.000000e+00 : f32
    %313 = vector.broadcast %cst_116 : f32 to vector<2x32xf32>
    %314 = arith.addf %313, %312 : vector<2x32xf32>
    %315 = arith.divf %313, %314 : vector<2x32xf32>
    %316 = vector.extract_strided_slice %52 {offsets = [14, 0], sizes = [2, 32], strides = [1, 1]} : vector<32x32xf32> to vector<2x32xf32>
    %317 = arith.mulf %308, %301 : vector<2x32xf32>
    %318 = arith.addf %316, %317 : vector<2x32xf32>
    %319 = math.tanh %318 : vector<2x32xf32>
    %cst_117 = arith.constant 1.000000e+00 : f32
    %320 = vector.broadcast %cst_117 : f32 to vector<2x32xf32>
    %321 = arith.subf %320, %315 : vector<2x32xf32>
    %322 = arith.mulf %321, %319 : vector<2x32xf32>
    %323 = arith.mulf %315, %292 : vector<2x32xf32>
    %324 = arith.addf %322, %323 : vector<2x32xf32>
    %c7 = arith.constant 7 : index
    %c0_118 = arith.constant 0 : index
    %c0_119 = arith.constant 0 : index
    %325 = vector.load %arg20[%c7, %c0_118, %c0_119] : memref<16x2x32xf32, #tpu.memory_space<vmem>>, vector<1x2x32xf32>
    %326 = vector.shape_cast %325 : vector<1x2x32xf32> to vector<2x32xf32>
    %327 = vector.shape_cast %324 : vector<2x32xf32> to vector<1x2x32xf32>
    tpu.vector_store %arg20[%c7, %c0_118, %c0_119], %327 {strides = array<i32>} : memref<16x2x32xf32, #tpu.memory_space<vmem>>, vector<1x2x32xf32>,
    %cst_120 = arith.constant dense<0.000000e+00> : vector<2x32xf32>
    %328 = tpu.matmul %324, %54, %cst_120 {dimension_numbers = #tpu.dot_dimension_numbers<[1], [0], [0], [1], [0, 0, 1, 1], [], []>} : vector<2x32xf32>, vector<32x32xf32>, vector<2x32xf32> -> vector<2x32xf32>
    %329 = arith.addf %328, %62 : vector<2x32xf32>
    %cst_121 = arith.constant dense<0.000000e+00> : vector<2x32xf32>
    %330 = tpu.matmul %324, %56, %cst_121 {dimension_numbers = #tpu.dot_dimension_numbers<[1], [0], [0], [1], [0, 0, 1, 1], [], []>} : vector<2x32xf32>, vector<32x32xf32>, vector<2x32xf32> -> vector<2x32xf32>
    %331 = arith.addf %330, %66 : vector<2x32xf32>
    %cst_122 = arith.constant dense<0.000000e+00> : vector<2x32xf32>
    %332 = tpu.matmul %324, %58, %cst_122 {dimension_numbers = #tpu.dot_dimension_numbers<[1], [0], [0], [1], [0, 0, 1, 1], [], []>} : vector<2x32xf32>, vector<32x32xf32>, vector<2x32xf32> -> vector<2x32xf32>
    %333 = arith.addf %332, %70 : vector<2x32xf32>
    %334 = vector.extract_strided_slice %38 {offsets = [16, 0], sizes = [2, 32], strides = [1, 1]} : vector<32x32xf32> to vector<2x32xf32>
    %335 = arith.addf %334, %329 : vector<2x32xf32>
    %336 = arith.negf %335 : vector<2x32xf32>
    %337 = math.exp %336 : vector<2x32xf32>
    %cst_123 = arith.constant 1.000000e+00 : f32
    %338 = vector.broadcast %cst_123 : f32 to vector<2x32xf32>
    %339 = arith.addf %338, %337 : vector<2x32xf32>
    %340 = arith.divf %338, %339 : vector<2x32xf32>
    %341 = vector.extract_strided_slice %45 {offsets = [16, 0], sizes = [2, 32], strides = [1, 1]} : vector<32x32xf32> to vector<2x32xf32>
    %342 = arith.addf %341, %331 : vector<2x32xf32>
    %343 = arith.negf %342 : vector<2x32xf32>
    %344 = math.exp %343 : vector<2x32xf32>
    %cst_124 = arith.constant 1.000000e+00 : f32
    %345 = vector.broadcast %cst_124 : f32 to vector<2x32xf32>
    %346 = arith.addf %345, %344 : vector<2x32xf32>
    %347 = arith.divf %345, %346 : vector<2x32xf32>
    %348 = vector.extract_strided_slice %52 {offsets = [16, 0], sizes = [2, 32], strides = [1, 1]} : vector<32x32xf32> to vector<2x32xf32>
    %349 = arith.mulf %340, %333 : vector<2x32xf32>
    %350 = arith.addf %348, %349 : vector<2x32xf32>
    %351 = math.tanh %350 : vector<2x32xf32>
    %cst_125 = arith.constant 1.000000e+00 : f32
    %352 = vector.broadcast %cst_125 : f32 to vector<2x32xf32>
    %353 = arith.subf %352, %347 : vector<2x32xf32>
    %354 = arith.mulf %353, %351 : vector<2x32xf32>
    %355 = arith.mulf %347, %324 : vector<2x32xf32>
    %356 = arith.addf %354, %355 : vector<2x32xf32>
    %c8 = arith.constant 8 : index
    %c0_126 = arith.constant 0 : index
    %c0_127 = arith.constant 0 : index
    %357 = vector.load %arg20[%c8, %c0_126, %c0_127] : memref<16x2x32xf32, #tpu.memory_space<vmem>>, vector<1x2x32xf32>
    %358 = vector.shape_cast %357 : vector<1x2x32xf32> to vector<2x32xf32>
    %359 = vector.shape_cast %356 : vector<2x32xf32> to vector<1x2x32xf32>
    tpu.vector_store %arg20[%c8, %c0_126, %c0_127], %359 {strides = array<i32>} : memref<16x2x32xf32, #tpu.memory_space<vmem>>, vector<1x2x32xf32>,
    %cst_128 = arith.constant dense<0.000000e+00> : vector<2x32xf32>
    %360 = tpu.matmul %356, %54, %cst_128 {dimension_numbers = #tpu.dot_dimension_numbers<[1], [0], [0], [1], [0, 0, 1, 1], [], []>} : vector<2x32xf32>, vector<32x32xf32>, vector<2x32xf32> -> vector<2x32xf32>
    %361 = arith.addf %360, %62 : vector<2x32xf32>
    %cst_129 = arith.constant dense<0.000000e+00> : vector<2x32xf32>
    %362 = tpu.matmul %356, %56, %cst_129 {dimension_numbers = #tpu.dot_dimension_numbers<[1], [0], [0], [1], [0, 0, 1, 1], [], []>} : vector<2x32xf32>, vector<32x32xf32>, vector<2x32xf32> -> vector<2x32xf32>
    %363 = arith.addf %362, %66 : vector<2x32xf32>
    %cst_130 = arith.constant dense<0.000000e+00> : vector<2x32xf32>
    %364 = tpu.matmul %356, %58, %cst_130 {dimension_numbers = #tpu.dot_dimension_numbers<[1], [0], [0], [1], [0, 0, 1, 1], [], []>} : vector<2x32xf32>, vector<32x32xf32>, vector<2x32xf32> -> vector<2x32xf32>
    %365 = arith.addf %364, %70 : vector<2x32xf32>
    %366 = vector.extract_strided_slice %38 {offsets = [18, 0], sizes = [2, 32], strides = [1, 1]} : vector<32x32xf32> to vector<2x32xf32>
    %367 = arith.addf %366, %361 : vector<2x32xf32>
    %368 = arith.negf %367 : vector<2x32xf32>
    %369 = math.exp %368 : vector<2x32xf32>
    %cst_131 = arith.constant 1.000000e+00 : f32
    %370 = vector.broadcast %cst_131 : f32 to vector<2x32xf32>
    %371 = arith.addf %370, %369 : vector<2x32xf32>
    %372 = arith.divf %370, %371 : vector<2x32xf32>
    %373 = vector.extract_strided_slice %45 {offsets = [18, 0], sizes = [2, 32], strides = [1, 1]} : vector<32x32xf32> to vector<2x32xf32>
    %374 = arith.addf %373, %363 : vector<2x32xf32>
    %375 = arith.negf %374 : vector<2x32xf32>
    %376 = math.exp %375 : vector<2x32xf32>
    %cst_132 = arith.constant 1.000000e+00 : f32
    %377 = vector.broadcast %cst_132 : f32 to vector<2x32xf32>
    %378 = arith.addf %377, %376 : vector<2x32xf32>
    %379 = arith.divf %377, %378 : vector<2x32xf32>
    %380 = vector.extract_strided_slice %52 {offsets = [18, 0], sizes = [2, 32], strides = [1, 1]} : vector<32x32xf32> to vector<2x32xf32>
    %381 = arith.mulf %372, %365 : vector<2x32xf32>
    %382 = arith.addf %380, %381 : vector<2x32xf32>
    %383 = math.tanh %382 : vector<2x32xf32>
    %cst_133 = arith.constant 1.000000e+00 : f32
    %384 = vector.broadcast %cst_133 : f32 to vector<2x32xf32>
    %385 = arith.subf %384, %379 : vector<2x32xf32>
    %386 = arith.mulf %385, %383 : vector<2x32xf32>
    %387 = arith.mulf %379, %356 : vector<2x32xf32>
    %388 = arith.addf %386, %387 : vector<2x32xf32>
    %c9 = arith.constant 9 : index
    %c0_134 = arith.constant 0 : index
    %c0_135 = arith.constant 0 : index
    %389 = vector.load %arg20[%c9, %c0_134, %c0_135] : memref<16x2x32xf32, #tpu.memory_space<vmem>>, vector<1x2x32xf32>
    %390 = vector.shape_cast %389 : vector<1x2x32xf32> to vector<2x32xf32>
    %391 = vector.shape_cast %388 : vector<2x32xf32> to vector<1x2x32xf32>
    tpu.vector_store %arg20[%c9, %c0_134, %c0_135], %391 {strides = array<i32>} : memref<16x2x32xf32, #tpu.memory_space<vmem>>, vector<1x2x32xf32>,
    %cst_136 = arith.constant dense<0.000000e+00> : vector<2x32xf32>
    %392 = tpu.matmul %388, %54, %cst_136 {dimension_numbers = #tpu.dot_dimension_numbers<[1], [0], [0], [1], [0, 0, 1, 1], [], []>} : vector<2x32xf32>, vector<32x32xf32>, vector<2x32xf32> -> vector<2x32xf32>
    %393 = arith.addf %392, %62 : vector<2x32xf32>
    %cst_137 = arith.constant dense<0.000000e+00> : vector<2x32xf32>
    %394 = tpu.matmul %388, %56, %cst_137 {dimension_numbers = #tpu.dot_dimension_numbers<[1], [0], [0], [1], [0, 0, 1, 1], [], []>} : vector<2x32xf32>, vector<32x32xf32>, vector<2x32xf32> -> vector<2x32xf32>
    %395 = arith.addf %394, %66 : vector<2x32xf32>
    %cst_138 = arith.constant dense<0.000000e+00> : vector<2x32xf32>
    %396 = tpu.matmul %388, %58, %cst_138 {dimension_numbers = #tpu.dot_dimension_numbers<[1], [0], [0], [1], [0, 0, 1, 1], [], []>} : vector<2x32xf32>, vector<32x32xf32>, vector<2x32xf32> -> vector<2x32xf32>
    %397 = arith.addf %396, %70 : vector<2x32xf32>
    %398 = vector.extract_strided_slice %38 {offsets = [20, 0], sizes = [2, 32], strides = [1, 1]} : vector<32x32xf32> to vector<2x32xf32>
    %399 = arith.addf %398, %393 : vector<2x32xf32>
    %400 = arith.negf %399 : vector<2x32xf32>
    %401 = math.exp %400 : vector<2x32xf32>
    %cst_139 = arith.constant 1.000000e+00 : f32
    %402 = vector.broadcast %cst_139 : f32 to vector<2x32xf32>
    %403 = arith.addf %402, %401 : vector<2x32xf32>
    %404 = arith.divf %402, %403 : vector<2x32xf32>
    %405 = vector.extract_strided_slice %45 {offsets = [20, 0], sizes = [2, 32], strides = [1, 1]} : vector<32x32xf32> to vector<2x32xf32>
    %406 = arith.addf %405, %395 : vector<2x32xf32>
    %407 = arith.negf %406 : vector<2x32xf32>
    %408 = math.exp %407 : vector<2x32xf32>
    %cst_140 = arith.constant 1.000000e+00 : f32
    %409 = vector.broadcast %cst_140 : f32 to vector<2x32xf32>
    %410 = arith.addf %409, %408 : vector<2x32xf32>
    %411 = arith.divf %409, %410 : vector<2x32xf32>
    %412 = vector.extract_strided_slice %52 {offsets = [20, 0], sizes = [2, 32], strides = [1, 1]} : vector<32x32xf32> to vector<2x32xf32>
    %413 = arith.mulf %404, %397 : vector<2x32xf32>
    %414 = arith.addf %412, %413 : vector<2x32xf32>
    %415 = math.tanh %414 : vector<2x32xf32>
    %cst_141 = arith.constant 1.000000e+00 : f32
    %416 = vector.broadcast %cst_141 : f32 to vector<2x32xf32>
    %417 = arith.subf %416, %411 : vector<2x32xf32>
    %418 = arith.mulf %417, %415 : vector<2x32xf32>
    %419 = arith.mulf %411, %388 : vector<2x32xf32>
    %420 = arith.addf %418, %419 : vector<2x32xf32>
    %c10 = arith.constant 10 : index
    %c0_142 = arith.constant 0 : index
    %c0_143 = arith.constant 0 : index
    %421 = vector.load %arg20[%c10, %c0_142, %c0_143] : memref<16x2x32xf32, #tpu.memory_space<vmem>>, vector<1x2x32xf32>
    %422 = vector.shape_cast %421 : vector<1x2x32xf32> to vector<2x32xf32>
    %423 = vector.shape_cast %420 : vector<2x32xf32> to vector<1x2x32xf32>
    tpu.vector_store %arg20[%c10, %c0_142, %c0_143], %423 {strides = array<i32>} : memref<16x2x32xf32, #tpu.memory_space<vmem>>, vector<1x2x32xf32>,
    %cst_144 = arith.constant dense<0.000000e+00> : vector<2x32xf32>
    %424 = tpu.matmul %420, %54, %cst_144 {dimension_numbers = #tpu.dot_dimension_numbers<[1], [0], [0], [1], [0, 0, 1, 1], [], []>} : vector<2x32xf32>, vector<32x32xf32>, vector<2x32xf32> -> vector<2x32xf32>
    %425 = arith.addf %424, %62 : vector<2x32xf32>
    %cst_145 = arith.constant dense<0.000000e+00> : vector<2x32xf32>
    %426 = tpu.matmul %420, %56, %cst_145 {dimension_numbers = #tpu.dot_dimension_numbers<[1], [0], [0], [1], [0, 0, 1, 1], [], []>} : vector<2x32xf32>, vector<32x32xf32>, vector<2x32xf32> -> vector<2x32xf32>
    %427 = arith.addf %426, %66 : vector<2x32xf32>
    %cst_146 = arith.constant dense<0.000000e+00> : vector<2x32xf32>
    %428 = tpu.matmul %420, %58, %cst_146 {dimension_numbers = #tpu.dot_dimension_numbers<[1], [0], [0], [1], [0, 0, 1, 1], [], []>} : vector<2x32xf32>, vector<32x32xf32>, vector<2x32xf32> -> vector<2x32xf32>
    %429 = arith.addf %428, %70 : vector<2x32xf32>
    %430 = vector.extract_strided_slice %38 {offsets = [22, 0], sizes = [2, 32], strides = [1, 1]} : vector<32x32xf32> to vector<2x32xf32>
    %431 = arith.addf %430, %425 : vector<2x32xf32>
    %432 = arith.negf %431 : vector<2x32xf32>
    %433 = math.exp %432 : vector<2x32xf32>
    %cst_147 = arith.constant 1.000000e+00 : f32
    %434 = vector.broadcast %cst_147 : f32 to vector<2x32xf32>
    %435 = arith.addf %434, %433 : vector<2x32xf32>
    %436 = arith.divf %434, %435 : vector<2x32xf32>
    %437 = vector.extract_strided_slice %45 {offsets = [22, 0], sizes = [2, 32], strides = [1, 1]} : vector<32x32xf32> to vector<2x32xf32>
    %438 = arith.addf %437, %427 : vector<2x32xf32>
    %439 = arith.negf %438 : vector<2x32xf32>
    %440 = math.exp %439 : vector<2x32xf32>
    %cst_148 = arith.constant 1.000000e+00 : f32
    %441 = vector.broadcast %cst_148 : f32 to vector<2x32xf32>
    %442 = arith.addf %441, %440 : vector<2x32xf32>
    %443 = arith.divf %441, %442 : vector<2x32xf32>
    %444 = vector.extract_strided_slice %52 {offsets = [22, 0], sizes = [2, 32], strides = [1, 1]} : vector<32x32xf32> to vector<2x32xf32>
    %445 = arith.mulf %436, %429 : vector<2x32xf32>
    %446 = arith.addf %444, %445 : vector<2x32xf32>
    %447 = math.tanh %446 : vector<2x32xf32>
    %cst_149 = arith.constant 1.000000e+00 : f32
    %448 = vector.broadcast %cst_149 : f32 to vector<2x32xf32>
    %449 = arith.subf %448, %443 : vector<2x32xf32>
    %450 = arith.mulf %449, %447 : vector<2x32xf32>
    %451 = arith.mulf %443, %420 : vector<2x32xf32>
    %452 = arith.addf %450, %451 : vector<2x32xf32>
    %c11 = arith.constant 11 : index
    %c0_150 = arith.constant 0 : index
    %c0_151 = arith.constant 0 : index
    %453 = vector.load %arg20[%c11, %c0_150, %c0_151] : memref<16x2x32xf32, #tpu.memory_space<vmem>>, vector<1x2x32xf32>
    %454 = vector.shape_cast %453 : vector<1x2x32xf32> to vector<2x32xf32>
    %455 = vector.shape_cast %452 : vector<2x32xf32> to vector<1x2x32xf32>
    tpu.vector_store %arg20[%c11, %c0_150, %c0_151], %455 {strides = array<i32>} : memref<16x2x32xf32, #tpu.memory_space<vmem>>, vector<1x2x32xf32>,
    %cst_152 = arith.constant dense<0.000000e+00> : vector<2x32xf32>
    %456 = tpu.matmul %452, %54, %cst_152 {dimension_numbers = #tpu.dot_dimension_numbers<[1], [0], [0], [1], [0, 0, 1, 1], [], []>} : vector<2x32xf32>, vector<32x32xf32>, vector<2x32xf32> -> vector<2x32xf32>
    %457 = arith.addf %456, %62 : vector<2x32xf32>
    %cst_153 = arith.constant dense<0.000000e+00> : vector<2x32xf32>
    %458 = tpu.matmul %452, %56, %cst_153 {dimension_numbers = #tpu.dot_dimension_numbers<[1], [0], [0], [1], [0, 0, 1, 1], [], []>} : vector<2x32xf32>, vector<32x32xf32>, vector<2x32xf32> -> vector<2x32xf32>
    %459 = arith.addf %458, %66 : vector<2x32xf32>
    %cst_154 = arith.constant dense<0.000000e+00> : vector<2x32xf32>
    %460 = tpu.matmul %452, %58, %cst_154 {dimension_numbers = #tpu.dot_dimension_numbers<[1], [0], [0], [1], [0, 0, 1, 1], [], []>} : vector<2x32xf32>, vector<32x32xf32>, vector<2x32xf32> -> vector<2x32xf32>
    %461 = arith.addf %460, %70 : vector<2x32xf32>
    %462 = vector.extract_strided_slice %38 {offsets = [24, 0], sizes = [2, 32], strides = [1, 1]} : vector<32x32xf32> to vector<2x32xf32>
    %463 = arith.addf %462, %457 : vector<2x32xf32>
    %464 = arith.negf %463 : vector<2x32xf32>
    %465 = math.exp %464 : vector<2x32xf32>
    %cst_155 = arith.constant 1.000000e+00 : f32
    %466 = vector.broadcast %cst_155 : f32 to vector<2x32xf32>
    %467 = arith.addf %466, %465 : vector<2x32xf32>
    %468 = arith.divf %466, %467 : vector<2x32xf32>
    %469 = vector.extract_strided_slice %45 {offsets = [24, 0], sizes = [2, 32], strides = [1, 1]} : vector<32x32xf32> to vector<2x32xf32>
    %470 = arith.addf %469, %459 : vector<2x32xf32>
    %471 = arith.negf %470 : vector<2x32xf32>
    %472 = math.exp %471 : vector<2x32xf32>
    %cst_156 = arith.constant 1.000000e+00 : f32
    %473 = vector.broadcast %cst_156 : f32 to vector<2x32xf32>
    %474 = arith.addf %473, %472 : vector<2x32xf32>
    %475 = arith.divf %473, %474 : vector<2x32xf32>
    %476 = vector.extract_strided_slice %52 {offsets = [24, 0], sizes = [2, 32], strides = [1, 1]} : vector<32x32xf32> to vector<2x32xf32>
    %477 = arith.mulf %468, %461 : vector<2x32xf32>
    %478 = arith.addf %476, %477 : vector<2x32xf32>
    %479 = math.tanh %478 : vector<2x32xf32>
    %cst_157 = arith.constant 1.000000e+00 : f32
    %480 = vector.broadcast %cst_157 : f32 to vector<2x32xf32>
    %481 = arith.subf %480, %475 : vector<2x32xf32>
    %482 = arith.mulf %481, %479 : vector<2x32xf32>
    %483 = arith.mulf %475, %452 : vector<2x32xf32>
    %484 = arith.addf %482, %483 : vector<2x32xf32>
    %c12 = arith.constant 12 : index
    %c0_158 = arith.constant 0 : index
    %c0_159 = arith.constant 0 : index
    %485 = vector.load %arg20[%c12, %c0_158, %c0_159] : memref<16x2x32xf32, #tpu.memory_space<vmem>>, vector<1x2x32xf32>
    %486 = vector.shape_cast %485 : vector<1x2x32xf32> to vector<2x32xf32>
    %487 = vector.shape_cast %484 : vector<2x32xf32> to vector<1x2x32xf32>
    tpu.vector_store %arg20[%c12, %c0_158, %c0_159], %487 {strides = array<i32>} : memref<16x2x32xf32, #tpu.memory_space<vmem>>, vector<1x2x32xf32>,
    %cst_160 = arith.constant dense<0.000000e+00> : vector<2x32xf32>
    %488 = tpu.matmul %484, %54, %cst_160 {dimension_numbers = #tpu.dot_dimension_numbers<[1], [0], [0], [1], [0, 0, 1, 1], [], []>} : vector<2x32xf32>, vector<32x32xf32>, vector<2x32xf32> -> vector<2x32xf32>
    %489 = arith.addf %488, %62 : vector<2x32xf32>
    %cst_161 = arith.constant dense<0.000000e+00> : vector<2x32xf32>
    %490 = tpu.matmul %484, %56, %cst_161 {dimension_numbers = #tpu.dot_dimension_numbers<[1], [0], [0], [1], [0, 0, 1, 1], [], []>} : vector<2x32xf32>, vector<32x32xf32>, vector<2x32xf32> -> vector<2x32xf32>
    %491 = arith.addf %490, %66 : vector<2x32xf32>
    %cst_162 = arith.constant dense<0.000000e+00> : vector<2x32xf32>
    %492 = tpu.matmul %484, %58, %cst_162 {dimension_numbers = #tpu.dot_dimension_numbers<[1], [0], [0], [1], [0, 0, 1, 1], [], []>} : vector<2x32xf32>, vector<32x32xf32>, vector<2x32xf32> -> vector<2x32xf32>
    %493 = arith.addf %492, %70 : vector<2x32xf32>
    %494 = vector.extract_strided_slice %38 {offsets = [26, 0], sizes = [2, 32], strides = [1, 1]} : vector<32x32xf32> to vector<2x32xf32>
    %495 = arith.addf %494, %489 : vector<2x32xf32>
    %496 = arith.negf %495 : vector<2x32xf32>
    %497 = math.exp %496 : vector<2x32xf32>
    %cst_163 = arith.constant 1.000000e+00 : f32
    %498 = vector.broadcast %cst_163 : f32 to vector<2x32xf32>
    %499 = arith.addf %498, %497 : vector<2x32xf32>
    %500 = arith.divf %498, %499 : vector<2x32xf32>
    %501 = vector.extract_strided_slice %45 {offsets = [26, 0], sizes = [2, 32], strides = [1, 1]} : vector<32x32xf32> to vector<2x32xf32>
    %502 = arith.addf %501, %491 : vector<2x32xf32>
    %503 = arith.negf %502 : vector<2x32xf32>
    %504 = math.exp %503 : vector<2x32xf32>
    %cst_164 = arith.constant 1.000000e+00 : f32
    %505 = vector.broadcast %cst_164 : f32 to vector<2x32xf32>
    %506 = arith.addf %505, %504 : vector<2x32xf32>
    %507 = arith.divf %505, %506 : vector<2x32xf32>
    %508 = vector.extract_strided_slice %52 {offsets = [26, 0], sizes = [2, 32], strides = [1, 1]} : vector<32x32xf32> to vector<2x32xf32>
    %509 = arith.mulf %500, %493 : vector<2x32xf32>
    %510 = arith.addf %508, %509 : vector<2x32xf32>
    %511 = math.tanh %510 : vector<2x32xf32>
    %cst_165 = arith.constant 1.000000e+00 : f32
    %512 = vector.broadcast %cst_165 : f32 to vector<2x32xf32>
    %513 = arith.subf %512, %507 : vector<2x32xf32>
    %514 = arith.mulf %513, %511 : vector<2x32xf32>
    %515 = arith.mulf %507, %484 : vector<2x32xf32>
    %516 = arith.addf %514, %515 : vector<2x32xf32>
    %c13 = arith.constant 13 : index
    %c0_166 = arith.constant 0 : index
    %c0_167 = arith.constant 0 : index
    %517 = vector.load %arg20[%c13, %c0_166, %c0_167] : memref<16x2x32xf32, #tpu.memory_space<vmem>>, vector<1x2x32xf32>
    %518 = vector.shape_cast %517 : vector<1x2x32xf32> to vector<2x32xf32>
    %519 = vector.shape_cast %516 : vector<2x32xf32> to vector<1x2x32xf32>
    tpu.vector_store %arg20[%c13, %c0_166, %c0_167], %519 {strides = array<i32>} : memref<16x2x32xf32, #tpu.memory_space<vmem>>, vector<1x2x32xf32>,
    %cst_168 = arith.constant dense<0.000000e+00> : vector<2x32xf32>
    %520 = tpu.matmul %516, %54, %cst_168 {dimension_numbers = #tpu.dot_dimension_numbers<[1], [0], [0], [1], [0, 0, 1, 1], [], []>} : vector<2x32xf32>, vector<32x32xf32>, vector<2x32xf32> -> vector<2x32xf32>
    %521 = arith.addf %520, %62 : vector<2x32xf32>
    %cst_169 = arith.constant dense<0.000000e+00> : vector<2x32xf32>
    %522 = tpu.matmul %516, %56, %cst_169 {dimension_numbers = #tpu.dot_dimension_numbers<[1], [0], [0], [1], [0, 0, 1, 1], [], []>} : vector<2x32xf32>, vector<32x32xf32>, vector<2x32xf32> -> vector<2x32xf32>
    %523 = arith.addf %522, %66 : vector<2x32xf32>
    %cst_170 = arith.constant dense<0.000000e+00> : vector<2x32xf32>
    %524 = tpu.matmul %516, %58, %cst_170 {dimension_numbers = #tpu.dot_dimension_numbers<[1], [0], [0], [1], [0, 0, 1, 1], [], []>} : vector<2x32xf32>, vector<32x32xf32>, vector<2x32xf32> -> vector<2x32xf32>
    %525 = arith.addf %524, %70 : vector<2x32xf32>
    %526 = vector.extract_strided_slice %38 {offsets = [28, 0], sizes = [2, 32], strides = [1, 1]} : vector<32x32xf32> to vector<2x32xf32>
    %527 = arith.addf %526, %521 : vector<2x32xf32>
    %528 = arith.negf %527 : vector<2x32xf32>
    %529 = math.exp %528 : vector<2x32xf32>
    %cst_171 = arith.constant 1.000000e+00 : f32
    %530 = vector.broadcast %cst_171 : f32 to vector<2x32xf32>
    %531 = arith.addf %530, %529 : vector<2x32xf32>
    %532 = arith.divf %530, %531 : vector<2x32xf32>
    %533 = vector.extract_strided_slice %45 {offsets = [28, 0], sizes = [2, 32], strides = [1, 1]} : vector<32x32xf32> to vector<2x32xf32>
    %534 = arith.addf %533, %523 : vector<2x32xf32>
    %535 = arith.negf %534 : vector<2x32xf32>
    %536 = math.exp %535 : vector<2x32xf32>
    %cst_172 = arith.constant 1.000000e+00 : f32
    %537 = vector.broadcast %cst_172 : f32 to vector<2x32xf32>
    %538 = arith.addf %537, %536 : vector<2x32xf32>
    %539 = arith.divf %537, %538 : vector<2x32xf32>
    %540 = vector.extract_strided_slice %52 {offsets = [28, 0], sizes = [2, 32], strides = [1, 1]} : vector<32x32xf32> to vector<2x32xf32>
    %541 = arith.mulf %532, %525 : vector<2x32xf32>
    %542 = arith.addf %540, %541 : vector<2x32xf32>
    %543 = math.tanh %542 : vector<2x32xf32>
    %cst_173 = arith.constant 1.000000e+00 : f32
    %544 = vector.broadcast %cst_173 : f32 to vector<2x32xf32>
    %545 = arith.subf %544, %539 : vector<2x32xf32>
    %546 = arith.mulf %545, %543 : vector<2x32xf32>
    %547 = arith.mulf %539, %516 : vector<2x32xf32>
    %548 = arith.addf %546, %547 : vector<2x32xf32>
    %c14 = arith.constant 14 : index
    %c0_174 = arith.constant 0 : index
    %c0_175 = arith.constant 0 : index
    %549 = vector.load %arg20[%c14, %c0_174, %c0_175] : memref<16x2x32xf32, #tpu.memory_space<vmem>>, vector<1x2x32xf32>
    %550 = vector.shape_cast %549 : vector<1x2x32xf32> to vector<2x32xf32>
    %551 = vector.shape_cast %548 : vector<2x32xf32> to vector<1x2x32xf32>
    tpu.vector_store %arg20[%c14, %c0_174, %c0_175], %551 {strides = array<i32>} : memref<16x2x32xf32, #tpu.memory_space<vmem>>, vector<1x2x32xf32>,
    %cst_176 = arith.constant dense<0.000000e+00> : vector<2x32xf32>
    %552 = tpu.matmul %548, %54, %cst_176 {dimension_numbers = #tpu.dot_dimension_numbers<[1], [0], [0], [1], [0, 0, 1, 1], [], []>} : vector<2x32xf32>, vector<32x32xf32>, vector<2x32xf32> -> vector<2x32xf32>
    %553 = arith.addf %552, %62 : vector<2x32xf32>
    %cst_177 = arith.constant dense<0.000000e+00> : vector<2x32xf32>
    %554 = tpu.matmul %548, %56, %cst_177 {dimension_numbers = #tpu.dot_dimension_numbers<[1], [0], [0], [1], [0, 0, 1, 1], [], []>} : vector<2x32xf32>, vector<32x32xf32>, vector<2x32xf32> -> vector<2x32xf32>
    %555 = arith.addf %554, %66 : vector<2x32xf32>
    %cst_178 = arith.constant dense<0.000000e+00> : vector<2x32xf32>
    %556 = tpu.matmul %548, %58, %cst_178 {dimension_numbers = #tpu.dot_dimension_numbers<[1], [0], [0], [1], [0, 0, 1, 1], [], []>} : vector<2x32xf32>, vector<32x32xf32>, vector<2x32xf32> -> vector<2x32xf32>
    %557 = arith.addf %556, %70 : vector<2x32xf32>
    %558 = vector.extract_strided_slice %38 {offsets = [30, 0], sizes = [2, 32], strides = [1, 1]} : vector<32x32xf32> to vector<2x32xf32>
    %559 = arith.addf %558, %553 : vector<2x32xf32>
    %560 = arith.negf %559 : vector<2x32xf32>
    %561 = math.exp %560 : vector<2x32xf32>
    %cst_179 = arith.constant 1.000000e+00 : f32
    %562 = vector.broadcast %cst_179 : f32 to vector<2x32xf32>
    %563 = arith.addf %562, %561 : vector<2x32xf32>
    %564 = arith.divf %562, %563 : vector<2x32xf32>
    %565 = vector.extract_strided_slice %45 {offsets = [30, 0], sizes = [2, 32], strides = [1, 1]} : vector<32x32xf32> to vector<2x32xf32>
    %566 = arith.addf %565, %555 : vector<2x32xf32>
    %567 = arith.negf %566 : vector<2x32xf32>
    %568 = math.exp %567 : vector<2x32xf32>
    %cst_180 = arith.constant 1.000000e+00 : f32
    %569 = vector.broadcast %cst_180 : f32 to vector<2x32xf32>
    %570 = arith.addf %569, %568 : vector<2x32xf32>
    %571 = arith.divf %569, %570 : vector<2x32xf32>
    %572 = vector.extract_strided_slice %52 {offsets = [30, 0], sizes = [2, 32], strides = [1, 1]} : vector<32x32xf32> to vector<2x32xf32>
    %573 = arith.mulf %564, %557 : vector<2x32xf32>
    %574 = arith.addf %572, %573 : vector<2x32xf32>
    %575 = math.tanh %574 : vector<2x32xf32>
    %cst_181 = arith.constant 1.000000e+00 : f32
    %576 = vector.broadcast %cst_181 : f32 to vector<2x32xf32>
    %577 = arith.subf %576, %571 : vector<2x32xf32>
    %578 = arith.mulf %577, %575 : vector<2x32xf32>
    %579 = arith.mulf %571, %548 : vector<2x32xf32>
    %580 = arith.addf %578, %579 : vector<2x32xf32>
    %c15 = arith.constant 15 : index
    %c0_182 = arith.constant 0 : index
    %c0_183 = arith.constant 0 : index
    %581 = vector.load %arg20[%c15, %c0_182, %c0_183] : memref<16x2x32xf32, #tpu.memory_space<vmem>>, vector<1x2x32xf32>
    %582 = vector.shape_cast %581 : vector<1x2x32xf32> to vector<2x32xf32>
    %583 = vector.shape_cast %580 : vector<2x32xf32> to vector<1x2x32xf32>
    tpu.vector_store %arg20[%c15, %c0_182, %c0_183], %583 {strides = array<i32>} : memref<16x2x32xf32, #tpu.memory_space<vmem>>, vector<1x2x32xf32>,
    %c0_184 = arith.constant 0 : index
    %c0_185 = arith.constant 0 : index
    %c0_186 = arith.constant 0 : index
    %584 = vector.load %arg20[%c0_184, %c0_185, %c0_186] : memref<16x2x32xf32, #tpu.memory_space<vmem>>, vector<16x2x32xf32>
    %585 = math.tanh %584 : vector<16x2x32xf32>
    %586 = vector.shape_cast %585 : vector<16x2x32xf32> to vector<32x32xf32>
    %c0_187 = arith.constant 0 : index
    %c0_188 = arith.constant 0 : index
    %587 = vector.load %arg9[%c0_187, %c0_188] : memref<1x32xf32, #tpu.memory_space<vmem>>, vector<1x32xf32>
    %c0_189 = arith.constant 0 : index
    %c0_190 = arith.constant 0 : index
    %588 = vector.load %arg10[%c0_189, %c0_190] : memref<1x32xf32, #tpu.memory_space<vmem>>, vector<1x32xf32>
    %cst_191 = arith.constant dense<0.000000e+00> : vector<32xf32>
    %589 = vector.multi_reduction <add>, %586, %cst_191 [1] : vector<32x32xf32> to vector<32xf32>
    %590 = vector.shape_cast %589 : vector<32xf32> to vector<32x1xf32>
    %cst_192 = arith.constant 3.200000e+01 : f32
    %591 = vector.broadcast %cst_192 : f32 to vector<32x1xf32>
    %592 = arith.divf %590, %591 : vector<32x1xf32>
    %593 = vector.broadcast %592 : vector<32x1xf32> to vector<32x32xf32>
    %594 = arith.subf %586, %593 : vector<32x32xf32>
    %595 = arith.mulf %594, %594 : vector<32x32xf32>
    %cst_193 = arith.constant dense<0.000000e+00> : vector<32xf32>
    %596 = vector.multi_reduction <add>, %595, %cst_193 [1] : vector<32x32xf32> to vector<32xf32>
    %597 = vector.shape_cast %596 : vector<32xf32> to vector<32x1xf32>
    %cst_194 = arith.constant 3.200000e+01 : f32
    %598 = vector.broadcast %cst_194 : f32 to vector<32x1xf32>
    %599 = arith.divf %597, %598 : vector<32x1xf32>
    %600 = vector.broadcast %592 : vector<32x1xf32> to vector<32x32xf32>
    %601 = arith.subf %586, %600 : vector<32x32xf32>
    %cst_195 = arith.constant 9.99999974E-6 : f32
    %602 = vector.broadcast %cst_195 : f32 to vector<32x1xf32>
    %603 = arith.addf %599, %602 : vector<32x1xf32>
    %604 = math.rsqrt %603 : vector<32x1xf32>
    %605 = vector.broadcast %604 : vector<32x1xf32> to vector<32x32xf32>
    %606 = arith.mulf %601, %605 : vector<32x32xf32>
    %607 = vector.broadcast %587 : vector<1x32xf32> to vector<32x32xf32>
    %608 = arith.mulf %606, %607 : vector<32x32xf32>
    %609 = vector.broadcast %588 : vector<1x32xf32> to vector<32x32xf32>
    %610 = arith.addf %608, %609 : vector<32x32xf32>
    %c0_196 = arith.constant 0 : index
    %c0_197 = arith.constant 0 : index
    %c0_198 = arith.constant 0 : index
    %611 = vector.load %arg11[%c0_196, %c0_197, %c0_198] : memref<3x32x32xf32, #tpu.memory_space<vmem>>, vector<1x32x32xf32>
    %612 = vector.shape_cast %611 : vector<1x32x32xf32> to vector<32x32xf32>
    %cst_199 = arith.constant dense<0.000000e+00> : vector<32x32xf32>
    %613 = tpu.matmul %610, %612, %cst_199 {dimension_numbers = #tpu.dot_dimension_numbers<[1], [0], [0], [1], [0, 0, 1, 1], [], []>} : vector<32x32xf32>, vector<32x32xf32>, vector<32x32xf32> -> vector<32x32xf32>
    %c0_200 = arith.constant 0 : index
    %c0_201 = arith.constant 0 : index
    %c0_202 = arith.constant 0 : index
    %614 = vector.load %arg13[%c0_200, %c0_201, %c0_202] : memref<3x1x32xf32, #tpu.memory_space<vmem>>, vector<1x1x32xf32>
    %615 = vector.shape_cast %614 : vector<1x1x32xf32> to vector<1x32xf32>
    %616 = vector.broadcast %615 : vector<1x32xf32> to vector<32x32xf32>
    %617 = arith.addf %613, %616 : vector<32x32xf32>
    %c1_203 = arith.constant 1 : index
    %c0_204 = arith.constant 0 : index
    %c0_205 = arith.constant 0 : index
    %618 = vector.load %arg11[%c1_203, %c0_204, %c0_205] : memref<3x32x32xf32, #tpu.memory_space<vmem>>, vector<1x32x32xf32>
    %619 = vector.shape_cast %618 : vector<1x32x32xf32> to vector<32x32xf32>
    %cst_206 = arith.constant dense<0.000000e+00> : vector<32x32xf32>
    %620 = tpu.matmul %610, %619, %cst_206 {dimension_numbers = #tpu.dot_dimension_numbers<[1], [0], [0], [1], [0, 0, 1, 1], [], []>} : vector<32x32xf32>, vector<32x32xf32>, vector<32x32xf32> -> vector<32x32xf32>
    %c1_207 = arith.constant 1 : index
    %c0_208 = arith.constant 0 : index
    %c0_209 = arith.constant 0 : index
    %621 = vector.load %arg13[%c1_207, %c0_208, %c0_209] : memref<3x1x32xf32, #tpu.memory_space<vmem>>, vector<1x1x32xf32>
    %622 = vector.shape_cast %621 : vector<1x1x32xf32> to vector<1x32xf32>
    %623 = vector.broadcast %622 : vector<1x32xf32> to vector<32x32xf32>
    %624 = arith.addf %620, %623 : vector<32x32xf32>
    %c2_210 = arith.constant 2 : index
    %c0_211 = arith.constant 0 : index
    %c0_212 = arith.constant 0 : index
    %625 = vector.load %arg11[%c2_210, %c0_211, %c0_212] : memref<3x32x32xf32, #tpu.memory_space<vmem>>, vector<1x32x32xf32>
    %626 = vector.shape_cast %625 : vector<1x32x32xf32> to vector<32x32xf32>
    %cst_213 = arith.constant dense<0.000000e+00> : vector<32x32xf32>
    %627 = tpu.matmul %610, %626, %cst_213 {dimension_numbers = #tpu.dot_dimension_numbers<[1], [0], [0], [1], [0, 0, 1, 1], [], []>} : vector<32x32xf32>, vector<32x32xf32>, vector<32x32xf32> -> vector<32x32xf32>
    %c2_214 = arith.constant 2 : index
    %c0_215 = arith.constant 0 : index
    %c0_216 = arith.constant 0 : index
    %628 = vector.load %arg13[%c2_214, %c0_215, %c0_216] : memref<3x1x32xf32, #tpu.memory_space<vmem>>, vector<1x1x32xf32>
    %629 = vector.shape_cast %628 : vector<1x1x32xf32> to vector<1x32xf32>
    %630 = vector.broadcast %629 : vector<1x32xf32> to vector<32x32xf32>
    %631 = arith.addf %627, %630 : vector<32x32xf32>
    %c0_217 = arith.constant 0 : index
    %c0_218 = arith.constant 0 : index
    %c0_219 = arith.constant 0 : index
    %632 = vector.load %arg12[%c0_217, %c0_218, %c0_219] : memref<3x32x32xf32, #tpu.memory_space<vmem>>, vector<1x32x32xf32>
    %633 = vector.shape_cast %632 : vector<1x32x32xf32> to vector<32x32xf32>
    %c1_220 = arith.constant 1 : index
    %c0_221 = arith.constant 0 : index
    %c0_222 = arith.constant 0 : index
    %634 = vector.load %arg12[%c1_220, %c0_221, %c0_222] : memref<3x32x32xf32, #tpu.memory_space<vmem>>, vector<1x32x32xf32>
    %635 = vector.shape_cast %634 : vector<1x32x32xf32> to vector<32x32xf32>
    %c2_223 = arith.constant 2 : index
    %c0_224 = arith.constant 0 : index
    %c0_225 = arith.constant 0 : index
    %636 = vector.load %arg12[%c2_223, %c0_224, %c0_225] : memref<3x32x32xf32, #tpu.memory_space<vmem>>, vector<1x32x32xf32>
    %637 = vector.shape_cast %636 : vector<1x32x32xf32> to vector<32x32xf32>
    %c0_226 = arith.constant 0 : index
    %c0_227 = arith.constant 0 : index
    %c0_228 = arith.constant 0 : index
    %638 = vector.load %arg14[%c0_226, %c0_227, %c0_228] : memref<3x1x32xf32, #tpu.memory_space<vmem>>, vector<1x1x32xf32>
    %639 = vector.shape_cast %638 : vector<1x1x32xf32> to vector<1x32xf32>
    %640 = vector.shape_cast %639 : vector<1x32xf32> to vector<1x32xf32>
    %641 = vector.broadcast %640 : vector<1x32xf32> to vector<2x32xf32>
    %c1_229 = arith.constant 1 : index
    %c0_230 = arith.constant 0 : index
    %c0_231 = arith.constant 0 : index
    %642 = vector.load %arg14[%c1_229, %c0_230, %c0_231] : memref<3x1x32xf32, #tpu.memory_space<vmem>>, vector<1x1x32xf32>
    %643 = vector.shape_cast %642 : vector<1x1x32xf32> to vector<1x32xf32>
    %644 = vector.shape_cast %643 : vector<1x32xf32> to vector<1x32xf32>
    %645 = vector.broadcast %644 : vector<1x32xf32> to vector<2x32xf32>
    %c2_232 = arith.constant 2 : index
    %c0_233 = arith.constant 0 : index
    %c0_234 = arith.constant 0 : index
    %646 = vector.load %arg14[%c2_232, %c0_233, %c0_234] : memref<3x1x32xf32, #tpu.memory_space<vmem>>, vector<1x1x32xf32>
    %647 = vector.shape_cast %646 : vector<1x1x32xf32> to vector<1x32xf32>
    %648 = vector.shape_cast %647 : vector<1x32xf32> to vector<1x32xf32>
    %649 = vector.broadcast %648 : vector<1x32xf32> to vector<2x32xf32>
    %cst_235 = arith.constant 0.000000e+00 : f32
    %650 = vector.broadcast %cst_235 : f32 to vector<2x32xf32>
    %cst_236 = arith.constant dense<0.000000e+00> : vector<2x32xf32>
    %651 = tpu.matmul %650, %633, %cst_236 {dimension_numbers = #tpu.dot_dimension_numbers<[1], [0], [0], [1], [0, 0, 1, 1], [], []>} : vector<2x32xf32>, vector<32x32xf32>, vector<2x32xf32> -> vector<2x32xf32>
    %652 = arith.addf %651, %641 : vector<2x32xf32>
    %cst_237 = arith.constant dense<0.000000e+00> : vector<2x32xf32>
    %653 = tpu.matmul %650, %635, %cst_237 {dimension_numbers = #tpu.dot_dimension_numbers<[1], [0], [0], [1], [0, 0, 1, 1], [], []>} : vector<2x32xf32>, vector<32x32xf32>, vector<2x32xf32> -> vector<2x32xf32>
    %654 = arith.addf %653, %645 : vector<2x32xf32>
    %cst_238 = arith.constant dense<0.000000e+00> : vector<2x32xf32>
    %655 = tpu.matmul %650, %637, %cst_238 {dimension_numbers = #tpu.dot_dimension_numbers<[1], [0], [0], [1], [0, 0, 1, 1], [], []>} : vector<2x32xf32>, vector<32x32xf32>, vector<2x32xf32> -> vector<2x32xf32>
    %656 = arith.addf %655, %649 : vector<2x32xf32>
    %657 = vector.extract_strided_slice %617 {offsets = [0, 0], sizes = [2, 32], strides = [1, 1]} : vector<32x32xf32> to vector<2x32xf32>
    %658 = arith.addf %657, %652 : vector<2x32xf32>
    %659 = arith.negf %658 : vector<2x32xf32>
    %660 = math.exp %659 : vector<2x32xf32>
    %cst_239 = arith.constant 1.000000e+00 : f32
    %661 = vector.broadcast %cst_239 : f32 to vector<2x32xf32>
    %662 = arith.addf %661, %660 : vector<2x32xf32>
    %663 = arith.divf %661, %662 : vector<2x32xf32>
    %664 = vector.extract_strided_slice %624 {offsets = [0, 0], sizes = [2, 32], strides = [1, 1]} : vector<32x32xf32> to vector<2x32xf32>
    %665 = arith.addf %664, %654 : vector<2x32xf32>
    %666 = arith.negf %665 : vector<2x32xf32>
    %667 = math.exp %666 : vector<2x32xf32>
    %cst_240 = arith.constant 1.000000e+00 : f32
    %668 = vector.broadcast %cst_240 : f32 to vector<2x32xf32>
    %669 = arith.addf %668, %667 : vector<2x32xf32>
    %670 = arith.divf %668, %669 : vector<2x32xf32>
    %671 = vector.extract_strided_slice %631 {offsets = [0, 0], sizes = [2, 32], strides = [1, 1]} : vector<32x32xf32> to vector<2x32xf32>
    %672 = arith.mulf %663, %656 : vector<2x32xf32>
    %673 = arith.addf %671, %672 : vector<2x32xf32>
    %674 = math.tanh %673 : vector<2x32xf32>
    %cst_241 = arith.constant 1.000000e+00 : f32
    %675 = vector.broadcast %cst_241 : f32 to vector<2x32xf32>
    %676 = arith.subf %675, %670 : vector<2x32xf32>
    %677 = arith.mulf %676, %674 : vector<2x32xf32>
    %678 = arith.mulf %670, %650 : vector<2x32xf32>
    %679 = arith.addf %677, %678 : vector<2x32xf32>
    %c0_242 = arith.constant 0 : index
    %c0_243 = arith.constant 0 : index
    %c0_244 = arith.constant 0 : index
    %680 = vector.load %arg20[%c0_242, %c0_243, %c0_244] : memref<16x2x32xf32, #tpu.memory_space<vmem>>, vector<1x2x32xf32>
    %681 = vector.shape_cast %680 : vector<1x2x32xf32> to vector<2x32xf32>
    %682 = vector.shape_cast %679 : vector<2x32xf32> to vector<1x2x32xf32>
    tpu.vector_store %arg20[%c0_242, %c0_243, %c0_244], %682 {strides = array<i32>} : memref<16x2x32xf32, #tpu.memory_space<vmem>>, vector<1x2x32xf32>,
    %cst_245 = arith.constant dense<0.000000e+00> : vector<2x32xf32>
    %683 = tpu.matmul %679, %633, %cst_245 {dimension_numbers = #tpu.dot_dimension_numbers<[1], [0], [0], [1], [0, 0, 1, 1], [], []>} : vector<2x32xf32>, vector<32x32xf32>, vector<2x32xf32> -> vector<2x32xf32>
    %684 = arith.addf %683, %641 : vector<2x32xf32>
    %cst_246 = arith.constant dense<0.000000e+00> : vector<2x32xf32>
    %685 = tpu.matmul %679, %635, %cst_246 {dimension_numbers = #tpu.dot_dimension_numbers<[1], [0], [0], [1], [0, 0, 1, 1], [], []>} : vector<2x32xf32>, vector<32x32xf32>, vector<2x32xf32> -> vector<2x32xf32>
    %686 = arith.addf %685, %645 : vector<2x32xf32>
    %cst_247 = arith.constant dense<0.000000e+00> : vector<2x32xf32>
    %687 = tpu.matmul %679, %637, %cst_247 {dimension_numbers = #tpu.dot_dimension_numbers<[1], [0], [0], [1], [0, 0, 1, 1], [], []>} : vector<2x32xf32>, vector<32x32xf32>, vector<2x32xf32> -> vector<2x32xf32>
    %688 = arith.addf %687, %649 : vector<2x32xf32>
    %689 = vector.extract_strided_slice %617 {offsets = [2, 0], sizes = [2, 32], strides = [1, 1]} : vector<32x32xf32> to vector<2x32xf32>
    %690 = arith.addf %689, %684 : vector<2x32xf32>
    %691 = arith.negf %690 : vector<2x32xf32>
    %692 = math.exp %691 : vector<2x32xf32>
    %cst_248 = arith.constant 1.000000e+00 : f32
    %693 = vector.broadcast %cst_248 : f32 to vector<2x32xf32>
    %694 = arith.addf %693, %692 : vector<2x32xf32>
    %695 = arith.divf %693, %694 : vector<2x32xf32>
    %696 = vector.extract_strided_slice %624 {offsets = [2, 0], sizes = [2, 32], strides = [1, 1]} : vector<32x32xf32> to vector<2x32xf32>
    %697 = arith.addf %696, %686 : vector<2x32xf32>
    %698 = arith.negf %697 : vector<2x32xf32>
    %699 = math.exp %698 : vector<2x32xf32>
    %cst_249 = arith.constant 1.000000e+00 : f32
    %700 = vector.broadcast %cst_249 : f32 to vector<2x32xf32>
    %701 = arith.addf %700, %699 : vector<2x32xf32>
    %702 = arith.divf %700, %701 : vector<2x32xf32>
    %703 = vector.extract_strided_slice %631 {offsets = [2, 0], sizes = [2, 32], strides = [1, 1]} : vector<32x32xf32> to vector<2x32xf32>
    %704 = arith.mulf %695, %688 : vector<2x32xf32>
    %705 = arith.addf %703, %704 : vector<2x32xf32>
    %706 = math.tanh %705 : vector<2x32xf32>
    %cst_250 = arith.constant 1.000000e+00 : f32
    %707 = vector.broadcast %cst_250 : f32 to vector<2x32xf32>
    %708 = arith.subf %707, %702 : vector<2x32xf32>
    %709 = arith.mulf %708, %706 : vector<2x32xf32>
    %710 = arith.mulf %702, %679 : vector<2x32xf32>
    %711 = arith.addf %709, %710 : vector<2x32xf32>
    %c1_251 = arith.constant 1 : index
    %c0_252 = arith.constant 0 : index
    %c0_253 = arith.constant 0 : index
    %712 = vector.load %arg20[%c1_251, %c0_252, %c0_253] : memref<16x2x32xf32, #tpu.memory_space<vmem>>, vector<1x2x32xf32>
    %713 = vector.shape_cast %712 : vector<1x2x32xf32> to vector<2x32xf32>
    %714 = vector.shape_cast %711 : vector<2x32xf32> to vector<1x2x32xf32>
    tpu.vector_store %arg20[%c1_251, %c0_252, %c0_253], %714 {strides = array<i32>} : memref<16x2x32xf32, #tpu.memory_space<vmem>>, vector<1x2x32xf32>,
    %cst_254 = arith.constant dense<0.000000e+00> : vector<2x32xf32>
    %715 = tpu.matmul %711, %633, %cst_254 {dimension_numbers = #tpu.dot_dimension_numbers<[1], [0], [0], [1], [0, 0, 1, 1], [], []>} : vector<2x32xf32>, vector<32x32xf32>, vector<2x32xf32> -> vector<2x32xf32>
    %716 = arith.addf %715, %641 : vector<2x32xf32>
    %cst_255 = arith.constant dense<0.000000e+00> : vector<2x32xf32>
    %717 = tpu.matmul %711, %635, %cst_255 {dimension_numbers = #tpu.dot_dimension_numbers<[1], [0], [0], [1], [0, 0, 1, 1], [], []>} : vector<2x32xf32>, vector<32x32xf32>, vector<2x32xf32> -> vector<2x32xf32>
    %718 = arith.addf %717, %645 : vector<2x32xf32>
    %cst_256 = arith.constant dense<0.000000e+00> : vector<2x32xf32>
    %719 = tpu.matmul %711, %637, %cst_256 {dimension_numbers = #tpu.dot_dimension_numbers<[1], [0], [0], [1], [0, 0, 1, 1], [], []>} : vector<2x32xf32>, vector<32x32xf32>, vector<2x32xf32> -> vector<2x32xf32>
    %720 = arith.addf %719, %649 : vector<2x32xf32>
    %721 = vector.extract_strided_slice %617 {offsets = [4, 0], sizes = [2, 32], strides = [1, 1]} : vector<32x32xf32> to vector<2x32xf32>
    %722 = arith.addf %721, %716 : vector<2x32xf32>
    %723 = arith.negf %722 : vector<2x32xf32>
    %724 = math.exp %723 : vector<2x32xf32>
    %cst_257 = arith.constant 1.000000e+00 : f32
    %725 = vector.broadcast %cst_257 : f32 to vector<2x32xf32>
    %726 = arith.addf %725, %724 : vector<2x32xf32>
    %727 = arith.divf %725, %726 : vector<2x32xf32>
    %728 = vector.extract_strided_slice %624 {offsets = [4, 0], sizes = [2, 32], strides = [1, 1]} : vector<32x32xf32> to vector<2x32xf32>
    %729 = arith.addf %728, %718 : vector<2x32xf32>
    %730 = arith.negf %729 : vector<2x32xf32>
    %731 = math.exp %730 : vector<2x32xf32>
    %cst_258 = arith.constant 1.000000e+00 : f32
    %732 = vector.broadcast %cst_258 : f32 to vector<2x32xf32>
    %733 = arith.addf %732, %731 : vector<2x32xf32>
    %734 = arith.divf %732, %733 : vector<2x32xf32>
    %735 = vector.extract_strided_slice %631 {offsets = [4, 0], sizes = [2, 32], strides = [1, 1]} : vector<32x32xf32> to vector<2x32xf32>
    %736 = arith.mulf %727, %720 : vector<2x32xf32>
    %737 = arith.addf %735, %736 : vector<2x32xf32>
    %738 = math.tanh %737 : vector<2x32xf32>
    %cst_259 = arith.constant 1.000000e+00 : f32
    %739 = vector.broadcast %cst_259 : f32 to vector<2x32xf32>
    %740 = arith.subf %739, %734 : vector<2x32xf32>
    %741 = arith.mulf %740, %738 : vector<2x32xf32>
    %742 = arith.mulf %734, %711 : vector<2x32xf32>
    %743 = arith.addf %741, %742 : vector<2x32xf32>
    %c2_260 = arith.constant 2 : index
    %c0_261 = arith.constant 0 : index
    %c0_262 = arith.constant 0 : index
    %744 = vector.load %arg20[%c2_260, %c0_261, %c0_262] : memref<16x2x32xf32, #tpu.memory_space<vmem>>, vector<1x2x32xf32>
    %745 = vector.shape_cast %744 : vector<1x2x32xf32> to vector<2x32xf32>
    %746 = vector.shape_cast %743 : vector<2x32xf32> to vector<1x2x32xf32>
    tpu.vector_store %arg20[%c2_260, %c0_261, %c0_262], %746 {strides = array<i32>} : memref<16x2x32xf32, #tpu.memory_space<vmem>>, vector<1x2x32xf32>,
    %cst_263 = arith.constant dense<0.000000e+00> : vector<2x32xf32>
    %747 = tpu.matmul %743, %633, %cst_263 {dimension_numbers = #tpu.dot_dimension_numbers<[1], [0], [0], [1], [0, 0, 1, 1], [], []>} : vector<2x32xf32>, vector<32x32xf32>, vector<2x32xf32> -> vector<2x32xf32>
    %748 = arith.addf %747, %641 : vector<2x32xf32>
    %cst_264 = arith.constant dense<0.000000e+00> : vector<2x32xf32>
    %749 = tpu.matmul %743, %635, %cst_264 {dimension_numbers = #tpu.dot_dimension_numbers<[1], [0], [0], [1], [0, 0, 1, 1], [], []>} : vector<2x32xf32>, vector<32x32xf32>, vector<2x32xf32> -> vector<2x32xf32>
    %750 = arith.addf %749, %645 : vector<2x32xf32>
    %cst_265 = arith.constant dense<0.000000e+00> : vector<2x32xf32>
    %751 = tpu.matmul %743, %637, %cst_265 {dimension_numbers = #tpu.dot_dimension_numbers<[1], [0], [0], [1], [0, 0, 1, 1], [], []>} : vector<2x32xf32>, vector<32x32xf32>, vector<2x32xf32> -> vector<2x32xf32>
    %752 = arith.addf %751, %649 : vector<2x32xf32>
    %753 = vector.extract_strided_slice %617 {offsets = [6, 0], sizes = [2, 32], strides = [1, 1]} : vector<32x32xf32> to vector<2x32xf32>
    %754 = arith.addf %753, %748 : vector<2x32xf32>
    %755 = arith.negf %754 : vector<2x32xf32>
    %756 = math.exp %755 : vector<2x32xf32>
    %cst_266 = arith.constant 1.000000e+00 : f32
    %757 = vector.broadcast %cst_266 : f32 to vector<2x32xf32>
    %758 = arith.addf %757, %756 : vector<2x32xf32>
    %759 = arith.divf %757, %758 : vector<2x32xf32>
    %760 = vector.extract_strided_slice %624 {offsets = [6, 0], sizes = [2, 32], strides = [1, 1]} : vector<32x32xf32> to vector<2x32xf32>
    %761 = arith.addf %760, %750 : vector<2x32xf32>
    %762 = arith.negf %761 : vector<2x32xf32>
    %763 = math.exp %762 : vector<2x32xf32>
    %cst_267 = arith.constant 1.000000e+00 : f32
    %764 = vector.broadcast %cst_267 : f32 to vector<2x32xf32>
    %765 = arith.addf %764, %763 : vector<2x32xf32>
    %766 = arith.divf %764, %765 : vector<2x32xf32>
    %767 = vector.extract_strided_slice %631 {offsets = [6, 0], sizes = [2, 32], strides = [1, 1]} : vector<32x32xf32> to vector<2x32xf32>
    %768 = arith.mulf %759, %752 : vector<2x32xf32>
    %769 = arith.addf %767, %768 : vector<2x32xf32>
    %770 = math.tanh %769 : vector<2x32xf32>
    %cst_268 = arith.constant 1.000000e+00 : f32
    %771 = vector.broadcast %cst_268 : f32 to vector<2x32xf32>
    %772 = arith.subf %771, %766 : vector<2x32xf32>
    %773 = arith.mulf %772, %770 : vector<2x32xf32>
    %774 = arith.mulf %766, %743 : vector<2x32xf32>
    %775 = arith.addf %773, %774 : vector<2x32xf32>
    %c3_269 = arith.constant 3 : index
    %c0_270 = arith.constant 0 : index
    %c0_271 = arith.constant 0 : index
    %776 = vector.load %arg20[%c3_269, %c0_270, %c0_271] : memref<16x2x32xf32, #tpu.memory_space<vmem>>, vector<1x2x32xf32>
    %777 = vector.shape_cast %776 : vector<1x2x32xf32> to vector<2x32xf32>
    %778 = vector.shape_cast %775 : vector<2x32xf32> to vector<1x2x32xf32>
    tpu.vector_store %arg20[%c3_269, %c0_270, %c0_271], %778 {strides = array<i32>} : memref<16x2x32xf32, #tpu.memory_space<vmem>>, vector<1x2x32xf32>,
    %cst_272 = arith.constant dense<0.000000e+00> : vector<2x32xf32>
    %779 = tpu.matmul %775, %633, %cst_272 {dimension_numbers = #tpu.dot_dimension_numbers<[1], [0], [0], [1], [0, 0, 1, 1], [], []>} : vector<2x32xf32>, vector<32x32xf32>, vector<2x32xf32> -> vector<2x32xf32>
    %780 = arith.addf %779, %641 : vector<2x32xf32>
    %cst_273 = arith.constant dense<0.000000e+00> : vector<2x32xf32>
    %781 = tpu.matmul %775, %635, %cst_273 {dimension_numbers = #tpu.dot_dimension_numbers<[1], [0], [0], [1], [0, 0, 1, 1], [], []>} : vector<2x32xf32>, vector<32x32xf32>, vector<2x32xf32> -> vector<2x32xf32>
    %782 = arith.addf %781, %645 : vector<2x32xf32>
    %cst_274 = arith.constant dense<0.000000e+00> : vector<2x32xf32>
    %783 = tpu.matmul %775, %637, %cst_274 {dimension_numbers = #tpu.dot_dimension_numbers<[1], [0], [0], [1], [0, 0, 1, 1], [], []>} : vector<2x32xf32>, vector<32x32xf32>, vector<2x32xf32> -> vector<2x32xf32>
    %784 = arith.addf %783, %649 : vector<2x32xf32>
    %785 = vector.extract_strided_slice %617 {offsets = [8, 0], sizes = [2, 32], strides = [1, 1]} : vector<32x32xf32> to vector<2x32xf32>
    %786 = arith.addf %785, %780 : vector<2x32xf32>
    %787 = arith.negf %786 : vector<2x32xf32>
    %788 = math.exp %787 : vector<2x32xf32>
    %cst_275 = arith.constant 1.000000e+00 : f32
    %789 = vector.broadcast %cst_275 : f32 to vector<2x32xf32>
    %790 = arith.addf %789, %788 : vector<2x32xf32>
    %791 = arith.divf %789, %790 : vector<2x32xf32>
    %792 = vector.extract_strided_slice %624 {offsets = [8, 0], sizes = [2, 32], strides = [1, 1]} : vector<32x32xf32> to vector<2x32xf32>
    %793 = arith.addf %792, %782 : vector<2x32xf32>
    %794 = arith.negf %793 : vector<2x32xf32>
    %795 = math.exp %794 : vector<2x32xf32>
    %cst_276 = arith.constant 1.000000e+00 : f32
    %796 = vector.broadcast %cst_276 : f32 to vector<2x32xf32>
    %797 = arith.addf %796, %795 : vector<2x32xf32>
    %798 = arith.divf %796, %797 : vector<2x32xf32>
    %799 = vector.extract_strided_slice %631 {offsets = [8, 0], sizes = [2, 32], strides = [1, 1]} : vector<32x32xf32> to vector<2x32xf32>
    %800 = arith.mulf %791, %784 : vector<2x32xf32>
    %801 = arith.addf %799, %800 : vector<2x32xf32>
    %802 = math.tanh %801 : vector<2x32xf32>
    %cst_277 = arith.constant 1.000000e+00 : f32
    %803 = vector.broadcast %cst_277 : f32 to vector<2x32xf32>
    %804 = arith.subf %803, %798 : vector<2x32xf32>
    %805 = arith.mulf %804, %802 : vector<2x32xf32>
    %806 = arith.mulf %798, %775 : vector<2x32xf32>
    %807 = arith.addf %805, %806 : vector<2x32xf32>
    %c4_278 = arith.constant 4 : index
    %c0_279 = arith.constant 0 : index
    %c0_280 = arith.constant 0 : index
    %808 = vector.load %arg20[%c4_278, %c0_279, %c0_280] : memref<16x2x32xf32, #tpu.memory_space<vmem>>, vector<1x2x32xf32>
    %809 = vector.shape_cast %808 : vector<1x2x32xf32> to vector<2x32xf32>
    %810 = vector.shape_cast %807 : vector<2x32xf32> to vector<1x2x32xf32>
    tpu.vector_store %arg20[%c4_278, %c0_279, %c0_280], %810 {strides = array<i32>} : memref<16x2x32xf32, #tpu.memory_space<vmem>>, vector<1x2x32xf32>,
    %cst_281 = arith.constant dense<0.000000e+00> : vector<2x32xf32>
    %811 = tpu.matmul %807, %633, %cst_281 {dimension_numbers = #tpu.dot_dimension_numbers<[1], [0], [0], [1], [0, 0, 1, 1], [], []>} : vector<2x32xf32>, vector<32x32xf32>, vector<2x32xf32> -> vector<2x32xf32>
    %812 = arith.addf %811, %641 : vector<2x32xf32>
    %cst_282 = arith.constant dense<0.000000e+00> : vector<2x32xf32>
    %813 = tpu.matmul %807, %635, %cst_282 {dimension_numbers = #tpu.dot_dimension_numbers<[1], [0], [0], [1], [0, 0, 1, 1], [], []>} : vector<2x32xf32>, vector<32x32xf32>, vector<2x32xf32> -> vector<2x32xf32>
    %814 = arith.addf %813, %645 : vector<2x32xf32>
    %cst_283 = arith.constant dense<0.000000e+00> : vector<2x32xf32>
    %815 = tpu.matmul %807, %637, %cst_283 {dimension_numbers = #tpu.dot_dimension_numbers<[1], [0], [0], [1], [0, 0, 1, 1], [], []>} : vector<2x32xf32>, vector<32x32xf32>, vector<2x32xf32> -> vector<2x32xf32>
    %816 = arith.addf %815, %649 : vector<2x32xf32>
    %817 = vector.extract_strided_slice %617 {offsets = [10, 0], sizes = [2, 32], strides = [1, 1]} : vector<32x32xf32> to vector<2x32xf32>
    %818 = arith.addf %817, %812 : vector<2x32xf32>
    %819 = arith.negf %818 : vector<2x32xf32>
    %820 = math.exp %819 : vector<2x32xf32>
    %cst_284 = arith.constant 1.000000e+00 : f32
    %821 = vector.broadcast %cst_284 : f32 to vector<2x32xf32>
    %822 = arith.addf %821, %820 : vector<2x32xf32>
    %823 = arith.divf %821, %822 : vector<2x32xf32>
    %824 = vector.extract_strided_slice %624 {offsets = [10, 0], sizes = [2, 32], strides = [1, 1]} : vector<32x32xf32> to vector<2x32xf32>
    %825 = arith.addf %824, %814 : vector<2x32xf32>
    %826 = arith.negf %825 : vector<2x32xf32>
    %827 = math.exp %826 : vector<2x32xf32>
    %cst_285 = arith.constant 1.000000e+00 : f32
    %828 = vector.broadcast %cst_285 : f32 to vector<2x32xf32>
    %829 = arith.addf %828, %827 : vector<2x32xf32>
    %830 = arith.divf %828, %829 : vector<2x32xf32>
    %831 = vector.extract_strided_slice %631 {offsets = [10, 0], sizes = [2, 32], strides = [1, 1]} : vector<32x32xf32> to vector<2x32xf32>
    %832 = arith.mulf %823, %816 : vector<2x32xf32>
    %833 = arith.addf %831, %832 : vector<2x32xf32>
    %834 = math.tanh %833 : vector<2x32xf32>
    %cst_286 = arith.constant 1.000000e+00 : f32
    %835 = vector.broadcast %cst_286 : f32 to vector<2x32xf32>
    %836 = arith.subf %835, %830 : vector<2x32xf32>
    %837 = arith.mulf %836, %834 : vector<2x32xf32>
    %838 = arith.mulf %830, %807 : vector<2x32xf32>
    %839 = arith.addf %837, %838 : vector<2x32xf32>
    %c5_287 = arith.constant 5 : index
    %c0_288 = arith.constant 0 : index
    %c0_289 = arith.constant 0 : index
    %840 = vector.load %arg20[%c5_287, %c0_288, %c0_289] : memref<16x2x32xf32, #tpu.memory_space<vmem>>, vector<1x2x32xf32>
    %841 = vector.shape_cast %840 : vector<1x2x32xf32> to vector<2x32xf32>
    %842 = vector.shape_cast %839 : vector<2x32xf32> to vector<1x2x32xf32>
    tpu.vector_store %arg20[%c5_287, %c0_288, %c0_289], %842 {strides = array<i32>} : memref<16x2x32xf32, #tpu.memory_space<vmem>>, vector<1x2x32xf32>,
    %cst_290 = arith.constant dense<0.000000e+00> : vector<2x32xf32>
    %843 = tpu.matmul %839, %633, %cst_290 {dimension_numbers = #tpu.dot_dimension_numbers<[1], [0], [0], [1], [0, 0, 1, 1], [], []>} : vector<2x32xf32>, vector<32x32xf32>, vector<2x32xf32> -> vector<2x32xf32>
    %844 = arith.addf %843, %641 : vector<2x32xf32>
    %cst_291 = arith.constant dense<0.000000e+00> : vector<2x32xf32>
    %845 = tpu.matmul %839, %635, %cst_291 {dimension_numbers = #tpu.dot_dimension_numbers<[1], [0], [0], [1], [0, 0, 1, 1], [], []>} : vector<2x32xf32>, vector<32x32xf32>, vector<2x32xf32> -> vector<2x32xf32>
    %846 = arith.addf %845, %645 : vector<2x32xf32>
    %cst_292 = arith.constant dense<0.000000e+00> : vector<2x32xf32>
    %847 = tpu.matmul %839, %637, %cst_292 {dimension_numbers = #tpu.dot_dimension_numbers<[1], [0], [0], [1], [0, 0, 1, 1], [], []>} : vector<2x32xf32>, vector<32x32xf32>, vector<2x32xf32> -> vector<2x32xf32>
    %848 = arith.addf %847, %649 : vector<2x32xf32>
    %849 = vector.extract_strided_slice %617 {offsets = [12, 0], sizes = [2, 32], strides = [1, 1]} : vector<32x32xf32> to vector<2x32xf32>
    %850 = arith.addf %849, %844 : vector<2x32xf32>
    %851 = arith.negf %850 : vector<2x32xf32>
    %852 = math.exp %851 : vector<2x32xf32>
    %cst_293 = arith.constant 1.000000e+00 : f32
    %853 = vector.broadcast %cst_293 : f32 to vector<2x32xf32>
    %854 = arith.addf %853, %852 : vector<2x32xf32>
    %855 = arith.divf %853, %854 : vector<2x32xf32>
    %856 = vector.extract_strided_slice %624 {offsets = [12, 0], sizes = [2, 32], strides = [1, 1]} : vector<32x32xf32> to vector<2x32xf32>
    %857 = arith.addf %856, %846 : vector<2x32xf32>
    %858 = arith.negf %857 : vector<2x32xf32>
    %859 = math.exp %858 : vector<2x32xf32>
    %cst_294 = arith.constant 1.000000e+00 : f32
    %860 = vector.broadcast %cst_294 : f32 to vector<2x32xf32>
    %861 = arith.addf %860, %859 : vector<2x32xf32>
    %862 = arith.divf %860, %861 : vector<2x32xf32>
    %863 = vector.extract_strided_slice %631 {offsets = [12, 0], sizes = [2, 32], strides = [1, 1]} : vector<32x32xf32> to vector<2x32xf32>
    %864 = arith.mulf %855, %848 : vector<2x32xf32>
    %865 = arith.addf %863, %864 : vector<2x32xf32>
    %866 = math.tanh %865 : vector<2x32xf32>
    %cst_295 = arith.constant 1.000000e+00 : f32
    %867 = vector.broadcast %cst_295 : f32 to vector<2x32xf32>
    %868 = arith.subf %867, %862 : vector<2x32xf32>
    %869 = arith.mulf %868, %866 : vector<2x32xf32>
    %870 = arith.mulf %862, %839 : vector<2x32xf32>
    %871 = arith.addf %869, %870 : vector<2x32xf32>
    %c6_296 = arith.constant 6 : index
    %c0_297 = arith.constant 0 : index
    %c0_298 = arith.constant 0 : index
    %872 = vector.load %arg20[%c6_296, %c0_297, %c0_298] : memref<16x2x32xf32, #tpu.memory_space<vmem>>, vector<1x2x32xf32>
    %873 = vector.shape_cast %872 : vector<1x2x32xf32> to vector<2x32xf32>
    %874 = vector.shape_cast %871 : vector<2x32xf32> to vector<1x2x32xf32>
    tpu.vector_store %arg20[%c6_296, %c0_297, %c0_298], %874 {strides = array<i32>} : memref<16x2x32xf32, #tpu.memory_space<vmem>>, vector<1x2x32xf32>,
    %cst_299 = arith.constant dense<0.000000e+00> : vector<2x32xf32>
    %875 = tpu.matmul %871, %633, %cst_299 {dimension_numbers = #tpu.dot_dimension_numbers<[1], [0], [0], [1], [0, 0, 1, 1], [], []>} : vector<2x32xf32>, vector<32x32xf32>, vector<2x32xf32> -> vector<2x32xf32>
    %876 = arith.addf %875, %641 : vector<2x32xf32>
    %cst_300 = arith.constant dense<0.000000e+00> : vector<2x32xf32>
    %877 = tpu.matmul %871, %635, %cst_300 {dimension_numbers = #tpu.dot_dimension_numbers<[1], [0], [0], [1], [0, 0, 1, 1], [], []>} : vector<2x32xf32>, vector<32x32xf32>, vector<2x32xf32> -> vector<2x32xf32>
    %878 = arith.addf %877, %645 : vector<2x32xf32>
    %cst_301 = arith.constant dense<0.000000e+00> : vector<2x32xf32>
    %879 = tpu.matmul %871, %637, %cst_301 {dimension_numbers = #tpu.dot_dimension_numbers<[1], [0], [0], [1], [0, 0, 1, 1], [], []>} : vector<2x32xf32>, vector<32x32xf32>, vector<2x32xf32> -> vector<2x32xf32>
    %880 = arith.addf %879, %649 : vector<2x32xf32>
    %881 = vector.extract_strided_slice %617 {offsets = [14, 0], sizes = [2, 32], strides = [1, 1]} : vector<32x32xf32> to vector<2x32xf32>
    %882 = arith.addf %881, %876 : vector<2x32xf32>
    %883 = arith.negf %882 : vector<2x32xf32>
    %884 = math.exp %883 : vector<2x32xf32>
    %cst_302 = arith.constant 1.000000e+00 : f32
    %885 = vector.broadcast %cst_302 : f32 to vector<2x32xf32>
    %886 = arith.addf %885, %884 : vector<2x32xf32>
    %887 = arith.divf %885, %886 : vector<2x32xf32>
    %888 = vector.extract_strided_slice %624 {offsets = [14, 0], sizes = [2, 32], strides = [1, 1]} : vector<32x32xf32> to vector<2x32xf32>
    %889 = arith.addf %888, %878 : vector<2x32xf32>
    %890 = arith.negf %889 : vector<2x32xf32>
    %891 = math.exp %890 : vector<2x32xf32>
    %cst_303 = arith.constant 1.000000e+00 : f32
    %892 = vector.broadcast %cst_303 : f32 to vector<2x32xf32>
    %893 = arith.addf %892, %891 : vector<2x32xf32>
    %894 = arith.divf %892, %893 : vector<2x32xf32>
    %895 = vector.extract_strided_slice %631 {offsets = [14, 0], sizes = [2, 32], strides = [1, 1]} : vector<32x32xf32> to vector<2x32xf32>
    %896 = arith.mulf %887, %880 : vector<2x32xf32>
    %897 = arith.addf %895, %896 : vector<2x32xf32>
    %898 = math.tanh %897 : vector<2x32xf32>
    %cst_304 = arith.constant 1.000000e+00 : f32
    %899 = vector.broadcast %cst_304 : f32 to vector<2x32xf32>
    %900 = arith.subf %899, %894 : vector<2x32xf32>
    %901 = arith.mulf %900, %898 : vector<2x32xf32>
    %902 = arith.mulf %894, %871 : vector<2x32xf32>
    %903 = arith.addf %901, %902 : vector<2x32xf32>
    %c7_305 = arith.constant 7 : index
    %c0_306 = arith.constant 0 : index
    %c0_307 = arith.constant 0 : index
    %904 = vector.load %arg20[%c7_305, %c0_306, %c0_307] : memref<16x2x32xf32, #tpu.memory_space<vmem>>, vector<1x2x32xf32>
    %905 = vector.shape_cast %904 : vector<1x2x32xf32> to vector<2x32xf32>
    %906 = vector.shape_cast %903 : vector<2x32xf32> to vector<1x2x32xf32>
    tpu.vector_store %arg20[%c7_305, %c0_306, %c0_307], %906 {strides = array<i32>} : memref<16x2x32xf32, #tpu.memory_space<vmem>>, vector<1x2x32xf32>,
    %cst_308 = arith.constant dense<0.000000e+00> : vector<2x32xf32>
    %907 = tpu.matmul %903, %633, %cst_308 {dimension_numbers = #tpu.dot_dimension_numbers<[1], [0], [0], [1], [0, 0, 1, 1], [], []>} : vector<2x32xf32>, vector<32x32xf32>, vector<2x32xf32> -> vector<2x32xf32>
    %908 = arith.addf %907, %641 : vector<2x32xf32>
    %cst_309 = arith.constant dense<0.000000e+00> : vector<2x32xf32>
    %909 = tpu.matmul %903, %635, %cst_309 {dimension_numbers = #tpu.dot_dimension_numbers<[1], [0], [0], [1], [0, 0, 1, 1], [], []>} : vector<2x32xf32>, vector<32x32xf32>, vector<2x32xf32> -> vector<2x32xf32>
    %910 = arith.addf %909, %645 : vector<2x32xf32>
    %cst_310 = arith.constant dense<0.000000e+00> : vector<2x32xf32>
    %911 = tpu.matmul %903, %637, %cst_310 {dimension_numbers = #tpu.dot_dimension_numbers<[1], [0], [0], [1], [0, 0, 1, 1], [], []>} : vector<2x32xf32>, vector<32x32xf32>, vector<2x32xf32> -> vector<2x32xf32>
    %912 = arith.addf %911, %649 : vector<2x32xf32>
    %913 = vector.extract_strided_slice %617 {offsets = [16, 0], sizes = [2, 32], strides = [1, 1]} : vector<32x32xf32> to vector<2x32xf32>
    %914 = arith.addf %913, %908 : vector<2x32xf32>
    %915 = arith.negf %914 : vector<2x32xf32>
    %916 = math.exp %915 : vector<2x32xf32>
    %cst_311 = arith.constant 1.000000e+00 : f32
    %917 = vector.broadcast %cst_311 : f32 to vector<2x32xf32>
    %918 = arith.addf %917, %916 : vector<2x32xf32>
    %919 = arith.divf %917, %918 : vector<2x32xf32>
    %920 = vector.extract_strided_slice %624 {offsets = [16, 0], sizes = [2, 32], strides = [1, 1]} : vector<32x32xf32> to vector<2x32xf32>
    %921 = arith.addf %920, %910 : vector<2x32xf32>
    %922 = arith.negf %921 : vector<2x32xf32>
    %923 = math.exp %922 : vector<2x32xf32>
    %cst_312 = arith.constant 1.000000e+00 : f32
    %924 = vector.broadcast %cst_312 : f32 to vector<2x32xf32>
    %925 = arith.addf %924, %923 : vector<2x32xf32>
    %926 = arith.divf %924, %925 : vector<2x32xf32>
    %927 = vector.extract_strided_slice %631 {offsets = [16, 0], sizes = [2, 32], strides = [1, 1]} : vector<32x32xf32> to vector<2x32xf32>
    %928 = arith.mulf %919, %912 : vector<2x32xf32>
    %929 = arith.addf %927, %928 : vector<2x32xf32>
    %930 = math.tanh %929 : vector<2x32xf32>
    %cst_313 = arith.constant 1.000000e+00 : f32
    %931 = vector.broadcast %cst_313 : f32 to vector<2x32xf32>
    %932 = arith.subf %931, %926 : vector<2x32xf32>
    %933 = arith.mulf %932, %930 : vector<2x32xf32>
    %934 = arith.mulf %926, %903 : vector<2x32xf32>
    %935 = arith.addf %933, %934 : vector<2x32xf32>
    %c8_314 = arith.constant 8 : index
    %c0_315 = arith.constant 0 : index
    %c0_316 = arith.constant 0 : index
    %936 = vector.load %arg20[%c8_314, %c0_315, %c0_316] : memref<16x2x32xf32, #tpu.memory_space<vmem>>, vector<1x2x32xf32>
    %937 = vector.shape_cast %936 : vector<1x2x32xf32> to vector<2x32xf32>
    %938 = vector.shape_cast %935 : vector<2x32xf32> to vector<1x2x32xf32>
    tpu.vector_store %arg20[%c8_314, %c0_315, %c0_316], %938 {strides = array<i32>} : memref<16x2x32xf32, #tpu.memory_space<vmem>>, vector<1x2x32xf32>,
    %cst_317 = arith.constant dense<0.000000e+00> : vector<2x32xf32>
    %939 = tpu.matmul %935, %633, %cst_317 {dimension_numbers = #tpu.dot_dimension_numbers<[1], [0], [0], [1], [0, 0, 1, 1], [], []>} : vector<2x32xf32>, vector<32x32xf32>, vector<2x32xf32> -> vector<2x32xf32>
    %940 = arith.addf %939, %641 : vector<2x32xf32>
    %cst_318 = arith.constant dense<0.000000e+00> : vector<2x32xf32>
    %941 = tpu.matmul %935, %635, %cst_318 {dimension_numbers = #tpu.dot_dimension_numbers<[1], [0], [0], [1], [0, 0, 1, 1], [], []>} : vector<2x32xf32>, vector<32x32xf32>, vector<2x32xf32> -> vector<2x32xf32>
    %942 = arith.addf %941, %645 : vector<2x32xf32>
    %cst_319 = arith.constant dense<0.000000e+00> : vector<2x32xf32>
    %943 = tpu.matmul %935, %637, %cst_319 {dimension_numbers = #tpu.dot_dimension_numbers<[1], [0], [0], [1], [0, 0, 1, 1], [], []>} : vector<2x32xf32>, vector<32x32xf32>, vector<2x32xf32> -> vector<2x32xf32>
    %944 = arith.addf %943, %649 : vector<2x32xf32>
    %945 = vector.extract_strided_slice %617 {offsets = [18, 0], sizes = [2, 32], strides = [1, 1]} : vector<32x32xf32> to vector<2x32xf32>
    %946 = arith.addf %945, %940 : vector<2x32xf32>
    %947 = arith.negf %946 : vector<2x32xf32>
    %948 = math.exp %947 : vector<2x32xf32>
    %cst_320 = arith.constant 1.000000e+00 : f32
    %949 = vector.broadcast %cst_320 : f32 to vector<2x32xf32>
    %950 = arith.addf %949, %948 : vector<2x32xf32>
    %951 = arith.divf %949, %950 : vector<2x32xf32>
    %952 = vector.extract_strided_slice %624 {offsets = [18, 0], sizes = [2, 32], strides = [1, 1]} : vector<32x32xf32> to vector<2x32xf32>
    %953 = arith.addf %952, %942 : vector<2x32xf32>
    %954 = arith.negf %953 : vector<2x32xf32>
    %955 = math.exp %954 : vector<2x32xf32>
    %cst_321 = arith.constant 1.000000e+00 : f32
    %956 = vector.broadcast %cst_321 : f32 to vector<2x32xf32>
    %957 = arith.addf %956, %955 : vector<2x32xf32>
    %958 = arith.divf %956, %957 : vector<2x32xf32>
    %959 = vector.extract_strided_slice %631 {offsets = [18, 0], sizes = [2, 32], strides = [1, 1]} : vector<32x32xf32> to vector<2x32xf32>
    %960 = arith.mulf %951, %944 : vector<2x32xf32>
    %961 = arith.addf %959, %960 : vector<2x32xf32>
    %962 = math.tanh %961 : vector<2x32xf32>
    %cst_322 = arith.constant 1.000000e+00 : f32
    %963 = vector.broadcast %cst_322 : f32 to vector<2x32xf32>
    %964 = arith.subf %963, %958 : vector<2x32xf32>
    %965 = arith.mulf %964, %962 : vector<2x32xf32>
    %966 = arith.mulf %958, %935 : vector<2x32xf32>
    %967 = arith.addf %965, %966 : vector<2x32xf32>
    %c9_323 = arith.constant 9 : index
    %c0_324 = arith.constant 0 : index
    %c0_325 = arith.constant 0 : index
    %968 = vector.load %arg20[%c9_323, %c0_324, %c0_325] : memref<16x2x32xf32, #tpu.memory_space<vmem>>, vector<1x2x32xf32>
    %969 = vector.shape_cast %968 : vector<1x2x32xf32> to vector<2x32xf32>
    %970 = vector.shape_cast %967 : vector<2x32xf32> to vector<1x2x32xf32>
    tpu.vector_store %arg20[%c9_323, %c0_324, %c0_325], %970 {strides = array<i32>} : memref<16x2x32xf32, #tpu.memory_space<vmem>>, vector<1x2x32xf32>,
    %cst_326 = arith.constant dense<0.000000e+00> : vector<2x32xf32>
    %971 = tpu.matmul %967, %633, %cst_326 {dimension_numbers = #tpu.dot_dimension_numbers<[1], [0], [0], [1], [0, 0, 1, 1], [], []>} : vector<2x32xf32>, vector<32x32xf32>, vector<2x32xf32> -> vector<2x32xf32>
    %972 = arith.addf %971, %641 : vector<2x32xf32>
    %cst_327 = arith.constant dense<0.000000e+00> : vector<2x32xf32>
    %973 = tpu.matmul %967, %635, %cst_327 {dimension_numbers = #tpu.dot_dimension_numbers<[1], [0], [0], [1], [0, 0, 1, 1], [], []>} : vector<2x32xf32>, vector<32x32xf32>, vector<2x32xf32> -> vector<2x32xf32>
    %974 = arith.addf %973, %645 : vector<2x32xf32>
    %cst_328 = arith.constant dense<0.000000e+00> : vector<2x32xf32>
    %975 = tpu.matmul %967, %637, %cst_328 {dimension_numbers = #tpu.dot_dimension_numbers<[1], [0], [0], [1], [0, 0, 1, 1], [], []>} : vector<2x32xf32>, vector<32x32xf32>, vector<2x32xf32> -> vector<2x32xf32>
    %976 = arith.addf %975, %649 : vector<2x32xf32>
    %977 = vector.extract_strided_slice %617 {offsets = [20, 0], sizes = [2, 32], strides = [1, 1]} : vector<32x32xf32> to vector<2x32xf32>
    %978 = arith.addf %977, %972 : vector<2x32xf32>
    %979 = arith.negf %978 : vector<2x32xf32>
    %980 = math.exp %979 : vector<2x32xf32>
    %cst_329 = arith.constant 1.000000e+00 : f32
    %981 = vector.broadcast %cst_329 : f32 to vector<2x32xf32>
    %982 = arith.addf %981, %980 : vector<2x32xf32>
    %983 = arith.divf %981, %982 : vector<2x32xf32>
    %984 = vector.extract_strided_slice %624 {offsets = [20, 0], sizes = [2, 32], strides = [1, 1]} : vector<32x32xf32> to vector<2x32xf32>
    %985 = arith.addf %984, %974 : vector<2x32xf32>
    %986 = arith.negf %985 : vector<2x32xf32>
    %987 = math.exp %986 : vector<2x32xf32>
    %cst_330 = arith.constant 1.000000e+00 : f32
    %988 = vector.broadcast %cst_330 : f32 to vector<2x32xf32>
    %989 = arith.addf %988, %987 : vector<2x32xf32>
    %990 = arith.divf %988, %989 : vector<2x32xf32>
    %991 = vector.extract_strided_slice %631 {offsets = [20, 0], sizes = [2, 32], strides = [1, 1]} : vector<32x32xf32> to vector<2x32xf32>
    %992 = arith.mulf %983, %976 : vector<2x32xf32>
    %993 = arith.addf %991, %992 : vector<2x32xf32>
    %994 = math.tanh %993 : vector<2x32xf32>
    %cst_331 = arith.constant 1.000000e+00 : f32
    %995 = vector.broadcast %cst_331 : f32 to vector<2x32xf32>
    %996 = arith.subf %995, %990 : vector<2x32xf32>
    %997 = arith.mulf %996, %994 : vector<2x32xf32>
    %998 = arith.mulf %990, %967 : vector<2x32xf32>
    %999 = arith.addf %997, %998 : vector<2x32xf32>
    %c10_332 = arith.constant 10 : index
    %c0_333 = arith.constant 0 : index
    %c0_334 = arith.constant 0 : index
    %1000 = vector.load %arg20[%c10_332, %c0_333, %c0_334] : memref<16x2x32xf32, #tpu.memory_space<vmem>>, vector<1x2x32xf32>
    %1001 = vector.shape_cast %1000 : vector<1x2x32xf32> to vector<2x32xf32>
    %1002 = vector.shape_cast %999 : vector<2x32xf32> to vector<1x2x32xf32>
    tpu.vector_store %arg20[%c10_332, %c0_333, %c0_334], %1002 {strides = array<i32>} : memref<16x2x32xf32, #tpu.memory_space<vmem>>, vector<1x2x32xf32>,
    %cst_335 = arith.constant dense<0.000000e+00> : vector<2x32xf32>
    %1003 = tpu.matmul %999, %633, %cst_335 {dimension_numbers = #tpu.dot_dimension_numbers<[1], [0], [0], [1], [0, 0, 1, 1], [], []>} : vector<2x32xf32>, vector<32x32xf32>, vector<2x32xf32> -> vector<2x32xf32>
    %1004 = arith.addf %1003, %641 : vector<2x32xf32>
    %cst_336 = arith.constant dense<0.000000e+00> : vector<2x32xf32>
    %1005 = tpu.matmul %999, %635, %cst_336 {dimension_numbers = #tpu.dot_dimension_numbers<[1], [0], [0], [1], [0, 0, 1, 1], [], []>} : vector<2x32xf32>, vector<32x32xf32>, vector<2x32xf32> -> vector<2x32xf32>
    %1006 = arith.addf %1005, %645 : vector<2x32xf32>
    %cst_337 = arith.constant dense<0.000000e+00> : vector<2x32xf32>
    %1007 = tpu.matmul %999, %637, %cst_337 {dimension_numbers = #tpu.dot_dimension_numbers<[1], [0], [0], [1], [0, 0, 1, 1], [], []>} : vector<2x32xf32>, vector<32x32xf32>, vector<2x32xf32> -> vector<2x32xf32>
    %1008 = arith.addf %1007, %649 : vector<2x32xf32>
    %1009 = vector.extract_strided_slice %617 {offsets = [22, 0], sizes = [2, 32], strides = [1, 1]} : vector<32x32xf32> to vector<2x32xf32>
    %1010 = arith.addf %1009, %1004 : vector<2x32xf32>
    %1011 = arith.negf %1010 : vector<2x32xf32>
    %1012 = math.exp %1011 : vector<2x32xf32>
    %cst_338 = arith.constant 1.000000e+00 : f32
    %1013 = vector.broadcast %cst_338 : f32 to vector<2x32xf32>
    %1014 = arith.addf %1013, %1012 : vector<2x32xf32>
    %1015 = arith.divf %1013, %1014 : vector<2x32xf32>
    %1016 = vector.extract_strided_slice %624 {offsets = [22, 0], sizes = [2, 32], strides = [1, 1]} : vector<32x32xf32> to vector<2x32xf32>
    %1017 = arith.addf %1016, %1006 : vector<2x32xf32>
    %1018 = arith.negf %1017 : vector<2x32xf32>
    %1019 = math.exp %1018 : vector<2x32xf32>
    %cst_339 = arith.constant 1.000000e+00 : f32
    %1020 = vector.broadcast %cst_339 : f32 to vector<2x32xf32>
    %1021 = arith.addf %1020, %1019 : vector<2x32xf32>
    %1022 = arith.divf %1020, %1021 : vector<2x32xf32>
    %1023 = vector.extract_strided_slice %631 {offsets = [22, 0], sizes = [2, 32], strides = [1, 1]} : vector<32x32xf32> to vector<2x32xf32>
    %1024 = arith.mulf %1015, %1008 : vector<2x32xf32>
    %1025 = arith.addf %1023, %1024 : vector<2x32xf32>
    %1026 = math.tanh %1025 : vector<2x32xf32>
    %cst_340 = arith.constant 1.000000e+00 : f32
    %1027 = vector.broadcast %cst_340 : f32 to vector<2x32xf32>
    %1028 = arith.subf %1027, %1022 : vector<2x32xf32>
    %1029 = arith.mulf %1028, %1026 : vector<2x32xf32>
    %1030 = arith.mulf %1022, %999 : vector<2x32xf32>
    %1031 = arith.addf %1029, %1030 : vector<2x32xf32>
    %c11_341 = arith.constant 11 : index
    %c0_342 = arith.constant 0 : index
    %c0_343 = arith.constant 0 : index
    %1032 = vector.load %arg20[%c11_341, %c0_342, %c0_343] : memref<16x2x32xf32, #tpu.memory_space<vmem>>, vector<1x2x32xf32>
    %1033 = vector.shape_cast %1032 : vector<1x2x32xf32> to vector<2x32xf32>
    %1034 = vector.shape_cast %1031 : vector<2x32xf32> to vector<1x2x32xf32>
    tpu.vector_store %arg20[%c11_341, %c0_342, %c0_343], %1034 {strides = array<i32>} : memref<16x2x32xf32, #tpu.memory_space<vmem>>, vector<1x2x32xf32>,
    %cst_344 = arith.constant dense<0.000000e+00> : vector<2x32xf32>
    %1035 = tpu.matmul %1031, %633, %cst_344 {dimension_numbers = #tpu.dot_dimension_numbers<[1], [0], [0], [1], [0, 0, 1, 1], [], []>} : vector<2x32xf32>, vector<32x32xf32>, vector<2x32xf32> -> vector<2x32xf32>
    %1036 = arith.addf %1035, %641 : vector<2x32xf32>
    %cst_345 = arith.constant dense<0.000000e+00> : vector<2x32xf32>
    %1037 = tpu.matmul %1031, %635, %cst_345 {dimension_numbers = #tpu.dot_dimension_numbers<[1], [0], [0], [1], [0, 0, 1, 1], [], []>} : vector<2x32xf32>, vector<32x32xf32>, vector<2x32xf32> -> vector<2x32xf32>
    %1038 = arith.addf %1037, %645 : vector<2x32xf32>
    %cst_346 = arith.constant dense<0.000000e+00> : vector<2x32xf32>
    %1039 = tpu.matmul %1031, %637, %cst_346 {dimension_numbers = #tpu.dot_dimension_numbers<[1], [0], [0], [1], [0, 0, 1, 1], [], []>} : vector<2x32xf32>, vector<32x32xf32>, vector<2x32xf32> -> vector<2x32xf32>
    %1040 = arith.addf %1039, %649 : vector<2x32xf32>
    %1041 = vector.extract_strided_slice %617 {offsets = [24, 0], sizes = [2, 32], strides = [1, 1]} : vector<32x32xf32> to vector<2x32xf32>
    %1042 = arith.addf %1041, %1036 : vector<2x32xf32>
    %1043 = arith.negf %1042 : vector<2x32xf32>
    %1044 = math.exp %1043 : vector<2x32xf32>
    %cst_347 = arith.constant 1.000000e+00 : f32
    %1045 = vector.broadcast %cst_347 : f32 to vector<2x32xf32>
    %1046 = arith.addf %1045, %1044 : vector<2x32xf32>
    %1047 = arith.divf %1045, %1046 : vector<2x32xf32>
    %1048 = vector.extract_strided_slice %624 {offsets = [24, 0], sizes = [2, 32], strides = [1, 1]} : vector<32x32xf32> to vector<2x32xf32>
    %1049 = arith.addf %1048, %1038 : vector<2x32xf32>
    %1050 = arith.negf %1049 : vector<2x32xf32>
    %1051 = math.exp %1050 : vector<2x32xf32>
    %cst_348 = arith.constant 1.000000e+00 : f32
    %1052 = vector.broadcast %cst_348 : f32 to vector<2x32xf32>
    %1053 = arith.addf %1052, %1051 : vector<2x32xf32>
    %1054 = arith.divf %1052, %1053 : vector<2x32xf32>
    %1055 = vector.extract_strided_slice %631 {offsets = [24, 0], sizes = [2, 32], strides = [1, 1]} : vector<32x32xf32> to vector<2x32xf32>
    %1056 = arith.mulf %1047, %1040 : vector<2x32xf32>
    %1057 = arith.addf %1055, %1056 : vector<2x32xf32>
    %1058 = math.tanh %1057 : vector<2x32xf32>
    %cst_349 = arith.constant 1.000000e+00 : f32
    %1059 = vector.broadcast %cst_349 : f32 to vector<2x32xf32>
    %1060 = arith.subf %1059, %1054 : vector<2x32xf32>
    %1061 = arith.mulf %1060, %1058 : vector<2x32xf32>
    %1062 = arith.mulf %1054, %1031 : vector<2x32xf32>
    %1063 = arith.addf %1061, %1062 : vector<2x32xf32>
    %c12_350 = arith.constant 12 : index
    %c0_351 = arith.constant 0 : index
    %c0_352 = arith.constant 0 : index
    %1064 = vector.load %arg20[%c12_350, %c0_351, %c0_352] : memref<16x2x32xf32, #tpu.memory_space<vmem>>, vector<1x2x32xf32>
    %1065 = vector.shape_cast %1064 : vector<1x2x32xf32> to vector<2x32xf32>
    %1066 = vector.shape_cast %1063 : vector<2x32xf32> to vector<1x2x32xf32>
    tpu.vector_store %arg20[%c12_350, %c0_351, %c0_352], %1066 {strides = array<i32>} : memref<16x2x32xf32, #tpu.memory_space<vmem>>, vector<1x2x32xf32>,
    %cst_353 = arith.constant dense<0.000000e+00> : vector<2x32xf32>
    %1067 = tpu.matmul %1063, %633, %cst_353 {dimension_numbers = #tpu.dot_dimension_numbers<[1], [0], [0], [1], [0, 0, 1, 1], [], []>} : vector<2x32xf32>, vector<32x32xf32>, vector<2x32xf32> -> vector<2x32xf32>
    %1068 = arith.addf %1067, %641 : vector<2x32xf32>
    %cst_354 = arith.constant dense<0.000000e+00> : vector<2x32xf32>
    %1069 = tpu.matmul %1063, %635, %cst_354 {dimension_numbers = #tpu.dot_dimension_numbers<[1], [0], [0], [1], [0, 0, 1, 1], [], []>} : vector<2x32xf32>, vector<32x32xf32>, vector<2x32xf32> -> vector<2x32xf32>
    %1070 = arith.addf %1069, %645 : vector<2x32xf32>
    %cst_355 = arith.constant dense<0.000000e+00> : vector<2x32xf32>
    %1071 = tpu.matmul %1063, %637, %cst_355 {dimension_numbers = #tpu.dot_dimension_numbers<[1], [0], [0], [1], [0, 0, 1, 1], [], []>} : vector<2x32xf32>, vector<32x32xf32>, vector<2x32xf32> -> vector<2x32xf32>
    %1072 = arith.addf %1071, %649 : vector<2x32xf32>
    %1073 = vector.extract_strided_slice %617 {offsets = [26, 0], sizes = [2, 32], strides = [1, 1]} : vector<32x32xf32> to vector<2x32xf32>
    %1074 = arith.addf %1073, %1068 : vector<2x32xf32>
    %1075 = arith.negf %1074 : vector<2x32xf32>
    %1076 = math.exp %1075 : vector<2x32xf32>
    %cst_356 = arith.constant 1.000000e+00 : f32
    %1077 = vector.broadcast %cst_356 : f32 to vector<2x32xf32>
    %1078 = arith.addf %1077, %1076 : vector<2x32xf32>
    %1079 = arith.divf %1077, %1078 : vector<2x32xf32>
    %1080 = vector.extract_strided_slice %624 {offsets = [26, 0], sizes = [2, 32], strides = [1, 1]} : vector<32x32xf32> to vector<2x32xf32>
    %1081 = arith.addf %1080, %1070 : vector<2x32xf32>
    %1082 = arith.negf %1081 : vector<2x32xf32>
    %1083 = math.exp %1082 : vector<2x32xf32>
    %cst_357 = arith.constant 1.000000e+00 : f32
    %1084 = vector.broadcast %cst_357 : f32 to vector<2x32xf32>
    %1085 = arith.addf %1084, %1083 : vector<2x32xf32>
    %1086 = arith.divf %1084, %1085 : vector<2x32xf32>
    %1087 = vector.extract_strided_slice %631 {offsets = [26, 0], sizes = [2, 32], strides = [1, 1]} : vector<32x32xf32> to vector<2x32xf32>
    %1088 = arith.mulf %1079, %1072 : vector<2x32xf32>
    %1089 = arith.addf %1087, %1088 : vector<2x32xf32>
    %1090 = math.tanh %1089 : vector<2x32xf32>
    %cst_358 = arith.constant 1.000000e+00 : f32
    %1091 = vector.broadcast %cst_358 : f32 to vector<2x32xf32>
    %1092 = arith.subf %1091, %1086 : vector<2x32xf32>
    %1093 = arith.mulf %1092, %1090 : vector<2x32xf32>
    %1094 = arith.mulf %1086, %1063 : vector<2x32xf32>
    %1095 = arith.addf %1093, %1094 : vector<2x32xf32>
    %c13_359 = arith.constant 13 : index
    %c0_360 = arith.constant 0 : index
    %c0_361 = arith.constant 0 : index
    %1096 = vector.load %arg20[%c13_359, %c0_360, %c0_361] : memref<16x2x32xf32, #tpu.memory_space<vmem>>, vector<1x2x32xf32>
    %1097 = vector.shape_cast %1096 : vector<1x2x32xf32> to vector<2x32xf32>
    %1098 = vector.shape_cast %1095 : vector<2x32xf32> to vector<1x2x32xf32>
    tpu.vector_store %arg20[%c13_359, %c0_360, %c0_361], %1098 {strides = array<i32>} : memref<16x2x32xf32, #tpu.memory_space<vmem>>, vector<1x2x32xf32>,
    %cst_362 = arith.constant dense<0.000000e+00> : vector<2x32xf32>
    %1099 = tpu.matmul %1095, %633, %cst_362 {dimension_numbers = #tpu.dot_dimension_numbers<[1], [0], [0], [1], [0, 0, 1, 1], [], []>} : vector<2x32xf32>, vector<32x32xf32>, vector<2x32xf32> -> vector<2x32xf32>
    %1100 = arith.addf %1099, %641 : vector<2x32xf32>
    %cst_363 = arith.constant dense<0.000000e+00> : vector<2x32xf32>
    %1101 = tpu.matmul %1095, %635, %cst_363 {dimension_numbers = #tpu.dot_dimension_numbers<[1], [0], [0], [1], [0, 0, 1, 1], [], []>} : vector<2x32xf32>, vector<32x32xf32>, vector<2x32xf32> -> vector<2x32xf32>
    %1102 = arith.addf %1101, %645 : vector<2x32xf32>
    %cst_364 = arith.constant dense<0.000000e+00> : vector<2x32xf32>
    %1103 = tpu.matmul %1095, %637, %cst_364 {dimension_numbers = #tpu.dot_dimension_numbers<[1], [0], [0], [1], [0, 0, 1, 1], [], []>} : vector<2x32xf32>, vector<32x32xf32>, vector<2x32xf32> -> vector<2x32xf32>
    %1104 = arith.addf %1103, %649 : vector<2x32xf32>
    %1105 = vector.extract_strided_slice %617 {offsets = [28, 0], sizes = [2, 32], strides = [1, 1]} : vector<32x32xf32> to vector<2x32xf32>
    %1106 = arith.addf %1105, %1100 : vector<2x32xf32>
    %1107 = arith.negf %1106 : vector<2x32xf32>
    %1108 = math.exp %1107 : vector<2x32xf32>
    %cst_365 = arith.constant 1.000000e+00 : f32
    %1109 = vector.broadcast %cst_365 : f32 to vector<2x32xf32>
    %1110 = arith.addf %1109, %1108 : vector<2x32xf32>
    %1111 = arith.divf %1109, %1110 : vector<2x32xf32>
    %1112 = vector.extract_strided_slice %624 {offsets = [28, 0], sizes = [2, 32], strides = [1, 1]} : vector<32x32xf32> to vector<2x32xf32>
    %1113 = arith.addf %1112, %1102 : vector<2x32xf32>
    %1114 = arith.negf %1113 : vector<2x32xf32>
    %1115 = math.exp %1114 : vector<2x32xf32>
    %cst_366 = arith.constant 1.000000e+00 : f32
    %1116 = vector.broadcast %cst_366 : f32 to vector<2x32xf32>
    %1117 = arith.addf %1116, %1115 : vector<2x32xf32>
    %1118 = arith.divf %1116, %1117 : vector<2x32xf32>
    %1119 = vector.extract_strided_slice %631 {offsets = [28, 0], sizes = [2, 32], strides = [1, 1]} : vector<32x32xf32> to vector<2x32xf32>
    %1120 = arith.mulf %1111, %1104 : vector<2x32xf32>
    %1121 = arith.addf %1119, %1120 : vector<2x32xf32>
    %1122 = math.tanh %1121 : vector<2x32xf32>
    %cst_367 = arith.constant 1.000000e+00 : f32
    %1123 = vector.broadcast %cst_367 : f32 to vector<2x32xf32>
    %1124 = arith.subf %1123, %1118 : vector<2x32xf32>
    %1125 = arith.mulf %1124, %1122 : vector<2x32xf32>
    %1126 = arith.mulf %1118, %1095 : vector<2x32xf32>
    %1127 = arith.addf %1125, %1126 : vector<2x32xf32>
    %c14_368 = arith.constant 14 : index
    %c0_369 = arith.constant 0 : index
    %c0_370 = arith.constant 0 : index
    %1128 = vector.load %arg20[%c14_368, %c0_369, %c0_370] : memref<16x2x32xf32, #tpu.memory_space<vmem>>, vector<1x2x32xf32>
    %1129 = vector.shape_cast %1128 : vector<1x2x32xf32> to vector<2x32xf32>
    %1130 = vector.shape_cast %1127 : vector<2x32xf32> to vector<1x2x32xf32>
    tpu.vector_store %arg20[%c14_368, %c0_369, %c0_370], %1130 {strides = array<i32>} : memref<16x2x32xf32, #tpu.memory_space<vmem>>, vector<1x2x32xf32>,
    %cst_371 = arith.constant dense<0.000000e+00> : vector<2x32xf32>
    %1131 = tpu.matmul %1127, %633, %cst_371 {dimension_numbers = #tpu.dot_dimension_numbers<[1], [0], [0], [1], [0, 0, 1, 1], [], []>} : vector<2x32xf32>, vector<32x32xf32>, vector<2x32xf32> -> vector<2x32xf32>
    %1132 = arith.addf %1131, %641 : vector<2x32xf32>
    %cst_372 = arith.constant dense<0.000000e+00> : vector<2x32xf32>
    %1133 = tpu.matmul %1127, %635, %cst_372 {dimension_numbers = #tpu.dot_dimension_numbers<[1], [0], [0], [1], [0, 0, 1, 1], [], []>} : vector<2x32xf32>, vector<32x32xf32>, vector<2x32xf32> -> vector<2x32xf32>
    %1134 = arith.addf %1133, %645 : vector<2x32xf32>
    %cst_373 = arith.constant dense<0.000000e+00> : vector<2x32xf32>
    %1135 = tpu.matmul %1127, %637, %cst_373 {dimension_numbers = #tpu.dot_dimension_numbers<[1], [0], [0], [1], [0, 0, 1, 1], [], []>} : vector<2x32xf32>, vector<32x32xf32>, vector<2x32xf32> -> vector<2x32xf32>
    %1136 = arith.addf %1135, %649 : vector<2x32xf32>
    %1137 = vector.extract_strided_slice %617 {offsets = [30, 0], sizes = [2, 32], strides = [1, 1]} : vector<32x32xf32> to vector<2x32xf32>
    %1138 = arith.addf %1137, %1132 : vector<2x32xf32>
    %1139 = arith.negf %1138 : vector<2x32xf32>
    %1140 = math.exp %1139 : vector<2x32xf32>
    %cst_374 = arith.constant 1.000000e+00 : f32
    %1141 = vector.broadcast %cst_374 : f32 to vector<2x32xf32>
    %1142 = arith.addf %1141, %1140 : vector<2x32xf32>
    %1143 = arith.divf %1141, %1142 : vector<2x32xf32>
    %1144 = vector.extract_strided_slice %624 {offsets = [30, 0], sizes = [2, 32], strides = [1, 1]} : vector<32x32xf32> to vector<2x32xf32>
    %1145 = arith.addf %1144, %1134 : vector<2x32xf32>
    %1146 = arith.negf %1145 : vector<2x32xf32>
    %1147 = math.exp %1146 : vector<2x32xf32>
    %cst_375 = arith.constant 1.000000e+00 : f32
    %1148 = vector.broadcast %cst_375 : f32 to vector<2x32xf32>
    %1149 = arith.addf %1148, %1147 : vector<2x32xf32>
    %1150 = arith.divf %1148, %1149 : vector<2x32xf32>
    %1151 = vector.extract_strided_slice %631 {offsets = [30, 0], sizes = [2, 32], strides = [1, 1]} : vector<32x32xf32> to vector<2x32xf32>
    %1152 = arith.mulf %1143, %1136 : vector<2x32xf32>
    %1153 = arith.addf %1151, %1152 : vector<2x32xf32>
    %1154 = math.tanh %1153 : vector<2x32xf32>
    %cst_376 = arith.constant 1.000000e+00 : f32
    %1155 = vector.broadcast %cst_376 : f32 to vector<2x32xf32>
    %1156 = arith.subf %1155, %1150 : vector<2x32xf32>
    %1157 = arith.mulf %1156, %1154 : vector<2x32xf32>
    %1158 = arith.mulf %1150, %1127 : vector<2x32xf32>
    %1159 = arith.addf %1157, %1158 : vector<2x32xf32>
    %c15_377 = arith.constant 15 : index
    %c0_378 = arith.constant 0 : index
    %c0_379 = arith.constant 0 : index
    %1160 = vector.load %arg20[%c15_377, %c0_378, %c0_379] : memref<16x2x32xf32, #tpu.memory_space<vmem>>, vector<1x2x32xf32>
    %1161 = vector.shape_cast %1160 : vector<1x2x32xf32> to vector<2x32xf32>
    %1162 = vector.shape_cast %1159 : vector<2x32xf32> to vector<1x2x32xf32>
    tpu.vector_store %arg20[%c15_377, %c0_378, %c0_379], %1162 {strides = array<i32>} : memref<16x2x32xf32, #tpu.memory_space<vmem>>, vector<1x2x32xf32>,
    %c0_380 = arith.constant 0 : index
    %c0_381 = arith.constant 0 : index
    %c0_382 = arith.constant 0 : index
    %1163 = vector.load %arg20[%c0_380, %c0_381, %c0_382] : memref<16x2x32xf32, #tpu.memory_space<vmem>>, vector<16x2x32xf32>
    %1164 = math.tanh %1163 : vector<16x2x32xf32>
    %1165 = vector.shape_cast %1164 : vector<16x2x32xf32> to vector<32x32xf32>
    %c0_383 = arith.constant 0 : index
    %c0_384 = arith.constant 0 : index
    %1166 = vector.load %arg15[%c0_383, %c0_384] : memref<1x32xf32, #tpu.memory_space<vmem>>, vector<1x32xf32>
    %c0_385 = arith.constant 0 : index
    %c0_386 = arith.constant 0 : index
    %1167 = vector.load %arg16[%c0_385, %c0_386] : memref<1x32xf32, #tpu.memory_space<vmem>>, vector<1x32xf32>
    %cst_387 = arith.constant dense<0.000000e+00> : vector<32xf32>
    %1168 = vector.multi_reduction <add>, %1165, %cst_387 [1] : vector<32x32xf32> to vector<32xf32>
    %1169 = vector.shape_cast %1168 : vector<32xf32> to vector<32x1xf32>
    %cst_388 = arith.constant 3.200000e+01 : f32
    %1170 = vector.broadcast %cst_388 : f32 to vector<32x1xf32>
    %1171 = arith.divf %1169, %1170 : vector<32x1xf32>
    %1172 = vector.broadcast %1171 : vector<32x1xf32> to vector<32x32xf32>
    %1173 = arith.subf %1165, %1172 : vector<32x32xf32>
    %1174 = arith.mulf %1173, %1173 : vector<32x32xf32>
    %cst_389 = arith.constant dense<0.000000e+00> : vector<32xf32>
    %1175 = vector.multi_reduction <add>, %1174, %cst_389 [1] : vector<32x32xf32> to vector<32xf32>
    %1176 = vector.shape_cast %1175 : vector<32xf32> to vector<32x1xf32>
    %cst_390 = arith.constant 3.200000e+01 : f32
    %1177 = vector.broadcast %cst_390 : f32 to vector<32x1xf32>
    %1178 = arith.divf %1176, %1177 : vector<32x1xf32>
    %1179 = vector.broadcast %1171 : vector<32x1xf32> to vector<32x32xf32>
    %1180 = arith.subf %1165, %1179 : vector<32x32xf32>
    %cst_391 = arith.constant 9.99999974E-6 : f32
    %1181 = vector.broadcast %cst_391 : f32 to vector<32x1xf32>
    %1182 = arith.addf %1178, %1181 : vector<32x1xf32>
    %1183 = math.rsqrt %1182 : vector<32x1xf32>
    %1184 = vector.broadcast %1183 : vector<32x1xf32> to vector<32x32xf32>
    %1185 = arith.mulf %1180, %1184 : vector<32x32xf32>
    %1186 = vector.broadcast %1166 : vector<1x32xf32> to vector<32x32xf32>
    %1187 = arith.mulf %1185, %1186 : vector<32x32xf32>
    %1188 = vector.broadcast %1167 : vector<1x32xf32> to vector<32x32xf32>
    %1189 = arith.addf %1187, %1188 : vector<32x32xf32>
    %c0_392 = arith.constant 0 : index
    %c0_393 = arith.constant 0 : index
    %1190 = vector.load %arg17[%c0_392, %c0_393] : memref<32x128xf32, #tpu.memory_space<vmem>>, vector<32x128xf32>
    %cst_394 = arith.constant dense<0.000000e+00> : vector<32x128xf32>
    %1191 = tpu.matmul %1189, %1190, %cst_394 {dimension_numbers = #tpu.dot_dimension_numbers<[1], [0], [0], [1], [0, 0, 1, 1], [], []>} : vector<32x32xf32>, vector<32x128xf32>, vector<32x128xf32> -> vector<32x128xf32>
    %c0_395 = arith.constant 0 : index
    %c0_396 = arith.constant 0 : index
    %1192 = vector.load %arg18[%c0_395, %c0_396] : memref<1x128xf32, #tpu.memory_space<vmem>>, vector<1x128xf32>
    %1193 = vector.broadcast %1192 : vector<1x128xf32> to vector<32x128xf32>
    %1194 = arith.addf %1191, %1193 : vector<32x128xf32>
    %cst_397 = arith.constant dense<0xFF800000> : vector<32xf32>
    %1195 = vector.multi_reduction <maximumf>, %1194, %cst_397 [1] : vector<32x128xf32> to vector<32xf32>
    %1196 = vector.shape_cast %1195 : vector<32xf32> to vector<32x1xf32>
    %1197 = vector.broadcast %1196 : vector<32x1xf32> to vector<32x128xf32>
    %1198 = arith.subf %1194, %1197 : vector<32x128xf32>
    %1199 = math.exp %1198 : vector<32x128xf32>
    %cst_398 = arith.constant dense<0.000000e+00> : vector<32xf32>
    %1200 = vector.multi_reduction <add>, %1199, %cst_398 [1] : vector<32x128xf32> to vector<32xf32>
    %1201 = vector.shape_cast %1200 : vector<32xf32> to vector<32x1xf32>
    %1202 = vector.broadcast %1201 : vector<32x1xf32> to vector<32x128xf32>
    %1203 = arith.divf %1199, %1202 : vector<32x128xf32>
    %1204 = vector.shape_cast %1203 : vector<32x128xf32> to vector<16x2x128xf32>
    %c0_399 = arith.constant 0 : index
    %c0_400 = arith.constant 0 : index
    %c0_401 = arith.constant 0 : index
    %1205 = vector.load %arg19[%c0_399, %c0_400, %c0_401] : memref<16x2x128xf32, #tpu.memory_space<vmem>>, vector<16x2x128xf32>
    tpu.vector_store %arg19[%c0_399, %c0_400, %c0_401], %1204 {strides = array<i32>} : memref<16x2x128xf32, #tpu.memory_space<vmem>>, vector<16x2x128xf32>,
    return
  }
}

</mosaic_0001>

<llo_original>
// kernel: model_forward.1
$region0: #{model_forward.1}
  #allocation0 [shape = 'u32[]', space=smem, size = 0x4, offset = 0x4, fixed_abs, tag = 'smem constant byte address 0x4 - core index']
  #allocation1 [shape = 'u32[144,128]{1,0:T(1,128)}', space=vmem, size = 0x12000, scoped, tag = 'internal scratch']
  #allocation2 [shape = 'f32[16,2,32]{2,1,0:T(2,128)}', space=vmem, size = 0x4000, scoped, tag = 'scratch operand']
  %s0 = inlined_call_operand.vmem [shape: f32[32,24], index: 0, kind: input, shape index: {}]
  %s1 = inlined_call_operand.hbm [shape: f32[24,16], index: 1, kind: input, shape index: {}]
  %s2 = inlined_call_operand.vmem [shape: f32[1,16], index: 2, kind: input, shape index: {}]
  %s3 = inlined_call_operand.vmem [shape: f32[1,16], index: 3, kind: input, shape index: {}]
  %s4 = inlined_call_operand.vmem [shape: f32[1,16], index: 4, kind: input, shape index: {}]
  %s5 = inlined_call_operand.vmem [shape: f32[3,16,32], index: 5, kind: input, shape index: {}]
  %s6 = inlined_call_operand.vmem [shape: f32[3,32,32], index: 6, kind: input, shape index: {}]
  %s7 = inlined_call_operand.vmem [shape: f32[3,1,32], index: 7, kind: input, shape index: {}]
  %s8 = inlined_call_operand.vmem [shape: f32[3,1,32], index: 8, kind: input, shape index: {}]
  %s9 = inlined_call_operand.vmem [shape: f32[1,32], index: 9, kind: input, shape index: {}]
  %s10 = inlined_call_operand.vmem [shape: f32[1,32], index: 10, kind: input, shape index: {}]
  %s11 = inlined_call_operand.vmem [shape: f32[3,32,32], index: 11, kind: input, shape index: {}]
  %s12 = inlined_call_operand.vmem [shape: f32[3,32,32], index: 12, kind: input, shape index: {}]
  %s13 = inlined_call_operand.vmem [shape: f32[3,1,32], index: 13, kind: input, shape index: {}]
  %s14 = inlined_call_operand.vmem [shape: f32[3,1,32], index: 14, kind: input, shape index: {}]
  %s15 = inlined_call_operand.vmem [shape: f32[1,32], index: 15, kind: input, shape index: {}]
  %s16 = inlined_call_operand.vmem [shape: f32[1,32], index: 16, kind: input, shape index: {}]
  %s17 = inlined_call_operand.vmem [shape: f32[32,128], index: 17, kind: input, shape index: {}]
  %s18 = inlined_call_operand.vmem [shape: f32[1,128], index: 18, kind: input, shape index: {}]
  %s19 = inlined_call_operand.vmem [shape: f32[16,2,128], index: 19, kind: output, shape index: {}]
  %s20 = sld [smem:[#allocation0]]
  $region90: #{model_forward.1} parent=0
    _
  %s22 = ssub.s32 1, %s20
  %s23 = scalar_select 0, %s22, %s20
  $region1: #{model_forward.1} parent=0
    #allocation3 [shape = 'u8[12288]{0}', space=vmem, size = 0x3000, scoped, tag = 'input window, operand 1, single buffered']
    #allocation4 [shape = 's32[1]{0}', space=sflag, size = 0x4, scoped, tag = 'scoped memory for model_forward.1']
    %24 = vsyncpa [#allocation4], 0
    // Predicated region
    $region2: #{model_forward.1} parent=1 // pred_check
      _
    $region3: #{model_forward.1} parent=1 // pred_check_branch
      %26 = sbr.rel (0) target = $region5
    $region4: #{model_forward.1} parent=1 // pred_region
      _
    $region5: #{model_forward.1} parent=1 // pred_fallthru
      _
    // Predicated region
    $region6: #{model_forward.1} parent=1 // pred_check
      _
    $region7: #{model_forward.1} parent=1 // pred_check_branch
      %28 = sbr.rel (0) target = $region9
    $region8: #{model_forward.1} parent=1 // pred_region
      %s30 = ssub.s32 384, 384
      %31 = vsyncadd [#allocation4], %s30
      %s32 = sshll.u32 [#allocation3], 4
      %s33 = int_to_ptr.vmem [resolvable:$true] %s32
      %38 = dma.hbm_to_vmem [thread:$0]  %s1, 384, %s33, [#allocation4], 128, 128, 8
    $region9: #{model_forward.1} parent=1 // pred_fallthru
      _
    // Predicated region
    $region10: #{model_forward.1} parent=1 // pred_check
      _
    $region11: #{model_forward.1} parent=1 // pred_check_branch
      %40 = sbr.rel (0) target = $region13
    $region12: #{model_forward.1} parent=1 // pred_region
      _
    $region13: #{model_forward.1} parent=1 // pred_fallthru
      _
    // Predicated region
    $region14: #{model_forward.1} parent=1 // pred_check
      _
    $region15: #{model_forward.1} parent=1 // pred_check_branch
      %42 = sbr.rel (0) target = $region17
    $region16: #{model_forward.1} parent=1 // pred_region
      _
    $region17: #{model_forward.1} parent=1 // pred_fallthru
      _
    // Predicated region
    $region18: #{model_forward.1} parent=1 // pred_check
      _
    $region19: #{model_forward.1} parent=1 // pred_check_branch
      %44 = sbr.rel (0) target = $region21
    $region20: #{model_forward.1} parent=1 // pred_region
      _
    $region21: #{model_forward.1} parent=1 // pred_fallthru
      _
    // Predicated region
    $region22: #{model_forward.1} parent=1 // pred_check
      _
    $region23: #{model_forward.1} parent=1 // pred_check_branch
      %46 = sbr.rel (0) target = $region25
    $region24: #{model_forward.1} parent=1 // pred_region
      _
    $region25: #{model_forward.1} parent=1 // pred_fallthru
      _
    // Predicated region
    $region26: #{model_forward.1} parent=1 // pred_check
      _
    $region27: #{model_forward.1} parent=1 // pred_check_branch
      %48 = sbr.rel (0) target = $region29
    $region28: #{model_forward.1} parent=1 // pred_region
      _
    $region29: #{model_forward.1} parent=1 // pred_fallthru
      _
    // Predicated region
    $region30: #{model_forward.1} parent=1 // pred_check
      _
    $region31: #{model_forward.1} parent=1 // pred_check_branch
      %50 = sbr.rel (0) target = $region33
    $region32: #{model_forward.1} parent=1 // pred_region
      _
    $region33: #{model_forward.1} parent=1 // pred_fallthru
      _
    // Predicated region
    $region34: #{model_forward.1} parent=1 // pred_check
      _
    $region35: #{model_forward.1} parent=1 // pred_check_branch
      %52 = sbr.rel (0) target = $region37
    $region36: #{model_forward.1} parent=1 // pred_region
      _
    $region37: #{model_forward.1} parent=1 // pred_fallthru
      _
    // Predicated region
    $region38: #{model_forward.1} parent=1 // pred_check
      _
    $region39: #{model_forward.1} parent=1 // pred_check_branch
      %54 = sbr.rel (0) target = $region41
    $region40: #{model_forward.1} parent=1 // pred_region
      _
    $region41: #{model_forward.1} parent=1 // pred_fallthru
      _
    // Predicated region
    $region42: #{model_forward.1} parent=1 // pred_check
      _
    $region43: #{model_forward.1} parent=1 // pred_check_branch
      %56 = sbr.rel (0) target = $region45
    $region44: #{model_forward.1} parent=1 // pred_region
      _
    $region45: #{model_forward.1} parent=1 // pred_fallthru
      _
    // Predicated region
    $region46: #{model_forward.1} parent=1 // pred_check
      _
    $region47: #{model_forward.1} parent=1 // pred_check_branch
      %58 = sbr.rel (0) target = $region49
    $region48: #{model_forward.1} parent=1 // pred_region
      _
    $region49: #{model_forward.1} parent=1 // pred_fallthru
      _
    // Predicated region
    $region50: #{model_forward.1} parent=1 // pred_check
      _
    $region51: #{model_forward.1} parent=1 // pred_check_branch
      %60 = sbr.rel (0) target = $region53
    $region52: #{model_forward.1} parent=1 // pred_region
      _
    $region53: #{model_forward.1} parent=1 // pred_fallthru
      _
    // Predicated region
    $region54: #{model_forward.1} parent=1 // pred_check
      _
    $region55: #{model_forward.1} parent=1 // pred_check_branch
      %62 = sbr.rel (0) target = $region57
    $region56: #{model_forward.1} parent=1 // pred_region
      _
    $region57: #{model_forward.1} parent=1 // pred_fallthru
      _
    // Predicated region
    $region58: #{model_forward.1} parent=1 // pred_check
      _
    $region59: #{model_forward.1} parent=1 // pred_check_branch
      %64 = sbr.rel (0) target = $region61
    $region60: #{model_forward.1} parent=1 // pred_region
      _
    $region61: #{model_forward.1} parent=1 // pred_fallthru
      _
    // Predicated region
    $region62: #{model_forward.1} parent=1 // pred_check
      _
    $region63: #{model_forward.1} parent=1 // pred_check_branch
      %66 = sbr.rel (0) target = $region65
    $region64: #{model_forward.1} parent=1 // pred_region
      _
    $region65: #{model_forward.1} parent=1 // pred_fallthru
      _
    // Predicated region
    $region66: #{model_forward.1} parent=1 // pred_check
      _
    $region67: #{model_forward.1} parent=1 // pred_check_branch
      %68 = sbr.rel (0) target = $region69
    $region68: #{model_forward.1} parent=1 // pred_region
      _
    $region69: #{model_forward.1} parent=1 // pred_fallthru
      _
    // Predicated region
    $region70: #{model_forward.1} parent=1 // pred_check
      _
    $region71: #{model_forward.1} parent=1 // pred_check_branch
      %70 = sbr.rel (0) target = $region73
    $region72: #{model_forward.1} parent=1 // pred_region
      _
    $region73: #{model_forward.1} parent=1 // pred_fallthru
      _
    // Predicated region
    $region74: #{model_forward.1} parent=1 // pred_check
      _
    $region75: #{model_forward.1} parent=1 // pred_check_branch
      %72 = sbr.rel (0) target = $region77
    $region76: #{model_forward.1} parent=1 // pred_region
      _
    $region77: #{model_forward.1} parent=1 // pred_fallthru
      _
    // Predicated region
    $region78: #{model_forward.1} parent=1 // pred_check
      _
    $region79: #{model_forward.1} parent=1 // pred_check_branch
      %74 = sbr.rel (0) target = $region81
    $region80: #{model_forward.1} parent=1 // pred_region
      %75 = dma.done [#allocation4], 384
    $region81: #{model_forward.1} parent=1 // pred_fallthru
      _
    %v76 = vld [vmem:[%s0] sm:$0xff]
    %v77 = vld [vmem:[%s0 + $0x8] sm:$0xff]
    %v78 = vld [vmem:[%s0 + $0x10] sm:$0xff]
    %v79 = vld [vmem:[%s0 + $0x18] sm:$0xff]
    %v80 = vld [vmem:[#allocation3] sm:$0xff]
    %v81 = vld [vmem:[#allocation3 + $0x8] sm:$0xff]
    %v82 = vld [vmem:[#allocation3 + $0x10] sm:$0xff]
    %v83 = vld [vmem:[%s2] sm:$0x1]
    %v85 = vlaneseq
    %v86 = vshrl.u32 %v85, 7
    %v87 = vsub.s32 0, %v86
    %v88 = vrot.slane %v83, %v87
    %vm90 = vcmask 195584
    %v92 = vsel %vm90, %v76, 0
    %v95 = vsel %vm90, %v77, 0
    %v98 = vsel %vm90, %v78, 0
    %v101 = vsel %vm90, %v79, 0
    %103 = vmatprep.subr.mxu0 0.0
    %104 = vmatpush1.msra.mxu0 %v80
    %105 = vmatprep.subr.mxu0 0.0
    %106 = vmatpush1.msra.mxu0 %v81
    %107 = vmatprep.subr.mxu0 0.0
    %108 = vmatpush1.msra.mxu0 %v82
    %109 = vmatprep.subr.mxu0 0.0
    %110 = vmatpush1.msra.mxu0 0.0
    %111 = vmatprep.subr.mxu0 0.0
    %112 = vmatpush1.msra.mxu0 0.0
    %113 = vmatprep.subr.mxu0 0.0
    %114 = vmatpush1.msra.mxu0 0.0
    %115 = vmatprep.subr.mxu0 0.0
    %116 = vmatpush1.msra.mxu0 0.0
    %117 = vmatprep.subr.mxu0 0.0
    %118 = vmatpush1.msra.mxu0 0.0
    %119 = vmatprep.subr.mxu0 0.0
    %120 = vmatpush1.msra.mxu0 0.0
    %121 = vmatprep.subr.mxu0 0.0
    %122 = vmatpush1.msra.mxu0 0.0
    %123 = vmatprep.subr.mxu0 0.0
    %124 = vmatpush1.msra.mxu0 0.0
    %125 = vmatprep.subr.mxu0 0.0
    %126 = vmatpush1.msra.mxu0 0.0
    %127 = vmatprep.subr.mxu0 0.0
    %128 = vmatpush1.msra.mxu0 0.0
    %129 = vmatprep.subr.mxu0 0.0
    %130 = vmatpush1.msra.mxu0 0.0
    %131 = vmatprep.subr.mxu0 0.0
    %132 = vmatpush1.msra.mxu0 0.0
    %133 = vmatprep.subr.mxu0 0.0
    %134 = vmatpush1.msra.mxu0 0.0
    %135 = vmatprep.subr.mxu0 0.0
    %136 = vmatpush1.msra.mxu0 0.0
    %137 = vmatprep.subr.mxu0 0.0
    %138 = vmatpush1.msra.mxu0 0.0
    %139 = vmatprep.subr.mxu0 0.0
    %140 = vmatpush1.msra.mxu0 0.0
    %141 = vmatprep.subr.mxu0 0.0
    %142 = vmatpush1.msra.mxu0 0.0
    %143 = vmatprep.subr.mxu0 0.0
    %144 = vmatpush1.msra.mxu0 0.0
    %145 = vmatprep.subr.mxu0 0.0
    %146 = vmatpush1.msra.mxu0 0.0
    %147 = vmatprep.subr.mxu0 0.0
    %148 = vmatpush1.msra.mxu0 0.0
    %149 = vmatprep.subr.mxu0 0.0
    %150 = vmatpush1.msra.mxu0 0.0
    %151 = vmatprep.subr.mxu0 0.0
    %152 = vmatpush1.msra.mxu0 0.0
    %153 = vmatprep.subr.mxu0 0.0
    %154 = vmatpush1.msra.mxu0 0.0
    %155 = vmatprep.subr.mxu0 0.0
    %156 = vmatpush1.msra.mxu0 0.0
    %157 = vmatprep.subr.mxu0 0.0
    %158 = vmatpush1.msra.mxu0 0.0
    %159 = vmatprep.subr.mxu0 0.0
    %160 = vmatpush1.msra.mxu0 0.0
    %161 = vmatprep.subr.mxu0 0.0
    %162 = vmatpush1.msra.mxu0 0.0
    %163 = vmatprep.subr.mxu0 0.0
    %164 = vmatpush1.msra.mxu0 0.0
    %165 = vmatprep.subr.mxu0 0.0
    %166 = vmatpush1.msra.mxu0 0.0
    %167 = vmatprep.mubr.f32.mxu0 0.0
    %168 = vmatmul.mubr.f32.gmra.mrb[0].mxu0 %v92
    %v169 = vpop.f32.mrb[0].mxu0
    %v170 = vadd.f32 %v88, %v169
    %v171 = vpop.f32.mrb[0].mxu0
    %172 = vmatprep.mubr.f32.mxu0 0.0
    %173 = vmatmul.mubr.f32.gmra.mrb[0].mxu0 %v95
    %v174 = vpop.f32.mrb[0].mxu0
    %v175 = vadd.f32 %v88, %v174
    %v176 = vpop.f32.mrb[0].mxu0
    %177 = vmatprep.mubr.f32.mxu0 0.0
    %178 = vmatmul.mubr.f32.gmra.mrb[0].mxu0 %v98
    %v179 = vpop.f32.mrb[0].mxu0
    %v180 = vadd.f32 %v88, %v179
    %v181 = vpop.f32.mrb[0].mxu0
    %182 = vmatprep.mubr.f32.mxu0 0.0
    %183 = vmatmul.mubr.f32.gmra.mrb[0].mxu0 %v101
    %v184 = vpop.f32.mrb[0].mxu0
    %v185 = vadd.f32 %v88, %v184
    %v186 = vpop.f32.mrb[0].mxu0
    %187 = vdwg.mxu0
    %v188 = vmax.f32 %v170, 0.0
    %v189 = vmax.f32 %v175, 0.0
    %v190 = vmax.f32 %v180, 0.0
    %v191 = vmax.f32 %v185, 0.0
    %v192 = vld [vmem:[%s3] sm:$0x1]
    %v193 = vld [vmem:[%s4] sm:$0x1]
    %vm194 = vcmask 130048
    %v195 = vsel %vm194, %v188, 0.0
    %196 = vadd.xlane.f32.xlu0 %v195
    %v197 = vpop.xlane.xlu0 %196
    %v198 = vsel %vm194, %v189, 0.0
    %199 = vadd.xlane.f32.xlu0 %v198
    %v200 = vpop.xlane.xlu0 %199
    %v201 = vsel %vm194, %v190, 0.0
    %202 = vadd.xlane.f32.xlu0 %v201
    %v203 = vpop.xlane.xlu0 %202
    %v204 = vsel %vm194, %v191, 0.0
    %205 = vadd.xlane.f32.xlu0 %v204
    %v206 = vpop.xlane.xlu0 %205
    %v207 = vrcp.pop 16.0
    %v208 = vmul.f32 %v197, %v207
    %v209 = vmul.f32 %v200, %v207
    %v210 = vmul.f32 %v203, %v207
    %v211 = vmul.f32 %v206, %v207
    %v212 = vsub.f32 %v188, %v208
    %v213 = vsub.f32 %v189, %v209
    %v214 = vsub.f32 %v190, %v210
    %v215 = vsub.f32 %v191, %v211
    %v216 = vmul.f32 %v212, %v212
    %v217 = vmul.f32 %v213, %v213
    %v218 = vmul.f32 %v214, %v214
    %v219 = vmul.f32 %v215, %v215
    %v220 = vsel %vm194, %v216, 0.0
    %221 = vadd.xlane.f32.xlu0 %v220
    %v222 = vpop.xlane.xlu0 %221
    %v223 = vsel %vm194, %v217, 0.0
    %224 = vadd.xlane.f32.xlu0 %v223
    %v225 = vpop.xlane.xlu0 %224
    %v226 = vsel %vm194, %v218, 0.0
    %227 = vadd.xlane.f32.xlu0 %v226
    %v228 = vpop.xlane.xlu0 %227
    %v229 = vsel %vm194, %v219, 0.0
    %230 = vadd.xlane.f32.xlu0 %v229
    %v231 = vpop.xlane.xlu0 %230
    %v232 = vmul.f32 %v222, %v207
    %v233 = vmul.f32 %v225, %v207
    %v234 = vmul.f32 %v228, %v207
    %v235 = vmul.f32 %v231, %v207
    %v236 = vadd.f32 %v232, 1e-05
    %v237 = vadd.f32 %v233, 1e-05
    %v238 = vadd.f32 %v234, 1e-05
    %v239 = vadd.f32 %v235, 1e-05
    %v240 = vrsqrt.pop %v236
    %v241 = vrsqrt.pop %v237
    %v242 = vrsqrt.pop %v238
    %v243 = vrsqrt.pop %v239
    %v244 = vmul.f32 %v212, %v240
    %v245 = vmul.f32 %v213, %v241
    %v246 = vmul.f32 %v214, %v242
    %v247 = vmul.f32 %v215, %v243
    %v249 = vlaneseq
    %v250 = vshrl.u32 %v249, 7
    %v251 = vsub.s32 0, %v250
    %v252 = vrot.slane %v192, %v251
    %v254 = vmul.f32 %v244, %v252
    %v255 = vmul.f32 %v245, %v252
    %v256 = vmul.f32 %v246, %v252
    %v257 = vmul.f32 %v247, %v252
    %v259 = vlaneseq
    %v260 = vshrl.u32 %v259, 7
    %v261 = vsub.s32 0, %v260
    %v262 = vrot.slane %v193, %v261
    %v264 = vadd.f32 %v254, %v262
    %v265 = vadd.f32 %v255, %v262
    %v266 = vadd.f32 %v256, %v262
    %v267 = vadd.f32 %v257, %v262
    %v268 = vld [vmem:[%s5] sm:$0xff]
    %v269 = vld [vmem:[%s5 + $0x8] sm:$0xff]
    %v270 = vld [vmem:[%s7] sm:$0x1]
    %v272 = vlaneseq
    %v273 = vshrl.u32 %v272, 7
    %v274 = vsub.s32 0, %v273
    %v275 = vrot.slane %v270, %v274
    %v278 = vsel %vm194, %v264, 0
    %v281 = vsel %vm194, %v265, 0
    %v284 = vsel %vm194, %v266, 0
    %v287 = vsel %vm194, %v267, 0
    %289 = vmatprep.subr.mxu0 0.0
    %290 = vmatpush1.msra.mxu0 %v268
    %291 = vmatprep.subr.mxu0 0.0
    %292 = vmatpush1.msra.mxu0 %v269
    %293 = vmatprep.subr.mxu0 0.0
    %294 = vmatpush1.msra.mxu0 0.0
    %295 = vmatprep.subr.mxu0 0.0
    %296 = vmatpush1.msra.mxu0 0.0
    %297 = vmatprep.subr.mxu0 0.0
    %298 = vmatpush1.msra.mxu0 0.0
    %299 = vmatprep.subr.mxu0 0.0
    %300 = vmatpush1.msra.mxu0 0.0
    %301 = vmatprep.subr.mxu0 0.0
    %302 = vmatpush1.msra.mxu0 0.0
    %303 = vmatprep.subr.mxu0 0.0
    %304 = vmatpush1.msra.mxu0 0.0
    %305 = vmatprep.subr.mxu0 0.0
    %306 = vmatpush1.msra.mxu0 0.0
    %307 = vmatprep.subr.mxu0 0.0
    %308 = vmatpush1.msra.mxu0 0.0
    %309 = vmatprep.subr.mxu0 0.0
    %310 = vmatpush1.msra.mxu0 0.0
    %311 = vmatprep.subr.mxu0 0.0
    %312 = vmatpush1.msra.mxu0 0.0
    %313 = vmatprep.subr.mxu0 0.0
    %314 = vmatpush1.msra.mxu0 0.0
    %315 = vmatprep.subr.mxu0 0.0
    %316 = vmatpush1.msra.mxu0 0.0
    %317 = vmatprep.subr.mxu0 0.0
    %318 = vmatpush1.msra.mxu0 0.0
    %319 = vmatprep.subr.mxu0 0.0
    %320 = vmatpush1.msra.mxu0 0.0
    %321 = vmatprep.subr.mxu0 0.0
    %322 = vmatpush1.msra.mxu0 0.0
    %323 = vmatprep.subr.mxu0 0.0
    %324 = vmatpush1.msra.mxu0 0.0
    %325 = vmatprep.subr.mxu0 0.0
    %326 = vmatpush1.msra.mxu0 0.0
    %327 = vmatprep.subr.mxu0 0.0
    %328 = vmatpush1.msra.mxu0 0.0
    %329 = vmatprep.subr.mxu0 0.0
    %330 = vmatpush1.msra.mxu0 0.0
    %331 = vmatprep.subr.mxu0 0.0
    %332 = vmatpush1.msra.mxu0 0.0
    %333 = vmatprep.subr.mxu0 0.0
    %334 = vmatpush1.msra.mxu0 0.0
    %335 = vmatprep.subr.mxu0 0.0
    %336 = vmatpush1.msra.mxu0 0.0
    %337 = vmatprep.subr.mxu0 0.0
    %338 = vmatpush1.msra.mxu0 0.0
    %339 = vmatprep.subr.mxu0 0.0
    %340 = vmatpush1.msra.mxu0 0.0
    %341 = vmatprep.subr.mxu0 0.0
    %342 = vmatpush1.msra.mxu0 0.0
    %343 = vmatprep.subr.mxu0 0.0
    %344 = vmatpush1.msra.mxu0 0.0
    %345 = vmatprep.subr.mxu0 0.0
    %346 = vmatpush1.msra.mxu0 0.0
    %347 = vmatprep.subr.mxu0 0.0
    %348 = vmatpush1.msra.mxu0 0.0
    %349 = vmatprep.subr.mxu0 0.0
    %350 = vmatpush1.msra.mxu0 0.0
    %351 = vmatprep.subr.mxu0 0.0
    %352 = vmatpush1.msra.mxu0 0.0
    %353 = vmatprep.mubr.f32.mxu0 0.0
    %354 = vmatmul.mubr.f32.gmra.mrb[0].mxu0 %v278
    %v355 = vpop.f32.mrb[0].mxu0
    %v356 = vadd.f32 %v275, %v355
    %v357 = vpop.f32.mrb[0].mxu0
    %358 = vmatprep.mubr.f32.mxu0 0.0
    %359 = vmatmul.mubr.f32.gmra.mrb[0].mxu0 %v281
    %v360 = vpop.f32.mrb[0].mxu0
    %v361 = vadd.f32 %v275, %v360
    %v362 = vpop.f32.mrb[0].mxu0
    %363 = vmatprep.mubr.f32.mxu0 0.0
    %364 = vmatmul.mubr.f32.gmra.mrb[0].mxu0 %v284
    %v365 = vpop.f32.mrb[0].mxu0
    %v366 = vadd.f32 %v275, %v365
    %v367 = vpop.f32.mrb[0].mxu0
    %368 = vmatprep.mubr.f32.mxu0 0.0
    %369 = vmatmul.mubr.f32.gmra.mrb[0].mxu0 %v287
    %v370 = vpop.f32.mrb[0].mxu0
    %v371 = vadd.f32 %v275, %v370
    %v372 = vpop.f32.mrb[0].mxu0
    %373 = vdwg.mxu0
    %s374 = scalar_lea.vmem %s5, 16
    %v375 = vld [vmem:[%s374] sm:$0xff]
    %v376 = vld [vmem:[%s374 + $0x8] sm:$0xff]
    %s377 = scalar_lea.vmem %s7, 1
    %v378 = vld [vmem:[%s377] sm:$0x1]
    %v380 = vlaneseq
    %v381 = vshrl.u32 %v380, 7
    %v382 = vsub.s32 0, %v381
    %v383 = vrot.slane %v378, %v382
    %385 = vmatprep.subr.mxu0 0.0
    %386 = vmatpush1.msra.mxu0 %v375
    %387 = vmatprep.subr.mxu0 0.0
    %388 = vmatpush1.msra.mxu0 %v376
    %389 = vmatprep.subr.mxu0 0.0
    %390 = vmatpush1.msra.mxu0 0.0
    %391 = vmatprep.subr.mxu0 0.0
    %392 = vmatpush1.msra.mxu0 0.0
    %393 = vmatprep.subr.mxu0 0.0
    %394 = vmatpush1.msra.mxu0 0.0
    %395 = vmatprep.subr.mxu0 0.0
    %396 = vmatpush1.msra.mxu0 0.0
    %397 = vmatprep.subr.mxu0 0.0
    %398 = vmatpush1.msra.mxu0 0.0
    %399 = vmatprep.subr.mxu0 0.0
    %400 = vmatpush1.msra.mxu0 0.0
    %401 = vmatprep.subr.mxu0 0.0
    %402 = vmatpush1.msra.mxu0 0.0
    %403 = vmatprep.subr.mxu0 0.0
    %404 = vmatpush1.msra.mxu0 0.0
    %405 = vmatprep.subr.mxu0 0.0
    %406 = vmatpush1.msra.mxu0 0.0
    %407 = vmatprep.subr.mxu0 0.0
    %408 = vmatpush1.msra.mxu0 0.0
    %409 = vmatprep.subr.mxu0 0.0
    %410 = vmatpush1.msra.mxu0 0.0
    %411 = vmatprep.subr.mxu0 0.0
    %412 = vmatpush1.msra.mxu0 0.0
    %413 = vmatprep.subr.mxu0 0.0
    %414 = vmatpush1.msra.mxu0 0.0
    %415 = vmatprep.subr.mxu0 0.0
    %416 = vmatpush1.msra.mxu0 0.0
    %417 = vmatprep.subr.mxu0 0.0
    %418 = vmatpush1.msra.mxu0 0.0
    %419 = vmatprep.subr.mxu0 0.0
    %420 = vmatpush1.msra.mxu0 0.0
    %421 = vmatprep.subr.mxu0 0.0
    %422 = vmatpush1.msra.mxu0 0.0
    %423 = vmatprep.subr.mxu0 0.0
    %424 = vmatpush1.msra.mxu0 0.0
    %425 = vmatprep.subr.mxu0 0.0
    %426 = vmatpush1.msra.mxu0 0.0
    %427 = vmatprep.subr.mxu0 0.0
    %428 = vmatpush1.msra.mxu0 0.0
    %429 = vmatprep.subr.mxu0 0.0
    %430 = vmatpush1.msra.mxu0 0.0
    %431 = vmatprep.subr.mxu0 0.0
    %432 = vmatpush1.msra.mxu0 0.0
    %433 = vmatprep.subr.mxu0 0.0
    %434 = vmatpush1.msra.mxu0 0.0
    %435 = vmatprep.subr.mxu0 0.0
    %436 = vmatpush1.msra.mxu0 0.0
    %437 = vmatprep.subr.mxu0 0.0
    %438 = vmatpush1.msra.mxu0 0.0
    %439 = vmatprep.subr.mxu0 0.0
    %440 = vmatpush1.msra.mxu0 0.0
    %441 = vmatprep.subr.mxu0 0.0
    %442 = vmatpush1.msra.mxu0 0.0
    %443 = vmatprep.subr.mxu0 0.0
    %444 = vmatpush1.msra.mxu0 0.0
    %445 = vmatprep.subr.mxu0 0.0
    %446 = vmatpush1.msra.mxu0 0.0
    %447 = vmatprep.subr.mxu0 0.0
    %448 = vmatpush1.msra.mxu0 0.0
    %449 = vmatprep.mubr.f32.mxu0 0.0
    %450 = vmatmul.mubr.f32.gmra.mrb[0].mxu0 %v278
    %v451 = vpop.f32.mrb[0].mxu0
    %v452 = vadd.f32 %v383, %v451
    %v453 = vpop.f32.mrb[0].mxu0
    %454 = vmatprep.mubr.f32.mxu0 0.0
    %455 = vmatmul.mubr.f32.gmra.mrb[0].mxu0 %v281
    %v456 = vpop.f32.mrb[0].mxu0
    %v457 = vadd.f32 %v383, %v456
    %v458 = vpop.f32.mrb[0].mxu0
    %459 = vmatprep.mubr.f32.mxu0 0.0
    %460 = vmatmul.mubr.f32.gmra.mrb[0].mxu0 %v284
    %v461 = vpop.f32.mrb[0].mxu0
    %v462 = vadd.f32 %v383, %v461
    %v463 = vpop.f32.mrb[0].mxu0
    %464 = vmatprep.mubr.f32.mxu0 0.0
    %465 = vmatmul.mubr.f32.gmra.mrb[0].mxu0 %v287
    %v466 = vpop.f32.mrb[0].mxu0
    %v467 = vadd.f32 %v383, %v466
    %v468 = vpop.f32.mrb[0].mxu0
    %469 = vdwg.mxu0
    %s470 = scalar_lea.vmem %s5, 32
    %v471 = vld [vmem:[%s470] sm:$0xff]
    %v472 = vld [vmem:[%s470 + $0x8] sm:$0xff]
    %s473 = scalar_lea.vmem %s7, 2
    %v474 = vld [vmem:[%s473] sm:$0x1]
    %v476 = vlaneseq
    %v477 = vshrl.u32 %v476, 7
    %v478 = vsub.s32 0, %v477
    %v479 = vrot.slane %v474, %v478
    %481 = vmatprep.subr.mxu0 0.0
    %482 = vmatpush1.msra.mxu0 %v471
    %483 = vmatprep.subr.mxu0 0.0
    %484 = vmatpush1.msra.mxu0 %v472
    %485 = vmatprep.subr.mxu0 0.0
    %486 = vmatpush1.msra.mxu0 0.0
    %487 = vmatprep.subr.mxu0 0.0
    %488 = vmatpush1.msra.mxu0 0.0
    %489 = vmatprep.subr.mxu0 0.0
    %490 = vmatpush1.msra.mxu0 0.0
    %491 = vmatprep.subr.mxu0 0.0
    %492 = vmatpush1.msra.mxu0 0.0
    %493 = vmatprep.subr.mxu0 0.0
    %494 = vmatpush1.msra.mxu0 0.0
    %495 = vmatprep.subr.mxu0 0.0
    %496 = vmatpush1.msra.mxu0 0.0
    %497 = vmatprep.subr.mxu0 0.0
    %498 = vmatpush1.msra.mxu0 0.0
    %499 = vmatprep.subr.mxu0 0.0
    %500 = vmatpush1.msra.mxu0 0.0
    %501 = vmatprep.subr.mxu0 0.0
    %502 = vmatpush1.msra.mxu0 0.0
    %503 = vmatprep.subr.mxu0 0.0
    %504 = vmatpush1.msra.mxu0 0.0
    %505 = vmatprep.subr.mxu0 0.0
    %506 = vmatpush1.msra.mxu0 0.0
    %507 = vmatprep.subr.mxu0 0.0
    %508 = vmatpush1.msra.mxu0 0.0
    %509 = vmatprep.subr.mxu0 0.0
    %510 = vmatpush1.msra.mxu0 0.0
    %511 = vmatprep.subr.mxu0 0.0
    %512 = vmatpush1.msra.mxu0 0.0
    %513 = vmatprep.subr.mxu0 0.0
    %514 = vmatpush1.msra.mxu0 0.0
    %515 = vmatprep.subr.mxu0 0.0
    %516 = vmatpush1.msra.mxu0 0.0
    %517 = vmatprep.subr.mxu0 0.0
    %518 = vmatpush1.msra.mxu0 0.0
    %519 = vmatprep.subr.mxu0 0.0
    %520 = vmatpush1.msra.mxu0 0.0
    %521 = vmatprep.subr.mxu0 0.0
    %522 = vmatpush1.msra.mxu0 0.0
    %523 = vmatprep.subr.mxu0 0.0
    %524 = vmatpush1.msra.mxu0 0.0
    %525 = vmatprep.subr.mxu0 0.0
    %526 = vmatpush1.msra.mxu0 0.0
    %527 = vmatprep.subr.mxu0 0.0
    %528 = vmatpush1.msra.mxu0 0.0
    %529 = vmatprep.subr.mxu0 0.0
    %530 = vmatpush1.msra.mxu0 0.0
    %531 = vmatprep.subr.mxu0 0.0
    %532 = vmatpush1.msra.mxu0 0.0
    %533 = vmatprep.subr.mxu0 0.0
    %534 = vmatpush1.msra.mxu0 0.0
    %535 = vmatprep.subr.mxu0 0.0
    %536 = vmatpush1.msra.mxu0 0.0
    %537 = vmatprep.subr.mxu0 0.0
    %538 = vmatpush1.msra.mxu0 0.0
    %539 = vmatprep.subr.mxu0 0.0
    %540 = vmatpush1.msra.mxu0 0.0
    %541 = vmatprep.subr.mxu0 0.0
    %542 = vmatpush1.msra.mxu0 0.0
    %543 = vmatprep.subr.mxu0 0.0
    %544 = vmatpush1.msra.mxu0 0.0
    %545 = vmatprep.mubr.f32.mxu0 0.0
    %546 = vmatmul.mubr.f32.gmra.mrb[0].mxu0 %v278
    %v547 = vpop.f32.mrb[0].mxu0
    %v548 = vadd.f32 %v479, %v547
    %v549 = vpop.f32.mrb[0].mxu0
    %550 = vmatprep.mubr.f32.mxu0 0.0
    %551 = vmatmul.mubr.f32.gmra.mrb[0].mxu0 %v281
    %v552 = vpop.f32.mrb[0].mxu0
    %v553 = vadd.f32 %v479, %v552
    %v554 = vpop.f32.mrb[0].mxu0
    %555 = vmatprep.mubr.f32.mxu0 0.0
    %556 = vmatmul.mubr.f32.gmra.mrb[0].mxu0 %v284
    %v557 = vpop.f32.mrb[0].mxu0
    %v558 = vadd.f32 %v479, %v557
    %v559 = vpop.f32.mrb[0].mxu0
    %560 = vmatprep.mubr.f32.mxu0 0.0
    %561 = vmatmul.mubr.f32.gmra.mrb[0].mxu0 %v287
    %v562 = vpop.f32.mrb[0].mxu0
    %v563 = vadd.f32 %v479, %v562
    %v564 = vpop.f32.mrb[0].mxu0
    %565 = vdwg.mxu0
    %v566 = vld [vmem:[%s6] sm:$0xff]
    %v567 = vld [vmem:[%s6 + $0x8] sm:$0xff]
    %v568 = vld [vmem:[%s6 + $0x10] sm:$0xff]
    %v569 = vld [vmem:[%s6 + $0x18] sm:$0xff]
    %s570 = scalar_lea.vmem %s6, 32
    %v571 = vld [vmem:[%s570] sm:$0xff]
    %v572 = vld [vmem:[%s570 + $0x8] sm:$0xff]
    %v573 = vld [vmem:[%s570 + $0x10] sm:$0xff]
    %v574 = vld [vmem:[%s570 + $0x18] sm:$0xff]
    %s575 = scalar_lea.vmem %s6, 64
    %v576 = vld [vmem:[%s575] sm:$0xff]
    %v577 = vld [vmem:[%s575 + $0x8] sm:$0xff]
    %v578 = vld [vmem:[%s575 + $0x10] sm:$0xff]
    %v579 = vld [vmem:[%s575 + $0x18] sm:$0xff]
    %v580 = vld [vmem:[%s8] sm:$0x1]
    %v582 = vlaneseq
    %v583 = vshrl.u32 %v582, 7
    %v584 = vsub.s32 0, %v583
    %v585 = vrot.slane %v580, %v584
    %s587 = scalar_lea.vmem %s8, 1
    %v588 = vld [vmem:[%s587] sm:$0x1]
    %v590 = vlaneseq
    %v591 = vshrl.u32 %v590, 7
    %v592 = vsub.s32 0, %v591
    %v593 = vrot.slane %v588, %v592
    %s595 = scalar_lea.vmem %s8, 2
    %v596 = vld [vmem:[%s595] sm:$0x1]
    %v598 = vlaneseq
    %v599 = vshrl.u32 %v598, 7
    %v600 = vsub.s32 0, %v599
    %v601 = vrot.slane %v596, %v600
    %vm603 = vcmask 261120
    %v605 = vsel %vm603, 0.0, 0
    %607 = vmatprep.subr.mxu0 0.0
    %608 = vmatpush1.msra.mxu0 %v566
    %609 = vmatprep.subr.mxu0 0.0
    %610 = vmatpush1.msra.mxu0 %v567
    %611 = vmatprep.subr.mxu0 0.0
    %612 = vmatpush1.msra.mxu0 %v568
    %613 = vmatprep.subr.mxu0 0.0
    %614 = vmatpush1.msra.mxu0 %v569
    %615 = vmatprep.subr.mxu0 0.0
    %616 = vmatpush1.msra.mxu0 0.0
    %617 = vmatprep.subr.mxu0 0.0
    %618 = vmatpush1.msra.mxu0 0.0
    %619 = vmatprep.subr.mxu0 0.0
    %620 = vmatpush1.msra.mxu0 0.0
    %621 = vmatprep.subr.mxu0 0.0
    %622 = vmatpush1.msra.mxu0 0.0
    %623 = vmatprep.subr.mxu0 0.0
    %624 = vmatpush1.msra.mxu0 0.0
    %625 = vmatprep.subr.mxu0 0.0
    %626 = vmatpush1.msra.mxu0 0.0
    %627 = vmatprep.subr.mxu0 0.0
    %628 = vmatpush1.msra.mxu0 0.0
    %629 = vmatprep.subr.mxu0 0.0
    %630 = vmatpush1.msra.mxu0 0.0
    %631 = vmatprep.subr.mxu0 0.0
    %632 = vmatpush1.msra.mxu0 0.0
    %633 = vmatprep.subr.mxu0 0.0
    %634 = vmatpush1.msra.mxu0 0.0
    %635 = vmatprep.subr.mxu0 0.0
    %636 = vmatpush1.msra.mxu0 0.0
    %637 = vmatprep.subr.mxu0 0.0
    %638 = vmatpush1.msra.mxu0 0.0
    %639 = vmatprep.subr.mxu0 0.0
    %640 = vmatpush1.msra.mxu0 0.0
    %641 = vmatprep.subr.mxu0 0.0
    %642 = vmatpush1.msra.mxu0 0.0
    %643 = vmatprep.subr.mxu0 0.0
    %644 = vmatpush1.msra.mxu0 0.0
    %645 = vmatprep.subr.mxu0 0.0
    %646 = vmatpush1.msra.mxu0 0.0
    %647 = vmatprep.subr.mxu0 0.0
    %648 = vmatpush1.msra.mxu0 0.0
    %649 = vmatprep.subr.mxu0 0.0
    %650 = vmatpush1.msra.mxu0 0.0
    %651 = vmatprep.subr.mxu0 0.0
    %652 = vmatpush1.msra.mxu0 0.0
    %653 = vmatprep.subr.mxu0 0.0
    %654 = vmatpush1.msra.mxu0 0.0
    %655 = vmatprep.subr.mxu0 0.0
    %656 = vmatpush1.msra.mxu0 0.0
    %657 = vmatprep.subr.mxu0 0.0
    %658 = vmatpush1.msra.mxu0 0.0
    %659 = vmatprep.subr.mxu0 0.0
    %660 = vmatpush1.msra.mxu0 0.0
    %661 = vmatprep.subr.mxu0 0.0
    %662 = vmatpush1.msra.mxu0 0.0
    %663 = vmatprep.subr.mxu0 0.0
    %664 = vmatpush1.msra.mxu0 0.0
    %665 = vmatprep.subr.mxu0 0.0
    %666 = vmatpush1.msra.mxu0 0.0
    %667 = vmatprep.subr.mxu0 0.0
    %668 = vmatpush1.msra.mxu0 0.0
    %669 = vmatprep.subr.mxu0 0.0
    %670 = vmatpush1.msra.mxu0 0.0
    %671 = vmatprep.mubr.f32.mxu0 0.0
    %672 = vmatmul.mubr.f32.gmra.mrb[0].mxu0 %v605
    %v673 = vpop.f32.mrb[0].mxu0
    %v674 = vadd.f32 %v585, %v673
    %v675 = vpop.f32.mrb[0].mxu0
    %676 = vdwg.mxu0
    %677 = vmatprep.subr.mxu0 0.0
    %678 = vmatpush1.msra.mxu0 %v571
    %679 = vmatprep.subr.mxu0 0.0
    %680 = vmatpush1.msra.mxu0 %v572
    %681 = vmatprep.subr.mxu0 0.0
    %682 = vmatpush1.msra.mxu0 %v573
    %683 = vmatprep.subr.mxu0 0.0
    %684 = vmatpush1.msra.mxu0 %v574
    %685 = vmatprep.subr.mxu0 0.0
    %686 = vmatpush1.msra.mxu0 0.0
    %687 = vmatprep.subr.mxu0 0.0
    %688 = vmatpush1.msra.mxu0 0.0
    %689 = vmatprep.subr.mxu0 0.0
    %690 = vmatpush1.msra.mxu0 0.0
    %691 = vmatprep.subr.mxu0 0.0
    %692 = vmatpush1.msra.mxu0 0.0
    %693 = vmatprep.subr.mxu0 0.0
    %694 = vmatpush1.msra.mxu0 0.0
    %695 = vmatprep.subr.mxu0 0.0
    %696 = vmatpush1.msra.mxu0 0.0
    %697 = vmatprep.subr.mxu0 0.0
    %698 = vmatpush1.msra.mxu0 0.0
    %699 = vmatprep.subr.mxu0 0.0
    %700 = vmatpush1.msra.mxu0 0.0
    %701 = vmatprep.subr.mxu0 0.0
    %702 = vmatpush1.msra.mxu0 0.0
    %703 = vmatprep.subr.mxu0 0.0
    %704 = vmatpush1.msra.mxu0 0.0
    %705 = vmatprep.subr.mxu0 0.0
    %706 = vmatpush1.msra.mxu0 0.0
    %707 = vmatprep.subr.mxu0 0.0
    %708 = vmatpush1.msra.mxu0 0.0
    %709 = vmatprep.subr.mxu0 0.0
    %710 = vmatpush1.msra.mxu0 0.0
    %711 = vmatprep.subr.mxu0 0.0
    %712 = vmatpush1.msra.mxu0 0.0
    %713 = vmatprep.subr.mxu0 0.0
    %714 = vmatpush1.msra.mxu0 0.0
    %715 = vmatprep.subr.mxu0 0.0
    %716 = vmatpush1.msra.mxu0 0.0
    %717 = vmatprep.subr.mxu0 0.0
    %718 = vmatpush1.msra.mxu0 0.0
    %719 = vmatprep.subr.mxu0 0.0
    %720 = vmatpush1.msra.mxu0 0.0
    %721 = vmatprep.subr.mxu0 0.0
    %722 = vmatpush1.msra.mxu0 0.0
    %723 = vmatprep.subr.mxu0 0.0
    %724 = vmatpush1.msra.mxu0 0.0
    %725 = vmatprep.subr.mxu0 0.0
    %726 = vmatpush1.msra.mxu0 0.0
    %727 = vmatprep.subr.mxu0 0.0
    %728 = vmatpush1.msra.mxu0 0.0
    %729 = vmatprep.subr.mxu0 0.0
    %730 = vmatpush1.msra.mxu0 0.0
    %731 = vmatprep.subr.mxu0 0.0
    %732 = vmatpush1.msra.mxu0 0.0
    %733 = vmatprep.subr.mxu0 0.0
    %734 = vmatpush1.msra.mxu0 0.0
    %735 = vmatprep.subr.mxu0 0.0
    %736 = vmatpush1.msra.mxu0 0.0
    %737 = vmatprep.subr.mxu0 0.0
    %738 = vmatpush1.msra.mxu0 0.0
    %739 = vmatprep.subr.mxu0 0.0
    %740 = vmatpush1.msra.mxu0 0.0
    %741 = vmatprep.mubr.f32.mxu0 0.0
    %742 = vmatmul.mubr.f32.gmra.mrb[0].mxu0 %v605
    %v743 = vpop.f32.mrb[0].mxu0
    %v744 = vadd.f32 %v593, %v743
    %v745 = vpop.f32.mrb[0].mxu0
    %746 = vdwg.mxu0
    %747 = vmatprep.subr.mxu0 0.0
    %748 = vmatpush1.msra.mxu0 %v576
    %749 = vmatprep.subr.mxu0 0.0
    %750 = vmatpush1.msra.mxu0 %v577
    %751 = vmatprep.subr.mxu0 0.0
    %752 = vmatpush1.msra.mxu0 %v578
    %753 = vmatprep.subr.mxu0 0.0
    %754 = vmatpush1.msra.mxu0 %v579
    %755 = vmatprep.subr.mxu0 0.0
    %756 = vmatpush1.msra.mxu0 0.0
    %757 = vmatprep.subr.mxu0 0.0
    %758 = vmatpush1.msra.mxu0 0.0
    %759 = vmatprep.subr.mxu0 0.0
    %760 = vmatpush1.msra.mxu0 0.0
    %761 = vmatprep.subr.mxu0 0.0
    %762 = vmatpush1.msra.mxu0 0.0
    %763 = vmatprep.subr.mxu0 0.0
    %764 = vmatpush1.msra.mxu0 0.0
    %765 = vmatprep.subr.mxu0 0.0
    %766 = vmatpush1.msra.mxu0 0.0
    %767 = vmatprep.subr.mxu0 0.0
    %768 = vmatpush1.msra.mxu0 0.0
    %769 = vmatprep.subr.mxu0 0.0
    %770 = vmatpush1.msra.mxu0 0.0
    %771 = vmatprep.subr.mxu0 0.0
    %772 = vmatpush1.msra.mxu0 0.0
    %773 = vmatprep.subr.mxu0 0.0
    %774 = vmatpush1.msra.mxu0 0.0
    %775 = vmatprep.subr.mxu0 0.0
    %776 = vmatpush1.msra.mxu0 0.0
    %777 = vmatprep.subr.mxu0 0.0
    %778 = vmatpush1.msra.mxu0 0.0
    %779 = vmatprep.subr.mxu0 0.0
    %780 = vmatpush1.msra.mxu0 0.0
    %781 = vmatprep.subr.mxu0 0.0
    %782 = vmatpush1.msra.mxu0 0.0
    %783 = vmatprep.subr.mxu0 0.0
    %784 = vmatpush1.msra.mxu0 0.0
    %785 = vmatprep.subr.mxu0 0.0
    %786 = vmatpush1.msra.mxu0 0.0
    %787 = vmatprep.subr.mxu0 0.0
    %788 = vmatpush1.msra.mxu0 0.0
    %789 = vmatprep.subr.mxu0 0.0
    %790 = vmatpush1.msra.mxu0 0.0
    %791 = vmatprep.subr.mxu0 0.0
    %792 = vmatpush1.msra.mxu0 0.0
    %793 = vmatprep.subr.mxu0 0.0
    %794 = vmatpush1.msra.mxu0 0.0
    %795 = vmatprep.subr.mxu0 0.0
    %796 = vmatpush1.msra.mxu0 0.0
    %797 = vmatprep.subr.mxu0 0.0
    %798 = vmatpush1.msra.mxu0 0.0
    %799 = vmatprep.subr.mxu0 0.0
    %800 = vmatpush1.msra.mxu0 0.0
    %801 = vmatprep.subr.mxu0 0.0
    %802 = vmatpush1.msra.mxu0 0.0
    %803 = vmatprep.subr.mxu0 0.0
    %804 = vmatpush1.msra.mxu0 0.0
    %805 = vmatprep.subr.mxu0 0.0
    %806 = vmatpush1.msra.mxu0 0.0
    %807 = vmatprep.subr.mxu0 0.0
    %808 = vmatpush1.msra.mxu0 0.0
    %809 = vmatprep.subr.mxu0 0.0
    %810 = vmatpush1.msra.mxu0 0.0
    %811 = vmatprep.mubr.f32.mxu0 0.0
    %812 = vmatmul.mubr.f32.gmra.mrb[0].mxu0 %v605
    %v813 = vpop.f32.mrb[0].mxu0
    %v814 = vadd.f32 %v601, %v813
    %v815 = vpop.f32.mrb[0].mxu0
    %816 = vdwg.mxu0
    %v817 = vadd.f32 %v356, %v674
    %v818 = vxor.u32 %v817, 2147483648
    %v819 = vmul.f32 %v818, 1.442695
    %v820 = vpow.pop %v819
    %v821 = vadd.f32 %v820, 1.0
    %v822 = vrcp.pop %v821
    %v823 = vmul.f32 1.0, %v822
    %v824 = vadd.f32 %v452, %v744
    %v825 = vxor.u32 %v824, 2147483648
    %v826 = vmul.f32 %v825, 1.442695
    %v827 = vpow.pop %v826
    %v828 = vadd.f32 %v827, 1.0
    %v829 = vrcp.pop %v828
    %v830 = vmul.f32 1.0, %v829
    %v831 = vmul.f32 %v823, %v814
    %v832 = vadd.f32 %v548, %v831
    %v833 = vtanh.pop %v832
    %v834 = vsub.f32 1.0, %v830
    %v835 = vmul.f32 %v834, %v833
    %v836 = vmul.f32 %v830, 0.0
    %v837 = vadd.f32 %v835, %v836
    %vm838 = vcmask 254976
    %839 = vst.msk [vmem:[#allocation2] sm:$0x3] %vm838, %v837
    %v841 = vsel %vm603, %v837, 0
    %843 = vmatprep.subr.mxu0 0.0
    %844 = vmatpush1.msra.mxu0 %v566
    %845 = vmatprep.subr.mxu0 0.0
    %846 = vmatpush1.msra.mxu0 %v567
    %847 = vmatprep.subr.mxu0 0.0
    %848 = vmatpush1.msra.mxu0 %v568
    %849 = vmatprep.subr.mxu0 0.0
    %850 = vmatpush1.msra.mxu0 %v569
    %851 = vmatprep.subr.mxu0 0.0
    %852 = vmatpush1.msra.mxu0 0.0
    %853 = vmatprep.subr.mxu0 0.0
    %854 = vmatpush1.msra.mxu0 0.0
    %855 = vmatprep.subr.mxu0 0.0
    %856 = vmatpush1.msra.mxu0 0.0
    %857 = vmatprep.subr.mxu0 0.0
    %858 = vmatpush1.msra.mxu0 0.0
    %859 = vmatprep.subr.mxu0 0.0
    %860 = vmatpush1.msra.mxu0 0.0
    %861 = vmatprep.subr.mxu0 0.0
    %862 = vmatpush1.msra.mxu0 0.0
    %863 = vmatprep.subr.mxu0 0.0
    %864 = vmatpush1.msra.mxu0 0.0
    %865 = vmatprep.subr.mxu0 0.0
    %866 = vmatpush1.msra.mxu0 0.0
    %867 = vmatprep.subr.mxu0 0.0
    %868 = vmatpush1.msra.mxu0 0.0
    %869 = vmatprep.subr.mxu0 0.0
    %870 = vmatpush1.msra.mxu0 0.0
    %871 = vmatprep.subr.mxu0 0.0
    %872 = vmatpush1.msra.mxu0 0.0
    %873 = vmatprep.subr.mxu0 0.0
    %874 = vmatpush1.msra.mxu0 0.0
    %875 = vmatprep.subr.mxu0 0.0
    %876 = vmatpush1.msra.mxu0 0.0
    %877 = vmatprep.subr.mxu0 0.0
    %878 = vmatpush1.msra.mxu0 0.0
    %879 = vmatprep.subr.mxu0 0.0
    %880 = vmatpush1.msra.mxu0 0.0
    %881 = vmatprep.subr.mxu0 0.0
    %882 = vmatpush1.msra.mxu0 0.0
    %883 = vmatprep.subr.mxu0 0.0
    %884 = vmatpush1.msra.mxu0 0.0
    %885 = vmatprep.subr.mxu0 0.0
    %886 = vmatpush1.msra.mxu0 0.0
    %887 = vmatprep.subr.mxu0 0.0
    %888 = vmatpush1.msra.mxu0 0.0
    %889 = vmatprep.subr.mxu0 0.0
    %890 = vmatpush1.msra.mxu0 0.0
    %891 = vmatprep.subr.mxu0 0.0
    %892 = vmatpush1.msra.mxu0 0.0
    %893 = vmatprep.subr.mxu0 0.0
    %894 = vmatpush1.msra.mxu0 0.0
    %895 = vmatprep.subr.mxu0 0.0
    %896 = vmatpush1.msra.mxu0 0.0
    %897 = vmatprep.subr.mxu0 0.0
    %898 = vmatpush1.msra.mxu0 0.0
    %899 = vmatprep.subr.mxu0 0.0
    %900 = vmatpush1.msra.mxu0 0.0
    %901 = vmatprep.subr.mxu0 0.0
    %902 = vmatpush1.msra.mxu0 0.0
    %903 = vmatprep.subr.mxu0 0.0
    %904 = vmatpush1.msra.mxu0 0.0
    %905 = vmatprep.subr.mxu0 0.0
    %906 = vmatpush1.msra.mxu0 0.0
    %907 = vmatprep.mubr.f32.mxu0 0.0
    %908 = vmatmul.mubr.f32.gmra.mrb[0].mxu0 %v841
    %v909 = vpop.f32.mrb[0].mxu0
    %v910 = vadd.f32 %v585, %v909
    %v911 = vpop.f32.mrb[0].mxu0
    %912 = vdwg.mxu0
    %913 = vmatprep.subr.mxu0 0.0
    %914 = vmatpush1.msra.mxu0 %v571
    %915 = vmatprep.subr.mxu0 0.0
    %916 = vmatpush1.msra.mxu0 %v572
    %917 = vmatprep.subr.mxu0 0.0
    %918 = vmatpush1.msra.mxu0 %v573
    %919 = vmatprep.subr.mxu0 0.0
    %920 = vmatpush1.msra.mxu0 %v574
    %921 = vmatprep.subr.mxu0 0.0
    %922 = vmatpush1.msra.mxu0 0.0
    %923 = vmatprep.subr.mxu0 0.0
    %924 = vmatpush1.msra.mxu0 0.0
    %925 = vmatprep.subr.mxu0 0.0
    %926 = vmatpush1.msra.mxu0 0.0
    %927 = vmatprep.subr.mxu0 0.0
    %928 = vmatpush1.msra.mxu0 0.0
    %929 = vmatprep.subr.mxu0 0.0
    %930 = vmatpush1.msra.mxu0 0.0
    %931 = vmatprep.subr.mxu0 0.0
    %932 = vmatpush1.msra.mxu0 0.0
    %933 = vmatprep.subr.mxu0 0.0
    %934 = vmatpush1.msra.mxu0 0.0
    %935 = vmatprep.subr.mxu0 0.0
    %936 = vmatpush1.msra.mxu0 0.0
    %937 = vmatprep.subr.mxu0 0.0
    %938 = vmatpush1.msra.mxu0 0.0
    %939 = vmatprep.subr.mxu0 0.0
    %940 = vmatpush1.msra.mxu0 0.0
    %941 = vmatprep.subr.mxu0 0.0
    %942 = vmatpush1.msra.mxu0 0.0
    %943 = vmatprep.subr.mxu0 0.0
    %944 = vmatpush1.msra.mxu0 0.0
    %945 = vmatprep.subr.mxu0 0.0
    %946 = vmatpush1.msra.mxu0 0.0
    %947 = vmatprep.subr.mxu0 0.0
    %948 = vmatpush1.msra.mxu0 0.0
    %949 = vmatprep.subr.mxu0 0.0
    %950 = vmatpush1.msra.mxu0 0.0
    %951 = vmatprep.subr.mxu0 0.0
    %952 = vmatpush1.msra.mxu0 0.0
    %953 = vmatprep.subr.mxu0 0.0
    %954 = vmatpush1.msra.mxu0 0.0
    %955 = vmatprep.subr.mxu0 0.0
    %956 = vmatpush1.msra.mxu0 0.0
    %957 = vmatprep.subr.mxu0 0.0
    %958 = vmatpush1.msra.mxu0 0.0
    %959 = vmatprep.subr.mxu0 0.0
    %960 = vmatpush1.msra.mxu0 0.0
    %961 = vmatprep.subr.mxu0 0.0
    %962 = vmatpush1.msra.mxu0 0.0
    %963 = vmatprep.subr.mxu0 0.0
    %964 = vmatpush1.msra.mxu0 0.0
    %965 = vmatprep.subr.mxu0 0.0
    %966 = vmatpush1.msra.mxu0 0.0
    %967 = vmatprep.subr.mxu0 0.0
    %968 = vmatpush1.msra.mxu0 0.0
    %969 = vmatprep.subr.mxu0 0.0
    %970 = vmatpush1.msra.mxu0 0.0
    %971 = vmatprep.subr.mxu0 0.0
    %972 = vmatpush1.msra.mxu0 0.0
    %973 = vmatprep.subr.mxu0 0.0
    %974 = vmatpush1.msra.mxu0 0.0
    %975 = vmatprep.subr.mxu0 0.0
    %976 = vmatpush1.msra.mxu0 0.0
    %977 = vmatprep.mubr.f32.mxu0 0.0
    %978 = vmatmul.mubr.f32.gmra.mrb[0].mxu0 %v841
    %v979 = vpop.f32.mrb[0].mxu0
    %v980 = vadd.f32 %v593, %v979
    %v981 = vpop.f32.mrb[0].mxu0
    %982 = vdwg.mxu0
    %983 = vmatprep.subr.mxu0 0.0
    %984 = vmatpush1.msra.mxu0 %v576
    %985 = vmatprep.subr.mxu0 0.0
    %986 = vmatpush1.msra.mxu0 %v577
    %987 = vmatprep.subr.mxu0 0.0
    %988 = vmatpush1.msra.mxu0 %v578
    %989 = vmatprep.subr.mxu0 0.0
    %990 = vmatpush1.msra.mxu0 %v579
    %991 = vmatprep.subr.mxu0 0.0
    %992 = vmatpush1.msra.mxu0 0.0
    %993 = vmatprep.subr.mxu0 0.0
    %994 = vmatpush1.msra.mxu0 0.0
    %995 = vmatprep.subr.mxu0 0.0
    %996 = vmatpush1.msra.mxu0 0.0
    %997 = vmatprep.subr.mxu0 0.0
    %998 = vmatpush1.msra.mxu0 0.0
    %999 = vmatprep.subr.mxu0 0.0
    %1000 = vmatpush1.msra.mxu0 0.0
    %1001 = vmatprep.subr.mxu0 0.0
    %1002 = vmatpush1.msra.mxu0 0.0
    %1003 = vmatprep.subr.mxu0 0.0
    %1004 = vmatpush1.msra.mxu0 0.0
    %1005 = vmatprep.subr.mxu0 0.0
    %1006 = vmatpush1.msra.mxu0 0.0
    %1007 = vmatprep.subr.mxu0 0.0
    %1008 = vmatpush1.msra.mxu0 0.0
    %1009 = vmatprep.subr.mxu0 0.0
    %1010 = vmatpush1.msra.mxu0 0.0
    %1011 = vmatprep.subr.mxu0 0.0
    %1012 = vmatpush1.msra.mxu0 0.0
    %1013 = vmatprep.subr.mxu0 0.0
    %1014 = vmatpush1.msra.mxu0 0.0
    %1015 = vmatprep.subr.mxu0 0.0
    %1016 = vmatpush1.msra.mxu0 0.0
    %1017 = vmatprep.subr.mxu0 0.0
    %1018 = vmatpush1.msra.mxu0 0.0
    %1019 = vmatprep.subr.mxu0 0.0
    %1020 = vmatpush1.msra.mxu0 0.0
    %1021 = vmatprep.subr.mxu0 0.0
    %1022 = vmatpush1.msra.mxu0 0.0
    %1023 = vmatprep.subr.mxu0 0.0
    %1024 = vmatpush1.msra.mxu0 0.0
    %1025 = vmatprep.subr.mxu0 0.0
    %1026 = vmatpush1.msra.mxu0 0.0
    %1027 = vmatprep.subr.mxu0 0.0
    %1028 = vmatpush1.msra.mxu0 0.0
    %1029 = vmatprep.subr.mxu0 0.0
    %1030 = vmatpush1.msra.mxu0 0.0
    %1031 = vmatprep.subr.mxu0 0.0
    %1032 = vmatpush1.msra.mxu0 0.0
    %1033 = vmatprep.subr.mxu0 0.0
    %1034 = vmatpush1.msra.mxu0 0.0
    %1035 = vmatprep.subr.mxu0 0.0
    %1036 = vmatpush1.msra.mxu0 0.0
    %1037 = vmatprep.subr.mxu0 0.0
    %1038 = vmatpush1.msra.mxu0 0.0
    %1039 = vmatprep.subr.mxu0 0.0
    %1040 = vmatpush1.msra.mxu0 0.0
    %1041 = vmatprep.subr.mxu0 0.0
    %1042 = vmatpush1.msra.mxu0 0.0
    %1043 = vmatprep.subr.mxu0 0.0
    %1044 = vmatpush1.msra.mxu0 0.0
    %1045 = vmatprep.subr.mxu0 0.0
    %1046 = vmatpush1.msra.mxu0 0.0
    %1047 = vmatprep.mubr.f32.mxu0 0.0
    %1048 = vmatmul.mubr.f32.gmra.mrb[0].mxu0 %v841
    %v1049 = vpop.f32.mrb[0].mxu0
    %v1050 = vadd.f32 %v601, %v1049
    %v1051 = vpop.f32.mrb[0].mxu0
    %1052 = vdwg.mxu0
    %v1054 = vrot.slane %v910, 6
    %v1056 = vadd.f32 %v356, %v1054
    %v1057 = vxor.u32 %v1056, 2147483648
    %v1058 = vmul.f32 %v1057, 1.442695
    %v1059 = vpow.pop %v1058
    %v1060 = vadd.f32 %v1059, 1.0
    %v1061 = vrcp.pop %v1060
    %v1062 = vmul.f32 1.0, %v1061
    %v1064 = vrot.slane %v980, 6
    %v1066 = vadd.f32 %v452, %v1064
    %v1067 = vxor.u32 %v1066, 2147483648
    %v1068 = vmul.f32 %v1067, 1.442695
    %v1069 = vpow.pop %v1068
    %v1070 = vadd.f32 %v1069, 1.0
    %v1071 = vrcp.pop %v1070
    %v1072 = vmul.f32 1.0, %v1071
    %v1074 = vrot.slane %v1050, 6
    %v1076 = vmul.f32 %v1062, %v1074
    %v1077 = vadd.f32 %v548, %v1076
    %v1078 = vtanh.pop %v1077
    %v1079 = vsub.f32 1.0, %v1072
    %v1080 = vmul.f32 %v1079, %v1078
    %v1081 = vrot.slane %v837, 6
    %v1083 = vmul.f32 %v1072, %v1081
    %v1084 = vadd.f32 %v1080, %v1083
    %s1085 = scalar_lea.vmem [#allocation2], 2
    %vm1086 = vcmask 257026
    %1087 = vst.msk [vmem:[%s1085 - $0x2] sm:$0xc] %vm1086, %v1084
    %v1089 = vrot.slane %v1084, 2
    %v1090 = vsel %vm603, %v1089, 0
    %1092 = vmatprep.subr.mxu0 0.0
    %1093 = vmatpush1.msra.mxu0 %v566
    %1094 = vmatprep.subr.mxu0 0.0
    %1095 = vmatpush1.msra.mxu0 %v567
    %1096 = vmatprep.subr.mxu0 0.0
    %1097 = vmatpush1.msra.mxu0 %v568
    %1098 = vmatprep.subr.mxu0 0.0
    %1099 = vmatpush1.msra.mxu0 %v569
    %1100 = vmatprep.subr.mxu0 0.0
    %1101 = vmatpush1.msra.mxu0 0.0
    %1102 = vmatprep.subr.mxu0 0.0
    %1103 = vmatpush1.msra.mxu0 0.0
    %1104 = vmatprep.subr.mxu0 0.0
    %1105 = vmatpush1.msra.mxu0 0.0
    %1106 = vmatprep.subr.mxu0 0.0
    %1107 = vmatpush1.msra.mxu0 0.0
    %1108 = vmatprep.subr.mxu0 0.0
    %1109 = vmatpush1.msra.mxu0 0.0
    %1110 = vmatprep.subr.mxu0 0.0
    %1111 = vmatpush1.msra.mxu0 0.0
    %1112 = vmatprep.subr.mxu0 0.0
    %1113 = vmatpush1.msra.mxu0 0.0
    %1114 = vmatprep.subr.mxu0 0.0
    %1115 = vmatpush1.msra.mxu0 0.0
    %1116 = vmatprep.subr.mxu0 0.0
    %1117 = vmatpush1.msra.mxu0 0.0
    %1118 = vmatprep.subr.mxu0 0.0
    %1119 = vmatpush1.msra.mxu0 0.0
    %1120 = vmatprep.subr.mxu0 0.0
    %1121 = vmatpush1.msra.mxu0 0.0
    %1122 = vmatprep.subr.mxu0 0.0
    %1123 = vmatpush1.msra.mxu0 0.0
    %1124 = vmatprep.subr.mxu0 0.0
    %1125 = vmatpush1.msra.mxu0 0.0
    %1126 = vmatprep.subr.mxu0 0.0
    %1127 = vmatpush1.msra.mxu0 0.0
    %1128 = vmatprep.subr.mxu0 0.0
    %1129 = vmatpush1.msra.mxu0 0.0
    %1130 = vmatprep.subr.mxu0 0.0
    %1131 = vmatpush1.msra.mxu0 0.0
    %1132 = vmatprep.subr.mxu0 0.0
    %1133 = vmatpush1.msra.mxu0 0.0
    %1134 = vmatprep.subr.mxu0 0.0
    %1135 = vmatpush1.msra.mxu0 0.0
    %1136 = vmatprep.subr.mxu0 0.0
    %1137 = vmatpush1.msra.mxu0 0.0
    %1138 = vmatprep.subr.mxu0 0.0
    %1139 = vmatpush1.msra.mxu0 0.0
    %1140 = vmatprep.subr.mxu0 0.0
    %1141 = vmatpush1.msra.mxu0 0.0
    %1142 = vmatprep.subr.mxu0 0.0
    %1143 = vmatpush1.msra.mxu0 0.0
    %1144 = vmatprep.subr.mxu0 0.0
    %1145 = vmatpush1.msra.mxu0 0.0
    %1146 = vmatprep.subr.mxu0 0.0
    %1147 = vmatpush1.msra.mxu0 0.0
    %1148 = vmatprep.subr.mxu0 0.0
    %1149 = vmatpush1.msra.mxu0 0.0
    %1150 = vmatprep.subr.mxu0 0.0
    %1151 = vmatpush1.msra.mxu0 0.0
    %1152 = vmatprep.subr.mxu0 0.0
    %1153 = vmatpush1.msra.mxu0 0.0
    %1154 = vmatprep.subr.mxu0 0.0
    %1155 = vmatpush1.msra.mxu0 0.0
    %1156 = vmatprep.mubr.f32.mxu0 0.0
    %1157 = vmatmul.mubr.f32.gmra.mrb[0].mxu0 %v1090
    %v1158 = vpop.f32.mrb[0].mxu0
    %v1159 = vadd.f32 %v585, %v1158
    %v1160 = vpop.f32.mrb[0].mxu0
    %1161 = vdwg.mxu0
    %1162 = vmatprep.subr.mxu0 0.0
    %1163 = vmatpush1.msra.mxu0 %v571
    %1164 = vmatprep.subr.mxu0 0.0
    %1165 = vmatpush1.msra.mxu0 %v572
    %1166 = vmatprep.subr.mxu0 0.0
    %1167 = vmatpush1.msra.mxu0 %v573
    %1168 = vmatprep.subr.mxu0 0.0
    %1169 = vmatpush1.msra.mxu0 %v574
    %1170 = vmatprep.subr.mxu0 0.0
    %1171 = vmatpush1.msra.mxu0 0.0
    %1172 = vmatprep.subr.mxu0 0.0
    %1173 = vmatpush1.msra.mxu0 0.0
    %1174 = vmatprep.subr.mxu0 0.0
    %1175 = vmatpush1.msra.mxu0 0.0
    %1176 = vmatprep.subr.mxu0 0.0
    %1177 = vmatpush1.msra.mxu0 0.0
    %1178 = vmatprep.subr.mxu0 0.0
    %1179 = vmatpush1.msra.mxu0 0.0
    %1180 = vmatprep.subr.mxu0 0.0
    %1181 = vmatpush1.msra.mxu0 0.0
    %1182 = vmatprep.subr.mxu0 0.0
    %1183 = vmatpush1.msra.mxu0 0.0
    %1184 = vmatprep.subr.mxu0 0.0
    %1185 = vmatpush1.msra.mxu0 0.0
    %1186 = vmatprep.subr.mxu0 0.0
    %1187 = vmatpush1.msra.mxu0 0.0
    %1188 = vmatprep.subr.mxu0 0.0
    %1189 = vmatpush1.msra.mxu0 0.0
    %1190 = vmatprep.subr.mxu0 0.0
    %1191 = vmatpush1.msra.mxu0 0.0
    %1192 = vmatprep.subr.mxu0 0.0
    %1193 = vmatpush1.msra.mxu0 0.0
    %1194 = vmatprep.subr.mxu0 0.0
    %1195 = vmatpush1.msra.mxu0 0.0
    %1196 = vmatprep.subr.mxu0 0.0
    %1197 = vmatpush1.msra.mxu0 0.0
    %1198 = vmatprep.subr.mxu0 0.0
    %1199 = vmatpush1.msra.mxu0 0.0
    %1200 = vmatprep.subr.mxu0 0.0
    %1201 = vmatpush1.msra.mxu0 0.0
    %1202 = vmatprep.subr.mxu0 0.0
    %1203 = vmatpush1.msra.mxu0 0.0
    %1204 = vmatprep.subr.mxu0 0.0
    %1205 = vmatpush1.msra.mxu0 0.0
    %1206 = vmatprep.subr.mxu0 0.0
    %1207 = vmatpush1.msra.mxu0 0.0
    %1208 = vmatprep.subr.mxu0 0.0
    %1209 = vmatpush1.msra.mxu0 0.0
    %1210 = vmatprep.subr.mxu0 0.0
    %1211 = vmatpush1.msra.mxu0 0.0
    %1212 = vmatprep.subr.mxu0 0.0
    %1213 = vmatpush1.msra.mxu0 0.0
    %1214 = vmatprep.subr.mxu0 0.0
    %1215 = vmatpush1.msra.mxu0 0.0
    %1216 = vmatprep.subr.mxu0 0.0
    %1217 = vmatpush1.msra.mxu0 0.0
    %1218 = vmatprep.subr.mxu0 0.0
    %1219 = vmatpush1.msra.mxu0 0.0
    %1220 = vmatprep.subr.mxu0 0.0
    %1221 = vmatpush1.msra.mxu0 0.0
    %1222 = vmatprep.subr.mxu0 0.0
    %1223 = vmatpush1.msra.mxu0 0.0
    %1224 = vmatprep.subr.mxu0 0.0
    %1225 = vmatpush1.msra.mxu0 0.0
    %1226 = vmatprep.mubr.f32.mxu0 0.0
    %1227 = vmatmul.mubr.f32.gmra.mrb[0].mxu0 %v1090
    %v1228 = vpop.f32.mrb[0].mxu0
    %v1229 = vadd.f32 %v593, %v1228
    %v1230 = vpop.f32.mrb[0].mxu0
    %1231 = vdwg.mxu0
    %1232 = vmatprep.subr.mxu0 0.0
    %1233 = vmatpush1.msra.mxu0 %v576
    %1234 = vmatprep.subr.mxu0 0.0
    %1235 = vmatpush1.msra.mxu0 %v577
    %1236 = vmatprep.subr.mxu0 0.0
    %1237 = vmatpush1.msra.mxu0 %v578
    %1238 = vmatprep.subr.mxu0 0.0
    %1239 = vmatpush1.msra.mxu0 %v579
    %1240 = vmatprep.subr.mxu0 0.0
    %1241 = vmatpush1.msra.mxu0 0.0
    %1242 = vmatprep.subr.mxu0 0.0
    %1243 = vmatpush1.msra.mxu0 0.0
    %1244 = vmatprep.subr.mxu0 0.0
    %1245 = vmatpush1.msra.mxu0 0.0
    %1246 = vmatprep.subr.mxu0 0.0
    %1247 = vmatpush1.msra.mxu0 0.0
    %1248 = vmatprep.subr.mxu0 0.0
    %1249 = vmatpush1.msra.mxu0 0.0
    %1250 = vmatprep.subr.mxu0 0.0
    %1251 = vmatpush1.msra.mxu0 0.0
    %1252 = vmatprep.subr.mxu0 0.0
    %1253 = vmatpush1.msra.mxu0 0.0
    %1254 = vmatprep.subr.mxu0 0.0
    %1255 = vmatpush1.msra.mxu0 0.0
    %1256 = vmatprep.subr.mxu0 0.0
    %1257 = vmatpush1.msra.mxu0 0.0
    %1258 = vmatprep.subr.mxu0 0.0
    %1259 = vmatpush1.msra.mxu0 0.0
    %1260 = vmatprep.subr.mxu0 0.0
    %1261 = vmatpush1.msra.mxu0 0.0
    %1262 = vmatprep.subr.mxu0 0.0
    %1263 = vmatpush1.msra.mxu0 0.0
    %1264 = vmatprep.subr.mxu0 0.0
    %1265 = vmatpush1.msra.mxu0 0.0
    %1266 = vmatprep.subr.mxu0 0.0
    %1267 = vmatpush1.msra.mxu0 0.0
    %1268 = vmatprep.subr.mxu0 0.0
    %1269 = vmatpush1.msra.mxu0 0.0
    %1270 = vmatprep.subr.mxu0 0.0
    %1271 = vmatpush1.msra.mxu0 0.0
    %1272 = vmatprep.subr.mxu0 0.0
    %1273 = vmatpush1.msra.mxu0 0.0
    %1274 = vmatprep.subr.mxu0 0.0
    %1275 = vmatpush1.msra.mxu0 0.0
    %1276 = vmatprep.subr.mxu0 0.0
    %1277 = vmatpush1.msra.mxu0 0.0
    %1278 = vmatprep.subr.mxu0 0.0
    %1279 = vmatpush1.msra.mxu0 0.0
    %1280 = vmatprep.subr.mxu0 0.0
    %1281 = vmatpush1.msra.mxu0 0.0
    %1282 = vmatprep.subr.mxu0 0.0
    %1283 = vmatpush1.msra.mxu0 0.0
    %1284 = vmatprep.subr.mxu0 0.0
    %1285 = vmatpush1.msra.mxu0 0.0
    %1286 = vmatprep.subr.mxu0 0.0
    %1287 = vmatpush1.msra.mxu0 0.0
    %1288 = vmatprep.subr.mxu0 0.0
    %1289 = vmatpush1.msra.mxu0 0.0
    %1290 = vmatprep.subr.mxu0 0.0
    %1291 = vmatpush1.msra.mxu0 0.0
    %1292 = vmatprep.subr.mxu0 0.0
    %1293 = vmatpush1.msra.mxu0 0.0
    %1294 = vmatprep.subr.mxu0 0.0
    %1295 = vmatpush1.msra.mxu0 0.0
    %1296 = vmatprep.mubr.f32.mxu0 0.0
    %1297 = vmatmul.mubr.f32.gmra.mrb[0].mxu0 %v1090
    %v1298 = vpop.f32.mrb[0].mxu0
    %v1299 = vadd.f32 %v601, %v1298
    %v1300 = vpop.f32.mrb[0].mxu0
    %1301 = vdwg.mxu0
    %v1303 = vrot.slane %v1159, 4
    %v1305 = vadd.f32 %v356, %v1303
    %v1306 = vxor.u32 %v1305, 2147483648
    %v1307 = vmul.f32 %v1306, 1.442695
    %v1308 = vpow.pop %v1307
    %v1309 = vadd.f32 %v1308, 1.0
    %v1310 = vrcp.pop %v1309
    %v1311 = vmul.f32 1.0, %v1310
    %v1313 = vrot.slane %v1229, 4
    %v1315 = vadd.f32 %v452, %v1313
    %v1316 = vxor.u32 %v1315, 2147483648
    %v1317 = vmul.f32 %v1316, 1.442695
    %v1318 = vpow.pop %v1317
    %v1319 = vadd.f32 %v1318, 1.0
    %v1320 = vrcp.pop %v1319
    %v1321 = vmul.f32 1.0, %v1320
    %v1323 = vrot.slane %v1299, 4
    %v1325 = vmul.f32 %v1311, %v1323
    %v1326 = vadd.f32 %v548, %v1325
    %v1327 = vtanh.pop %v1326
    %v1328 = vsub.f32 1.0, %v1321
    %v1329 = vmul.f32 %v1328, %v1327
    %v1330 = vrot.slane %v1084, 6
    %v1332 = vmul.f32 %v1321, %v1330
    %v1333 = vadd.f32 %v1329, %v1332
    %s1334 = scalar_lea.vmem [#allocation2], 4
    %vm1335 = vcmask 259076
    %1336 = vst.msk [vmem:[%s1334 - $0x4] sm:$0x30] %vm1335, %v1333
    %v1338 = vrot.slane %v1333, 4
    %v1339 = vsel %vm603, %v1338, 0
    %1341 = vmatprep.subr.mxu0 0.0
    %1342 = vmatpush1.msra.mxu0 %v566
    %1343 = vmatprep.subr.mxu0 0.0
    %1344 = vmatpush1.msra.mxu0 %v567
    %1345 = vmatprep.subr.mxu0 0.0
    %1346 = vmatpush1.msra.mxu0 %v568
    %1347 = vmatprep.subr.mxu0 0.0
    %1348 = vmatpush1.msra.mxu0 %v569
    %1349 = vmatprep.subr.mxu0 0.0
    %1350 = vmatpush1.msra.mxu0 0.0
    %1351 = vmatprep.subr.mxu0 0.0
    %1352 = vmatpush1.msra.mxu0 0.0
    %1353 = vmatprep.subr.mxu0 0.0
    %1354 = vmatpush1.msra.mxu0 0.0
    %1355 = vmatprep.subr.mxu0 0.0
    %1356 = vmatpush1.msra.mxu0 0.0
    %1357 = vmatprep.subr.mxu0 0.0
    %1358 = vmatpush1.msra.mxu0 0.0
    %1359 = vmatprep.subr.mxu0 0.0
    %1360 = vmatpush1.msra.mxu0 0.0
    %1361 = vmatprep.subr.mxu0 0.0
    %1362 = vmatpush1.msra.mxu0 0.0
    %1363 = vmatprep.subr.mxu0 0.0
    %1364 = vmatpush1.msra.mxu0 0.0
    %1365 = vmatprep.subr.mxu0 0.0
    %1366 = vmatpush1.msra.mxu0 0.0
    %1367 = vmatprep.subr.mxu0 0.0
    %1368 = vmatpush1.msra.mxu0 0.0
    %1369 = vmatprep.subr.mxu0 0.0
    %1370 = vmatpush1.msra.mxu0 0.0
    %1371 = vmatprep.subr.mxu0 0.0
    %1372 = vmatpush1.msra.mxu0 0.0
    %1373 = vmatprep.subr.mxu0 0.0
    %1374 = vmatpush1.msra.mxu0 0.0
    %1375 = vmatprep.subr.mxu0 0.0
    %1376 = vmatpush1.msra.mxu0 0.0
    %1377 = vmatprep.subr.mxu0 0.0
    %1378 = vmatpush1.msra.mxu0 0.0
    %1379 = vmatprep.subr.mxu0 0.0
    %1380 = vmatpush1.msra.mxu0 0.0
    %1381 = vmatprep.subr.mxu0 0.0
    %1382 = vmatpush1.msra.mxu0 0.0
    %1383 = vmatprep.subr.mxu0 0.0
    %1384 = vmatpush1.msra.mxu0 0.0
    %1385 = vmatprep.subr.mxu0 0.0
    %1386 = vmatpush1.msra.mxu0 0.0
    %1387 = vmatprep.subr.mxu0 0.0
    %1388 = vmatpush1.msra.mxu0 0.0
    %1389 = vmatprep.subr.mxu0 0.0
    %1390 = vmatpush1.msra.mxu0 0.0
    %1391 = vmatprep.subr.mxu0 0.0
    %1392 = vmatpush1.msra.mxu0 0.0
    %1393 = vmatprep.subr.mxu0 0.0
    %1394 = vmatpush1.msra.mxu0 0.0
    %1395 = vmatprep.subr.mxu0 0.0
    %1396 = vmatpush1.msra.mxu0 0.0
    %1397 = vmatprep.subr.mxu0 0.0
    %1398 = vmatpush1.msra.mxu0 0.0
    %1399 = vmatprep.subr.mxu0 0.0
    %1400 = vmatpush1.msra.mxu0 0.0
    %1401 = vmatprep.subr.mxu0 0.0
    %1402 = vmatpush1.msra.mxu0 0.0
    %1403 = vmatprep.subr.mxu0 0.0
    %1404 = vmatpush1.msra.mxu0 0.0
    %1405 = vmatprep.mubr.f32.mxu0 0.0
    %1406 = vmatmul.mubr.f32.gmra.mrb[0].mxu0 %v1339
    %v1407 = vpop.f32.mrb[0].mxu0
    %v1408 = vadd.f32 %v585, %v1407
    %v1409 = vpop.f32.mrb[0].mxu0
    %1410 = vdwg.mxu0
    %1411 = vmatprep.subr.mxu0 0.0
    %1412 = vmatpush1.msra.mxu0 %v571
    %1413 = vmatprep.subr.mxu0 0.0
    %1414 = vmatpush1.msra.mxu0 %v572
    %1415 = vmatprep.subr.mxu0 0.0
    %1416 = vmatpush1.msra.mxu0 %v573
    %1417 = vmatprep.subr.mxu0 0.0
    %1418 = vmatpush1.msra.mxu0 %v574
    %1419 = vmatprep.subr.mxu0 0.0
    %1420 = vmatpush1.msra.mxu0 0.0
    %1421 = vmatprep.subr.mxu0 0.0
    %1422 = vmatpush1.msra.mxu0 0.0
    %1423 = vmatprep.subr.mxu0 0.0
    %1424 = vmatpush1.msra.mxu0 0.0
    %1425 = vmatprep.subr.mxu0 0.0
    %1426 = vmatpush1.msra.mxu0 0.0
    %1427 = vmatprep.subr.mxu0 0.0
    %1428 = vmatpush1.msra.mxu0 0.0
    %1429 = vmatprep.subr.mxu0 0.0
    %1430 = vmatpush1.msra.mxu0 0.0
    %1431 = vmatprep.subr.mxu0 0.0
    %1432 = vmatpush1.msra.mxu0 0.0
    %1433 = vmatprep.subr.mxu0 0.0
    %1434 = vmatpush1.msra.mxu0 0.0
    %1435 = vmatprep.subr.mxu0 0.0
    %1436 = vmatpush1.msra.mxu0 0.0
    %1437 = vmatprep.subr.mxu0 0.0
    %1438 = vmatpush1.msra.mxu0 0.0
    %1439 = vmatprep.subr.mxu0 0.0
    %1440 = vmatpush1.msra.mxu0 0.0
    %1441 = vmatprep.subr.mxu0 0.0
    %1442 = vmatpush1.msra.mxu0 0.0
    %1443 = vmatprep.subr.mxu0 0.0
    %1444 = vmatpush1.msra.mxu0 0.0
    %1445 = vmatprep.subr.mxu0 0.0
    %1446 = vmatpush1.msra.mxu0 0.0
    %1447 = vmatprep.subr.mxu0 0.0
    %1448 = vmatpush1.msra.mxu0 0.0
    %1449 = vmatprep.subr.mxu0 0.0
    %1450 = vmatpush1.msra.mxu0 0.0
    %1451 = vmatprep.subr.mxu0 0.0
    %1452 = vmatpush1.msra.mxu0 0.0
    %1453 = vmatprep.subr.mxu0 0.0
    %1454 = vmatpush1.msra.mxu0 0.0
    %1455 = vmatprep.subr.mxu0 0.0
    %1456 = vmatpush1.msra.mxu0 0.0
    %1457 = vmatprep.subr.mxu0 0.0
    %1458 = vmatpush1.msra.mxu0 0.0
    %1459 = vmatprep.subr.mxu0 0.0
    %1460 = vmatpush1.msra.mxu0 0.0
    %1461 = vmatprep.subr.mxu0 0.0
    %1462 = vmatpush1.msra.mxu0 0.0
    %1463 = vmatprep.subr.mxu0 0.0
    %1464 = vmatpush1.msra.mxu0 0.0
    %1465 = vmatprep.subr.mxu0 0.0
    %1466 = vmatpush1.msra.mxu0 0.0
    %1467 = vmatprep.subr.mxu0 0.0
    %1468 = vmatpush1.msra.mxu0 0.0
    %1469 = vmatprep.subr.mxu0 0.0
    %1470 = vmatpush1.msra.mxu0 0.0
    %1471 = vmatprep.subr.mxu0 0.0
    %1472 = vmatpush1.msra.mxu0 0.0
    %1473 = vmatprep.subr.mxu0 0.0
    %1474 = vmatpush1.msra.mxu0 0.0
    %1475 = vmatprep.mubr.f32.mxu0 0.0
    %1476 = vmatmul.mubr.f32.gmra.mrb[0].mxu0 %v1339
    %v1477 = vpop.f32.mrb[0].mxu0
    %v1478 = vadd.f32 %v593, %v1477
    %v1479 = vpop.f32.mrb[0].mxu0
    %1480 = vdwg.mxu0
    %1481 = vmatprep.subr.mxu0 0.0
    %1482 = vmatpush1.msra.mxu0 %v576
    %1483 = vmatprep.subr.mxu0 0.0
    %1484 = vmatpush1.msra.mxu0 %v577
    %1485 = vmatprep.subr.mxu0 0.0
    %1486 = vmatpush1.msra.mxu0 %v578
    %1487 = vmatprep.subr.mxu0 0.0
    %1488 = vmatpush1.msra.mxu0 %v579
    %1489 = vmatprep.subr.mxu0 0.0
    %1490 = vmatpush1.msra.mxu0 0.0
    %1491 = vmatprep.subr.mxu0 0.0
    %1492 = vmatpush1.msra.mxu0 0.0
    %1493 = vmatprep.subr.mxu0 0.0
    %1494 = vmatpush1.msra.mxu0 0.0
    %1495 = vmatprep.subr.mxu0 0.0
    %1496 = vmatpush1.msra.mxu0 0.0
    %1497 = vmatprep.subr.mxu0 0.0
    %1498 = vmatpush1.msra.mxu0 0.0
    %1499 = vmatprep.subr.mxu0 0.0
    %1500 = vmatpush1.msra.mxu0 0.0
    %1501 = vmatprep.subr.mxu0 0.0
    %1502 = vmatpush1.msra.mxu0 0.0
    %1503 = vmatprep.subr.mxu0 0.0
    %1504 = vmatpush1.msra.mxu0 0.0
    %1505 = vmatprep.subr.mxu0 0.0
    %1506 = vmatpush1.msra.mxu0 0.0
    %1507 = vmatprep.subr.mxu0 0.0
    %1508 = vmatpush1.msra.mxu0 0.0
    %1509 = vmatprep.subr.mxu0 0.0
    %1510 = vmatpush1.msra.mxu0 0.0
    %1511 = vmatprep.subr.mxu0 0.0
    %1512 = vmatpush1.msra.mxu0 0.0
    %1513 = vmatprep.subr.mxu0 0.0
    %1514 = vmatpush1.msra.mxu0 0.0
    %1515 = vmatprep.subr.mxu0 0.0
    %1516 = vmatpush1.msra.mxu0 0.0
    %1517 = vmatprep.subr.mxu0 0.0
    %1518 = vmatpush1.msra.mxu0 0.0
    %1519 = vmatprep.subr.mxu0 0.0
    %1520 = vmatpush1.msra.mxu0 0.0
    %1521 = vmatprep.subr.mxu0 0.0
    %1522 = vmatpush1.msra.mxu0 0.0
    %1523 = vmatprep.subr.mxu0 0.0
    %1524 = vmatpush1.msra.mxu0 0.0
    %1525 = vmatprep.subr.mxu0 0.0
    %1526 = vmatpush1.msra.mxu0 0.0
    %1527 = vmatprep.subr.mxu0 0.0
    %1528 = vmatpush1.msra.mxu0 0.0
    %1529 = vmatprep.subr.mxu0 0.0
    %1530 = vmatpush1.msra.mxu0 0.0
    %1531 = vmatprep.subr.mxu0 0.0
    %1532 = vmatpush1.msra.mxu0 0.0
    %1533 = vmatprep.subr.mxu0 0.0
    %1534 = vmatpush1.msra.mxu0 0.0
    %1535 = vmatprep.subr.mxu0 0.0
    %1536 = vmatpush1.msra.mxu0 0.0
    %1537 = vmatprep.subr.mxu0 0.0
    %1538 = vmatpush1.msra.mxu0 0.0
    %1539 = vmatprep.subr.mxu0 0.0
    %1540 = vmatpush1.msra.mxu0 0.0
    %1541 = vmatprep.subr.mxu0 0.0
    %1542 = vmatpush1.msra.mxu0 0.0
    %1543 = vmatprep.subr.mxu0 0.0
    %1544 = vmatpush1.msra.mxu0 0.0
    %1545 = vmatprep.mubr.f32.mxu0 0.0
    %1546 = vmatmul.mubr.f32.gmra.mrb[0].mxu0 %v1339
    %v1547 = vpop.f32.mrb[0].mxu0
    %v1548 = vadd.f32 %v601, %v1547
    %v1549 = vpop.f32.mrb[0].mxu0
    %1550 = vdwg.mxu0
    %v1552 = vrot.slane %v1408, 2
    %v1554 = vadd.f32 %v356, %v1552
    %v1555 = vxor.u32 %v1554, 2147483648
    %v1556 = vmul.f32 %v1555, 1.442695
    %v1557 = vpow.pop %v1556
    %v1558 = vadd.f32 %v1557, 1.0
    %v1559 = vrcp.pop %v1558
    %v1560 = vmul.f32 1.0, %v1559
    %v1562 = vrot.slane %v1478, 2
    %v1564 = vadd.f32 %v452, %v1562
    %v1565 = vxor.u32 %v1564, 2147483648
    %v1566 = vmul.f32 %v1565, 1.442695
    %v1567 = vpow.pop %v1566
    %v1568 = vadd.f32 %v1567, 1.0
    %v1569 = vrcp.pop %v1568
    %v1570 = vmul.f32 1.0, %v1569
    %v1572 = vrot.slane %v1548, 2
    %v1574 = vmul.f32 %v1560, %v1572
    %v1575 = vadd.f32 %v548, %v1574
    %v1576 = vtanh.pop %v1575
    %v1577 = vsub.f32 1.0, %v1570
    %v1578 = vmul.f32 %v1577, %v1576
    %v1579 = vrot.slane %v1333, 6
    %v1581 = vmul.f32 %v1570, %v1579
    %v1582 = vadd.f32 %v1578, %v1581
    %s1583 = scalar_lea.vmem [#allocation2], 6
    %vm1584 = vcmask 261126
    %1585 = vst.msk [vmem:[%s1583 - $0x6] sm:$0xc0] %vm1584, %v1582
    %v1587 = vrot.slane %v1582, 6
    %v1588 = vsel %vm603, %v1587, 0
    %1590 = vmatprep.subr.mxu0 0.0
    %1591 = vmatpush1.msra.mxu0 %v566
    %1592 = vmatprep.subr.mxu0 0.0
    %1593 = vmatpush1.msra.mxu0 %v567
    %1594 = vmatprep.subr.mxu0 0.0
    %1595 = vmatpush1.msra.mxu0 %v568
    %1596 = vmatprep.subr.mxu0 0.0
    %1597 = vmatpush1.msra.mxu0 %v569
    %1598 = vmatprep.subr.mxu0 0.0
    %1599 = vmatpush1.msra.mxu0 0.0
    %1600 = vmatprep.subr.mxu0 0.0
    %1601 = vmatpush1.msra.mxu0 0.0
    %1602 = vmatprep.subr.mxu0 0.0
    %1603 = vmatpush1.msra.mxu0 0.0
    %1604 = vmatprep.subr.mxu0 0.0
    %1605 = vmatpush1.msra.mxu0 0.0
    %1606 = vmatprep.subr.mxu0 0.0
    %1607 = vmatpush1.msra.mxu0 0.0
    %1608 = vmatprep.subr.mxu0 0.0
    %1609 = vmatpush1.msra.mxu0 0.0
    %1610 = vmatprep.subr.mxu0 0.0
    %1611 = vmatpush1.msra.mxu0 0.0
    %1612 = vmatprep.subr.mxu0 0.0
    %1613 = vmatpush1.msra.mxu0 0.0
    %1614 = vmatprep.subr.mxu0 0.0
    %1615 = vmatpush1.msra.mxu0 0.0
    %1616 = vmatprep.subr.mxu0 0.0
    %1617 = vmatpush1.msra.mxu0 0.0
    %1618 = vmatprep.subr.mxu0 0.0
    %1619 = vmatpush1.msra.mxu0 0.0
    %1620 = vmatprep.subr.mxu0 0.0
    %1621 = vmatpush1.msra.mxu0 0.0
    %1622 = vmatprep.subr.mxu0 0.0
    %1623 = vmatpush1.msra.mxu0 0.0
    %1624 = vmatprep.subr.mxu0 0.0
    %1625 = vmatpush1.msra.mxu0 0.0
    %1626 = vmatprep.subr.mxu0 0.0
    %1627 = vmatpush1.msra.mxu0 0.0
    %1628 = vmatprep.subr.mxu0 0.0
    %1629 = vmatpush1.msra.mxu0 0.0
    %1630 = vmatprep.subr.mxu0 0.0
    %1631 = vmatpush1.msra.mxu0 0.0
    %1632 = vmatprep.subr.mxu0 0.0
    %1633 = vmatpush1.msra.mxu0 0.0
    %1634 = vmatprep.subr.mxu0 0.0
    %1635 = vmatpush1.msra.mxu0 0.0
    %1636 = vmatprep.subr.mxu0 0.0
    %1637 = vmatpush1.msra.mxu0 0.0
    %1638 = vmatprep.subr.mxu0 0.0
    %1639 = vmatpush1.msra.mxu0 0.0
    %1640 = vmatprep.subr.mxu0 0.0
    %1641 = vmatpush1.msra.mxu0 0.0
    %1642 = vmatprep.subr.mxu0 0.0
    %1643 = vmatpush1.msra.mxu0 0.0
    %1644 = vmatprep.subr.mxu0 0.0
    %1645 = vmatpush1.msra.mxu0 0.0
    %1646 = vmatprep.subr.mxu0 0.0
    %1647 = vmatpush1.msra.mxu0 0.0
    %1648 = vmatprep.subr.mxu0 0.0
    %1649 = vmatpush1.msra.mxu0 0.0
    %1650 = vmatprep.subr.mxu0 0.0
    %1651 = vmatpush1.msra.mxu0 0.0
    %1652 = vmatprep.subr.mxu0 0.0
    %1653 = vmatpush1.msra.mxu0 0.0
    %1654 = vmatprep.mubr.f32.mxu0 0.0
    %1655 = vmatmul.mubr.f32.gmra.mrb[0].mxu0 %v1588
    %v1656 = vpop.f32.mrb[0].mxu0
    %v1657 = vadd.f32 %v585, %v1656
    %v1658 = vpop.f32.mrb[0].mxu0
    %1659 = vdwg.mxu0
    %1660 = vmatprep.subr.mxu0 0.0
    %1661 = vmatpush1.msra.mxu0 %v571
    %1662 = vmatprep.subr.mxu0 0.0
    %1663 = vmatpush1.msra.mxu0 %v572
    %1664 = vmatprep.subr.mxu0 0.0
    %1665 = vmatpush1.msra.mxu0 %v573
    %1666 = vmatprep.subr.mxu0 0.0
    %1667 = vmatpush1.msra.mxu0 %v574
    %1668 = vmatprep.subr.mxu0 0.0
    %1669 = vmatpush1.msra.mxu0 0.0
    %1670 = vmatprep.subr.mxu0 0.0
    %1671 = vmatpush1.msra.mxu0 0.0
    %1672 = vmatprep.subr.mxu0 0.0
    %1673 = vmatpush1.msra.mxu0 0.0
    %1674 = vmatprep.subr.mxu0 0.0
    %1675 = vmatpush1.msra.mxu0 0.0
    %1676 = vmatprep.subr.mxu0 0.0
    %1677 = vmatpush1.msra.mxu0 0.0
    %1678 = vmatprep.subr.mxu0 0.0
    %1679 = vmatpush1.msra.mxu0 0.0
    %1680 = vmatprep.subr.mxu0 0.0
    %1681 = vmatpush1.msra.mxu0 0.0
    %1682 = vmatprep.subr.mxu0 0.0
    %1683 = vmatpush1.msra.mxu0 0.0
    %1684 = vmatprep.subr.mxu0 0.0
    %1685 = vmatpush1.msra.mxu0 0.0
    %1686 = vmatprep.subr.mxu0 0.0
    %1687 = vmatpush1.msra.mxu0 0.0
    %1688 = vmatprep.subr.mxu0 0.0
    %1689 = vmatpush1.msra.mxu0 0.0
    %1690 = vmatprep.subr.mxu0 0.0
    %1691 = vmatpush1.msra.mxu0 0.0
    %1692 = vmatprep.subr.mxu0 0.0
    %1693 = vmatpush1.msra.mxu0 0.0
    %1694 = vmatprep.subr.mxu0 0.0
    %1695 = vmatpush1.msra.mxu0 0.0
    %1696 = vmatprep.subr.mxu0 0.0
    %1697 = vmatpush1.msra.mxu0 0.0
    %1698 = vmatprep.subr.mxu0 0.0
    %1699 = vmatpush1.msra.mxu0 0.0
    %1700 = vmatprep.subr.mxu0 0.0
    %1701 = vmatpush1.msra.mxu0 0.0
    %1702 = vmatprep.subr.mxu0 0.0
    %1703 = vmatpush1.msra.mxu0 0.0
    %1704 = vmatprep.subr.mxu0 0.0
    %1705 = vmatpush1.msra.mxu0 0.0
    %1706 = vmatprep.subr.mxu0 0.0
    %1707 = vmatpush1.msra.mxu0 0.0
    %1708 = vmatprep.subr.mxu0 0.0
    %1709 = vmatpush1.msra.mxu0 0.0
    %1710 = vmatprep.subr.mxu0 0.0
    %1711 = vmatpush1.msra.mxu0 0.0
    %1712 = vmatprep.subr.mxu0 0.0
    %1713 = vmatpush1.msra.mxu0 0.0
    %1714 = vmatprep.subr.mxu0 0.0
    %1715 = vmatpush1.msra.mxu0 0.0
    %1716 = vmatprep.subr.mxu0 0.0
    %1717 = vmatpush1.msra.mxu0 0.0
    %1718 = vmatprep.subr.mxu0 0.0
    %1719 = vmatpush1.msra.mxu0 0.0
    %1720 = vmatprep.subr.mxu0 0.0
    %1721 = vmatpush1.msra.mxu0 0.0
    %1722 = vmatprep.subr.mxu0 0.0
    %1723 = vmatpush1.msra.mxu0 0.0
    %1724 = vmatprep.mubr.f32.mxu0 0.0
    %1725 = vmatmul.mubr.f32.gmra.mrb[0].mxu0 %v1588
    %v1726 = vpop.f32.mrb[0].mxu0
    %v1727 = vadd.f32 %v593, %v1726
    %v1728 = vpop.f32.mrb[0].mxu0
    %1729 = vdwg.mxu0
    %1730 = vmatprep.subr.mxu0 0.0
    %1731 = vmatpush1.msra.mxu0 %v576
    %1732 = vmatprep.subr.mxu0 0.0
    %1733 = vmatpush1.msra.mxu0 %v577
    %1734 = vmatprep.subr.mxu0 0.0
    %1735 = vmatpush1.msra.mxu0 %v578
    %1736 = vmatprep.subr.mxu0 0.0
    %1737 = vmatpush1.msra.mxu0 %v579
    %1738 = vmatprep.subr.mxu0 0.0
    %1739 = vmatpush1.msra.mxu0 0.0
    %1740 = vmatprep.subr.mxu0 0.0
    %1741 = vmatpush1.msra.mxu0 0.0
    %1742 = vmatprep.subr.mxu0 0.0
    %1743 = vmatpush1.msra.mxu0 0.0
    %1744 = vmatprep.subr.mxu0 0.0
    %1745 = vmatpush1.msra.mxu0 0.0
    %1746 = vmatprep.subr.mxu0 0.0
    %1747 = vmatpush1.msra.mxu0 0.0
    %1748 = vmatprep.subr.mxu0 0.0
    %1749 = vmatpush1.msra.mxu0 0.0
    %1750 = vmatprep.subr.mxu0 0.0
    %1751 = vmatpush1.msra.mxu0 0.0
    %1752 = vmatprep.subr.mxu0 0.0
    %1753 = vmatpush1.msra.mxu0 0.0
    %1754 = vmatprep.subr.mxu0 0.0
    %1755 = vmatpush1.msra.mxu0 0.0
    %1756 = vmatprep.subr.mxu0 0.0
    %1757 = vmatpush1.msra.mxu0 0.0
    %1758 = vmatprep.subr.mxu0 0.0
    %1759 = vmatpush1.msra.mxu0 0.0
    %1760 = vmatprep.subr.mxu0 0.0
    %1761 = vmatpush1.msra.mxu0 0.0
    %1762 = vmatprep.subr.mxu0 0.0
    %1763 = vmatpush1.msra.mxu0 0.0
    %1764 = vmatprep.subr.mxu0 0.0
    %1765 = vmatpush1.msra.mxu0 0.0
    %1766 = vmatprep.subr.mxu0 0.0
    %1767 = vmatpush1.msra.mxu0 0.0
    %1768 = vmatprep.subr.mxu0 0.0
    %1769 = vmatpush1.msra.mxu0 0.0
    %1770 = vmatprep.subr.mxu0 0.0
    %1771 = vmatpush1.msra.mxu0 0.0
    %1772 = vmatprep.subr.mxu0 0.0
    %1773 = vmatpush1.msra.mxu0 0.0
    %1774 = vmatprep.subr.mxu0 0.0
    %1775 = vmatpush1.msra.mxu0 0.0
    %1776 = vmatprep.subr.mxu0 0.0
    %1777 = vmatpush1.msra.mxu0 0.0
    %1778 = vmatprep.subr.mxu0 0.0
    %1779 = vmatpush1.msra.mxu0 0.0
    %1780 = vmatprep.subr.mxu0 0.0
    %1781 = vmatpush1.msra.mxu0 0.0
    %1782 = vmatprep.subr.mxu0 0.0
    %1783 = vmatpush1.msra.mxu0 0.0
    %1784 = vmatprep.subr.mxu0 0.0
    %1785 = vmatpush1.msra.mxu0 0.0
    %1786 = vmatprep.subr.mxu0 0.0
    %1787 = vmatpush1.msra.mxu0 0.0
    %1788 = vmatprep.subr.mxu0 0.0
    %1789 = vmatpush1.msra.mxu0 0.0
    %1790 = vmatprep.subr.mxu0 0.0
    %1791 = vmatpush1.msra.mxu0 0.0
    %1792 = vmatprep.subr.mxu0 0.0
    %1793 = vmatpush1.msra.mxu0 0.0
    %1794 = vmatprep.mubr.f32.mxu0 0.0
    %1795 = vmatmul.mubr.f32.gmra.mrb[0].mxu0 %v1588
    %v1796 = vpop.f32.mrb[0].mxu0
    %v1797 = vadd.f32 %v601, %v1796
    %v1798 = vpop.f32.mrb[0].mxu0
    %1799 = vdwg.mxu0
    %v1800 = vadd.f32 %v361, %v1657
    %v1801 = vxor.u32 %v1800, 2147483648
    %v1802 = vmul.f32 %v1801, 1.442695
    %v1803 = vpow.pop %v1802
    %v1804 = vadd.f32 %v1803, 1.0
    %v1805 = vrcp.pop %v1804
    %v1806 = vmul.f32 1.0, %v1805
    %v1807 = vadd.f32 %v457, %v1727
    %v1808 = vxor.u32 %v1807, 2147483648
    %v1809 = vmul.f32 %v1808, 1.442695
    %v1810 = vpow.pop %v1809
    %v1811 = vadd.f32 %v1810, 1.0
    %v1812 = vrcp.pop %v1811
    %v1813 = vmul.f32 1.0, %v1812
    %v1814 = vmul.f32 %v1806, %v1797
    %v1815 = vadd.f32 %v553, %v1814
    %v1816 = vtanh.pop %v1815
    %v1817 = vsub.f32 1.0, %v1813
    %v1818 = vmul.f32 %v1817, %v1816
    %v1820 = vmul.f32 %v1813, %v1587
    %v1821 = vadd.f32 %v1818, %v1820
    %s1822 = scalar_lea.vmem [#allocation2], 8
    %1823 = vst.msk [vmem:[%s1822] sm:$0x3] %vm838, %v1821
    %v1825 = vsel %vm603, %v1821, 0
    %1827 = vmatprep.subr.mxu0 0.0
    %1828 = vmatpush1.msra.mxu0 %v566
    %1829 = vmatprep.subr.mxu0 0.0
    %1830 = vmatpush1.msra.mxu0 %v567
    %1831 = vmatprep.subr.mxu0 0.0
    %1832 = vmatpush1.msra.mxu0 %v568
    %1833 = vmatprep.subr.mxu0 0.0
    %1834 = vmatpush1.msra.mxu0 %v569
    %1835 = vmatprep.subr.mxu0 0.0
    %1836 = vmatpush1.msra.mxu0 0.0
    %1837 = vmatprep.subr.mxu0 0.0
    %1838 = vmatpush1.msra.mxu0 0.0
    %1839 = vmatprep.subr.mxu0 0.0
    %1840 = vmatpush1.msra.mxu0 0.0
    %1841 = vmatprep.subr.mxu0 0.0
    %1842 = vmatpush1.msra.mxu0 0.0
    %1843 = vmatprep.subr.mxu0 0.0
    %1844 = vmatpush1.msra.mxu0 0.0
    %1845 = vmatprep.subr.mxu0 0.0
    %1846 = vmatpush1.msra.mxu0 0.0
    %1847 = vmatprep.subr.mxu0 0.0
    %1848 = vmatpush1.msra.mxu0 0.0
    %1849 = vmatprep.subr.mxu0 0.0
    %1850 = vmatpush1.msra.mxu0 0.0
    %1851 = vmatprep.subr.mxu0 0.0
    %1852 = vmatpush1.msra.mxu0 0.0
    %1853 = vmatprep.subr.mxu0 0.0
    %1854 = vmatpush1.msra.mxu0 0.0
    %1855 = vmatprep.subr.mxu0 0.0
    %1856 = vmatpush1.msra.mxu0 0.0
    %1857 = vmatprep.subr.mxu0 0.0
    %1858 = vmatpush1.msra.mxu0 0.0
    %1859 = vmatprep.subr.mxu0 0.0
    %1860 = vmatpush1.msra.mxu0 0.0
    %1861 = vmatprep.subr.mxu0 0.0
    %1862 = vmatpush1.msra.mxu0 0.0
    %1863 = vmatprep.subr.mxu0 0.0
    %1864 = vmatpush1.msra.mxu0 0.0
    %1865 = vmatprep.subr.mxu0 0.0
    %1866 = vmatpush1.msra.mxu0 0.0
    %1867 = vmatprep.subr.mxu0 0.0
    %1868 = vmatpush1.msra.mxu0 0.0
    %1869 = vmatprep.subr.mxu0 0.0
    %1870 = vmatpush1.msra.mxu0 0.0
    %1871 = vmatprep.subr.mxu0 0.0
    %1872 = vmatpush1.msra.mxu0 0.0
    %1873 = vmatprep.subr.mxu0 0.0
    %1874 = vmatpush1.msra.mxu0 0.0
    %1875 = vmatprep.subr.mxu0 0.0
    %1876 = vmatpush1.msra.mxu0 0.0
    %1877 = vmatprep.subr.mxu0 0.0
    %1878 = vmatpush1.msra.mxu0 0.0
    %1879 = vmatprep.subr.mxu0 0.0
    %1880 = vmatpush1.msra.mxu0 0.0
    %1881 = vmatprep.subr.mxu0 0.0
    %1882 = vmatpush1.msra.mxu0 0.0
    %1883 = vmatprep.subr.mxu0 0.0
    %1884 = vmatpush1.msra.mxu0 0.0
    %1885 = vmatprep.subr.mxu0 0.0
    %1886 = vmatpush1.msra.mxu0 0.0
    %1887 = vmatprep.subr.mxu0 0.0
    %1888 = vmatpush1.msra.mxu0 0.0
    %1889 = vmatprep.subr.mxu0 0.0
    %1890 = vmatpush1.msra.mxu0 0.0
    %1891 = vmatprep.mubr.f32.mxu0 0.0
    %1892 = vmatmul.mubr.f32.gmra.mrb[0].mxu0 %v1825
    %v1893 = vpop.f32.mrb[0].mxu0
    %v1894 = vadd.f32 %v585, %v1893
    %v1895 = vpop.f32.mrb[0].mxu0
    %1896 = vdwg.mxu0
    %1897 = vmatprep.subr.mxu0 0.0
    %1898 = vmatpush1.msra.mxu0 %v571
    %1899 = vmatprep.subr.mxu0 0.0
    %1900 = vmatpush1.msra.mxu0 %v572
    %1901 = vmatprep.subr.mxu0 0.0
    %1902 = vmatpush1.msra.mxu0 %v573
    %1903 = vmatprep.subr.mxu0 0.0
    %1904 = vmatpush1.msra.mxu0 %v574
    %1905 = vmatprep.subr.mxu0 0.0
    %1906 = vmatpush1.msra.mxu0 0.0
    %1907 = vmatprep.subr.mxu0 0.0
    %1908 = vmatpush1.msra.mxu0 0.0
    %1909 = vmatprep.subr.mxu0 0.0
    %1910 = vmatpush1.msra.mxu0 0.0
    %1911 = vmatprep.subr.mxu0 0.0
    %1912 = vmatpush1.msra.mxu0 0.0
    %1913 = vmatprep.subr.mxu0 0.0
    %1914 = vmatpush1.msra.mxu0 0.0
    %1915 = vmatprep.subr.mxu0 0.0
    %1916 = vmatpush1.msra.mxu0 0.0
    %1917 = vmatprep.subr.mxu0 0.0
    %1918 = vmatpush1.msra.mxu0 0.0
    %1919 = vmatprep.subr.mxu0 0.0
    %1920 = vmatpush1.msra.mxu0 0.0
    %1921 = vmatprep.subr.mxu0 0.0
    %1922 = vmatpush1.msra.mxu0 0.0
    %1923 = vmatprep.subr.mxu0 0.0
    %1924 = vmatpush1.msra.mxu0 0.0
    %1925 = vmatprep.subr.mxu0 0.0
    %1926 = vmatpush1.msra.mxu0 0.0
    %1927 = vmatprep.subr.mxu0 0.0
    %1928 = vmatpush1.msra.mxu0 0.0
    %1929 = vmatprep.subr.mxu0 0.0
    %1930 = vmatpush1.msra.mxu0 0.0
    %1931 = vmatprep.subr.mxu0 0.0
    %1932 = vmatpush1.msra.mxu0 0.0
    %1933 = vmatprep.subr.mxu0 0.0
    %1934 = vmatpush1.msra.mxu0 0.0
    %1935 = vmatprep.subr.mxu0 0.0
    %1936 = vmatpush1.msra.mxu0 0.0
    %1937 = vmatprep.subr.mxu0 0.0
    %1938 = vmatpush1.msra.mxu0 0.0
    %1939 = vmatprep.subr.mxu0 0.0
    %1940 = vmatpush1.msra.mxu0 0.0
    %1941 = vmatprep.subr.mxu0 0.0
    %1942 = vmatpush1.msra.mxu0 0.0
    %1943 = vmatprep.subr.mxu0 0.0
    %1944 = vmatpush1.msra.mxu0 0.0
    %1945 = vmatprep.subr.mxu0 0.0
    %1946 = vmatpush1.msra.mxu0 0.0
    %1947 = vmatprep.subr.mxu0 0.0
    %1948 = vmatpush1.msra.mxu0 0.0
    %1949 = vmatprep.subr.mxu0 0.0
    %1950 = vmatpush1.msra.mxu0 0.0
    %1951 = vmatprep.subr.mxu0 0.0
    %1952 = vmatpush1.msra.mxu0 0.0
    %1953 = vmatprep.subr.mxu0 0.0
    %1954 = vmatpush1.msra.mxu0 0.0
    %1955 = vmatprep.subr.mxu0 0.0
    %1956 = vmatpush1.msra.mxu0 0.0
    %1957 = vmatprep.subr.mxu0 0.0
    %1958 = vmatpush1.msra.mxu0 0.0
    %1959 = vmatprep.subr.mxu0 0.0
    %1960 = vmatpush1.msra.mxu0 0.0
    %1961 = vmatprep.mubr.f32.mxu0 0.0
    %1962 = vmatmul.mubr.f32.gmra.mrb[0].mxu0 %v1825
    %v1963 = vpop.f32.mrb[0].mxu0
    %v1964 = vadd.f32 %v593, %v1963
    %v1965 = vpop.f32.mrb[0].mxu0
    %1966 = vdwg.mxu0
    %1967 = vmatprep.subr.mxu0 0.0
    %1968 = vmatpush1.msra.mxu0 %v576
    %1969 = vmatprep.subr.mxu0 0.0
    %1970 = vmatpush1.msra.mxu0 %v577
    %1971 = vmatprep.subr.mxu0 0.0
    %1972 = vmatpush1.msra.mxu0 %v578
    %1973 = vmatprep.subr.mxu0 0.0
    %1974 = vmatpush1.msra.mxu0 %v579
    %1975 = vmatprep.subr.mxu0 0.0
    %1976 = vmatpush1.msra.mxu0 0.0
    %1977 = vmatprep.subr.mxu0 0.0
    %1978 = vmatpush1.msra.mxu0 0.0
    %1979 = vmatprep.subr.mxu0 0.0
    %1980 = vmatpush1.msra.mxu0 0.0
    %1981 = vmatprep.subr.mxu0 0.0
    %1982 = vmatpush1.msra.mxu0 0.0
    %1983 = vmatprep.subr.mxu0 0.0
    %1984 = vmatpush1.msra.mxu0 0.0
    %1985 = vmatprep.subr.mxu0 0.0
    %1986 = vmatpush1.msra.mxu0 0.0
    %1987 = vmatprep.subr.mxu0 0.0
    %1988 = vmatpush1.msra.mxu0 0.0
    %1989 = vmatprep.subr.mxu0 0.0
    %1990 = vmatpush1.msra.mxu0 0.0
    %1991 = vmatprep.subr.mxu0 0.0
    %1992 = vmatpush1.msra.mxu0 0.0
    %1993 = vmatprep.subr.mxu0 0.0
    %1994 = vmatpush1.msra.mxu0 0.0
    %1995 = vmatprep.subr.mxu0 0.0
    %1996 = vmatpush1.msra.mxu0 0.0
    %1997 = vmatprep.subr.mxu0 0.0
    %1998 = vmatpush1.msra.mxu0 0.0
    %1999 = vmatprep.subr.mxu0 0.0
    %2000 = vmatpush1.msra.mxu0 0.0
    %2001 = vmatprep.subr.mxu0 0.0
    %2002 = vmatpush1.msra.mxu0 0.0
    %2003 = vmatprep.subr.mxu0 0.0
    %2004 = vmatpush1.msra.mxu0 0.0
    %2005 = vmatprep.subr.mxu0 0.0
    %2006 = vmatpush1.msra.mxu0 0.0
    %2007 = vmatprep.subr.mxu0 0.0
    %2008 = vmatpush1.msra.mxu0 0.0
    %2009 = vmatprep.subr.mxu0 0.0
    %2010 = vmatpush1.msra.mxu0 0.0
    %2011 = vmatprep.subr.mxu0 0.0
    %2012 = vmatpush1.msra.mxu0 0.0
    %2013 = vmatprep.subr.mxu0 0.0
    %2014 = vmatpush1.msra.mxu0 0.0
    %2015 = vmatprep.subr.mxu0 0.0
    %2016 = vmatpush1.msra.mxu0 0.0
    %2017 = vmatprep.subr.mxu0 0.0
    %2018 = vmatpush1.msra.mxu0 0.0
    %2019 = vmatprep.subr.mxu0 0.0
    %2020 = vmatpush1.msra.mxu0 0.0
    %2021 = vmatprep.subr.mxu0 0.0
    %2022 = vmatpush1.msra.mxu0 0.0
    %2023 = vmatprep.subr.mxu0 0.0
    %2024 = vmatpush1.msra.mxu0 0.0
    %2025 = vmatprep.subr.mxu0 0.0
    %2026 = vmatpush1.msra.mxu0 0.0
    %2027 = vmatprep.subr.mxu0 0.0
    %2028 = vmatpush1.msra.mxu0 0.0
    %2029 = vmatprep.subr.mxu0 0.0
    %2030 = vmatpush1.msra.mxu0 0.0
    %2031 = vmatprep.mubr.f32.mxu0 0.0
    %2032 = vmatmul.mubr.f32.gmra.mrb[0].mxu0 %v1825
    %v2033 = vpop.f32.mrb[0].mxu0
    %v2034 = vadd.f32 %v601, %v2033
    %v2035 = vpop.f32.mrb[0].mxu0
    %2036 = vdwg.mxu0
    %v2038 = vrot.slane %v1894, 6
    %v2040 = vadd.f32 %v361, %v2038
    %v2041 = vxor.u32 %v2040, 2147483648
    %v2042 = vmul.f32 %v2041, 1.442695
    %v2043 = vpow.pop %v2042
    %v2044 = vadd.f32 %v2043, 1.0
    %v2045 = vrcp.pop %v2044
    %v2046 = vmul.f32 1.0, %v2045
    %v2048 = vrot.slane %v1964, 6
    %v2050 = vadd.f32 %v457, %v2048
    %v2051 = vxor.u32 %v2050, 2147483648
    %v2052 = vmul.f32 %v2051, 1.442695
    %v2053 = vpow.pop %v2052
    %v2054 = vadd.f32 %v2053, 1.0
    %v2055 = vrcp.pop %v2054
    %v2056 = vmul.f32 1.0, %v2055
    %v2058 = vrot.slane %v2034, 6
    %v2060 = vmul.f32 %v2046, %v2058
    %v2061 = vadd.f32 %v553, %v2060
    %v2062 = vtanh.pop %v2061
    %v2063 = vsub.f32 1.0, %v2056
    %v2064 = vmul.f32 %v2063, %v2062
    %v2065 = vrot.slane %v1821, 6
    %v2067 = vmul.f32 %v2056, %v2065
    %v2068 = vadd.f32 %v2064, %v2067
    %s2069 = scalar_lea.vmem [#allocation2], 10
    %2070 = vst.msk [vmem:[%s2069 - $0x2] sm:$0xc] %vm1086, %v2068
    %v2072 = vrot.slane %v2068, 2
    %v2073 = vsel %vm603, %v2072, 0
    %2075 = vmatprep.subr.mxu0 0.0
    %2076 = vmatpush1.msra.mxu0 %v566
    %2077 = vmatprep.subr.mxu0 0.0
    %2078 = vmatpush1.msra.mxu0 %v567
    %2079 = vmatprep.subr.mxu0 0.0
    %2080 = vmatpush1.msra.mxu0 %v568
    %2081 = vmatprep.subr.mxu0 0.0
    %2082 = vmatpush1.msra.mxu0 %v569
    %2083 = vmatprep.subr.mxu0 0.0
    %2084 = vmatpush1.msra.mxu0 0.0
    %2085 = vmatprep.subr.mxu0 0.0
    %2086 = vmatpush1.msra.mxu0 0.0
    %2087 = vmatprep.subr.mxu0 0.0
    %2088 = vmatpush1.msra.mxu0 0.0
    %2089 = vmatprep.subr.mxu0 0.0
    %2090 = vmatpush1.msra.mxu0 0.0
    %2091 = vmatprep.subr.mxu0 0.0
    %2092 = vmatpush1.msra.mxu0 0.0
    %2093 = vmatprep.subr.mxu0 0.0
    %2094 = vmatpush1.msra.mxu0 0.0
    %2095 = vmatprep.subr.mxu0 0.0
    %2096 = vmatpush1.msra.mxu0 0.0
    %2097 = vmatprep.subr.mxu0 0.0
    %2098 = vmatpush1.msra.mxu0 0.0
    %2099 = vmatprep.subr.mxu0 0.0
    %2100 = vmatpush1.msra.mxu0 0.0
    %2101 = vmatprep.subr.mxu0 0.0
    %2102 = vmatpush1.msra.mxu0 0.0
    %2103 = vmatprep.subr.mxu0 0.0
    %2104 = vmatpush1.msra.mxu0 0.0
    %2105 = vmatprep.subr.mxu0 0.0
    %2106 = vmatpush1.msra.mxu0 0.0
    %2107 = vmatprep.subr.mxu0 0.0
    %2108 = vmatpush1.msra.mxu0 0.0
    %2109 = vmatprep.subr.mxu0 0.0
    %2110 = vmatpush1.msra.mxu0 0.0
    %2111 = vmatprep.subr.mxu0 0.0
    %2112 = vmatpush1.msra.mxu0 0.0
    %2113 = vmatprep.subr.mxu0 0.0
    %2114 = vmatpush1.msra.mxu0 0.0
    %2115 = vmatprep.subr.mxu0 0.0
    %2116 = vmatpush1.msra.mxu0 0.0
    %2117 = vmatprep.subr.mxu0 0.0
    %2118 = vmatpush1.msra.mxu0 0.0
    %2119 = vmatprep.subr.mxu0 0.0
    %2120 = vmatpush1.msra.mxu0 0.0
    %2121 = vmatprep.subr.mxu0 0.0
    %2122 = vmatpush1.msra.mxu0 0.0
    %2123 = vmatprep.subr.mxu0 0.0
    %2124 = vmatpush1.msra.mxu0 0.0
    %2125 = vmatprep.subr.mxu0 0.0
    %2126 = vmatpush1.msra.mxu0 0.0
    %2127 = vmatprep.subr.mxu0 0.0
    %2128 = vmatpush1.msra.mxu0 0.0
    %2129 = vmatprep.subr.mxu0 0.0
    %2130 = vmatpush1.msra.mxu0 0.0
    %2131 = vmatprep.subr.mxu0 0.0
    %2132 = vmatpush1.msra.mxu0 0.0
    %2133 = vmatprep.subr.mxu0 0.0
    %2134 = vmatpush1.msra.mxu0 0.0
    %2135 = vmatprep.subr.mxu0 0.0
    %2136 = vmatpush1.msra.mxu0 0.0
    %2137 = vmatprep.subr.mxu0 0.0
    %2138 = vmatpush1.msra.mxu0 0.0
    %2139 = vmatprep.mubr.f32.mxu0 0.0
    %2140 = vmatmul.mubr.f32.gmra.mrb[0].mxu0 %v2073
    %v2141 = vpop.f32.mrb[0].mxu0
    %v2142 = vadd.f32 %v585, %v2141
    %v2143 = vpop.f32.mrb[0].mxu0
    %2144 = vdwg.mxu0
    %2145 = vmatprep.subr.mxu0 0.0
    %2146 = vmatpush1.msra.mxu0 %v571
    %2147 = vmatprep.subr.mxu0 0.0
    %2148 = vmatpush1.msra.mxu0 %v572
    %2149 = vmatprep.subr.mxu0 0.0
    %2150 = vmatpush1.msra.mxu0 %v573
    %2151 = vmatprep.subr.mxu0 0.0
    %2152 = vmatpush1.msra.mxu0 %v574
    %2153 = vmatprep.subr.mxu0 0.0
    %2154 = vmatpush1.msra.mxu0 0.0
    %2155 = vmatprep.subr.mxu0 0.0
    %2156 = vmatpush1.msra.mxu0 0.0
    %2157 = vmatprep.subr.mxu0 0.0
    %2158 = vmatpush1.msra.mxu0 0.0
    %2159 = vmatprep.subr.mxu0 0.0
    %2160 = vmatpush1.msra.mxu0 0.0
    %2161 = vmatprep.subr.mxu0 0.0
    %2162 = vmatpush1.msra.mxu0 0.0
    %2163 = vmatprep.subr.mxu0 0.0
    %2164 = vmatpush1.msra.mxu0 0.0
    %2165 = vmatprep.subr.mxu0 0.0
    %2166 = vmatpush1.msra.mxu0 0.0
    %2167 = vmatprep.subr.mxu0 0.0
    %2168 = vmatpush1.msra.mxu0 0.0
    %2169 = vmatprep.subr.mxu0 0.0
    %2170 = vmatpush1.msra.mxu0 0.0
    %2171 = vmatprep.subr.mxu0 0.0
    %2172 = vmatpush1.msra.mxu0 0.0
    %2173 = vmatprep.subr.mxu0 0.0
    %2174 = vmatpush1.msra.mxu0 0.0
    %2175 = vmatprep.subr.mxu0 0.0
    %2176 = vmatpush1.msra.mxu0 0.0
    %2177 = vmatprep.subr.mxu0 0.0
    %2178 = vmatpush1.msra.mxu0 0.0
    %2179 = vmatprep.subr.mxu0 0.0
    %2180 = vmatpush1.msra.mxu0 0.0
    %2181 = vmatprep.subr.mxu0 0.0
    %2182 = vmatpush1.msra.mxu0 0.0
    %2183 = vmatprep.subr.mxu0 0.0
    %2184 = vmatpush1.msra.mxu0 0.0
    %2185 = vmatprep.subr.mxu0 0.0
    %2186 = vmatpush1.msra.mxu0 0.0
    %2187 = vmatprep.subr.mxu0 0.0
    %2188 = vmatpush1.msra.mxu0 0.0
    %2189 = vmatprep.subr.mxu0 0.0
    %2190 = vmatpush1.msra.mxu0 0.0
    %2191 = vmatprep.subr.mxu0 0.0
    %2192 = vmatpush1.msra.mxu0 0.0
    %2193 = vmatprep.subr.mxu0 0.0
    %2194 = vmatpush1.msra.mxu0 0.0
    %2195 = vmatprep.subr.mxu0 0.0
    %2196 = vmatpush1.msra.mxu0 0.0
    %2197 = vmatprep.subr.mxu0 0.0
    %2198 = vmatpush1.msra.mxu0 0.0
    %2199 = vmatprep.subr.mxu0 0.0
    %2200 = vmatpush1.msra.mxu0 0.0
    %2201 = vmatprep.subr.mxu0 0.0
    %2202 = vmatpush1.msra.mxu0 0.0
    %2203 = vmatprep.subr.mxu0 0.0
    %2204 = vmatpush1.msra.mxu0 0.0
    %2205 = vmatprep.subr.mxu0 0.0
    %2206 = vmatpush1.msra.mxu0 0.0
    %2207 = vmatprep.subr.mxu0 0.0
    %2208 = vmatpush1.msra.mxu0 0.0
    %2209 = vmatprep.mubr.f32.mxu0 0.0
    %2210 = vmatmul.mubr.f32.gmra.mrb[0].mxu0 %v2073
    %v2211 = vpop.f32.mrb[0].mxu0
    %v2212 = vadd.f32 %v593, %v2211
    %v2213 = vpop.f32.mrb[0].mxu0
    %2214 = vdwg.mxu0
    %2215 = vmatprep.subr.mxu0 0.0
    %2216 = vmatpush1.msra.mxu0 %v576
    %2217 = vmatprep.subr.mxu0 0.0
    %2218 = vmatpush1.msra.mxu0 %v577
    %2219 = vmatprep.subr.mxu0 0.0
    %2220 = vmatpush1.msra.mxu0 %v578
    %2221 = vmatprep.subr.mxu0 0.0
    %2222 = vmatpush1.msra.mxu0 %v579
    %2223 = vmatprep.subr.mxu0 0.0
    %2224 = vmatpush1.msra.mxu0 0.0
    %2225 = vmatprep.subr.mxu0 0.0
    %2226 = vmatpush1.msra.mxu0 0.0
    %2227 = vmatprep.subr.mxu0 0.0
    %2228 = vmatpush1.msra.mxu0 0.0
    %2229 = vmatprep.subr.mxu0 0.0
    %2230 = vmatpush1.msra.mxu0 0.0
    %2231 = vmatprep.subr.mxu0 0.0
    %2232 = vmatpush1.msra.mxu0 0.0
    %2233 = vmatprep.subr.mxu0 0.0
    %2234 = vmatpush1.msra.mxu0 0.0
    %2235 = vmatprep.subr.mxu0 0.0
    %2236 = vmatpush1.msra.mxu0 0.0
    %2237 = vmatprep.subr.mxu0 0.0
    %2238 = vmatpush1.msra.mxu0 0.0
    %2239 = vmatprep.subr.mxu0 0.0
    %2240 = vmatpush1.msra.mxu0 0.0
    %2241 = vmatprep.subr.mxu0 0.0
    %2242 = vmatpush1.msra.mxu0 0.0
    %2243 = vmatprep.subr.mxu0 0.0
    %2244 = vmatpush1.msra.mxu0 0.0
    %2245 = vmatprep.subr.mxu0 0.0
    %2246 = vmatpush1.msra.mxu0 0.0
    %2247 = vmatprep.subr.mxu0 0.0
    %2248 = vmatpush1.msra.mxu0 0.0
    %2249 = vmatprep.subr.mxu0 0.0
    %2250 = vmatpush1.msra.mxu0 0.0
    %2251 = vmatprep.subr.mxu0 0.0
    %2252 = vmatpush1.msra.mxu0 0.0
    %2253 = vmatprep.subr.mxu0 0.0
    %2254 = vmatpush1.msra.mxu0 0.0
    %2255 = vmatprep.subr.mxu0 0.0
    %2256 = vmatpush1.msra.mxu0 0.0
    %2257 = vmatprep.subr.mxu0 0.0
    %2258 = vmatpush1.msra.mxu0 0.0
    %2259 = vmatprep.subr.mxu0 0.0
    %2260 = vmatpush1.msra.mxu0 0.0
    %2261 = vmatprep.subr.mxu0 0.0
    %2262 = vmatpush1.msra.mxu0 0.0
    %2263 = vmatprep.subr.mxu0 0.0
    %2264 = vmatpush1.msra.mxu0 0.0
    %2265 = vmatprep.subr.mxu0 0.0
    %2266 = vmatpush1.msra.mxu0 0.0
    %2267 = vmatprep.subr.mxu0 0.0
    %2268 = vmatpush1.msra.mxu0 0.0
    %2269 = vmatprep.subr.mxu0 0.0
    %2270 = vmatpush1.msra.mxu0 0.0
    %2271 = vmatprep.subr.mxu0 0.0
    %2272 = vmatpush1.msra.mxu0 0.0
    %2273 = vmatprep.subr.mxu0 0.0
    %2274 = vmatpush1.msra.mxu0 0.0
    %2275 = vmatprep.subr.mxu0 0.0
    %2276 = vmatpush1.msra.mxu0 0.0
    %2277 = vmatprep.subr.mxu0 0.0
    %2278 = vmatpush1.msra.mxu0 0.0
    %2279 = vmatprep.mubr.f32.mxu0 0.0
    %2280 = vmatmul.mubr.f32.gmra.mrb[0].mxu0 %v2073
    %v2281 = vpop.f32.mrb[0].mxu0
    %v2282 = vadd.f32 %v601, %v2281
    %v2283 = vpop.f32.mrb[0].mxu0
    %2284 = vdwg.mxu0
    %v2286 = vrot.slane %v2142, 4
    %v2288 = vadd.f32 %v361, %v2286
    %v2289 = vxor.u32 %v2288, 2147483648
    %v2290 = vmul.f32 %v2289, 1.442695
    %v2291 = vpow.pop %v2290
    %v2292 = vadd.f32 %v2291, 1.0
    %v2293 = vrcp.pop %v2292
    %v2294 = vmul.f32 1.0, %v2293
    %v2296 = vrot.slane %v2212, 4
    %v2298 = vadd.f32 %v457, %v2296
    %v2299 = vxor.u32 %v2298, 2147483648
    %v2300 = vmul.f32 %v2299, 1.442695
    %v2301 = vpow.pop %v2300
    %v2302 = vadd.f32 %v2301, 1.0
    %v2303 = vrcp.pop %v2302
    %v2304 = vmul.f32 1.0, %v2303
    %v2306 = vrot.slane %v2282, 4
    %v2308 = vmul.f32 %v2294, %v2306
    %v2309 = vadd.f32 %v553, %v2308
    %v2310 = vtanh.pop %v2309
    %v2311 = vsub.f32 1.0, %v2304
    %v2312 = vmul.f32 %v2311, %v2310
    %v2313 = vrot.slane %v2068, 6
    %v2315 = vmul.f32 %v2304, %v2313
    %v2316 = vadd.f32 %v2312, %v2315
    %s2317 = scalar_lea.vmem [#allocation2], 12
    %2318 = vst.msk [vmem:[%s2317 - $0x4] sm:$0x30] %vm1335, %v2316
    %v2320 = vrot.slane %v2316, 4
    %v2321 = vsel %vm603, %v2320, 0
    %2323 = vmatprep.subr.mxu0 0.0
    %2324 = vmatpush1.msra.mxu0 %v566
    %2325 = vmatprep.subr.mxu0 0.0
    %2326 = vmatpush1.msra.mxu0 %v567
    %2327 = vmatprep.subr.mxu0 0.0
    %2328 = vmatpush1.msra.mxu0 %v568
    %2329 = vmatprep.subr.mxu0 0.0
    %2330 = vmatpush1.msra.mxu0 %v569
    %2331 = vmatprep.subr.mxu0 0.0
    %2332 = vmatpush1.msra.mxu0 0.0
    %2333 = vmatprep.subr.mxu0 0.0
    %2334 = vmatpush1.msra.mxu0 0.0
    %2335 = vmatprep.subr.mxu0 0.0
    %2336 = vmatpush1.msra.mxu0 0.0
    %2337 = vmatprep.subr.mxu0 0.0
    %2338 = vmatpush1.msra.mxu0 0.0
    %2339 = vmatprep.subr.mxu0 0.0
    %2340 = vmatpush1.msra.mxu0 0.0
    %2341 = vmatprep.subr.mxu0 0.0
    %2342 = vmatpush1.msra.mxu0 0.0
    %2343 = vmatprep.subr.mxu0 0.0
    %2344 = vmatpush1.msra.mxu0 0.0
    %2345 = vmatprep.subr.mxu0 0.0
    %2346 = vmatpush1.msra.mxu0 0.0
    %2347 = vmatprep.subr.mxu0 0.0
    %2348 = vmatpush1.msra.mxu0 0.0
    %2349 = vmatprep.subr.mxu0 0.0
    %2350 = vmatpush1.msra.mxu0 0.0
    %2351 = vmatprep.subr.mxu0 0.0
    %2352 = vmatpush1.msra.mxu0 0.0
    %2353 = vmatprep.subr.mxu0 0.0
    %2354 = vmatpush1.msra.mxu0 0.0
    %2355 = vmatprep.subr.mxu0 0.0
    %2356 = vmatpush1.msra.mxu0 0.0
    %2357 = vmatprep.subr.mxu0 0.0
    %2358 = vmatpush1.msra.mxu0 0.0
    %2359 = vmatprep.subr.mxu0 0.0
    %2360 = vmatpush1.msra.mxu0 0.0
    %2361 = vmatprep.subr.mxu0 0.0
    %2362 = vmatpush1.msra.mxu0 0.0
    %2363 = vmatprep.subr.mxu0 0.0
    %2364 = vmatpush1.msra.mxu0 0.0
    %2365 = vmatprep.subr.mxu0 0.0
    %2366 = vmatpush1.msra.mxu0 0.0
    %2367 = vmatprep.subr.mxu0 0.0
    %2368 = vmatpush1.msra.mxu0 0.0
    %2369 = vmatprep.subr.mxu0 0.0
    %2370 = vmatpush1.msra.mxu0 0.0
    %2371 = vmatprep.subr.mxu0 0.0
    %2372 = vmatpush1.msra.mxu0 0.0
    %2373 = vmatprep.subr.mxu0 0.0
    %2374 = vmatpush1.msra.mxu0 0.0
    %2375 = vmatprep.subr.mxu0 0.0
    %2376 = vmatpush1.msra.mxu0 0.0
    %2377 = vmatprep.subr.mxu0 0.0
    %2378 = vmatpush1.msra.mxu0 0.0
    %2379 = vmatprep.subr.mxu0 0.0
    %2380 = vmatpush1.msra.mxu0 0.0
    %2381 = vmatprep.subr.mxu0 0.0
    %2382 = vmatpush1.msra.mxu0 0.0
    %2383 = vmatprep.subr.mxu0 0.0
    %2384 = vmatpush1.msra.mxu0 0.0
    %2385 = vmatprep.subr.mxu0 0.0
    %2386 = vmatpush1.msra.mxu0 0.0
    %2387 = vmatprep.mubr.f32.mxu0 0.0
    %2388 = vmatmul.mubr.f32.gmra.mrb[0].mxu0 %v2321
    %v2389 = vpop.f32.mrb[0].mxu0
    %v2390 = vadd.f32 %v585, %v2389
    %v2391 = vpop.f32.mrb[0].mxu0
    %2392 = vdwg.mxu0
    %2393 = vmatprep.subr.mxu0 0.0
    %2394 = vmatpush1.msra.mxu0 %v571
    %2395 = vmatprep.subr.mxu0 0.0
    %2396 = vmatpush1.msra.mxu0 %v572
    %2397 = vmatprep.subr.mxu0 0.0
    %2398 = vmatpush1.msra.mxu0 %v573
    %2399 = vmatprep.subr.mxu0 0.0
    %2400 = vmatpush1.msra.mxu0 %v574
    %2401 = vmatprep.subr.mxu0 0.0
    %2402 = vmatpush1.msra.mxu0 0.0
    %2403 = vmatprep.subr.mxu0 0.0
    %2404 = vmatpush1.msra.mxu0 0.0
    %2405 = vmatprep.subr.mxu0 0.0
    %2406 = vmatpush1.msra.mxu0 0.0
    %2407 = vmatprep.subr.mxu0 0.0
    %2408 = vmatpush1.msra.mxu0 0.0
    %2409 = vmatprep.subr.mxu0 0.0
    %2410 = vmatpush1.msra.mxu0 0.0
    %2411 = vmatprep.subr.mxu0 0.0
    %2412 = vmatpush1.msra.mxu0 0.0
    %2413 = vmatprep.subr.mxu0 0.0
    %2414 = vmatpush1.msra.mxu0 0.0
    %2415 = vmatprep.subr.mxu0 0.0
    %2416 = vmatpush1.msra.mxu0 0.0
    %2417 = vmatprep.subr.mxu0 0.0
    %2418 = vmatpush1.msra.mxu0 0.0
    %2419 = vmatprep.subr.mxu0 0.0
    %2420 = vmatpush1.msra.mxu0 0.0
    %2421 = vmatprep.subr.mxu0 0.0
    %2422 = vmatpush1.msra.mxu0 0.0
    %2423 = vmatprep.subr.mxu0 0.0
    %2424 = vmatpush1.msra.mxu0 0.0
    %2425 = vmatprep.subr.mxu0 0.0
    %2426 = vmatpush1.msra.mxu0 0.0
    %2427 = vmatprep.subr.mxu0 0.0
    %2428 = vmatpush1.msra.mxu0 0.0
    %2429 = vmatprep.subr.mxu0 0.0
    %2430 = vmatpush1.msra.mxu0 0.0
    %2431 = vmatprep.subr.mxu0 0.0
    %2432 = vmatpush1.msra.mxu0 0.0
    %2433 = vmatprep.subr.mxu0 0.0
    %2434 = vmatpush1.msra.mxu0 0.0
    %2435 = vmatprep.subr.mxu0 0.0
    %2436 = vmatpush1.msra.mxu0 0.0
    %2437 = vmatprep.subr.mxu0 0.0
    %2438 = vmatpush1.msra.mxu0 0.0
    %2439 = vmatprep.subr.mxu0 0.0
    %2440 = vmatpush1.msra.mxu0 0.0
    %2441 = vmatprep.subr.mxu0 0.0
    %2442 = vmatpush1.msra.mxu0 0.0
    %2443 = vmatprep.subr.mxu0 0.0
    %2444 = vmatpush1.msra.mxu0 0.0
    %2445 = vmatprep.subr.mxu0 0.0
    %2446 = vmatpush1.msra.mxu0 0.0
    %2447 = vmatprep.subr.mxu0 0.0
    %2448 = vmatpush1.msra.mxu0 0.0
    %2449 = vmatprep.subr.mxu0 0.0
    %2450 = vmatpush1.msra.mxu0 0.0
    %2451 = vmatprep.subr.mxu0 0.0
    %2452 = vmatpush1.msra.mxu0 0.0
    %2453 = vmatprep.subr.mxu0 0.0
    %2454 = vmatpush1.msra.mxu0 0.0
    %2455 = vmatprep.subr.mxu0 0.0
    %2456 = vmatpush1.msra.mxu0 0.0
    %2457 = vmatprep.mubr.f32.mxu0 0.0
    %2458 = vmatmul.mubr.f32.gmra.mrb[0].mxu0 %v2321
    %v2459 = vpop.f32.mrb[0].mxu0
    %v2460 = vadd.f32 %v593, %v2459
    %v2461 = vpop.f32.mrb[0].mxu0
    %2462 = vdwg.mxu0
    %2463 = vmatprep.subr.mxu0 0.0
    %2464 = vmatpush1.msra.mxu0 %v576
    %2465 = vmatprep.subr.mxu0 0.0
    %2466 = vmatpush1.msra.mxu0 %v577
    %2467 = vmatprep.subr.mxu0 0.0
    %2468 = vmatpush1.msra.mxu0 %v578
    %2469 = vmatprep.subr.mxu0 0.0
    %2470 = vmatpush1.msra.mxu0 %v579
    %2471 = vmatprep.subr.mxu0 0.0
    %2472 = vmatpush1.msra.mxu0 0.0
    %2473 = vmatprep.subr.mxu0 0.0
    %2474 = vmatpush1.msra.mxu0 0.0
    %2475 = vmatprep.subr.mxu0 0.0
    %2476 = vmatpush1.msra.mxu0 0.0
    %2477 = vmatprep.subr.mxu0 0.0
    %2478 = vmatpush1.msra.mxu0 0.0
    %2479 = vmatprep.subr.mxu0 0.0
    %2480 = vmatpush1.msra.mxu0 0.0
    %2481 = vmatprep.subr.mxu0 0.0
    %2482 = vmatpush1.msra.mxu0 0.0
    %2483 = vmatprep.subr.mxu0 0.0
    %2484 = vmatpush1.msra.mxu0 0.0
    %2485 = vmatprep.subr.mxu0 0.0
    %2486 = vmatpush1.msra.mxu0 0.0
    %2487 = vmatprep.subr.mxu0 0.0
    %2488 = vmatpush1.msra.mxu0 0.0
    %2489 = vmatprep.subr.mxu0 0.0
    %2490 = vmatpush1.msra.mxu0 0.0
    %2491 = vmatprep.subr.mxu0 0.0
    %2492 = vmatpush1.msra.mxu0 0.0
    %2493 = vmatprep.subr.mxu0 0.0
    %2494 = vmatpush1.msra.mxu0 0.0
    %2495 = vmatprep.subr.mxu0 0.0
    %2496 = vmatpush1.msra.mxu0 0.0
    %2497 = vmatprep.subr.mxu0 0.0
    %2498 = vmatpush1.msra.mxu0 0.0
    %2499 = vmatprep.subr.mxu0 0.0
    %2500 = vmatpush1.msra.mxu0 0.0
    %2501 = vmatprep.subr.mxu0 0.0
    %2502 = vmatpush1.msra.mxu0 0.0
    %2503 = vmatprep.subr.mxu0 0.0
    %2504 = vmatpush1.msra.mxu0 0.0
    %2505 = vmatprep.subr.mxu0 0.0
    %2506 = vmatpush1.msra.mxu0 0.0
    %2507 = vmatprep.subr.mxu0 0.0
    %2508 = vmatpush1.msra.mxu0 0.0
    %2509 = vmatprep.subr.mxu0 0.0
    %2510 = vmatpush1.msra.mxu0 0.0
    %2511 = vmatprep.subr.mxu0 0.0
    %2512 = vmatpush1.msra.mxu0 0.0
    %2513 = vmatprep.subr.mxu0 0.0
    %2514 = vmatpush1.msra.mxu0 0.0
    %2515 = vmatprep.subr.mxu0 0.0
    %2516 = vmatpush1.msra.mxu0 0.0
    %2517 = vmatprep.subr.mxu0 0.0
    %2518 = vmatpush1.msra.mxu0 0.0
    %2519 = vmatprep.subr.mxu0 0.0
    %2520 = vmatpush1.msra.mxu0 0.0
    %2521 = vmatprep.subr.mxu0 0.0
    %2522 = vmatpush1.msra.mxu0 0.0
    %2523 = vmatprep.subr.mxu0 0.0
    %2524 = vmatpush1.msra.mxu0 0.0
    %2525 = vmatprep.subr.mxu0 0.0
    %2526 = vmatpush1.msra.mxu0 0.0
    %2527 = vmatprep.mubr.f32.mxu0 0.0
    %2528 = vmatmul.mubr.f32.gmra.mrb[0].mxu0 %v2321
    %v2529 = vpop.f32.mrb[0].mxu0
    %v2530 = vadd.f32 %v601, %v2529
    %v2531 = vpop.f32.mrb[0].mxu0
    %2532 = vdwg.mxu0
    %v2534 = vrot.slane %v2390, 2
    %v2536 = vadd.f32 %v361, %v2534
    %v2537 = vxor.u32 %v2536, 2147483648
    %v2538 = vmul.f32 %v2537, 1.442695
    %v2539 = vpow.pop %v2538
    %v2540 = vadd.f32 %v2539, 1.0
    %v2541 = vrcp.pop %v2540
    %v2542 = vmul.f32 1.0, %v2541
    %v2544 = vrot.slane %v2460, 2
    %v2546 = vadd.f32 %v457, %v2544
    %v2547 = vxor.u32 %v2546, 2147483648
    %v2548 = vmul.f32 %v2547, 1.442695
    %v2549 = vpow.pop %v2548
    %v2550 = vadd.f32 %v2549, 1.0
    %v2551 = vrcp.pop %v2550
    %v2552 = vmul.f32 1.0, %v2551
    %v2554 = vrot.slane %v2530, 2
    %v2556 = vmul.f32 %v2542, %v2554
    %v2557 = vadd.f32 %v553, %v2556
    %v2558 = vtanh.pop %v2557
    %v2559 = vsub.f32 1.0, %v2552
    %v2560 = vmul.f32 %v2559, %v2558
    %v2561 = vrot.slane %v2316, 6
    %v2563 = vmul.f32 %v2552, %v2561
    %v2564 = vadd.f32 %v2560, %v2563
    %s2565 = scalar_lea.vmem [#allocation2], 14
    %2566 = vst.msk [vmem:[%s2565 - $0x6] sm:$0xc0] %vm1584, %v2564
    %v2568 = vrot.slane %v2564, 6
    %v2569 = vsel %vm603, %v2568, 0
    %2571 = vmatprep.subr.mxu0 0.0
    %2572 = vmatpush1.msra.mxu0 %v566
    %2573 = vmatprep.subr.mxu0 0.0
    %2574 = vmatpush1.msra.mxu0 %v567
    %2575 = vmatprep.subr.mxu0 0.0
    %2576 = vmatpush1.msra.mxu0 %v568
    %2577 = vmatprep.subr.mxu0 0.0
    %2578 = vmatpush1.msra.mxu0 %v569
    %2579 = vmatprep.subr.mxu0 0.0
    %2580 = vmatpush1.msra.mxu0 0.0
    %2581 = vmatprep.subr.mxu0 0.0
    %2582 = vmatpush1.msra.mxu0 0.0
    %2583 = vmatprep.subr.mxu0 0.0
    %2584 = vmatpush1.msra.mxu0 0.0
    %2585 = vmatprep.subr.mxu0 0.0
    %2586 = vmatpush1.msra.mxu0 0.0
    %2587 = vmatprep.subr.mxu0 0.0
    %2588 = vmatpush1.msra.mxu0 0.0
    %2589 = vmatprep.subr.mxu0 0.0
    %2590 = vmatpush1.msra.mxu0 0.0
    %2591 = vmatprep.subr.mxu0 0.0
    %2592 = vmatpush1.msra.mxu0 0.0
    %2593 = vmatprep.subr.mxu0 0.0
    %2594 = vmatpush1.msra.mxu0 0.0
    %2595 = vmatprep.subr.mxu0 0.0
    %2596 = vmatpush1.msra.mxu0 0.0
    %2597 = vmatprep.subr.mxu0 0.0
    %2598 = vmatpush1.msra.mxu0 0.0
    %2599 = vmatprep.subr.mxu0 0.0
    %2600 = vmatpush1.msra.mxu0 0.0
    %2601 = vmatprep.subr.mxu0 0.0
    %2602 = vmatpush1.msra.mxu0 0.0
    %2603 = vmatprep.subr.mxu0 0.0
    %2604 = vmatpush1.msra.mxu0 0.0
    %2605 = vmatprep.subr.mxu0 0.0
    %2606 = vmatpush1.msra.mxu0 0.0
    %2607 = vmatprep.subr.mxu0 0.0
    %2608 = vmatpush1.msra.mxu0 0.0
    %2609 = vmatprep.subr.mxu0 0.0
    %2610 = vmatpush1.msra.mxu0 0.0
    %2611 = vmatprep.subr.mxu0 0.0
    %2612 = vmatpush1.msra.mxu0 0.0
    %2613 = vmatprep.subr.mxu0 0.0
    %2614 = vmatpush1.msra.mxu0 0.0
    %2615 = vmatprep.subr.mxu0 0.0
    %2616 = vmatpush1.msra.mxu0 0.0
    %2617 = vmatprep.subr.mxu0 0.0
    %2618 = vmatpush1.msra.mxu0 0.0
    %2619 = vmatprep.subr.mxu0 0.0
    %2620 = vmatpush1.msra.mxu0 0.0
    %2621 = vmatprep.subr.mxu0 0.0
    %2622 = vmatpush1.msra.mxu0 0.0
    %2623 = vmatprep.subr.mxu0 0.0
    %2624 = vmatpush1.msra.mxu0 0.0
    %2625 = vmatprep.subr.mxu0 0.0
    %2626 = vmatpush1.msra.mxu0 0.0
    %2627 = vmatprep.subr.mxu0 0.0
    %2628 = vmatpush1.msra.mxu0 0.0
    %2629 = vmatprep.subr.mxu0 0.0
    %2630 = vmatpush1.msra.mxu0 0.0
    %2631 = vmatprep.subr.mxu0 0.0
    %2632 = vmatpush1.msra.mxu0 0.0
    %2633 = vmatprep.subr.mxu0 0.0
    %2634 = vmatpush1.msra.mxu0 0.0
    %2635 = vmatprep.mubr.f32.mxu0 0.0
    %2636 = vmatmul.mubr.f32.gmra.mrb[0].mxu0 %v2569
    %v2637 = vpop.f32.mrb[0].mxu0
    %v2638 = vadd.f32 %v585, %v2637
    %v2639 = vpop.f32.mrb[0].mxu0
    %2640 = vdwg.mxu0
    %2641 = vmatprep.subr.mxu0 0.0
    %2642 = vmatpush1.msra.mxu0 %v571
    %2643 = vmatprep.subr.mxu0 0.0
    %2644 = vmatpush1.msra.mxu0 %v572
    %2645 = vmatprep.subr.mxu0 0.0
    %2646 = vmatpush1.msra.mxu0 %v573
    %2647 = vmatprep.subr.mxu0 0.0
    %2648 = vmatpush1.msra.mxu0 %v574
    %2649 = vmatprep.subr.mxu0 0.0
    %2650 = vmatpush1.msra.mxu0 0.0
    %2651 = vmatprep.subr.mxu0 0.0
    %2652 = vmatpush1.msra.mxu0 0.0
    %2653 = vmatprep.subr.mxu0 0.0
    %2654 = vmatpush1.msra.mxu0 0.0
    %2655 = vmatprep.subr.mxu0 0.0
    %2656 = vmatpush1.msra.mxu0 0.0
    %2657 = vmatprep.subr.mxu0 0.0
    %2658 = vmatpush1.msra.mxu0 0.0
    %2659 = vmatprep.subr.mxu0 0.0
    %2660 = vmatpush1.msra.mxu0 0.0
    %2661 = vmatprep.subr.mxu0 0.0
    %2662 = vmatpush1.msra.mxu0 0.0
    %2663 = vmatprep.subr.mxu0 0.0
    %2664 = vmatpush1.msra.mxu0 0.0
    %2665 = vmatprep.subr.mxu0 0.0
    %2666 = vmatpush1.msra.mxu0 0.0
    %2667 = vmatprep.subr.mxu0 0.0
    %2668 = vmatpush1.msra.mxu0 0.0
    %2669 = vmatprep.subr.mxu0 0.0
    %2670 = vmatpush1.msra.mxu0 0.0
    %2671 = vmatprep.subr.mxu0 0.0
    %2672 = vmatpush1.msra.mxu0 0.0
    %2673 = vmatprep.subr.mxu0 0.0
    %2674 = vmatpush1.msra.mxu0 0.0
    %2675 = vmatprep.subr.mxu0 0.0
    %2676 = vmatpush1.msra.mxu0 0.0
    %2677 = vmatprep.subr.mxu0 0.0
    %2678 = vmatpush1.msra.mxu0 0.0
    %2679 = vmatprep.subr.mxu0 0.0
    %2680 = vmatpush1.msra.mxu0 0.0
    %2681 = vmatprep.subr.mxu0 0.0
    %2682 = vmatpush1.msra.mxu0 0.0
    %2683 = vmatprep.subr.mxu0 0.0
    %2684 = vmatpush1.msra.mxu0 0.0
    %2685 = vmatprep.subr.mxu0 0.0
    %2686 = vmatpush1.msra.mxu0 0.0
    %2687 = vmatprep.subr.mxu0 0.0
    %2688 = vmatpush1.msra.mxu0 0.0
    %2689 = vmatprep.subr.mxu0 0.0
    %2690 = vmatpush1.msra.mxu0 0.0
    %2691 = vmatprep.subr.mxu0 0.0
    %2692 = vmatpush1.msra.mxu0 0.0
    %2693 = vmatprep.subr.mxu0 0.0
    %2694 = vmatpush1.msra.mxu0 0.0
    %2695 = vmatprep.subr.mxu0 0.0
    %2696 = vmatpush1.msra.mxu0 0.0
    %2697 = vmatprep.subr.mxu0 0.0
    %2698 = vmatpush1.msra.mxu0 0.0
    %2699 = vmatprep.subr.mxu0 0.0
    %2700 = vmatpush1.msra.mxu0 0.0
    %2701 = vmatprep.subr.mxu0 0.0
    %2702 = vmatpush1.msra.mxu0 0.0
    %2703 = vmatprep.subr.mxu0 0.0
    %2704 = vmatpush1.msra.mxu0 0.0
    %2705 = vmatprep.mubr.f32.mxu0 0.0
    %2706 = vmatmul.mubr.f32.gmra.mrb[0].mxu0 %v2569
    %v2707 = vpop.f32.mrb[0].mxu0
    %v2708 = vadd.f32 %v593, %v2707
    %v2709 = vpop.f32.mrb[0].mxu0
    %2710 = vdwg.mxu0
    %2711 = vmatprep.subr.mxu0 0.0
    %2712 = vmatpush1.msra.mxu0 %v576
    %2713 = vmatprep.subr.mxu0 0.0
    %2714 = vmatpush1.msra.mxu0 %v577
    %2715 = vmatprep.subr.mxu0 0.0
    %2716 = vmatpush1.msra.mxu0 %v578
    %2717 = vmatprep.subr.mxu0 0.0
    %2718 = vmatpush1.msra.mxu0 %v579
    %2719 = vmatprep.subr.mxu0 0.0
    %2720 = vmatpush1.msra.mxu0 0.0
    %2721 = vmatprep.subr.mxu0 0.0
    %2722 = vmatpush1.msra.mxu0 0.0
    %2723 = vmatprep.subr.mxu0 0.0
    %2724 = vmatpush1.msra.mxu0 0.0
    %2725 = vmatprep.subr.mxu0 0.0
    %2726 = vmatpush1.msra.mxu0 0.0
    %2727 = vmatprep.subr.mxu0 0.0
    %2728 = vmatpush1.msra.mxu0 0.0
    %2729 = vmatprep.subr.mxu0 0.0
    %2730 = vmatpush1.msra.mxu0 0.0
    %2731 = vmatprep.subr.mxu0 0.0
    %2732 = vmatpush1.msra.mxu0 0.0
    %2733 = vmatprep.subr.mxu0 0.0
    %2734 = vmatpush1.msra.mxu0 0.0
    %2735 = vmatprep.subr.mxu0 0.0
    %2736 = vmatpush1.msra.mxu0 0.0
    %2737 = vmatprep.subr.mxu0 0.0
    %2738 = vmatpush1.msra.mxu0 0.0
    %2739 = vmatprep.subr.mxu0 0.0
    %2740 = vmatpush1.msra.mxu0 0.0
    %2741 = vmatprep.subr.mxu0 0.0
    %2742 = vmatpush1.msra.mxu0 0.0
    %2743 = vmatprep.subr.mxu0 0.0
    %2744 = vmatpush1.msra.mxu0 0.0
    %2745 = vmatprep.subr.mxu0 0.0
    %2746 = vmatpush1.msra.mxu0 0.0
    %2747 = vmatprep.subr.mxu0 0.0
    %2748 = vmatpush1.msra.mxu0 0.0
    %2749 = vmatprep.subr.mxu0 0.0
    %2750 = vmatpush1.msra.mxu0 0.0
    %2751 = vmatprep.subr.mxu0 0.0
    %2752 = vmatpush1.msra.mxu0 0.0
    %2753 = vmatprep.subr.mxu0 0.0
    %2754 = vmatpush1.msra.mxu0 0.0
    %2755 = vmatprep.subr.mxu0 0.0
    %2756 = vmatpush1.msra.mxu0 0.0
    %2757 = vmatprep.subr.mxu0 0.0
    %2758 = vmatpush1.msra.mxu0 0.0
    %2759 = vmatprep.subr.mxu0 0.0
    %2760 = vmatpush1.msra.mxu0 0.0
    %2761 = vmatprep.subr.mxu0 0.0
    %2762 = vmatpush1.msra.mxu0 0.0
    %2763 = vmatprep.subr.mxu0 0.0
    %2764 = vmatpush1.msra.mxu0 0.0
    %2765 = vmatprep.subr.mxu0 0.0
    %2766 = vmatpush1.msra.mxu0 0.0
    %2767 = vmatprep.subr.mxu0 0.0
    %2768 = vmatpush1.msra.mxu0 0.0
    %2769 = vmatprep.subr.mxu0 0.0
    %2770 = vmatpush1.msra.mxu0 0.0
    %2771 = vmatprep.subr.mxu0 0.0
    %2772 = vmatpush1.msra.mxu0 0.0
    %2773 = vmatprep.subr.mxu0 0.0
    %2774 = vmatpush1.msra.mxu0 0.0
    %2775 = vmatprep.mubr.f32.mxu0 0.0
    %2776 = vmatmul.mubr.f32.gmra.mrb[0].mxu0 %v2569
    %v2777 = vpop.f32.mrb[0].mxu0
    %v2778 = vadd.f32 %v601, %v2777
    %v2779 = vpop.f32.mrb[0].mxu0
    %2780 = vdwg.mxu0
    %v2781 = vadd.f32 %v366, %v2638
    %v2782 = vxor.u32 %v2781, 2147483648
    %v2783 = vmul.f32 %v2782, 1.442695
    %v2784 = vpow.pop %v2783
    %v2785 = vadd.f32 %v2784, 1.0
    %v2786 = vrcp.pop %v2785
    %v2787 = vmul.f32 1.0, %v2786
    %v2788 = vadd.f32 %v462, %v2708
    %v2789 = vxor.u32 %v2788, 2147483648
    %v2790 = vmul.f32 %v2789, 1.442695
    %v2791 = vpow.pop %v2790
    %v2792 = vadd.f32 %v2791, 1.0
    %v2793 = vrcp.pop %v2792
    %v2794 = vmul.f32 1.0, %v2793
    %v2795 = vmul.f32 %v2787, %v2778
    %v2796 = vadd.f32 %v558, %v2795
    %v2797 = vtanh.pop %v2796
    %v2798 = vsub.f32 1.0, %v2794
    %v2799 = vmul.f32 %v2798, %v2797
    %v2801 = vmul.f32 %v2794, %v2568
    %v2802 = vadd.f32 %v2799, %v2801
    %s2803 = scalar_lea.vmem [#allocation2], 16
    %2804 = vst.msk [vmem:[%s2803] sm:$0x3] %vm838, %v2802
    %v2806 = vsel %vm603, %v2802, 0
    %2808 = vmatprep.subr.mxu0 0.0
    %2809 = vmatpush1.msra.mxu0 %v566
    %2810 = vmatprep.subr.mxu0 0.0
    %2811 = vmatpush1.msra.mxu0 %v567
    %2812 = vmatprep.subr.mxu0 0.0
    %2813 = vmatpush1.msra.mxu0 %v568
    %2814 = vmatprep.subr.mxu0 0.0
    %2815 = vmatpush1.msra.mxu0 %v569
    %2816 = vmatprep.subr.mxu0 0.0
    %2817 = vmatpush1.msra.mxu0 0.0
    %2818 = vmatprep.subr.mxu0 0.0
    %2819 = vmatpush1.msra.mxu0 0.0
    %2820 = vmatprep.subr.mxu0 0.0
    %2821 = vmatpush1.msra.mxu0 0.0
    %2822 = vmatprep.subr.mxu0 0.0
    %2823 = vmatpush1.msra.mxu0 0.0
    %2824 = vmatprep.subr.mxu0 0.0
    %2825 = vmatpush1.msra.mxu0 0.0
    %2826 = vmatprep.subr.mxu0 0.0
    %2827 = vmatpush1.msra.mxu0 0.0
    %2828 = vmatprep.subr.mxu0 0.0
    %2829 = vmatpush1.msra.mxu0 0.0
    %2830 = vmatprep.subr.mxu0 0.0
    %2831 = vmatpush1.msra.mxu0 0.0
    %2832 = vmatprep.subr.mxu0 0.0
    %2833 = vmatpush1.msra.mxu0 0.0
    %2834 = vmatprep.subr.mxu0 0.0
    %2835 = vmatpush1.msra.mxu0 0.0
    %2836 = vmatprep.subr.mxu0 0.0
    %2837 = vmatpush1.msra.mxu0 0.0
    %2838 = vmatprep.subr.mxu0 0.0
    %2839 = vmatpush1.msra.mxu0 0.0
    %2840 = vmatprep.subr.mxu0 0.0
    %2841 = vmatpush1.msra.mxu0 0.0
    %2842 = vmatprep.subr.mxu0 0.0
    %2843 = vmatpush1.msra.mxu0 0.0
    %2844 = vmatprep.subr.mxu0 0.0
    %2845 = vmatpush1.msra.mxu0 0.0
    %2846 = vmatprep.subr.mxu0 0.0
    %2847 = vmatpush1.msra.mxu0 0.0
    %2848 = vmatprep.subr.mxu0 0.0
    %2849 = vmatpush1.msra.mxu0 0.0
    %2850 = vmatprep.subr.mxu0 0.0
    %2851 = vmatpush1.msra.mxu0 0.0
    %2852 = vmatprep.subr.mxu0 0.0
    %2853 = vmatpush1.msra.mxu0 0.0
    %2854 = vmatprep.subr.mxu0 0.0
    %2855 = vmatpush1.msra.mxu0 0.0
    %2856 = vmatprep.subr.mxu0 0.0
    %2857 = vmatpush1.msra.mxu0 0.0
    %2858 = vmatprep.subr.mxu0 0.0
    %2859 = vmatpush1.msra.mxu0 0.0
    %2860 = vmatprep.subr.mxu0 0.0
    %2861 = vmatpush1.msra.mxu0 0.0
    %2862 = vmatprep.subr.mxu0 0.0
    %2863 = vmatpush1.msra.mxu0 0.0
    %2864 = vmatprep.subr.mxu0 0.0
    %2865 = vmatpush1.msra.mxu0 0.0
    %2866 = vmatprep.subr.mxu0 0.0
    %2867 = vmatpush1.msra.mxu0 0.0
    %2868 = vmatprep.subr.mxu0 0.0
    %2869 = vmatpush1.msra.mxu0 0.0
    %2870 = vmatprep.subr.mxu0 0.0
    %2871 = vmatpush1.msra.mxu0 0.0
    %2872 = vmatprep.mubr.f32.mxu0 0.0
    %2873 = vmatmul.mubr.f32.gmra.mrb[0].mxu0 %v2806
    %v2874 = vpop.f32.mrb[0].mxu0
    %v2875 = vadd.f32 %v585, %v2874
    %v2876 = vpop.f32.mrb[0].mxu0
    %2877 = vdwg.mxu0
    %2878 = vmatprep.subr.mxu0 0.0
    %2879 = vmatpush1.msra.mxu0 %v571
    %2880 = vmatprep.subr.mxu0 0.0
    %2881 = vmatpush1.msra.mxu0 %v572
    %2882 = vmatprep.subr.mxu0 0.0
    %2883 = vmatpush1.msra.mxu0 %v573
    %2884 = vmatprep.subr.mxu0 0.0
    %2885 = vmatpush1.msra.mxu0 %v574
    %2886 = vmatprep.subr.mxu0 0.0
    %2887 = vmatpush1.msra.mxu0 0.0
    %2888 = vmatprep.subr.mxu0 0.0
    %2889 = vmatpush1.msra.mxu0 0.0
    %2890 = vmatprep.subr.mxu0 0.0
    %2891 = vmatpush1.msra.mxu0 0.0
    %2892 = vmatprep.subr.mxu0 0.0
    %2893 = vmatpush1.msra.mxu0 0.0
    %2894 = vmatprep.subr.mxu0 0.0
    %2895 = vmatpush1.msra.mxu0 0.0
    %2896 = vmatprep.subr.mxu0 0.0
    %2897 = vmatpush1.msra.mxu0 0.0
    %2898 = vmatprep.subr.mxu0 0.0
    %2899 = vmatpush1.msra.mxu0 0.0
    %2900 = vmatprep.subr.mxu0 0.0
    %2901 = vmatpush1.msra.mxu0 0.0
    %2902 = vmatprep.subr.mxu0 0.0
    %2903 = vmatpush1.msra.mxu0 0.0
    %2904 = vmatprep.subr.mxu0 0.0
    %2905 = vmatpush1.msra.mxu0 0.0
    %2906 = vmatprep.subr.mxu0 0.0
    %2907 = vmatpush1.msra.mxu0 0.0
    %2908 = vmatprep.subr.mxu0 0.0
    %2909 = vmatpush1.msra.mxu0 0.0
    %2910 = vmatprep.subr.mxu0 0.0
    %2911 = vmatpush1.msra.mxu0 0.0
    %2912 = vmatprep.subr.mxu0 0.0
    %2913 = vmatpush1.msra.mxu0 0.0
    %2914 = vmatprep.subr.mxu0 0.0
    %2915 = vmatpush1.msra.mxu0 0.0
    %2916 = vmatprep.subr.mxu0 0.0
    %2917 = vmatpush1.msra.mxu0 0.0
    %2918 = vmatprep.subr.mxu0 0.0
    %2919 = vmatpush1.msra.mxu0 0.0
    %2920 = vmatprep.subr.mxu0 0.0
    %2921 = vmatpush1.msra.mxu0 0.0
    %2922 = vmatprep.subr.mxu0 0.0
    %2923 = vmatpush1.msra.mxu0 0.0
    %2924 = vmatprep.subr.mxu0 0.0
    %2925 = vmatpush1.msra.mxu0 0.0
    %2926 = vmatprep.subr.mxu0 0.0
    %2927 = vmatpush1.msra.mxu0 0.0
    %2928 = vmatprep.subr.mxu0 0.0
    %2929 = vmatpush1.msra.mxu0 0.0
    %2930 = vmatprep.subr.mxu0 0.0
    %2931 = vmatpush1.msra.mxu0 0.0
    %2932 = vmatprep.subr.mxu0 0.0
    %2933 = vmatpush1.msra.mxu0 0.0
    %2934 = vmatprep.subr.mxu0 0.0
    %2935 = vmatpush1.msra.mxu0 0.0
    %2936 = vmatprep.subr.mxu0 0.0
    %2937 = vmatpush1.msra.mxu0 0.0
    %2938 = vmatprep.subr.mxu0 0.0
    %2939 = vmatpush1.msra.mxu0 0.0
    %2940 = vmatprep.subr.mxu0 0.0
    %2941 = vmatpush1.msra.mxu0 0.0
    %2942 = vmatprep.mubr.f32.mxu0 0.0
    %2943 = vmatmul.mubr.f32.gmra.mrb[0].mxu0 %v2806
    %v2944 = vpop.f32.mrb[0].mxu0
    %v2945 = vadd.f32 %v593, %v2944
    %v2946 = vpop.f32.mrb[0].mxu0
    %2947 = vdwg.mxu0
    %2948 = vmatprep.subr.mxu0 0.0
    %2949 = vmatpush1.msra.mxu0 %v576
    %2950 = vmatprep.subr.mxu0 0.0
    %2951 = vmatpush1.msra.mxu0 %v577
    %2952 = vmatprep.subr.mxu0 0.0
    %2953 = vmatpush1.msra.mxu0 %v578
    %2954 = vmatprep.subr.mxu0 0.0
    %2955 = vmatpush1.msra.mxu0 %v579
    %2956 = vmatprep.subr.mxu0 0.0
    %2957 = vmatpush1.msra.mxu0 0.0
    %2958 = vmatprep.subr.mxu0 0.0
    %2959 = vmatpush1.msra.mxu0 0.0
    %2960 = vmatprep.subr.mxu0 0.0
    %2961 = vmatpush1.msra.mxu0 0.0
    %2962 = vmatprep.subr.mxu0 0.0
    %2963 = vmatpush1.msra.mxu0 0.0
    %2964 = vmatprep.subr.mxu0 0.0
    %2965 = vmatpush1.msra.mxu0 0.0
    %2966 = vmatprep.subr.mxu0 0.0
    %2967 = vmatpush1.msra.mxu0 0.0
    %2968 = vmatprep.subr.mxu0 0.0
    %2969 = vmatpush1.msra.mxu0 0.0
    %2970 = vmatprep.subr.mxu0 0.0
    %2971 = vmatpush1.msra.mxu0 0.0
    %2972 = vmatprep.subr.mxu0 0.0
    %2973 = vmatpush1.msra.mxu0 0.0
    %2974 = vmatprep.subr.mxu0 0.0
    %2975 = vmatpush1.msra.mxu0 0.0
    %2976 = vmatprep.subr.mxu0 0.0
    %2977 = vmatpush1.msra.mxu0 0.0
    %2978 = vmatprep.subr.mxu0 0.0
    %2979 = vmatpush1.msra.mxu0 0.0
    %2980 = vmatprep.subr.mxu0 0.0
    %2981 = vmatpush1.msra.mxu0 0.0
    %2982 = vmatprep.subr.mxu0 0.0
    %2983 = vmatpush1.msra.mxu0 0.0
    %2984 = vmatprep.subr.mxu0 0.0
    %2985 = vmatpush1.msra.mxu0 0.0
    %2986 = vmatprep.subr.mxu0 0.0
    %2987 = vmatpush1.msra.mxu0 0.0
    %2988 = vmatprep.subr.mxu0 0.0
    %2989 = vmatpush1.msra.mxu0 0.0
    %2990 = vmatprep.subr.mxu0 0.0
    %2991 = vmatpush1.msra.mxu0 0.0
    %2992 = vmatprep.subr.mxu0 0.0
    %2993 = vmatpush1.msra.mxu0 0.0
    %2994 = vmatprep.subr.mxu0 0.0
    %2995 = vmatpush1.msra.mxu0 0.0
    %2996 = vmatprep.subr.mxu0 0.0
    %2997 = vmatpush1.msra.mxu0 0.0
    %2998 = vmatprep.subr.mxu0 0.0
    %2999 = vmatpush1.msra.mxu0 0.0
    %3000 = vmatprep.subr.mxu0 0.0
    %3001 = vmatpush1.msra.mxu0 0.0
    %3002 = vmatprep.subr.mxu0 0.0
    %3003 = vmatpush1.msra.mxu0 0.0
    %3004 = vmatprep.subr.mxu0 0.0
    %3005 = vmatpush1.msra.mxu0 0.0
    %3006 = vmatprep.subr.mxu0 0.0
    %3007 = vmatpush1.msra.mxu0 0.0
    %3008 = vmatprep.subr.mxu0 0.0
    %3009 = vmatpush1.msra.mxu0 0.0
    %3010 = vmatprep.subr.mxu0 0.0
    %3011 = vmatpush1.msra.mxu0 0.0
    %3012 = vmatprep.mubr.f32.mxu0 0.0
    %3013 = vmatmul.mubr.f32.gmra.mrb[0].mxu0 %v2806
    %v3014 = vpop.f32.mrb[0].mxu0
    %v3015 = vadd.f32 %v601, %v3014
    %v3016 = vpop.f32.mrb[0].mxu0
    %3017 = vdwg.mxu0
    %v3019 = vrot.slane %v2875, 6
    %v3021 = vadd.f32 %v366, %v3019
    %v3022 = vxor.u32 %v3021, 2147483648
    %v3023 = vmul.f32 %v3022, 1.442695
    %v3024 = vpow.pop %v3023
    %v3025 = vadd.f32 %v3024, 1.0
    %v3026 = vrcp.pop %v3025
    %v3027 = vmul.f32 1.0, %v3026
    %v3029 = vrot.slane %v2945, 6
    %v3031 = vadd.f32 %v462, %v3029
    %v3032 = vxor.u32 %v3031, 2147483648
    %v3033 = vmul.f32 %v3032, 1.442695
    %v3034 = vpow.pop %v3033
    %v3035 = vadd.f32 %v3034, 1.0
    %v3036 = vrcp.pop %v3035
    %v3037 = vmul.f32 1.0, %v3036
    %v3039 = vrot.slane %v3015, 6
    %v3041 = vmul.f32 %v3027, %v3039
    %v3042 = vadd.f32 %v558, %v3041
    %v3043 = vtanh.pop %v3042
    %v3044 = vsub.f32 1.0, %v3037
    %v3045 = vmul.f32 %v3044, %v3043
    %v3046 = vrot.slane %v2802, 6
    %v3048 = vmul.f32 %v3037, %v3046
    %v3049 = vadd.f32 %v3045, %v3048
    %s3050 = scalar_lea.vmem [#allocation2], 18
    %3051 = vst.msk [vmem:[%s3050 - $0x2] sm:$0xc] %vm1086, %v3049
    %v3053 = vrot.slane %v3049, 2
    %v3054 = vsel %vm603, %v3053, 0
    %3056 = vmatprep.subr.mxu0 0.0
    %3057 = vmatpush1.msra.mxu0 %v566
    %3058 = vmatprep.subr.mxu0 0.0
    %3059 = vmatpush1.msra.mxu0 %v567
    %3060 = vmatprep.subr.mxu0 0.0
    %3061 = vmatpush1.msra.mxu0 %v568
    %3062 = vmatprep.subr.mxu0 0.0
    %3063 = vmatpush1.msra.mxu0 %v569
    %3064 = vmatprep.subr.mxu0 0.0
    %3065 = vmatpush1.msra.mxu0 0.0
    %3066 = vmatprep.subr.mxu0 0.0
    %3067 = vmatpush1.msra.mxu0 0.0
    %3068 = vmatprep.subr.mxu0 0.0
    %3069 = vmatpush1.msra.mxu0 0.0
    %3070 = vmatprep.subr.mxu0 0.0
    %3071 = vmatpush1.msra.mxu0 0.0
    %3072 = vmatprep.subr.mxu0 0.0
    %3073 = vmatpush1.msra.mxu0 0.0
    %3074 = vmatprep.subr.mxu0 0.0
    %3075 = vmatpush1.msra.mxu0 0.0
    %3076 = vmatprep.subr.mxu0 0.0
    %3077 = vmatpush1.msra.mxu0 0.0
    %3078 = vmatprep.subr.mxu0 0.0
    %3079 = vmatpush1.msra.mxu0 0.0
    %3080 = vmatprep.subr.mxu0 0.0
    %3081 = vmatpush1.msra.mxu0 0.0
    %3082 = vmatprep.subr.mxu0 0.0
    %3083 = vmatpush1.msra.mxu0 0.0
    %3084 = vmatprep.subr.mxu0 0.0
    %3085 = vmatpush1.msra.mxu0 0.0
    %3086 = vmatprep.subr.mxu0 0.0
    %3087 = vmatpush1.msra.mxu0 0.0
    %3088 = vmatprep.subr.mxu0 0.0
    %3089 = vmatpush1.msra.mxu0 0.0
    %3090 = vmatprep.subr.mxu0 0.0
    %3091 = vmatpush1.msra.mxu0 0.0
    %3092 = vmatprep.subr.mxu0 0.0
    %3093 = vmatpush1.msra.mxu0 0.0
    %3094 = vmatprep.subr.mxu0 0.0
    %3095 = vmatpush1.msra.mxu0 0.0
    %3096 = vmatprep.subr.mxu0 0.0
    %3097 = vmatpush1.msra.mxu0 0.0
    %3098 = vmatprep.subr.mxu0 0.0
    %3099 = vmatpush1.msra.mxu0 0.0
    %3100 = vmatprep.subr.mxu0 0.0
    %3101 = vmatpush1.msra.mxu0 0.0
    %3102 = vmatprep.subr.mxu0 0.0
    %3103 = vmatpush1.msra.mxu0 0.0
    %3104 = vmatprep.subr.mxu0 0.0
    %3105 = vmatpush1.msra.mxu0 0.0
    %3106 = vmatprep.subr.mxu0 0.0
    %3107 = vmatpush1.msra.mxu0 0.0
    %3108 = vmatprep.subr.mxu0 0.0
    %3109 = vmatpush1.msra.mxu0 0.0
    %3110 = vmatprep.subr.mxu0 0.0
    %3111 = vmatpush1.msra.mxu0 0.0
    %3112 = vmatprep.subr.mxu0 0.0
    %3113 = vmatpush1.msra.mxu0 0.0
    %3114 = vmatprep.subr.mxu0 0.0
    %3115 = vmatpush1.msra.mxu0 0.0
    %3116 = vmatprep.subr.mxu0 0.0
    %3117 = vmatpush1.msra.mxu0 0.0
    %3118 = vmatprep.subr.mxu0 0.0
    %3119 = vmatpush1.msra.mxu0 0.0
    %3120 = vmatprep.mubr.f32.mxu0 0.0
    %3121 = vmatmul.mubr.f32.gmra.mrb[0].mxu0 %v3054
    %v3122 = vpop.f32.mrb[0].mxu0
    %v3123 = vadd.f32 %v585, %v3122
    %v3124 = vpop.f32.mrb[0].mxu0
    %3125 = vdwg.mxu0
    %3126 = vmatprep.subr.mxu0 0.0
    %3127 = vmatpush1.msra.mxu0 %v571
    %3128 = vmatprep.subr.mxu0 0.0
    %3129 = vmatpush1.msra.mxu0 %v572
    %3130 = vmatprep.subr.mxu0 0.0
    %3131 = vmatpush1.msra.mxu0 %v573
    %3132 = vmatprep.subr.mxu0 0.0
    %3133 = vmatpush1.msra.mxu0 %v574
    %3134 = vmatprep.subr.mxu0 0.0
    %3135 = vmatpush1.msra.mxu0 0.0
    %3136 = vmatprep.subr.mxu0 0.0
    %3137 = vmatpush1.msra.mxu0 0.0
    %3138 = vmatprep.subr.mxu0 0.0
    %3139 = vmatpush1.msra.mxu0 0.0
    %3140 = vmatprep.subr.mxu0 0.0
    %3141 = vmatpush1.msra.mxu0 0.0
    %3142 = vmatprep.subr.mxu0 0.0
    %3143 = vmatpush1.msra.mxu0 0.0
    %3144 = vmatprep.subr.mxu0 0.0
    %3145 = vmatpush1.msra.mxu0 0.0
    %3146 = vmatprep.subr.mxu0 0.0
    %3147 = vmatpush1.msra.mxu0 0.0
    %3148 = vmatprep.subr.mxu0 0.0
    %3149 = vmatpush1.msra.mxu0 0.0
    %3150 = vmatprep.subr.mxu0 0.0
    %3151 = vmatpush1.msra.mxu0 0.0
    %3152 = vmatprep.subr.mxu0 0.0
    %3153 = vmatpush1.msra.mxu0 0.0
    %3154 = vmatprep.subr.mxu0 0.0
    %3155 = vmatpush1.msra.mxu0 0.0
    %3156 = vmatprep.subr.mxu0 0.0
    %3157 = vmatpush1.msra.mxu0 0.0
    %3158 = vmatprep.subr.mxu0 0.0
    %3159 = vmatpush1.msra.mxu0 0.0
    %3160 = vmatprep.subr.mxu0 0.0
    %3161 = vmatpush1.msra.mxu0 0.0
    %3162 = vmatprep.subr.mxu0 0.0
    %3163 = vmatpush1.msra.mxu0 0.0
    %3164 = vmatprep.subr.mxu0 0.0
    %3165 = vmatpush1.msra.mxu0 0.0
    %3166 = vmatprep.subr.mxu0 0.0
    %3167 = vmatpush1.msra.mxu0 0.0
    %3168 = vmatprep.subr.mxu0 0.0
    %3169 = vmatpush1.msra.mxu0 0.0
    %3170 = vmatprep.subr.mxu0 0.0
    %3171 = vmatpush1.msra.mxu0 0.0
    %3172 = vmatprep.subr.mxu0 0.0
    %3173 = vmatpush1.msra.mxu0 0.0
    %3174 = vmatprep.subr.mxu0 0.0
    %3175 = vmatpush1.msra.mxu0 0.0
    %3176 = vmatprep.subr.mxu0 0.0
    %3177 = vmatpush1.msra.mxu0 0.0
    %3178 = vmatprep.subr.mxu0 0.0
    %3179 = vmatpush1.msra.mxu0 0.0
    %3180 = vmatprep.subr.mxu0 0.0
    %3181 = vmatpush1.msra.mxu0 0.0
    %3182 = vmatprep.subr.mxu0 0.0
    %3183 = vmatpush1.msra.mxu0 0.0
    %3184 = vmatprep.subr.mxu0 0.0
    %3185 = vmatpush1.msra.mxu0 0.0
    %3186 = vmatprep.subr.mxu0 0.0
    %3187 = vmatpush1.msra.mxu0 0.0
    %3188 = vmatprep.subr.mxu0 0.0
    %3189 = vmatpush1.msra.mxu0 0.0
    %3190 = vmatprep.mubr.f32.mxu0 0.0
    %3191 = vmatmul.mubr.f32.gmra.mrb[0].mxu0 %v3054
    %v3192 = vpop.f32.mrb[0].mxu0
    %v3193 = vadd.f32 %v593, %v3192
    %v3194 = vpop.f32.mrb[0].mxu0
    %3195 = vdwg.mxu0
    %3196 = vmatprep.subr.mxu0 0.0
    %3197 = vmatpush1.msra.mxu0 %v576
    %3198 = vmatprep.subr.mxu0 0.0
    %3199 = vmatpush1.msra.mxu0 %v577
    %3200 = vmatprep.subr.mxu0 0.0
    %3201 = vmatpush1.msra.mxu0 %v578
    %3202 = vmatprep.subr.mxu0 0.0
    %3203 = vmatpush1.msra.mxu0 %v579
    %3204 = vmatprep.subr.mxu0 0.0
    %3205 = vmatpush1.msra.mxu0 0.0
    %3206 = vmatprep.subr.mxu0 0.0
    %3207 = vmatpush1.msra.mxu0 0.0
    %3208 = vmatprep.subr.mxu0 0.0
    %3209 = vmatpush1.msra.mxu0 0.0
    %3210 = vmatprep.subr.mxu0 0.0
    %3211 = vmatpush1.msra.mxu0 0.0
    %3212 = vmatprep.subr.mxu0 0.0
    %3213 = vmatpush1.msra.mxu0 0.0
    %3214 = vmatprep.subr.mxu0 0.0
    %3215 = vmatpush1.msra.mxu0 0.0
    %3216 = vmatprep.subr.mxu0 0.0
    %3217 = vmatpush1.msra.mxu0 0.0
    %3218 = vmatprep.subr.mxu0 0.0
    %3219 = vmatpush1.msra.mxu0 0.0
    %3220 = vmatprep.subr.mxu0 0.0
    %3221 = vmatpush1.msra.mxu0 0.0
    %3222 = vmatprep.subr.mxu0 0.0
    %3223 = vmatpush1.msra.mxu0 0.0
    %3224 = vmatprep.subr.mxu0 0.0
    %3225 = vmatpush1.msra.mxu0 0.0
    %3226 = vmatprep.subr.mxu0 0.0
    %3227 = vmatpush1.msra.mxu0 0.0
    %3228 = vmatprep.subr.mxu0 0.0
    %3229 = vmatpush1.msra.mxu0 0.0
    %3230 = vmatprep.subr.mxu0 0.0
    %3231 = vmatpush1.msra.mxu0 0.0
    %3232 = vmatprep.subr.mxu0 0.0
    %3233 = vmatpush1.msra.mxu0 0.0
    %3234 = vmatprep.subr.mxu0 0.0
    %3235 = vmatpush1.msra.mxu0 0.0
    %3236 = vmatprep.subr.mxu0 0.0
    %3237 = vmatpush1.msra.mxu0 0.0
    %3238 = vmatprep.subr.mxu0 0.0
    %3239 = vmatpush1.msra.mxu0 0.0
    %3240 = vmatprep.subr.mxu0 0.0
    %3241 = vmatpush1.msra.mxu0 0.0
    %3242 = vmatprep.subr.mxu0 0.0
    %3243 = vmatpush1.msra.mxu0 0.0
    %3244 = vmatprep.subr.mxu0 0.0
    %3245 = vmatpush1.msra.mxu0 0.0
    %3246 = vmatprep.subr.mxu0 0.0
    %3247 = vmatpush1.msra.mxu0 0.0
    %3248 = vmatprep.subr.mxu0 0.0
    %3249 = vmatpush1.msra.mxu0 0.0
    %3250 = vmatprep.subr.mxu0 0.0
    %3251 = vmatpush1.msra.mxu0 0.0
    %3252 = vmatprep.subr.mxu0 0.0
    %3253 = vmatpush1.msra.mxu0 0.0
    %3254 = vmatprep.subr.mxu0 0.0
    %3255 = vmatpush1.msra.mxu0 0.0
    %3256 = vmatprep.subr.mxu0 0.0
    %3257 = vmatpush1.msra.mxu0 0.0
    %3258 = vmatprep.subr.mxu0 0.0
    %3259 = vmatpush1.msra.mxu0 0.0
    %3260 = vmatprep.mubr.f32.mxu0 0.0
    %3261 = vmatmul.mubr.f32.gmra.mrb[0].mxu0 %v3054
    %v3262 = vpop.f32.mrb[0].mxu0
    %v3263 = vadd.f32 %v601, %v3262
    %v3264 = vpop.f32.mrb[0].mxu0
    %3265 = vdwg.mxu0
    %v3267 = vrot.slane %v3123, 4
    %v3269 = vadd.f32 %v366, %v3267
    %v3270 = vxor.u32 %v3269, 2147483648
    %v3271 = vmul.f32 %v3270, 1.442695
    %v3272 = vpow.pop %v3271
    %v3273 = vadd.f32 %v3272, 1.0
    %v3274 = vrcp.pop %v3273
    %v3275 = vmul.f32 1.0, %v3274
    %v3277 = vrot.slane %v3193, 4
    %v3279 = vadd.f32 %v462, %v3277
    %v3280 = vxor.u32 %v3279, 2147483648
    %v3281 = vmul.f32 %v3280, 1.442695
    %v3282 = vpow.pop %v3281
    %v3283 = vadd.f32 %v3282, 1.0
    %v3284 = vrcp.pop %v3283
    %v3285 = vmul.f32 1.0, %v3284
    %v3287 = vrot.slane %v3263, 4
    %v3289 = vmul.f32 %v3275, %v3287
    %v3290 = vadd.f32 %v558, %v3289
    %v3291 = vtanh.pop %v3290
    %v3292 = vsub.f32 1.0, %v3285
    %v3293 = vmul.f32 %v3292, %v3291
    %v3294 = vrot.slane %v3049, 6
    %v3296 = vmul.f32 %v3285, %v3294
    %v3297 = vadd.f32 %v3293, %v3296
    %s3298 = scalar_lea.vmem [#allocation2], 20
    %3299 = vst.msk [vmem:[%s3298 - $0x4] sm:$0x30] %vm1335, %v3297
    %v3301 = vrot.slane %v3297, 4
    %v3302 = vsel %vm603, %v3301, 0
    %3304 = vmatprep.subr.mxu0 0.0
    %3305 = vmatpush1.msra.mxu0 %v566
    %3306 = vmatprep.subr.mxu0 0.0
    %3307 = vmatpush1.msra.mxu0 %v567
    %3308 = vmatprep.subr.mxu0 0.0
    %3309 = vmatpush1.msra.mxu0 %v568
    %3310 = vmatprep.subr.mxu0 0.0
    %3311 = vmatpush1.msra.mxu0 %v569
    %3312 = vmatprep.subr.mxu0 0.0
    %3313 = vmatpush1.msra.mxu0 0.0
    %3314 = vmatprep.subr.mxu0 0.0
    %3315 = vmatpush1.msra.mxu0 0.0
    %3316 = vmatprep.subr.mxu0 0.0
    %3317 = vmatpush1.msra.mxu0 0.0
    %3318 = vmatprep.subr.mxu0 0.0
    %3319 = vmatpush1.msra.mxu0 0.0
    %3320 = vmatprep.subr.mxu0 0.0
    %3321 = vmatpush1.msra.mxu0 0.0
    %3322 = vmatprep.subr.mxu0 0.0
    %3323 = vmatpush1.msra.mxu0 0.0
    %3324 = vmatprep.subr.mxu0 0.0
    %3325 = vmatpush1.msra.mxu0 0.0
    %3326 = vmatprep.subr.mxu0 0.0
    %3327 = vmatpush1.msra.mxu0 0.0
    %3328 = vmatprep.subr.mxu0 0.0
    %3329 = vmatpush1.msra.mxu0 0.0
    %3330 = vmatprep.subr.mxu0 0.0
    %3331 = vmatpush1.msra.mxu0 0.0
    %3332 = vmatprep.subr.mxu0 0.0
    %3333 = vmatpush1.msra.mxu0 0.0
    %3334 = vmatprep.subr.mxu0 0.0
    %3335 = vmatpush1.msra.mxu0 0.0
    %3336 = vmatprep.subr.mxu0 0.0
    %3337 = vmatpush1.msra.mxu0 0.0
    %3338 = vmatprep.subr.mxu0 0.0
    %3339 = vmatpush1.msra.mxu0 0.0
    %3340 = vmatprep.subr.mxu0 0.0
    %3341 = vmatpush1.msra.mxu0 0.0
    %3342 = vmatprep.subr.mxu0 0.0
    %3343 = vmatpush1.msra.mxu0 0.0
    %3344 = vmatprep.subr.mxu0 0.0
    %3345 = vmatpush1.msra.mxu0 0.0
    %3346 = vmatprep.subr.mxu0 0.0
    %3347 = vmatpush1.msra.mxu0 0.0
    %3348 = vmatprep.subr.mxu0 0.0
    %3349 = vmatpush1.msra.mxu0 0.0
    %3350 = vmatprep.subr.mxu0 0.0
    %3351 = vmatpush1.msra.mxu0 0.0
    %3352 = vmatprep.subr.mxu0 0.0
    %3353 = vmatpush1.msra.mxu0 0.0
    %3354 = vmatprep.subr.mxu0 0.0
    %3355 = vmatpush1.msra.mxu0 0.0
    %3356 = vmatprep.subr.mxu0 0.0
    %3357 = vmatpush1.msra.mxu0 0.0
    %3358 = vmatprep.subr.mxu0 0.0
    %3359 = vmatpush1.msra.mxu0 0.0
    %3360 = vmatprep.subr.mxu0 0.0
    %3361 = vmatpush1.msra.mxu0 0.0
    %3362 = vmatprep.subr.mxu0 0.0
    %3363 = vmatpush1.msra.mxu0 0.0
    %3364 = vmatprep.subr.mxu0 0.0
    %3365 = vmatpush1.msra.mxu0 0.0
    %3366 = vmatprep.subr.mxu0 0.0
    %3367 = vmatpush1.msra.mxu0 0.0
    %3368 = vmatprep.mubr.f32.mxu0 0.0
    %3369 = vmatmul.mubr.f32.gmra.mrb[0].mxu0 %v3302
    %v3370 = vpop.f32.mrb[0].mxu0
    %v3371 = vadd.f32 %v585, %v3370
    %v3372 = vpop.f32.mrb[0].mxu0
    %3373 = vdwg.mxu0
    %3374 = vmatprep.subr.mxu0 0.0
    %3375 = vmatpush1.msra.mxu0 %v571
    %3376 = vmatprep.subr.mxu0 0.0
    %3377 = vmatpush1.msra.mxu0 %v572
    %3378 = vmatprep.subr.mxu0 0.0
    %3379 = vmatpush1.msra.mxu0 %v573
    %3380 = vmatprep.subr.mxu0 0.0
    %3381 = vmatpush1.msra.mxu0 %v574
    %3382 = vmatprep.subr.mxu0 0.0
    %3383 = vmatpush1.msra.mxu0 0.0
    %3384 = vmatprep.subr.mxu0 0.0
    %3385 = vmatpush1.msra.mxu0 0.0
    %3386 = vmatprep.subr.mxu0 0.0
    %3387 = vmatpush1.msra.mxu0 0.0
    %3388 = vmatprep.subr.mxu0 0.0
    %3389 = vmatpush1.msra.mxu0 0.0
    %3390 = vmatprep.subr.mxu0 0.0
    %3391 = vmatpush1.msra.mxu0 0.0
    %3392 = vmatprep.subr.mxu0 0.0
    %3393 = vmatpush1.msra.mxu0 0.0
    %3394 = vmatprep.subr.mxu0 0.0
    %3395 = vmatpush1.msra.mxu0 0.0
    %3396 = vmatprep.subr.mxu0 0.0
    %3397 = vmatpush1.msra.mxu0 0.0
    %3398 = vmatprep.subr.mxu0 0.0
    %3399 = vmatpush1.msra.mxu0 0.0
    %3400 = vmatprep.subr.mxu0 0.0
    %3401 = vmatpush1.msra.mxu0 0.0
    %3402 = vmatprep.subr.mxu0 0.0
    %3403 = vmatpush1.msra.mxu0 0.0
    %3404 = vmatprep.subr.mxu0 0.0
    %3405 = vmatpush1.msra.mxu0 0.0
    %3406 = vmatprep.subr.mxu0 0.0
    %3407 = vmatpush1.msra.mxu0 0.0
    %3408 = vmatprep.subr.mxu0 0.0
    %3409 = vmatpush1.msra.mxu0 0.0
    %3410 = vmatprep.subr.mxu0 0.0
    %3411 = vmatpush1.msra.mxu0 0.0
    %3412 = vmatprep.subr.mxu0 0.0
    %3413 = vmatpush1.msra.mxu0 0.0
    %3414 = vmatprep.subr.mxu0 0.0
    %3415 = vmatpush1.msra.mxu0 0.0
    %3416 = vmatprep.subr.mxu0 0.0
    %3417 = vmatpush1.msra.mxu0 0.0
    %3418 = vmatprep.subr.mxu0 0.0
    %3419 = vmatpush1.msra.mxu0 0.0
    %3420 = vmatprep.subr.mxu0 0.0
    %3421 = vmatpush1.msra.mxu0 0.0
    %3422 = vmatprep.subr.mxu0 0.0
    %3423 = vmatpush1.msra.mxu0 0.0
    %3424 = vmatprep.subr.mxu0 0.0
    %3425 = vmatpush1.msra.mxu0 0.0
    %3426 = vmatprep.subr.mxu0 0.0
    %3427 = vmatpush1.msra.mxu0 0.0
    %3428 = vmatprep.subr.mxu0 0.0
    %3429 = vmatpush1.msra.mxu0 0.0
    %3430 = vmatprep.subr.mxu0 0.0
    %3431 = vmatpush1.msra.mxu0 0.0
    %3432 = vmatprep.subr.mxu0 0.0
    %3433 = vmatpush1.msra.mxu0 0.0
    %3434 = vmatprep.subr.mxu0 0.0
    %3435 = vmatpush1.msra.mxu0 0.0
    %3436 = vmatprep.subr.mxu0 0.0
    %3437 = vmatpush1.msra.mxu0 0.0
    %3438 = vmatprep.mubr.f32.mxu0 0.0
    %3439 = vmatmul.mubr.f32.gmra.mrb[0].mxu0 %v3302
    %v3440 = vpop.f32.mrb[0].mxu0
    %v3441 = vadd.f32 %v593, %v3440
    %v3442 = vpop.f32.mrb[0].mxu0
    %3443 = vdwg.mxu0
    %3444 = vmatprep.subr.mxu0 0.0
    %3445 = vmatpush1.msra.mxu0 %v576
    %3446 = vmatprep.subr.mxu0 0.0
    %3447 = vmatpush1.msra.mxu0 %v577
    %3448 = vmatprep.subr.mxu0 0.0
    %3449 = vmatpush1.msra.mxu0 %v578
    %3450 = vmatprep.subr.mxu0 0.0
    %3451 = vmatpush1.msra.mxu0 %v579
    %3452 = vmatprep.subr.mxu0 0.0
    %3453 = vmatpush1.msra.mxu0 0.0
    %3454 = vmatprep.subr.mxu0 0.0
    %3455 = vmatpush1.msra.mxu0 0.0
    %3456 = vmatprep.subr.mxu0 0.0
    %3457 = vmatpush1.msra.mxu0 0.0
    %3458 = vmatprep.subr.mxu0 0.0
    %3459 = vmatpush1.msra.mxu0 0.0
    %3460 = vmatprep.subr.mxu0 0.0
    %3461 = vmatpush1.msra.mxu0 0.0
    %3462 = vmatprep.subr.mxu0 0.0
    %3463 = vmatpush1.msra.mxu0 0.0
    %3464 = vmatprep.subr.mxu0 0.0
    %3465 = vmatpush1.msra.mxu0 0.0
    %3466 = vmatprep.subr.mxu0 0.0
    %3467 = vmatpush1.msra.mxu0 0.0
    %3468 = vmatprep.subr.mxu0 0.0
    %3469 = vmatpush1.msra.mxu0 0.0
    %3470 = vmatprep.subr.mxu0 0.0
    %3471 = vmatpush1.msra.mxu0 0.0
    %3472 = vmatprep.subr.mxu0 0.0
    %3473 = vmatpush1.msra.mxu0 0.0
    %3474 = vmatprep.subr.mxu0 0.0
    %3475 = vmatpush1.msra.mxu0 0.0
    %3476 = vmatprep.subr.mxu0 0.0
    %3477 = vmatpush1.msra.mxu0 0.0
    %3478 = vmatprep.subr.mxu0 0.0
    %3479 = vmatpush1.msra.mxu0 0.0
    %3480 = vmatprep.subr.mxu0 0.0
    %3481 = vmatpush1.msra.mxu0 0.0
    %3482 = vmatprep.subr.mxu0 0.0
    %3483 = vmatpush1.msra.mxu0 0.0
    %3484 = vmatprep.subr.mxu0 0.0
    %3485 = vmatpush1.msra.mxu0 0.0
    %3486 = vmatprep.subr.mxu0 0.0
    %3487 = vmatpush1.msra.mxu0 0.0
    %3488 = vmatprep.subr.mxu0 0.0
    %3489 = vmatpush1.msra.mxu0 0.0
    %3490 = vmatprep.subr.mxu0 0.0
    %3491 = vmatpush1.msra.mxu0 0.0
    %3492 = vmatprep.subr.mxu0 0.0
    %3493 = vmatpush1.msra.mxu0 0.0
    %3494 = vmatprep.subr.mxu0 0.0
    %3495 = vmatpush1.msra.mxu0 0.0
    %3496 = vmatprep.subr.mxu0 0.0
    %3497 = vmatpush1.msra.mxu0 0.0
    %3498 = vmatprep.subr.mxu0 0.0
    %3499 = vmatpush1.msra.mxu0 0.0
    %3500 = vmatprep.subr.mxu0 0.0
    %3501 = vmatpush1.msra.mxu0 0.0
    %3502 = vmatprep.subr.mxu0 0.0
    %3503 = vmatpush1.msra.mxu0 0.0
    %3504 = vmatprep.subr.mxu0 0.0
    %3505 = vmatpush1.msra.mxu0 0.0
    %3506 = vmatprep.subr.mxu0 0.0
    %3507 = vmatpush1.msra.mxu0 0.0
    %3508 = vmatprep.mubr.f32.mxu0 0.0
    %3509 = vmatmul.mubr.f32.gmra.mrb[0].mxu0 %v3302
    %v3510 = vpop.f32.mrb[0].mxu0
    %v3511 = vadd.f32 %v601, %v3510
    %v3512 = vpop.f32.mrb[0].mxu0
    %3513 = vdwg.mxu0
    %v3515 = vrot.slane %v3371, 2
    %v3517 = vadd.f32 %v366, %v3515
    %v3518 = vxor.u32 %v3517, 2147483648
    %v3519 = vmul.f32 %v3518, 1.442695
    %v3520 = vpow.pop %v3519
    %v3521 = vadd.f32 %v3520, 1.0
    %v3522 = vrcp.pop %v3521
    %v3523 = vmul.f32 1.0, %v3522
    %v3525 = vrot.slane %v3441, 2
    %v3527 = vadd.f32 %v462, %v3525
    %v3528 = vxor.u32 %v3527, 2147483648
    %v3529 = vmul.f32 %v3528, 1.442695
    %v3530 = vpow.pop %v3529
    %v3531 = vadd.f32 %v3530, 1.0
    %v3532 = vrcp.pop %v3531
    %v3533 = vmul.f32 1.0, %v3532
    %v3535 = vrot.slane %v3511, 2
    %v3537 = vmul.f32 %v3523, %v3535
    %v3538 = vadd.f32 %v558, %v3537
    %v3539 = vtanh.pop %v3538
    %v3540 = vsub.f32 1.0, %v3533
    %v3541 = vmul.f32 %v3540, %v3539
    %v3542 = vrot.slane %v3297, 6
    %v3544 = vmul.f32 %v3533, %v3542
    %v3545 = vadd.f32 %v3541, %v3544
    %s3546 = scalar_lea.vmem [#allocation2], 22
    %3547 = vst.msk [vmem:[%s3546 - $0x6] sm:$0xc0] %vm1584, %v3545
    %v3549 = vrot.slane %v3545, 6
    %v3550 = vsel %vm603, %v3549, 0
    %3552 = vmatprep.subr.mxu0 0.0
    %3553 = vmatpush1.msra.mxu0 %v566
    %3554 = vmatprep.subr.mxu0 0.0
    %3555 = vmatpush1.msra.mxu0 %v567
    %3556 = vmatprep.subr.mxu0 0.0
    %3557 = vmatpush1.msra.mxu0 %v568
    %3558 = vmatprep.subr.mxu0 0.0
    %3559 = vmatpush1.msra.mxu0 %v569
    %3560 = vmatprep.subr.mxu0 0.0
    %3561 = vmatpush1.msra.mxu0 0.0
    %3562 = vmatprep.subr.mxu0 0.0
    %3563 = vmatpush1.msra.mxu0 0.0
    %3564 = vmatprep.subr.mxu0 0.0
    %3565 = vmatpush1.msra.mxu0 0.0
    %3566 = vmatprep.subr.mxu0 0.0
    %3567 = vmatpush1.msra.mxu0 0.0
    %3568 = vmatprep.subr.mxu0 0.0
    %3569 = vmatpush1.msra.mxu0 0.0
    %3570 = vmatprep.subr.mxu0 0.0
    %3571 = vmatpush1.msra.mxu0 0.0
    %3572 = vmatprep.subr.mxu0 0.0
    %3573 = vmatpush1.msra.mxu0 0.0
    %3574 = vmatprep.subr.mxu0 0.0
    %3575 = vmatpush1.msra.mxu0 0.0
    %3576 = vmatprep.subr.mxu0 0.0
    %3577 = vmatpush1.msra.mxu0 0.0
    %3578 = vmatprep.subr.mxu0 0.0
    %3579 = vmatpush1.msra.mxu0 0.0
    %3580 = vmatprep.subr.mxu0 0.0
    %3581 = vmatpush1.msra.mxu0 0.0
    %3582 = vmatprep.subr.mxu0 0.0
    %3583 = vmatpush1.msra.mxu0 0.0
    %3584 = vmatprep.subr.mxu0 0.0
    %3585 = vmatpush1.msra.mxu0 0.0
    %3586 = vmatprep.subr.mxu0 0.0
    %3587 = vmatpush1.msra.mxu0 0.0
    %3588 = vmatprep.subr.mxu0 0.0
    %3589 = vmatpush1.msra.mxu0 0.0
    %3590 = vmatprep.subr.mxu0 0.0
    %3591 = vmatpush1.msra.mxu0 0.0
    %3592 = vmatprep.subr.mxu0 0.0
    %3593 = vmatpush1.msra.mxu0 0.0
    %3594 = vmatprep.subr.mxu0 0.0
    %3595 = vmatpush1.msra.mxu0 0.0
    %3596 = vmatprep.subr.mxu0 0.0
    %3597 = vmatpush1.msra.mxu0 0.0
    %3598 = vmatprep.subr.mxu0 0.0
    %3599 = vmatpush1.msra.mxu0 0.0
    %3600 = vmatprep.subr.mxu0 0.0
    %3601 = vmatpush1.msra.mxu0 0.0
    %3602 = vmatprep.subr.mxu0 0.0
    %3603 = vmatpush1.msra.mxu0 0.0
    %3604 = vmatprep.subr.mxu0 0.0
    %3605 = vmatpush1.msra.mxu0 0.0
    %3606 = vmatprep.subr.mxu0 0.0
    %3607 = vmatpush1.msra.mxu0 0.0
    %3608 = vmatprep.subr.mxu0 0.0
    %3609 = vmatpush1.msra.mxu0 0.0
    %3610 = vmatprep.subr.mxu0 0.0
    %3611 = vmatpush1.msra.mxu0 0.0
    %3612 = vmatprep.subr.mxu0 0.0
    %3613 = vmatpush1.msra.mxu0 0.0
    %3614 = vmatprep.subr.mxu0 0.0
    %3615 = vmatpush1.msra.mxu0 0.0
    %3616 = vmatprep.mubr.f32.mxu0 0.0
    %3617 = vmatmul.mubr.f32.gmra.mrb[0].mxu0 %v3550
    %v3618 = vpop.f32.mrb[0].mxu0
    %v3619 = vadd.f32 %v585, %v3618
    %v3620 = vpop.f32.mrb[0].mxu0
    %3621 = vdwg.mxu0
    %3622 = vmatprep.subr.mxu0 0.0
    %3623 = vmatpush1.msra.mxu0 %v571
    %3624 = vmatprep.subr.mxu0 0.0
    %3625 = vmatpush1.msra.mxu0 %v572
    %3626 = vmatprep.subr.mxu0 0.0
    %3627 = vmatpush1.msra.mxu0 %v573
    %3628 = vmatprep.subr.mxu0 0.0
    %3629 = vmatpush1.msra.mxu0 %v574
    %3630 = vmatprep.subr.mxu0 0.0
    %3631 = vmatpush1.msra.mxu0 0.0
    %3632 = vmatprep.subr.mxu0 0.0
    %3633 = vmatpush1.msra.mxu0 0.0
    %3634 = vmatprep.subr.mxu0 0.0
    %3635 = vmatpush1.msra.mxu0 0.0
    %3636 = vmatprep.subr.mxu0 0.0
    %3637 = vmatpush1.msra.mxu0 0.0
    %3638 = vmatprep.subr.mxu0 0.0
    %3639 = vmatpush1.msra.mxu0 0.0
    %3640 = vmatprep.subr.mxu0 0.0
    %3641 = vmatpush1.msra.mxu0 0.0
    %3642 = vmatprep.subr.mxu0 0.0
    %3643 = vmatpush1.msra.mxu0 0.0
    %3644 = vmatprep.subr.mxu0 0.0
    %3645 = vmatpush1.msra.mxu0 0.0
    %3646 = vmatprep.subr.mxu0 0.0
    %3647 = vmatpush1.msra.mxu0 0.0
    %3648 = vmatprep.subr.mxu0 0.0
    %3649 = vmatpush1.msra.mxu0 0.0
    %3650 = vmatprep.subr.mxu0 0.0
    %3651 = vmatpush1.msra.mxu0 0.0
    %3652 = vmatprep.subr.mxu0 0.0
    %3653 = vmatpush1.msra.mxu0 0.0
    %3654 = vmatprep.subr.mxu0 0.0
    %3655 = vmatpush1.msra.mxu0 0.0
    %3656 = vmatprep.subr.mxu0 0.0
    %3657 = vmatpush1.msra.mxu0 0.0
    %3658 = vmatprep.subr.mxu0 0.0
    %3659 = vmatpush1.msra.mxu0 0.0
    %3660 = vmatprep.subr.mxu0 0.0
    %3661 = vmatpush1.msra.mxu0 0.0
    %3662 = vmatprep.subr.mxu0 0.0
    %3663 = vmatpush1.msra.mxu0 0.0
    %3664 = vmatprep.subr.mxu0 0.0
    %3665 = vmatpush1.msra.mxu0 0.0
    %3666 = vmatprep.subr.mxu0 0.0
    %3667 = vmatpush1.msra.mxu0 0.0
    %3668 = vmatprep.subr.mxu0 0.0
    %3669 = vmatpush1.msra.mxu0 0.0
    %3670 = vmatprep.subr.mxu0 0.0
    %3671 = vmatpush1.msra.mxu0 0.0
    %3672 = vmatprep.subr.mxu0 0.0
    %3673 = vmatpush1.msra.mxu0 0.0
    %3674 = vmatprep.subr.mxu0 0.0
    %3675 = vmatpush1.msra.mxu0 0.0
    %3676 = vmatprep.subr.mxu0 0.0
    %3677 = vmatpush1.msra.mxu0 0.0
    %3678 = vmatprep.subr.mxu0 0.0
    %3679 = vmatpush1.msra.mxu0 0.0
    %3680 = vmatprep.subr.mxu0 0.0
    %3681 = vmatpush1.msra.mxu0 0.0
    %3682 = vmatprep.subr.mxu0 0.0
    %3683 = vmatpush1.msra.mxu0 0.0
    %3684 = vmatprep.subr.mxu0 0.0
    %3685 = vmatpush1.msra.mxu0 0.0
    %3686 = vmatprep.mubr.f32.mxu0 0.0
    %3687 = vmatmul.mubr.f32.gmra.mrb[0].mxu0 %v3550
    %v3688 = vpop.f32.mrb[0].mxu0
    %v3689 = vadd.f32 %v593, %v3688
    %v3690 = vpop.f32.mrb[0].mxu0
    %3691 = vdwg.mxu0
    %3692 = vmatprep.subr.mxu0 0.0
    %3693 = vmatpush1.msra.mxu0 %v576
    %3694 = vmatprep.subr.mxu0 0.0
    %3695 = vmatpush1.msra.mxu0 %v577
    %3696 = vmatprep.subr.mxu0 0.0
    %3697 = vmatpush1.msra.mxu0 %v578
    %3698 = vmatprep.subr.mxu0 0.0
    %3699 = vmatpush1.msra.mxu0 %v579
    %3700 = vmatprep.subr.mxu0 0.0
    %3701 = vmatpush1.msra.mxu0 0.0
    %3702 = vmatprep.subr.mxu0 0.0
    %3703 = vmatpush1.msra.mxu0 0.0
    %3704 = vmatprep.subr.mxu0 0.0
    %3705 = vmatpush1.msra.mxu0 0.0
    %3706 = vmatprep.subr.mxu0 0.0
    %3707 = vmatpush1.msra.mxu0 0.0
    %3708 = vmatprep.subr.mxu0 0.0
    %3709 = vmatpush1.msra.mxu0 0.0
    %3710 = vmatprep.subr.mxu0 0.0
    %3711 = vmatpush1.msra.mxu0 0.0
    %3712 = vmatprep.subr.mxu0 0.0
    %3713 = vmatpush1.msra.mxu0 0.0
    %3714 = vmatprep.subr.mxu0 0.0
    %3715 = vmatpush1.msra.mxu0 0.0
    %3716 = vmatprep.subr.mxu0 0.0
    %3717 = vmatpush1.msra.mxu0 0.0
    %3718 = vmatprep.subr.mxu0 0.0
    %3719 = vmatpush1.msra.mxu0 0.0
    %3720 = vmatprep.subr.mxu0 0.0
    %3721 = vmatpush1.msra.mxu0 0.0
    %3722 = vmatprep.subr.mxu0 0.0
    %3723 = vmatpush1.msra.mxu0 0.0
    %3724 = vmatprep.subr.mxu0 0.0
    %3725 = vmatpush1.msra.mxu0 0.0
    %3726 = vmatprep.subr.mxu0 0.0
    %3727 = vmatpush1.msra.mxu0 0.0
    %3728 = vmatprep.subr.mxu0 0.0
    %3729 = vmatpush1.msra.mxu0 0.0
    %3730 = vmatprep.subr.mxu0 0.0
    %3731 = vmatpush1.msra.mxu0 0.0
    %3732 = vmatprep.subr.mxu0 0.0
    %3733 = vmatpush1.msra.mxu0 0.0
    %3734 = vmatprep.subr.mxu0 0.0
    %3735 = vmatpush1.msra.mxu0 0.0
    %3736 = vmatprep.subr.mxu0 0.0
    %3737 = vmatpush1.msra.mxu0 0.0
    %3738 = vmatprep.subr.mxu0 0.0
    %3739 = vmatpush1.msra.mxu0 0.0
    %3740 = vmatprep.subr.mxu0 0.0
    %3741 = vmatpush1.msra.mxu0 0.0
    %3742 = vmatprep.subr.mxu0 0.0
    %3743 = vmatpush1.msra.mxu0 0.0
    %3744 = vmatprep.subr.mxu0 0.0
    %3745 = vmatpush1.msra.mxu0 0.0
    %3746 = vmatprep.subr.mxu0 0.0
    %3747 = vmatpush1.msra.mxu0 0.0
    %3748 = vmatprep.subr.mxu0 0.0
    %3749 = vmatpush1.msra.mxu0 0.0
    %3750 = vmatprep.subr.mxu0 0.0
    %3751 = vmatpush1.msra.mxu0 0.0
    %3752 = vmatprep.subr.mxu0 0.0
    %3753 = vmatpush1.msra.mxu0 0.0
    %3754 = vmatprep.subr.mxu0 0.0
    %3755 = vmatpush1.msra.mxu0 0.0
    %3756 = vmatprep.mubr.f32.mxu0 0.0
    %3757 = vmatmul.mubr.f32.gmra.mrb[0].mxu0 %v3550
    %v3758 = vpop.f32.mrb[0].mxu0
    %v3759 = vadd.f32 %v601, %v3758
    %v3760 = vpop.f32.mrb[0].mxu0
    %3761 = vdwg.mxu0
    %v3762 = vadd.f32 %v371, %v3619
    %v3763 = vxor.u32 %v3762, 2147483648
    %v3764 = vmul.f32 %v3763, 1.442695
    %v3765 = vpow.pop %v3764
    %v3766 = vadd.f32 %v3765, 1.0
    %v3767 = vrcp.pop %v3766
    %v3768 = vmul.f32 1.0, %v3767
    %v3769 = vadd.f32 %v467, %v3689
    %v3770 = vxor.u32 %v3769, 2147483648
    %v3771 = vmul.f32 %v3770, 1.442695
    %v3772 = vpow.pop %v3771
    %v3773 = vadd.f32 %v3772, 1.0
    %v3774 = vrcp.pop %v3773
    %v3775 = vmul.f32 1.0, %v3774
    %v3776 = vmul.f32 %v3768, %v3759
    %v3777 = vadd.f32 %v563, %v3776
    %v3778 = vtanh.pop %v3777
    %v3779 = vsub.f32 1.0, %v3775
    %v3780 = vmul.f32 %v3779, %v3778
    %v3782 = vmul.f32 %v3775, %v3549
    %v3783 = vadd.f32 %v3780, %v3782
    %s3784 = scalar_lea.vmem [#allocation2], 24
    %3785 = vst.msk [vmem:[%s3784] sm:$0x3] %vm838, %v3783
    %v3787 = vsel %vm603, %v3783, 0
    %3789 = vmatprep.subr.mxu0 0.0
    %3790 = vmatpush1.msra.mxu0 %v566
    %3791 = vmatprep.subr.mxu0 0.0
    %3792 = vmatpush1.msra.mxu0 %v567
    %3793 = vmatprep.subr.mxu0 0.0
    %3794 = vmatpush1.msra.mxu0 %v568
    %3795 = vmatprep.subr.mxu0 0.0
    %3796 = vmatpush1.msra.mxu0 %v569
    %3797 = vmatprep.subr.mxu0 0.0
    %3798 = vmatpush1.msra.mxu0 0.0
    %3799 = vmatprep.subr.mxu0 0.0
    %3800 = vmatpush1.msra.mxu0 0.0
    %3801 = vmatprep.subr.mxu0 0.0
    %3802 = vmatpush1.msra.mxu0 0.0
    %3803 = vmatprep.subr.mxu0 0.0
    %3804 = vmatpush1.msra.mxu0 0.0
    %3805 = vmatprep.subr.mxu0 0.0
    %3806 = vmatpush1.msra.mxu0 0.0
    %3807 = vmatprep.subr.mxu0 0.0
    %3808 = vmatpush1.msra.mxu0 0.0
    %3809 = vmatprep.subr.mxu0 0.0
    %3810 = vmatpush1.msra.mxu0 0.0
    %3811 = vmatprep.subr.mxu0 0.0
    %3812 = vmatpush1.msra.mxu0 0.0
    %3813 = vmatprep.subr.mxu0 0.0
    %3814 = vmatpush1.msra.mxu0 0.0
    %3815 = vmatprep.subr.mxu0 0.0
    %3816 = vmatpush1.msra.mxu0 0.0
    %3817 = vmatprep.subr.mxu0 0.0
    %3818 = vmatpush1.msra.mxu0 0.0
    %3819 = vmatprep.subr.mxu0 0.0
    %3820 = vmatpush1.msra.mxu0 0.0
    %3821 = vmatprep.subr.mxu0 0.0
    %3822 = vmatpush1.msra.mxu0 0.0
    %3823 = vmatprep.subr.mxu0 0.0
    %3824 = vmatpush1.msra.mxu0 0.0
    %3825 = vmatprep.subr.mxu0 0.0
    %3826 = vmatpush1.msra.mxu0 0.0
    %3827 = vmatprep.subr.mxu0 0.0
    %3828 = vmatpush1.msra.mxu0 0.0
    %3829 = vmatprep.subr.mxu0 0.0
    %3830 = vmatpush1.msra.mxu0 0.0
    %3831 = vmatprep.subr.mxu0 0.0
    %3832 = vmatpush1.msra.mxu0 0.0
    %3833 = vmatprep.subr.mxu0 0.0
    %3834 = vmatpush1.msra.mxu0 0.0
    %3835 = vmatprep.subr.mxu0 0.0
    %3836 = vmatpush1.msra.mxu0 0.0
    %3837 = vmatprep.subr.mxu0 0.0
    %3838 = vmatpush1.msra.mxu0 0.0
    %3839 = vmatprep.subr.mxu0 0.0
    %3840 = vmatpush1.msra.mxu0 0.0
    %3841 = vmatprep.subr.mxu0 0.0
    %3842 = vmatpush1.msra.mxu0 0.0
    %3843 = vmatprep.subr.mxu0 0.0
    %3844 = vmatpush1.msra.mxu0 0.0
    %3845 = vmatprep.subr.mxu0 0.0
    %3846 = vmatpush1.msra.mxu0 0.0
    %3847 = vmatprep.subr.mxu0 0.0
    %3848 = vmatpush1.msra.mxu0 0.0
    %3849 = vmatprep.subr.mxu0 0.0
    %3850 = vmatpush1.msra.mxu0 0.0
    %3851 = vmatprep.subr.mxu0 0.0
    %3852 = vmatpush1.msra.mxu0 0.0
    %3853 = vmatprep.mubr.f32.mxu0 0.0
    %3854 = vmatmul.mubr.f32.gmra.mrb[0].mxu0 %v3787
    %v3855 = vpop.f32.mrb[0].mxu0
    %v3856 = vadd.f32 %v585, %v3855
    %v3857 = vpop.f32.mrb[0].mxu0
    %3858 = vdwg.mxu0
    %3859 = vmatprep.subr.mxu0 0.0
    %3860 = vmatpush1.msra.mxu0 %v571
    %3861 = vmatprep.subr.mxu0 0.0
    %3862 = vmatpush1.msra.mxu0 %v572
    %3863 = vmatprep.subr.mxu0 0.0
    %3864 = vmatpush1.msra.mxu0 %v573
    %3865 = vmatprep.subr.mxu0 0.0
    %3866 = vmatpush1.msra.mxu0 %v574
    %3867 = vmatprep.subr.mxu0 0.0
    %3868 = vmatpush1.msra.mxu0 0.0
    %3869 = vmatprep.subr.mxu0 0.0
    %3870 = vmatpush1.msra.mxu0 0.0
    %3871 = vmatprep.subr.mxu0 0.0
    %3872 = vmatpush1.msra.mxu0 0.0
    %3873 = vmatprep.subr.mxu0 0.0
    %3874 = vmatpush1.msra.mxu0 0.0
    %3875 = vmatprep.subr.mxu0 0.0
    %3876 = vmatpush1.msra.mxu0 0.0
    %3877 = vmatprep.subr.mxu0 0.0
    %3878 = vmatpush1.msra.mxu0 0.0
    %3879 = vmatprep.subr.mxu0 0.0
    %3880 = vmatpush1.msra.mxu0 0.0
    %3881 = vmatprep.subr.mxu0 0.0
    %3882 = vmatpush1.msra.mxu0 0.0
    %3883 = vmatprep.subr.mxu0 0.0
    %3884 = vmatpush1.msra.mxu0 0.0
    %3885 = vmatprep.subr.mxu0 0.0
    %3886 = vmatpush1.msra.mxu0 0.0
    %3887 = vmatprep.subr.mxu0 0.0
    %3888 = vmatpush1.msra.mxu0 0.0
    %3889 = vmatprep.subr.mxu0 0.0
    %3890 = vmatpush1.msra.mxu0 0.0
    %3891 = vmatprep.subr.mxu0 0.0
    %3892 = vmatpush1.msra.mxu0 0.0
    %3893 = vmatprep.subr.mxu0 0.0
    %3894 = vmatpush1.msra.mxu0 0.0
    %3895 = vmatprep.subr.mxu0 0.0
    %3896 = vmatpush1.msra.mxu0 0.0
    %3897 = vmatprep.subr.mxu0 0.0
    %3898 = vmatpush1.msra.mxu0 0.0
    %3899 = vmatprep.subr.mxu0 0.0
    %3900 = vmatpush1.msra.mxu0 0.0
    %3901 = vmatprep.subr.mxu0 0.0
    %3902 = vmatpush1.msra.mxu0 0.0
    %3903 = vmatprep.subr.mxu0 0.0
    %3904 = vmatpush1.msra.mxu0 0.0
    %3905 = vmatprep.subr.mxu0 0.0
    %3906 = vmatpush1.msra.mxu0 0.0
    %3907 = vmatprep.subr.mxu0 0.0
    %3908 = vmatpush1.msra.mxu0 0.0
    %3909 = vmatprep.subr.mxu0 0.0
    %3910 = vmatpush1.msra.mxu0 0.0
    %3911 = vmatprep.subr.mxu0 0.0
    %3912 = vmatpush1.msra.mxu0 0.0
    %3913 = vmatprep.subr.mxu0 0.0
    %3914 = vmatpush1.msra.mxu0 0.0
    %3915 = vmatprep.subr.mxu0 0.0
    %3916 = vmatpush1.msra.mxu0 0.0
    %3917 = vmatprep.subr.mxu0 0.0
    %3918 = vmatpush1.msra.mxu0 0.0
    %3919 = vmatprep.subr.mxu0 0.0
    %3920 = vmatpush1.msra.mxu0 0.0
    %3921 = vmatprep.subr.mxu0 0.0
    %3922 = vmatpush1.msra.mxu0 0.0
    %3923 = vmatprep.mubr.f32.mxu0 0.0
    %3924 = vmatmul.mubr.f32.gmra.mrb[0].mxu0 %v3787
    %v3925 = vpop.f32.mrb[0].mxu0
    %v3926 = vadd.f32 %v593, %v3925
    %v3927 = vpop.f32.mrb[0].mxu0
    %3928 = vdwg.mxu0
    %3929 = vmatprep.subr.mxu0 0.0
    %3930 = vmatpush1.msra.mxu0 %v576
    %3931 = vmatprep.subr.mxu0 0.0
    %3932 = vmatpush1.msra.mxu0 %v577
    %3933 = vmatprep.subr.mxu0 0.0
    %3934 = vmatpush1.msra.mxu0 %v578
    %3935 = vmatprep.subr.mxu0 0.0
    %3936 = vmatpush1.msra.mxu0 %v579
    %3937 = vmatprep.subr.mxu0 0.0
    %3938 = vmatpush1.msra.mxu0 0.0
    %3939 = vmatprep.subr.mxu0 0.0
    %3940 = vmatpush1.msra.mxu0 0.0
    %3941 = vmatprep.subr.mxu0 0.0
    %3942 = vmatpush1.msra.mxu0 0.0
    %3943 = vmatprep.subr.mxu0 0.0
    %3944 = vmatpush1.msra.mxu0 0.0
    %3945 = vmatprep.subr.mxu0 0.0
    %3946 = vmatpush1.msra.mxu0 0.0
    %3947 = vmatprep.subr.mxu0 0.0
    %3948 = vmatpush1.msra.mxu0 0.0
    %3949 = vmatprep.subr.mxu0 0.0
    %3950 = vmatpush1.msra.mxu0 0.0
    %3951 = vmatprep.subr.mxu0 0.0
    %3952 = vmatpush1.msra.mxu0 0.0
    %3953 = vmatprep.subr.mxu0 0.0
    %3954 = vmatpush1.msra.mxu0 0.0
    %3955 = vmatprep.subr.mxu0 0.0
    %3956 = vmatpush1.msra.mxu0 0.0
    %3957 = vmatprep.subr.mxu0 0.0
    %3958 = vmatpush1.msra.mxu0 0.0
    %3959 = vmatprep.subr.mxu0 0.0
    %3960 = vmatpush1.msra.mxu0 0.0
    %3961 = vmatprep.subr.mxu0 0.0
    %3962 = vmatpush1.msra.mxu0 0.0
    %3963 = vmatprep.subr.mxu0 0.0
    %3964 = vmatpush1.msra.mxu0 0.0
    %3965 = vmatprep.subr.mxu0 0.0
    %3966 = vmatpush1.msra.mxu0 0.0
    %3967 = vmatprep.subr.mxu0 0.0
    %3968 = vmatpush1.msra.mxu0 0.0
    %3969 = vmatprep.subr.mxu0 0.0
    %3970 = vmatpush1.msra.mxu0 0.0
    %3971 = vmatprep.subr.mxu0 0.0
    %3972 = vmatpush1.msra.mxu0 0.0
    %3973 = vmatprep.subr.mxu0 0.0
    %3974 = vmatpush1.msra.mxu0 0.0
    %3975 = vmatprep.subr.mxu0 0.0
    %3976 = vmatpush1.msra.mxu0 0.0
    %3977 = vmatprep.subr.mxu0 0.0
    %3978 = vmatpush1.msra.mxu0 0.0
    %3979 = vmatprep.subr.mxu0 0.0
    %3980 = vmatpush1.msra.mxu0 0.0
    %3981 = vmatprep.subr.mxu0 0.0
    %3982 = vmatpush1.msra.mxu0 0.0
    %3983 = vmatprep.subr.mxu0 0.0
    %3984 = vmatpush1.msra.mxu0 0.0
    %3985 = vmatprep.subr.mxu0 0.0
    %3986 = vmatpush1.msra.mxu0 0.0
    %3987 = vmatprep.subr.mxu0 0.0
    %3988 = vmatpush1.msra.mxu0 0.0
    %3989 = vmatprep.subr.mxu0 0.0
    %3990 = vmatpush1.msra.mxu0 0.0
    %3991 = vmatprep.subr.mxu0 0.0
    %3992 = vmatpush1.msra.mxu0 0.0
    %3993 = vmatprep.mubr.f32.mxu0 0.0
    %3994 = vmatmul.mubr.f32.gmra.mrb[0].mxu0 %v3787
    %v3995 = vpop.f32.mrb[0].mxu0
    %v3996 = vadd.f32 %v601, %v3995
    %v3997 = vpop.f32.mrb[0].mxu0
    %3998 = vdwg.mxu0
    %v4000 = vrot.slane %v3856, 6
    %v4002 = vadd.f32 %v371, %v4000
    %v4003 = vxor.u32 %v4002, 2147483648
    %v4004 = vmul.f32 %v4003, 1.442695
    %v4005 = vpow.pop %v4004
    %v4006 = vadd.f32 %v4005, 1.0
    %v4007 = vrcp.pop %v4006
    %v4008 = vmul.f32 1.0, %v4007
    %v4010 = vrot.slane %v3926, 6
    %v4012 = vadd.f32 %v467, %v4010
    %v4013 = vxor.u32 %v4012, 2147483648
    %v4014 = vmul.f32 %v4013, 1.442695
    %v4015 = vpow.pop %v4014
    %v4016 = vadd.f32 %v4015, 1.0
    %v4017 = vrcp.pop %v4016
    %v4018 = vmul.f32 1.0, %v4017
    %v4020 = vrot.slane %v3996, 6
    %v4022 = vmul.f32 %v4008, %v4020
    %v4023 = vadd.f32 %v563, %v4022
    %v4024 = vtanh.pop %v4023
    %v4025 = vsub.f32 1.0, %v4018
    %v4026 = vmul.f32 %v4025, %v4024
    %v4027 = vrot.slane %v3783, 6
    %v4029 = vmul.f32 %v4018, %v4027
    %v4030 = vadd.f32 %v4026, %v4029
    %s4031 = scalar_lea.vmem [#allocation2], 26
    %4032 = vst.msk [vmem:[%s4031 - $0x2] sm:$0xc] %vm1086, %v4030
    %v4034 = vrot.slane %v4030, 2
    %v4035 = vsel %vm603, %v4034, 0
    %4037 = vmatprep.subr.mxu0 0.0
    %4038 = vmatpush1.msra.mxu0 %v566
    %4039 = vmatprep.subr.mxu0 0.0
    %4040 = vmatpush1.msra.mxu0 %v567
    %4041 = vmatprep.subr.mxu0 0.0
    %4042 = vmatpush1.msra.mxu0 %v568
    %4043 = vmatprep.subr.mxu0 0.0
    %4044 = vmatpush1.msra.mxu0 %v569
    %4045 = vmatprep.subr.mxu0 0.0
    %4046 = vmatpush1.msra.mxu0 0.0
    %4047 = vmatprep.subr.mxu0 0.0
    %4048 = vmatpush1.msra.mxu0 0.0
    %4049 = vmatprep.subr.mxu0 0.0
    %4050 = vmatpush1.msra.mxu0 0.0
    %4051 = vmatprep.subr.mxu0 0.0
    %4052 = vmatpush1.msra.mxu0 0.0
    %4053 = vmatprep.subr.mxu0 0.0
    %4054 = vmatpush1.msra.mxu0 0.0
    %4055 = vmatprep.subr.mxu0 0.0
    %4056 = vmatpush1.msra.mxu0 0.0
    %4057 = vmatprep.subr.mxu0 0.0
    %4058 = vmatpush1.msra.mxu0 0.0
    %4059 = vmatprep.subr.mxu0 0.0
    %4060 = vmatpush1.msra.mxu0 0.0
    %4061 = vmatprep.subr.mxu0 0.0
    %4062 = vmatpush1.msra.mxu0 0.0
    %4063 = vmatprep.subr.mxu0 0.0
    %4064 = vmatpush1.msra.mxu0 0.0
    %4065 = vmatprep.subr.mxu0 0.0
    %4066 = vmatpush1.msra.mxu0 0.0
    %4067 = vmatprep.subr.mxu0 0.0
    %4068 = vmatpush1.msra.mxu0 0.0
    %4069 = vmatprep.subr.mxu0 0.0
    %4070 = vmatpush1.msra.mxu0 0.0
    %4071 = vmatprep.subr.mxu0 0.0
    %4072 = vmatpush1.msra.mxu0 0.0
    %4073 = vmatprep.subr.mxu0 0.0
    %4074 = vmatpush1.msra.mxu0 0.0
    %4075 = vmatprep.subr.mxu0 0.0
    %4076 = vmatpush1.msra.mxu0 0.0
    %4077 = vmatprep.subr.mxu0 0.0
    %4078 = vmatpush1.msra.mxu0 0.0
    %4079 = vmatprep.subr.mxu0 0.0
    %4080 = vmatpush1.msra.mxu0 0.0
    %4081 = vmatprep.subr.mxu0 0.0
    %4082 = vmatpush1.msra.mxu0 0.0
    %4083 = vmatprep.subr.mxu0 0.0
    %4084 = vmatpush1.msra.mxu0 0.0
    %4085 = vmatprep.subr.mxu0 0.0
    %4086 = vmatpush1.msra.mxu0 0.0
    %4087 = vmatprep.subr.mxu0 0.0
    %4088 = vmatpush1.msra.mxu0 0.0
    %4089 = vmatprep.subr.mxu0 0.0
    %4090 = vmatpush1.msra.mxu0 0.0
    %4091 = vmatprep.subr.mxu0 0.0
    %4092 = vmatpush1.msra.mxu0 0.0
    %4093 = vmatprep.subr.mxu0 0.0
    %4094 = vmatpush1.msra.mxu0 0.0
    %4095 = vmatprep.subr.mxu0 0.0
    %4096 = vmatpush1.msra.mxu0 0.0
    %4097 = vmatprep.subr.mxu0 0.0
    %4098 = vmatpush1.msra.mxu0 0.0
    %4099 = vmatprep.subr.mxu0 0.0
    %4100 = vmatpush1.msra.mxu0 0.0
    %4101 = vmatprep.mubr.f32.mxu0 0.0
    %4102 = vmatmul.mubr.f32.gmra.mrb[0].mxu0 %v4035
    %v4103 = vpop.f32.mrb[0].mxu0
    %v4104 = vadd.f32 %v585, %v4103
    %v4105 = vpop.f32.mrb[0].mxu0
    %4106 = vdwg.mxu0
    %4107 = vmatprep.subr.mxu0 0.0
    %4108 = vmatpush1.msra.mxu0 %v571
    %4109 = vmatprep.subr.mxu0 0.0
    %4110 = vmatpush1.msra.mxu0 %v572
    %4111 = vmatprep.subr.mxu0 0.0
    %4112 = vmatpush1.msra.mxu0 %v573
    %4113 = vmatprep.subr.mxu0 0.0
    %4114 = vmatpush1.msra.mxu0 %v574
    %4115 = vmatprep.subr.mxu0 0.0
    %4116 = vmatpush1.msra.mxu0 0.0
    %4117 = vmatprep.subr.mxu0 0.0
    %4118 = vmatpush1.msra.mxu0 0.0
    %4119 = vmatprep.subr.mxu0 0.0
    %4120 = vmatpush1.msra.mxu0 0.0
    %4121 = vmatprep.subr.mxu0 0.0
    %4122 = vmatpush1.msra.mxu0 0.0
    %4123 = vmatprep.subr.mxu0 0.0
    %4124 = vmatpush1.msra.mxu0 0.0
    %4125 = vmatprep.subr.mxu0 0.0
    %4126 = vmatpush1.msra.mxu0 0.0
    %4127 = vmatprep.subr.mxu0 0.0
    %4128 = vmatpush1.msra.mxu0 0.0
    %4129 = vmatprep.subr.mxu0 0.0
    %4130 = vmatpush1.msra.mxu0 0.0
    %4131 = vmatprep.subr.mxu0 0.0
    %4132 = vmatpush1.msra.mxu0 0.0
    %4133 = vmatprep.subr.mxu0 0.0
    %4134 = vmatpush1.msra.mxu0 0.0
    %4135 = vmatprep.subr.mxu0 0.0
    %4136 = vmatpush1.msra.mxu0 0.0
    %4137 = vmatprep.subr.mxu0 0.0
    %4138 = vmatpush1.msra.mxu0 0.0
    %4139 = vmatprep.subr.mxu0 0.0
    %4140 = vmatpush1.msra.mxu0 0.0
    %4141 = vmatprep.subr.mxu0 0.0
    %4142 = vmatpush1.msra.mxu0 0.0
    %4143 = vmatprep.subr.mxu0 0.0
    %4144 = vmatpush1.msra.mxu0 0.0
    %4145 = vmatprep.subr.mxu0 0.0
    %4146 = vmatpush1.msra.mxu0 0.0
    %4147 = vmatprep.subr.mxu0 0.0
    %4148 = vmatpush1.msra.mxu0 0.0
    %4149 = vmatprep.subr.mxu0 0.0
    %4150 = vmatpush1.msra.mxu0 0.0
    %4151 = vmatprep.subr.mxu0 0.0
    %4152 = vmatpush1.msra.mxu0 0.0
    %4153 = vmatprep.subr.mxu0 0.0
    %4154 = vmatpush1.msra.mxu0 0.0
    %4155 = vmatprep.subr.mxu0 0.0
    %4156 = vmatpush1.msra.mxu0 0.0
    %4157 = vmatprep.subr.mxu0 0.0
    %4158 = vmatpush1.msra.mxu0 0.0
    %4159 = vmatprep.subr.mxu0 0.0
    %4160 = vmatpush1.msra.mxu0 0.0
    %4161 = vmatprep.subr.mxu0 0.0
    %4162 = vmatpush1.msra.mxu0 0.0
    %4163 = vmatprep.subr.mxu0 0.0
    %4164 = vmatpush1.msra.mxu0 0.0
    %4165 = vmatprep.subr.mxu0 0.0
    %4166 = vmatpush1.msra.mxu0 0.0
    %4167 = vmatprep.subr.mxu0 0.0
    %4168 = vmatpush1.msra.mxu0 0.0
    %4169 = vmatprep.subr.mxu0 0.0
    %4170 = vmatpush1.msra.mxu0 0.0
    %4171 = vmatprep.mubr.f32.mxu0 0.0
    %4172 = vmatmul.mubr.f32.gmra.mrb[0].mxu0 %v4035
    %v4173 = vpop.f32.mrb[0].mxu0
    %v4174 = vadd.f32 %v593, %v4173
    %v4175 = vpop.f32.mrb[0].mxu0
    %4176 = vdwg.mxu0
    %4177 = vmatprep.subr.mxu0 0.0
    %4178 = vmatpush1.msra.mxu0 %v576
    %4179 = vmatprep.subr.mxu0 0.0
    %4180 = vmatpush1.msra.mxu0 %v577
    %4181 = vmatprep.subr.mxu0 0.0
    %4182 = vmatpush1.msra.mxu0 %v578
    %4183 = vmatprep.subr.mxu0 0.0
    %4184 = vmatpush1.msra.mxu0 %v579
    %4185 = vmatprep.subr.mxu0 0.0
    %4186 = vmatpush1.msra.mxu0 0.0
    %4187 = vmatprep.subr.mxu0 0.0
    %4188 = vmatpush1.msra.mxu0 0.0
    %4189 = vmatprep.subr.mxu0 0.0
    %4190 = vmatpush1.msra.mxu0 0.0
    %4191 = vmatprep.subr.mxu0 0.0
    %4192 = vmatpush1.msra.mxu0 0.0
    %4193 = vmatprep.subr.mxu0 0.0
    %4194 = vmatpush1.msra.mxu0 0.0
    %4195 = vmatprep.subr.mxu0 0.0
    %4196 = vmatpush1.msra.mxu0 0.0
    %4197 = vmatprep.subr.mxu0 0.0
    %4198 = vmatpush1.msra.mxu0 0.0
    %4199 = vmatprep.subr.mxu0 0.0
    %4200 = vmatpush1.msra.mxu0 0.0
    %4201 = vmatprep.subr.mxu0 0.0
    %4202 = vmatpush1.msra.mxu0 0.0
    %4203 = vmatprep.subr.mxu0 0.0
    %4204 = vmatpush1.msra.mxu0 0.0
    %4205 = vmatprep.subr.mxu0 0.0
    %4206 = vmatpush1.msra.mxu0 0.0
    %4207 = vmatprep.subr.mxu0 0.0
    %4208 = vmatpush1.msra.mxu0 0.0
    %4209 = vmatprep.subr.mxu0 0.0
    %4210 = vmatpush1.msra.mxu0 0.0
    %4211 = vmatprep.subr.mxu0 0.0
    %4212 = vmatpush1.msra.mxu0 0.0
    %4213 = vmatprep.subr.mxu0 0.0
    %4214 = vmatpush1.msra.mxu0 0.0
    %4215 = vmatprep.subr.mxu0 0.0
    %4216 = vmatpush1.msra.mxu0 0.0
    %4217 = vmatprep.subr.mxu0 0.0
    %4218 = vmatpush1.msra.mxu0 0.0
    %4219 = vmatprep.subr.mxu0 0.0
    %4220 = vmatpush1.msra.mxu0 0.0
    %4221 = vmatprep.subr.mxu0 0.0
    %4222 = vmatpush1.msra.mxu0 0.0
    %4223 = vmatprep.subr.mxu0 0.0
    %4224 = vmatpush1.msra.mxu0 0.0
    %4225 = vmatprep.subr.mxu0 0.0
    %4226 = vmatpush1.msra.mxu0 0.0
    %4227 = vmatprep.subr.mxu0 0.0
    %4228 = vmatpush1.msra.mxu0 0.0
    %4229 = vmatprep.subr.mxu0 0.0
    %4230 = vmatpush1.msra.mxu0 0.0
    %4231 = vmatprep.subr.mxu0 0.0
    %4232 = vmatpush1.msra.mxu0 0.0
    %4233 = vmatprep.subr.mxu0 0.0
    %4234 = vmatpush1.msra.mxu0 0.0
    %4235 = vmatprep.subr.mxu0 0.0
    %4236 = vmatpush1.msra.mxu0 0.0
    %4237 = vmatprep.subr.mxu0 0.0
    %4238 = vmatpush1.msra.mxu0 0.0
    %4239 = vmatprep.subr.mxu0 0.0
    %4240 = vmatpush1.msra.mxu0 0.0
    %4241 = vmatprep.mubr.f32.mxu0 0.0
    %4242 = vmatmul.mubr.f32.gmra.mrb[0].mxu0 %v4035
    %v4243 = vpop.f32.mrb[0].mxu0
    %v4244 = vadd.f32 %v601, %v4243
    %v4245 = vpop.f32.mrb[0].mxu0
    %4246 = vdwg.mxu0
    %v4248 = vrot.slane %v4104, 4
    %v4250 = vadd.f32 %v371, %v4248
    %v4251 = vxor.u32 %v4250, 2147483648
    %v4252 = vmul.f32 %v4251, 1.442695
    %v4253 = vpow.pop %v4252
    %v4254 = vadd.f32 %v4253, 1.0
    %v4255 = vrcp.pop %v4254
    %v4256 = vmul.f32 1.0, %v4255
    %v4258 = vrot.slane %v4174, 4
    %v4260 = vadd.f32 %v467, %v4258
    %v4261 = vxor.u32 %v4260, 2147483648
    %v4262 = vmul.f32 %v4261, 1.442695
    %v4263 = vpow.pop %v4262
    %v4264 = vadd.f32 %v4263, 1.0
    %v4265 = vrcp.pop %v4264
    %v4266 = vmul.f32 1.0, %v4265
    %v4268 = vrot.slane %v4244, 4
    %v4270 = vmul.f32 %v4256, %v4268
    %v4271 = vadd.f32 %v563, %v4270
    %v4272 = vtanh.pop %v4271
    %v4273 = vsub.f32 1.0, %v4266
    %v4274 = vmul.f32 %v4273, %v4272
    %v4275 = vrot.slane %v4030, 6
    %v4277 = vmul.f32 %v4266, %v4275
    %v4278 = vadd.f32 %v4274, %v4277
    %s4279 = scalar_lea.vmem [#allocation2], 28
    %4280 = vst.msk [vmem:[%s4279 - $0x4] sm:$0x30] %vm1335, %v4278
    %v4282 = vrot.slane %v4278, 4
    %v4283 = vsel %vm603, %v4282, 0
    %4285 = vmatprep.subr.mxu0 0.0
    %4286 = vmatpush1.msra.mxu0 %v566
    %4287 = vmatprep.subr.mxu0 0.0
    %4288 = vmatpush1.msra.mxu0 %v567
    %4289 = vmatprep.subr.mxu0 0.0
    %4290 = vmatpush1.msra.mxu0 %v568
    %4291 = vmatprep.subr.mxu0 0.0
    %4292 = vmatpush1.msra.mxu0 %v569
    %4293 = vmatprep.subr.mxu0 0.0
    %4294 = vmatpush1.msra.mxu0 0.0
    %4295 = vmatprep.subr.mxu0 0.0
    %4296 = vmatpush1.msra.mxu0 0.0
    %4297 = vmatprep.subr.mxu0 0.0
    %4298 = vmatpush1.msra.mxu0 0.0
    %4299 = vmatprep.subr.mxu0 0.0
    %4300 = vmatpush1.msra.mxu0 0.0
    %4301 = vmatprep.subr.mxu0 0.0
    %4302 = vmatpush1.msra.mxu0 0.0
    %4303 = vmatprep.subr.mxu0 0.0
    %4304 = vmatpush1.msra.mxu0 0.0
    %4305 = vmatprep.subr.mxu0 0.0
    %4306 = vmatpush1.msra.mxu0 0.0
    %4307 = vmatprep.subr.mxu0 0.0
    %4308 = vmatpush1.msra.mxu0 0.0
    %4309 = vmatprep.subr.mxu0 0.0
    %4310 = vmatpush1.msra.mxu0 0.0
    %4311 = vmatprep.subr.mxu0 0.0
    %4312 = vmatpush1.msra.mxu0 0.0
    %4313 = vmatprep.subr.mxu0 0.0
    %4314 = vmatpush1.msra.mxu0 0.0
    %4315 = vmatprep.subr.mxu0 0.0
    %4316 = vmatpush1.msra.mxu0 0.0
    %4317 = vmatprep.subr.mxu0 0.0
    %4318 = vmatpush1.msra.mxu0 0.0
    %4319 = vmatprep.subr.mxu0 0.0
    %4320 = vmatpush1.msra.mxu0 0.0
    %4321 = vmatprep.subr.mxu0 0.0
    %4322 = vmatpush1.msra.mxu0 0.0
    %4323 = vmatprep.subr.mxu0 0.0
    %4324 = vmatpush1.msra.mxu0 0.0
    %4325 = vmatprep.subr.mxu0 0.0
    %4326 = vmatpush1.msra.mxu0 0.0
    %4327 = vmatprep.subr.mxu0 0.0
    %4328 = vmatpush1.msra.mxu0 0.0
    %4329 = vmatprep.subr.mxu0 0.0
    %4330 = vmatpush1.msra.mxu0 0.0
    %4331 = vmatprep.subr.mxu0 0.0
    %4332 = vmatpush1.msra.mxu0 0.0
    %4333 = vmatprep.subr.mxu0 0.0
    %4334 = vmatpush1.msra.mxu0 0.0
    %4335 = vmatprep.subr.mxu0 0.0
    %4336 = vmatpush1.msra.mxu0 0.0
    %4337 = vmatprep.subr.mxu0 0.0
    %4338 = vmatpush1.msra.mxu0 0.0
    %4339 = vmatprep.subr.mxu0 0.0
    %4340 = vmatpush1.msra.mxu0 0.0
    %4341 = vmatprep.subr.mxu0 0.0
    %4342 = vmatpush1.msra.mxu0 0.0
    %4343 = vmatprep.subr.mxu0 0.0
    %4344 = vmatpush1.msra.mxu0 0.0
    %4345 = vmatprep.subr.mxu0 0.0
    %4346 = vmatpush1.msra.mxu0 0.0
    %4347 = vmatprep.subr.mxu0 0.0
    %4348 = vmatpush1.msra.mxu0 0.0
    %4349 = vmatprep.mubr.f32.mxu0 0.0
    %4350 = vmatmul.mubr.f32.gmra.mrb[0].mxu0 %v4283
    %v4351 = vpop.f32.mrb[0].mxu0
    %v4352 = vadd.f32 %v585, %v4351
    %v4353 = vpop.f32.mrb[0].mxu0
    %4354 = vdwg.mxu0
    %4355 = vmatprep.subr.mxu0 0.0
    %4356 = vmatpush1.msra.mxu0 %v571
    %4357 = vmatprep.subr.mxu0 0.0
    %4358 = vmatpush1.msra.mxu0 %v572
    %4359 = vmatprep.subr.mxu0 0.0
    %4360 = vmatpush1.msra.mxu0 %v573
    %4361 = vmatprep.subr.mxu0 0.0
    %4362 = vmatpush1.msra.mxu0 %v574
    %4363 = vmatprep.subr.mxu0 0.0
    %4364 = vmatpush1.msra.mxu0 0.0
    %4365 = vmatprep.subr.mxu0 0.0
    %4366 = vmatpush1.msra.mxu0 0.0
    %4367 = vmatprep.subr.mxu0 0.0
    %4368 = vmatpush1.msra.mxu0 0.0
    %4369 = vmatprep.subr.mxu0 0.0
    %4370 = vmatpush1.msra.mxu0 0.0
    %4371 = vmatprep.subr.mxu0 0.0
    %4372 = vmatpush1.msra.mxu0 0.0
    %4373 = vmatprep.subr.mxu0 0.0
    %4374 = vmatpush1.msra.mxu0 0.0
    %4375 = vmatprep.subr.mxu0 0.0
    %4376 = vmatpush1.msra.mxu0 0.0
    %4377 = vmatprep.subr.mxu0 0.0
    %4378 = vmatpush1.msra.mxu0 0.0
    %4379 = vmatprep.subr.mxu0 0.0
    %4380 = vmatpush1.msra.mxu0 0.0
    %4381 = vmatprep.subr.mxu0 0.0
    %4382 = vmatpush1.msra.mxu0 0.0
    %4383 = vmatprep.subr.mxu0 0.0
    %4384 = vmatpush1.msra.mxu0 0.0
    %4385 = vmatprep.subr.mxu0 0.0
    %4386 = vmatpush1.msra.mxu0 0.0
    %4387 = vmatprep.subr.mxu0 0.0
    %4388 = vmatpush1.msra.mxu0 0.0
    %4389 = vmatprep.subr.mxu0 0.0
    %4390 = vmatpush1.msra.mxu0 0.0
    %4391 = vmatprep.subr.mxu0 0.0
    %4392 = vmatpush1.msra.mxu0 0.0
    %4393 = vmatprep.subr.mxu0 0.0
    %4394 = vmatpush1.msra.mxu0 0.0
    %4395 = vmatprep.subr.mxu0 0.0
    %4396 = vmatpush1.msra.mxu0 0.0
    %4397 = vmatprep.subr.mxu0 0.0
    %4398 = vmatpush1.msra.mxu0 0.0
    %4399 = vmatprep.subr.mxu0 0.0
    %4400 = vmatpush1.msra.mxu0 0.0
    %4401 = vmatprep.subr.mxu0 0.0
    %4402 = vmatpush1.msra.mxu0 0.0
    %4403 = vmatprep.subr.mxu0 0.0
    %4404 = vmatpush1.msra.mxu0 0.0
    %4405 = vmatprep.subr.mxu0 0.0
    %4406 = vmatpush1.msra.mxu0 0.0
    %4407 = vmatprep.subr.mxu0 0.0
    %4408 = vmatpush1.msra.mxu0 0.0
    %4409 = vmatprep.subr.mxu0 0.0
    %4410 = vmatpush1.msra.mxu0 0.0
    %4411 = vmatprep.subr.mxu0 0.0
    %4412 = vmatpush1.msra.mxu0 0.0
    %4413 = vmatprep.subr.mxu0 0.0
    %4414 = vmatpush1.msra.mxu0 0.0
    %4415 = vmatprep.subr.mxu0 0.0
    %4416 = vmatpush1.msra.mxu0 0.0
    %4417 = vmatprep.subr.mxu0 0.0
    %4418 = vmatpush1.msra.mxu0 0.0
    %4419 = vmatprep.mubr.f32.mxu0 0.0
    %4420 = vmatmul.mubr.f32.gmra.mrb[0].mxu0 %v4283
    %v4421 = vpop.f32.mrb[0].mxu0
    %v4422 = vadd.f32 %v593, %v4421
    %v4423 = vpop.f32.mrb[0].mxu0
    %4424 = vdwg.mxu0
    %4425 = vmatprep.subr.mxu0 0.0
    %4426 = vmatpush1.msra.mxu0 %v576
    %4427 = vmatprep.subr.mxu0 0.0
    %4428 = vmatpush1.msra.mxu0 %v577
    %4429 = vmatprep.subr.mxu0 0.0
    %4430 = vmatpush1.msra.mxu0 %v578
    %4431 = vmatprep.subr.mxu0 0.0
    %4432 = vmatpush1.msra.mxu0 %v579
    %4433 = vmatprep.subr.mxu0 0.0
    %4434 = vmatpush1.msra.mxu0 0.0
    %4435 = vmatprep.subr.mxu0 0.0
    %4436 = vmatpush1.msra.mxu0 0.0
    %4437 = vmatprep.subr.mxu0 0.0
    %4438 = vmatpush1.msra.mxu0 0.0
    %4439 = vmatprep.subr.mxu0 0.0
    %4440 = vmatpush1.msra.mxu0 0.0
    %4441 = vmatprep.subr.mxu0 0.0
    %4442 = vmatpush1.msra.mxu0 0.0
    %4443 = vmatprep.subr.mxu0 0.0
    %4444 = vmatpush1.msra.mxu0 0.0
    %4445 = vmatprep.subr.mxu0 0.0
    %4446 = vmatpush1.msra.mxu0 0.0
    %4447 = vmatprep.subr.mxu0 0.0
    %4448 = vmatpush1.msra.mxu0 0.0
    %4449 = vmatprep.subr.mxu0 0.0
    %4450 = vmatpush1.msra.mxu0 0.0
    %4451 = vmatprep.subr.mxu0 0.0
    %4452 = vmatpush1.msra.mxu0 0.0
    %4453 = vmatprep.subr.mxu0 0.0
    %4454 = vmatpush1.msra.mxu0 0.0
    %4455 = vmatprep.subr.mxu0 0.0
    %4456 = vmatpush1.msra.mxu0 0.0
    %4457 = vmatprep.subr.mxu0 0.0
    %4458 = vmatpush1.msra.mxu0 0.0
    %4459 = vmatprep.subr.mxu0 0.0
    %4460 = vmatpush1.msra.mxu0 0.0
    %4461 = vmatprep.subr.mxu0 0.0
    %4462 = vmatpush1.msra.mxu0 0.0
    %4463 = vmatprep.subr.mxu0 0.0
    %4464 = vmatpush1.msra.mxu0 0.0
    %4465 = vmatprep.subr.mxu0 0.0
    %4466 = vmatpush1.msra.mxu0 0.0
    %4467 = vmatprep.subr.mxu0 0.0
    %4468 = vmatpush1.msra.mxu0 0.0
    %4469 = vmatprep.subr.mxu0 0.0
    %4470 = vmatpush1.msra.mxu0 0.0
    %4471 = vmatprep.subr.mxu0 0.0
    %4472 = vmatpush1.msra.mxu0 0.0
    %4473 = vmatprep.subr.mxu0 0.0
    %4474 = vmatpush1.msra.mxu0 0.0
    %4475 = vmatprep.subr.mxu0 0.0
    %4476 = vmatpush1.msra.mxu0 0.0
    %4477 = vmatprep.subr.mxu0 0.0
    %4478 = vmatpush1.msra.mxu0 0.0
    %4479 = vmatprep.subr.mxu0 0.0
    %4480 = vmatpush1.msra.mxu0 0.0
    %4481 = vmatprep.subr.mxu0 0.0
    %4482 = vmatpush1.msra.mxu0 0.0
    %4483 = vmatprep.subr.mxu0 0.0
    %4484 = vmatpush1.msra.mxu0 0.0
    %4485 = vmatprep.subr.mxu0 0.0
    %4486 = vmatpush1.msra.mxu0 0.0
    %4487 = vmatprep.subr.mxu0 0.0
    %4488 = vmatpush1.msra.mxu0 0.0
    %4489 = vmatprep.mubr.f32.mxu0 0.0
    %4490 = vmatmul.mubr.f32.gmra.mrb[0].mxu0 %v4283
    %v4491 = vpop.f32.mrb[0].mxu0
    %v4492 = vadd.f32 %v601, %v4491
    %v4493 = vpop.f32.mrb[0].mxu0
    %4494 = vdwg.mxu0
    %v4496 = vrot.slane %v4352, 2
    %v4498 = vadd.f32 %v371, %v4496
    %v4499 = vxor.u32 %v4498, 2147483648
    %v4500 = vmul.f32 %v4499, 1.442695
    %v4501 = vpow.pop %v4500
    %v4502 = vadd.f32 %v4501, 1.0
    %v4503 = vrcp.pop %v4502
    %v4504 = vmul.f32 1.0, %v4503
    %v4506 = vrot.slane %v4422, 2
    %v4508 = vadd.f32 %v467, %v4506
    %v4509 = vxor.u32 %v4508, 2147483648
    %v4510 = vmul.f32 %v4509, 1.442695
    %v4511 = vpow.pop %v4510
    %v4512 = vadd.f32 %v4511, 1.0
    %v4513 = vrcp.pop %v4512
    %v4514 = vmul.f32 1.0, %v4513
    %v4516 = vrot.slane %v4492, 2
    %v4518 = vmul.f32 %v4504, %v4516
    %v4519 = vadd.f32 %v563, %v4518
    %v4520 = vtanh.pop %v4519
    %v4521 = vsub.f32 1.0, %v4514
    %v4522 = vmul.f32 %v4521, %v4520
    %v4523 = vrot.slane %v4278, 6
    %v4525 = vmul.f32 %v4514, %v4523
    %v4526 = vadd.f32 %v4522, %v4525
    %s4527 = scalar_lea.vmem [#allocation2], 30
    %4528 = vst.msk [vmem:[%s4527 - $0x6] sm:$0xc0] %vm1584, %v4526
    %v4529 = vld [vmem:[#allocation2] sm:$0x3]
    %v4530 = vld [vmem:[#allocation2 + $0x2] sm:$0x3]
    %v4531 = vld [vmem:[#allocation2 + $0x4] sm:$0x3]
    %v4532 = vld [vmem:[#allocation2 + $0x6] sm:$0x3]
    %v4533 = vld [vmem:[#allocation2 + $0x8] sm:$0x3]
    %v4534 = vld [vmem:[#allocation2 + $0xa] sm:$0x3]
    %v4535 = vld [vmem:[#allocation2 + $0xc] sm:$0x3]
    %v4536 = vld [vmem:[#allocation2 + $0xe] sm:$0x3]
    %v4537 = vld [vmem:[#allocation2 + $0x10] sm:$0x3]
    %v4538 = vld [vmem:[#allocation2 + $0x12] sm:$0x3]
    %v4539 = vld [vmem:[#allocation2 + $0x14] sm:$0x3]
    %v4540 = vld [vmem:[#allocation2 + $0x16] sm:$0x3]
    %v4541 = vld [vmem:[#allocation2 + $0x18] sm:$0x3]
    %v4542 = vld [vmem:[#allocation2 + $0x1a] sm:$0x3]
    %v4543 = vld [vmem:[#allocation2 + $0x1c] sm:$0x3]
    %v4544 = vld [vmem:[#allocation2 + $0x1e] sm:$0x3]
    %v4545 = vtanh.pop %v4529
    %v4546 = vtanh.pop %v4530
    %v4547 = vtanh.pop %v4531
    %v4548 = vtanh.pop %v4532
    %v4549 = vtanh.pop %v4533
    %v4550 = vtanh.pop %v4534
    %v4551 = vtanh.pop %v4535
    %v4552 = vtanh.pop %v4536
    %v4553 = vtanh.pop %v4537
    %v4554 = vtanh.pop %v4538
    %v4555 = vtanh.pop %v4539
    %v4556 = vtanh.pop %v4540
    %v4557 = vtanh.pop %v4541
    %v4558 = vtanh.pop %v4542
    %v4559 = vtanh.pop %v4543
    %v4560 = vtanh.pop %v4544
    %v4561 = vld [vmem:[%s9] sm:$0x1]
    %v4562 = vld [vmem:[%s10] sm:$0x1]
    %v4579 = vcombine.low %v4545, %v4546
    %v4580 = vcombine.low %v4547, %v4548
    %v4582 = vunpack.c.l.s4 1983009808
    %v4583 = vunpack.c.0.s8 %v4582
    %v4584 = vlaneseq
    %v4585 = vshrl.u32 %v4584, 7
    %v4586 = vsub.s32 %v4583, %v4585
    %v4587 = vrot.slane %v4579, %v4586
    %v4589 = vunpack.c.l.s4 1983009808
    %v4590 = vunpack.c.0.s8 %v4589
    %v4591 = vlaneseq
    %v4592 = vshrl.u32 %v4591, 7
    %v4593 = vsub.s32 %v4590, %v4592
    %v4594 = vrot.slane %v4580, %v4593
    %v4595 = vcombine.low %v4587, %v4594
    %v4596 = vcombine.low %v4549, %v4550
    %v4597 = vcombine.low %v4551, %v4552
    %v4599 = vunpack.c.l.s4 1983009808
    %v4600 = vunpack.c.0.s8 %v4599
    %v4601 = vlaneseq
    %v4602 = vshrl.u32 %v4601, 7
    %v4603 = vsub.s32 %v4600, %v4602
    %v4604 = vrot.slane %v4596, %v4603
    %v4606 = vunpack.c.l.s4 1983009808
    %v4607 = vunpack.c.0.s8 %v4606
    %v4608 = vlaneseq
    %v4609 = vshrl.u32 %v4608, 7
    %v4610 = vsub.s32 %v4607, %v4609
    %v4611 = vrot.slane %v4597, %v4610
    %v4612 = vcombine.low %v4604, %v4611
    %v4613 = vcombine.low %v4553, %v4554
    %v4614 = vcombine.low %v4555, %v4556
    %v4616 = vunpack.c.l.s4 1983009808
    %v4617 = vunpack.c.0.s8 %v4616
    %v4618 = vlaneseq
    %v4619 = vshrl.u32 %v4618, 7
    %v4620 = vsub.s32 %v4617, %v4619
    %v4621 = vrot.slane %v4613, %v4620
    %v4623 = vunpack.c.l.s4 1983009808
    %v4624 = vunpack.c.0.s8 %v4623
    %v4625 = vlaneseq
    %v4626 = vshrl.u32 %v4625, 7
    %v4627 = vsub.s32 %v4624, %v4626
    %v4628 = vrot.slane %v4614, %v4627
    %v4629 = vcombine.low %v4621, %v4628
    %v4630 = vcombine.low %v4557, %v4558
    %v4631 = vcombine.low %v4559, %v4560
    %v4633 = vunpack.c.l.s4 1983009808
    %v4634 = vunpack.c.0.s8 %v4633
    %v4635 = vlaneseq
    %v4636 = vshrl.u32 %v4635, 7
    %v4637 = vsub.s32 %v4634, %v4636
    %v4638 = vrot.slane %v4630, %v4637
    %v4640 = vunpack.c.l.s4 1983009808
    %v4641 = vunpack.c.0.s8 %v4640
    %v4642 = vlaneseq
    %v4643 = vshrl.u32 %v4642, 7
    %v4644 = vsub.s32 %v4641, %v4643
    %v4645 = vrot.slane %v4631, %v4644
    %v4646 = vcombine.low %v4638, %v4645
    %v4651 = vsel %vm603, %v4595, 0.0
    %4652 = vadd.xlane.f32.xlu0 %v4651
    %v4653 = vpop.xlane.xlu0 %4652
    %v4654 = vsel %vm603, %v4612, 0.0
    %4655 = vadd.xlane.f32.xlu0 %v4654
    %v4656 = vpop.xlane.xlu0 %4655
    %v4657 = vsel %vm603, %v4629, 0.0
    %4658 = vadd.xlane.f32.xlu0 %v4657
    %v4659 = vpop.xlane.xlu0 %4658
    %v4660 = vsel %vm603, %v4646, 0.0
    %4661 = vadd.xlane.f32.xlu0 %v4660
    %v4662 = vpop.xlane.xlu0 %4661
    %v4663 = vrcp.pop 32.0
    %v4664 = vmul.f32 %v4653, %v4663
    %v4665 = vmul.f32 %v4656, %v4663
    %v4666 = vmul.f32 %v4659, %v4663
    %v4667 = vmul.f32 %v4662, %v4663
    %v4673 = vunpack.c.l.s4 269488144
    %v4674 = vunpack.c.0.s8 %v4673
    %v4675 = vlaneseq
    %v4676 = vshrl.u32 %v4675, 7
    %v4677 = vsub.s32 %v4674, %v4676
    %v4678 = vrot.slane %v4664, %v4677
    %v4680 = vunpack.c.l.s4 842150450
    %v4681 = vunpack.c.0.s8 %v4680
    %v4682 = vlaneseq
    %v4683 = vshrl.u32 %v4682, 7
    %v4684 = vsub.s32 %v4681, %v4683
    %v4685 = vrot.slane %v4664, %v4684
    %v4687 = vunpack.c.l.s4 1414812756
    %v4688 = vunpack.c.0.s8 %v4687
    %v4689 = vlaneseq
    %v4690 = vshrl.u32 %v4689, 7
    %v4691 = vsub.s32 %v4688, %v4690
    %v4692 = vrot.slane %v4664, %v4691
    %v4694 = vunpack.c.l.s4 1987475062
    %v4695 = vunpack.c.0.s8 %v4694
    %v4696 = vlaneseq
    %v4697 = vshrl.u32 %v4696, 7
    %v4698 = vsub.s32 %v4695, %v4697
    %v4699 = vrot.slane %v4664, %v4698
    %v4701 = vunpack.c.l.s4 269488144
    %v4702 = vunpack.c.0.s8 %v4701
    %v4703 = vlaneseq
    %v4704 = vshrl.u32 %v4703, 7
    %v4705 = vsub.s32 %v4702, %v4704
    %v4706 = vrot.slane %v4665, %v4705
    %v4708 = vunpack.c.l.s4 842150450
    %v4709 = vunpack.c.0.s8 %v4708
    %v4710 = vlaneseq
    %v4711 = vshrl.u32 %v4710, 7
    %v4712 = vsub.s32 %v4709, %v4711
    %v4713 = vrot.slane %v4665, %v4712
    %v4715 = vunpack.c.l.s4 1414812756
    %v4716 = vunpack.c.0.s8 %v4715
    %v4717 = vlaneseq
    %v4718 = vshrl.u32 %v4717, 7
    %v4719 = vsub.s32 %v4716, %v4718
    %v4720 = vrot.slane %v4665, %v4719
    %v4722 = vunpack.c.l.s4 1987475062
    %v4723 = vunpack.c.0.s8 %v4722
    %v4724 = vlaneseq
    %v4725 = vshrl.u32 %v4724, 7
    %v4726 = vsub.s32 %v4723, %v4725
    %v4727 = vrot.slane %v4665, %v4726
    %v4729 = vunpack.c.l.s4 269488144
    %v4730 = vunpack.c.0.s8 %v4729
    %v4731 = vlaneseq
    %v4732 = vshrl.u32 %v4731, 7
    %v4733 = vsub.s32 %v4730, %v4732
    %v4734 = vrot.slane %v4666, %v4733
    %v4736 = vunpack.c.l.s4 842150450
    %v4737 = vunpack.c.0.s8 %v4736
    %v4738 = vlaneseq
    %v4739 = vshrl.u32 %v4738, 7
    %v4740 = vsub.s32 %v4737, %v4739
    %v4741 = vrot.slane %v4666, %v4740
    %v4743 = vunpack.c.l.s4 1414812756
    %v4744 = vunpack.c.0.s8 %v4743
    %v4745 = vlaneseq
    %v4746 = vshrl.u32 %v4745, 7
    %v4747 = vsub.s32 %v4744, %v4746
    %v4748 = vrot.slane %v4666, %v4747
    %v4750 = vunpack.c.l.s4 1987475062
    %v4751 = vunpack.c.0.s8 %v4750
    %v4752 = vlaneseq
    %v4753 = vshrl.u32 %v4752, 7
    %v4754 = vsub.s32 %v4751, %v4753
    %v4755 = vrot.slane %v4666, %v4754
    %v4757 = vunpack.c.l.s4 269488144
    %v4758 = vunpack.c.0.s8 %v4757
    %v4759 = vlaneseq
    %v4760 = vshrl.u32 %v4759, 7
    %v4761 = vsub.s32 %v4758, %v4760
    %v4762 = vrot.slane %v4667, %v4761
    %v4764 = vunpack.c.l.s4 842150450
    %v4765 = vunpack.c.0.s8 %v4764
    %v4766 = vlaneseq
    %v4767 = vshrl.u32 %v4766, 7
    %v4768 = vsub.s32 %v4765, %v4767
    %v4769 = vrot.slane %v4667, %v4768
    %v4771 = vunpack.c.l.s4 1414812756
    %v4772 = vunpack.c.0.s8 %v4771
    %v4773 = vlaneseq
    %v4774 = vshrl.u32 %v4773, 7
    %v4775 = vsub.s32 %v4772, %v4774
    %v4776 = vrot.slane %v4667, %v4775
    %v4778 = vunpack.c.l.s4 1987475062
    %v4779 = vunpack.c.0.s8 %v4778
    %v4780 = vlaneseq
    %v4781 = vshrl.u32 %v4780, 7
    %v4782 = vsub.s32 %v4779, %v4781
    %v4783 = vrot.slane %v4667, %v4782
    %v4800 = vsub.f32 %v4545, %v4678
    %v4801 = vsub.f32 %v4546, %v4685
    %v4802 = vsub.f32 %v4547, %v4692
    %v4803 = vsub.f32 %v4548, %v4699
    %v4804 = vsub.f32 %v4549, %v4706
    %v4805 = vsub.f32 %v4550, %v4713
    %v4806 = vsub.f32 %v4551, %v4720
    %v4807 = vsub.f32 %v4552, %v4727
    %v4808 = vsub.f32 %v4553, %v4734
    %v4809 = vsub.f32 %v4554, %v4741
    %v4810 = vsub.f32 %v4555, %v4748
    %v4811 = vsub.f32 %v4556, %v4755
    %v4812 = vsub.f32 %v4557, %v4762
    %v4813 = vsub.f32 %v4558, %v4769
    %v4814 = vsub.f32 %v4559, %v4776
    %v4815 = vsub.f32 %v4560, %v4783
    %v4816 = vmul.f32 %v4800, %v4800
    %v4817 = vmul.f32 %v4801, %v4801
    %v4818 = vmul.f32 %v4802, %v4802
    %v4819 = vmul.f32 %v4803, %v4803
    %v4820 = vmul.f32 %v4804, %v4804
    %v4821 = vmul.f32 %v4805, %v4805
    %v4822 = vmul.f32 %v4806, %v4806
    %v4823 = vmul.f32 %v4807, %v4807
    %v4824 = vmul.f32 %v4808, %v4808
    %v4825 = vmul.f32 %v4809, %v4809
    %v4826 = vmul.f32 %v4810, %v4810
    %v4827 = vmul.f32 %v4811, %v4811
    %v4828 = vmul.f32 %v4812, %v4812
    %v4829 = vmul.f32 %v4813, %v4813
    %v4830 = vmul.f32 %v4814, %v4814
    %v4831 = vmul.f32 %v4815, %v4815
    %v4848 = vcombine.low %v4816, %v4817
    %v4849 = vcombine.low %v4818, %v4819
    %v4851 = vunpack.c.l.s4 1983009808
    %v4852 = vunpack.c.0.s8 %v4851
    %v4853 = vlaneseq
    %v4854 = vshrl.u32 %v4853, 7
    %v4855 = vsub.s32 %v4852, %v4854
    %v4856 = vrot.slane %v4848, %v4855
    %v4858 = vunpack.c.l.s4 1983009808
    %v4859 = vunpack.c.0.s8 %v4858
    %v4860 = vlaneseq
    %v4861 = vshrl.u32 %v4860, 7
    %v4862 = vsub.s32 %v4859, %v4861
    %v4863 = vrot.slane %v4849, %v4862
    %v4864 = vcombine.low %v4856, %v4863
    %v4865 = vcombine.low %v4820, %v4821
    %v4866 = vcombine.low %v4822, %v4823
    %v4868 = vunpack.c.l.s4 1983009808
    %v4869 = vunpack.c.0.s8 %v4868
    %v4870 = vlaneseq
    %v4871 = vshrl.u32 %v4870, 7
    %v4872 = vsub.s32 %v4869, %v4871
    %v4873 = vrot.slane %v4865, %v4872
    %v4875 = vunpack.c.l.s4 1983009808
    %v4876 = vunpack.c.0.s8 %v4875
    %v4877 = vlaneseq
    %v4878 = vshrl.u32 %v4877, 7
    %v4879 = vsub.s32 %v4876, %v4878
    %v4880 = vrot.slane %v4866, %v4879
    %v4881 = vcombine.low %v4873, %v4880
    %v4882 = vcombine.low %v4824, %v4825
    %v4883 = vcombine.low %v4826, %v4827
    %v4885 = vunpack.c.l.s4 1983009808
    %v4886 = vunpack.c.0.s8 %v4885
    %v4887 = vlaneseq
    %v4888 = vshrl.u32 %v4887, 7
    %v4889 = vsub.s32 %v4886, %v4888
    %v4890 = vrot.slane %v4882, %v4889
    %v4892 = vunpack.c.l.s4 1983009808
    %v4893 = vunpack.c.0.s8 %v4892
    %v4894 = vlaneseq
    %v4895 = vshrl.u32 %v4894, 7
    %v4896 = vsub.s32 %v4893, %v4895
    %v4897 = vrot.slane %v4883, %v4896
    %v4898 = vcombine.low %v4890, %v4897
    %v4899 = vcombine.low %v4828, %v4829
    %v4900 = vcombine.low %v4830, %v4831
    %v4902 = vunpack.c.l.s4 1983009808
    %v4903 = vunpack.c.0.s8 %v4902
    %v4904 = vlaneseq
    %v4905 = vshrl.u32 %v4904, 7
    %v4906 = vsub.s32 %v4903, %v4905
    %v4907 = vrot.slane %v4899, %v4906
    %v4909 = vunpack.c.l.s4 1983009808
    %v4910 = vunpack.c.0.s8 %v4909
    %v4911 = vlaneseq
    %v4912 = vshrl.u32 %v4911, 7
    %v4913 = vsub.s32 %v4910, %v4912
    %v4914 = vrot.slane %v4900, %v4913
    %v4915 = vcombine.low %v4907, %v4914
    %v4920 = vsel %vm603, %v4864, 0.0
    %4921 = vadd.xlane.f32.xlu0 %v4920
    %v4922 = vpop.xlane.xlu0 %4921
    %v4923 = vsel %vm603, %v4881, 0.0
    %4924 = vadd.xlane.f32.xlu0 %v4923
    %v4925 = vpop.xlane.xlu0 %4924
    %v4926 = vsel %vm603, %v4898, 0.0
    %4927 = vadd.xlane.f32.xlu0 %v4926
    %v4928 = vpop.xlane.xlu0 %4927
    %v4929 = vsel %vm603, %v4915, 0.0
    %4930 = vadd.xlane.f32.xlu0 %v4929
    %v4931 = vpop.xlane.xlu0 %4930
    %v4932 = vmul.f32 %v4922, %v4663
    %v4933 = vmul.f32 %v4925, %v4663
    %v4934 = vmul.f32 %v4928, %v4663
    %v4935 = vmul.f32 %v4931, %v4663
    %v4936 = vadd.f32 %v4932, 1e-05
    %v4937 = vadd.f32 %v4933, 1e-05
    %v4938 = vadd.f32 %v4934, 1e-05
    %v4939 = vadd.f32 %v4935, 1e-05
    %v4940 = vrsqrt.pop %v4936
    %v4941 = vrsqrt.pop %v4937
    %v4942 = vrsqrt.pop %v4938
    %v4943 = vrsqrt.pop %v4939
    %v4949 = vunpack.c.l.s4 269488144
    %v4950 = vunpack.c.0.s8 %v4949
    %v4951 = vlaneseq
    %v4952 = vshrl.u32 %v4951, 7
    %v4953 = vsub.s32 %v4950, %v4952
    %v4954 = vrot.slane %v4940, %v4953
    %v4956 = vunpack.c.l.s4 842150450
    %v4957 = vunpack.c.0.s8 %v4956
    %v4958 = vlaneseq
    %v4959 = vshrl.u32 %v4958, 7
    %v4960 = vsub.s32 %v4957, %v4959
    %v4961 = vrot.slane %v4940, %v4960
    %v4963 = vunpack.c.l.s4 1414812756
    %v4964 = vunpack.c.0.s8 %v4963
    %v4965 = vlaneseq
    %v4966 = vshrl.u32 %v4965, 7
    %v4967 = vsub.s32 %v4964, %v4966
    %v4968 = vrot.slane %v4940, %v4967
    %v4970 = vunpack.c.l.s4 1987475062
    %v4971 = vunpack.c.0.s8 %v4970
    %v4972 = vlaneseq
    %v4973 = vshrl.u32 %v4972, 7
    %v4974 = vsub.s32 %v4971, %v4973
    %v4975 = vrot.slane %v4940, %v4974
    %v4977 = vunpack.c.l.s4 269488144
    %v4978 = vunpack.c.0.s8 %v4977
    %v4979 = vlaneseq
    %v4980 = vshrl.u32 %v4979, 7
    %v4981 = vsub.s32 %v4978, %v4980
    %v4982 = vrot.slane %v4941, %v4981
    %v4984 = vunpack.c.l.s4 842150450
    %v4985 = vunpack.c.0.s8 %v4984
    %v4986 = vlaneseq
    %v4987 = vshrl.u32 %v4986, 7
    %v4988 = vsub.s32 %v4985, %v4987
    %v4989 = vrot.slane %v4941, %v4988
    %v4991 = vunpack.c.l.s4 1414812756
    %v4992 = vunpack.c.0.s8 %v4991
    %v4993 = vlaneseq
    %v4994 = vshrl.u32 %v4993, 7
    %v4995 = vsub.s32 %v4992, %v4994
    %v4996 = vrot.slane %v4941, %v4995
    %v4998 = vunpack.c.l.s4 1987475062
    %v4999 = vunpack.c.0.s8 %v4998
    %v5000 = vlaneseq
    %v5001 = vshrl.u32 %v5000, 7
    %v5002 = vsub.s32 %v4999, %v5001
    %v5003 = vrot.slane %v4941, %v5002
    %v5005 = vunpack.c.l.s4 269488144
    %v5006 = vunpack.c.0.s8 %v5005
    %v5007 = vlaneseq
    %v5008 = vshrl.u32 %v5007, 7
    %v5009 = vsub.s32 %v5006, %v5008
    %v5010 = vrot.slane %v4942, %v5009
    %v5012 = vunpack.c.l.s4 842150450
    %v5013 = vunpack.c.0.s8 %v5012
    %v5014 = vlaneseq
    %v5015 = vshrl.u32 %v5014, 7
    %v5016 = vsub.s32 %v5013, %v5015
    %v5017 = vrot.slane %v4942, %v5016
    %v5019 = vunpack.c.l.s4 1414812756
    %v5020 = vunpack.c.0.s8 %v5019
    %v5021 = vlaneseq
    %v5022 = vshrl.u32 %v5021, 7
    %v5023 = vsub.s32 %v5020, %v5022
    %v5024 = vrot.slane %v4942, %v5023
    %v5026 = vunpack.c.l.s4 1987475062
    %v5027 = vunpack.c.0.s8 %v5026
    %v5028 = vlaneseq
    %v5029 = vshrl.u32 %v5028, 7
    %v5030 = vsub.s32 %v5027, %v5029
    %v5031 = vrot.slane %v4942, %v5030
    %v5033 = vunpack.c.l.s4 269488144
    %v5034 = vunpack.c.0.s8 %v5033
    %v5035 = vlaneseq
    %v5036 = vshrl.u32 %v5035, 7
    %v5037 = vsub.s32 %v5034, %v5036
    %v5038 = vrot.slane %v4943, %v5037
    %v5040 = vunpack.c.l.s4 842150450
    %v5041 = vunpack.c.0.s8 %v5040
    %v5042 = vlaneseq
    %v5043 = vshrl.u32 %v5042, 7
    %v5044 = vsub.s32 %v5041, %v5043
    %v5045 = vrot.slane %v4943, %v5044
    %v5047 = vunpack.c.l.s4 1414812756
    %v5048 = vunpack.c.0.s8 %v5047
    %v5049 = vlaneseq
    %v5050 = vshrl.u32 %v5049, 7
    %v5051 = vsub.s32 %v5048, %v5050
    %v5052 = vrot.slane %v4943, %v5051
    %v5054 = vunpack.c.l.s4 1987475062
    %v5055 = vunpack.c.0.s8 %v5054
    %v5056 = vlaneseq
    %v5057 = vshrl.u32 %v5056, 7
    %v5058 = vsub.s32 %v5055, %v5057
    %v5059 = vrot.slane %v4943, %v5058
    %v5076 = vmul.f32 %v4800, %v4954
    %v5077 = vmul.f32 %v4801, %v4961
    %v5078 = vmul.f32 %v4802, %v4968
    %v5079 = vmul.f32 %v4803, %v4975
    %v5080 = vmul.f32 %v4804, %v4982
    %v5081 = vmul.f32 %v4805, %v4989
    %v5082 = vmul.f32 %v4806, %v4996
    %v5083 = vmul.f32 %v4807, %v5003
    %v5084 = vmul.f32 %v4808, %v5010
    %v5085 = vmul.f32 %v4809, %v5017
    %v5086 = vmul.f32 %v4810, %v5024
    %v5087 = vmul.f32 %v4811, %v5031
    %v5088 = vmul.f32 %v4812, %v5038
    %v5089 = vmul.f32 %v4813, %v5045
    %v5090 = vmul.f32 %v4814, %v5052
    %v5091 = vmul.f32 %v4815, %v5059
    %v5093 = vlaneseq
    %v5094 = vshrl.u32 %v5093, 7
    %v5095 = vsub.s32 0, %v5094
    %v5096 = vrot.slane %v4561, %v5095
    %v5097 = vcombine.high %v5096, %v5096
    %v5099 = vunpack.c.l.s4 1983009808
    %v5100 = vunpack.c.0.s8 %v5099
    %v5101 = vlaneseq
    %v5102 = vshrl.u32 %v5101, 7
    %v5103 = vsub.s32 %v5100, %v5102
    %v5104 = vrot.slane %v5096, %v5103
    %v5106 = vunpack.c.l.s4 1983009808
    %v5107 = vunpack.c.0.s8 %v5106
    %v5108 = vlaneseq
    %v5109 = vshrl.u32 %v5108, 7
    %v5110 = vsub.s32 %v5107, %v5109
    %v5111 = vrot.slane %v5097, %v5110
    %v5112 = vcombine.high %v5104, %v5104
    %v5113 = vcombine.high %v5111, %v5111
    %v5118 = vmul.f32 %v5076, %v5104
    %v5119 = vmul.f32 %v5077, %v5112
    %v5120 = vmul.f32 %v5078, %v5111
    %v5121 = vmul.f32 %v5079, %v5113
    %v5122 = vmul.f32 %v5080, %v5104
    %v5123 = vmul.f32 %v5081, %v5112
    %v5124 = vmul.f32 %v5082, %v5111
    %v5125 = vmul.f32 %v5083, %v5113
    %v5126 = vmul.f32 %v5084, %v5104
    %v5127 = vmul.f32 %v5085, %v5112
    %v5128 = vmul.f32 %v5086, %v5111
    %v5129 = vmul.f32 %v5087, %v5113
    %v5130 = vmul.f32 %v5088, %v5104
    %v5131 = vmul.f32 %v5089, %v5112
    %v5132 = vmul.f32 %v5090, %v5111
    %v5133 = vmul.f32 %v5091, %v5113
    %v5135 = vlaneseq
    %v5136 = vshrl.u32 %v5135, 7
    %v5137 = vsub.s32 0, %v5136
    %v5138 = vrot.slane %v4562, %v5137
    %v5139 = vcombine.high %v5138, %v5138
    %v5141 = vunpack.c.l.s4 1983009808
    %v5142 = vunpack.c.0.s8 %v5141
    %v5143 = vlaneseq
    %v5144 = vshrl.u32 %v5143, 7
    %v5145 = vsub.s32 %v5142, %v5144
    %v5146 = vrot.slane %v5138, %v5145
    %v5148 = vunpack.c.l.s4 1983009808
    %v5149 = vunpack.c.0.s8 %v5148
    %v5150 = vlaneseq
    %v5151 = vshrl.u32 %v5150, 7
    %v5152 = vsub.s32 %v5149, %v5151
    %v5153 = vrot.slane %v5139, %v5152
    %v5154 = vcombine.high %v5146, %v5146
    %v5155 = vcombine.high %v5153, %v5153
    %v5160 = vadd.f32 %v5118, %v5146
    %v5161 = vadd.f32 %v5119, %v5154
    %v5162 = vadd.f32 %v5120, %v5153
    %v5163 = vadd.f32 %v5121, %v5155
    %v5164 = vadd.f32 %v5122, %v5146
    %v5165 = vadd.f32 %v5123, %v5154
    %v5166 = vadd.f32 %v5124, %v5153
    %v5167 = vadd.f32 %v5125, %v5155
    %v5168 = vadd.f32 %v5126, %v5146
    %v5169 = vadd.f32 %v5127, %v5154
    %v5170 = vadd.f32 %v5128, %v5153
    %v5171 = vadd.f32 %v5129, %v5155
    %v5172 = vadd.f32 %v5130, %v5146
    %v5173 = vadd.f32 %v5131, %v5154
    %v5174 = vadd.f32 %v5132, %v5153
    %v5175 = vadd.f32 %v5133, %v5155
    %v5176 = vld [vmem:[%s11] sm:$0xff]
    %v5177 = vld [vmem:[%s11 + $0x8] sm:$0xff]
    %v5178 = vld [vmem:[%s11 + $0x10] sm:$0xff]
    %v5179 = vld [vmem:[%s11 + $0x18] sm:$0xff]
    %v5180 = vld [vmem:[%s13] sm:$0x1]
    %v5182 = vlaneseq
    %v5183 = vshrl.u32 %v5182, 7
    %v5184 = vsub.s32 0, %v5183
    %v5185 = vrot.slane %v5180, %v5184
    %v5203 = vcombine.low %v5160, %v5161
    %v5204 = vcombine.low %v5162, %v5163
    %v5206 = vunpack.c.l.s4 1983009808
    %v5207 = vunpack.c.0.s8 %v5206
    %v5208 = vlaneseq
    %v5209 = vshrl.u32 %v5208, 7
    %v5210 = vsub.s32 %v5207, %v5209
    %v5211 = vrot.slane %v5203, %v5210
    %v5213 = vunpack.c.l.s4 1983009808
    %v5214 = vunpack.c.0.s8 %v5213
    %v5215 = vlaneseq
    %v5216 = vshrl.u32 %v5215, 7
    %v5217 = vsub.s32 %v5214, %v5216
    %v5218 = vrot.slane %v5204, %v5217
    %v5219 = vcombine.low %v5211, %v5218
    %v5220 = vcombine.low %v5164, %v5165
    %v5221 = vcombine.low %v5166, %v5167
    %v5223 = vunpack.c.l.s4 1983009808
    %v5224 = vunpack.c.0.s8 %v5223
    %v5225 = vlaneseq
    %v5226 = vshrl.u32 %v5225, 7
    %v5227 = vsub.s32 %v5224, %v5226
    %v5228 = vrot.slane %v5220, %v5227
    %v5230 = vunpack.c.l.s4 1983009808
    %v5231 = vunpack.c.0.s8 %v5230
    %v5232 = vlaneseq
    %v5233 = vshrl.u32 %v5232, 7
    %v5234 = vsub.s32 %v5231, %v5233
    %v5235 = vrot.slane %v5221, %v5234
    %v5236 = vcombine.low %v5228, %v5235
    %v5237 = vcombine.low %v5168, %v5169
    %v5238 = vcombine.low %v5170, %v5171
    %v5240 = vunpack.c.l.s4 1983009808
    %v5241 = vunpack.c.0.s8 %v5240
    %v5242 = vlaneseq
    %v5243 = vshrl.u32 %v5242, 7
    %v5244 = vsub.s32 %v5241, %v5243
    %v5245 = vrot.slane %v5237, %v5244
    %v5247 = vunpack.c.l.s4 1983009808
    %v5248 = vunpack.c.0.s8 %v5247
    %v5249 = vlaneseq
    %v5250 = vshrl.u32 %v5249, 7
    %v5251 = vsub.s32 %v5248, %v5250
    %v5252 = vrot.slane %v5238, %v5251
    %v5253 = vcombine.low %v5245, %v5252
    %v5254 = vcombine.low %v5172, %v5173
    %v5255 = vcombine.low %v5174, %v5175
    %v5257 = vunpack.c.l.s4 1983009808
    %v5258 = vunpack.c.0.s8 %v5257
    %v5259 = vlaneseq
    %v5260 = vshrl.u32 %v5259, 7
    %v5261 = vsub.s32 %v5258, %v5260
    %v5262 = vrot.slane %v5254, %v5261
    %v5264 = vunpack.c.l.s4 1983009808
    %v5265 = vunpack.c.0.s8 %v5264
    %v5266 = vlaneseq
    %v5267 = vshrl.u32 %v5266, 7
    %v5268 = vsub.s32 %v5265, %v5267
    %v5269 = vrot.slane %v5255, %v5268
    %v5270 = vcombine.low %v5262, %v5269
    %v5271 = vsel %vm603, %v5219, 0
    %v5273 = vsel %vm603, %v5236, 0
    %v5275 = vsel %vm603, %v5253, 0
    %v5277 = vsel %vm603, %v5270, 0
    %5279 = vmatprep.subr.mxu0 0.0
    %5280 = vmatpush1.msra.mxu0 %v5176
    %5281 = vmatprep.subr.mxu0 0.0
    %5282 = vmatpush1.msra.mxu0 %v5177
    %5283 = vmatprep.subr.mxu0 0.0
    %5284 = vmatpush1.msra.mxu0 %v5178
    %5285 = vmatprep.subr.mxu0 0.0
    %5286 = vmatpush1.msra.mxu0 %v5179
    %5287 = vmatprep.subr.mxu0 0.0
    %5288 = vmatpush1.msra.mxu0 0.0
    %5289 = vmatprep.subr.mxu0 0.0
    %5290 = vmatpush1.msra.mxu0 0.0
    %5291 = vmatprep.subr.mxu0 0.0
    %5292 = vmatpush1.msra.mxu0 0.0
    %5293 = vmatprep.subr.mxu0 0.0
    %5294 = vmatpush1.msra.mxu0 0.0
    %5295 = vmatprep.subr.mxu0 0.0
    %5296 = vmatpush1.msra.mxu0 0.0
    %5297 = vmatprep.subr.mxu0 0.0
    %5298 = vmatpush1.msra.mxu0 0.0
    %5299 = vmatprep.subr.mxu0 0.0
    %5300 = vmatpush1.msra.mxu0 0.0
    %5301 = vmatprep.subr.mxu0 0.0
    %5302 = vmatpush1.msra.mxu0 0.0
    %5303 = vmatprep.subr.mxu0 0.0
    %5304 = vmatpush1.msra.mxu0 0.0
    %5305 = vmatprep.subr.mxu0 0.0
    %5306 = vmatpush1.msra.mxu0 0.0
    %5307 = vmatprep.subr.mxu0 0.0
    %5308 = vmatpush1.msra.mxu0 0.0
    %5309 = vmatprep.subr.mxu0 0.0
    %5310 = vmatpush1.msra.mxu0 0.0
    %5311 = vmatprep.subr.mxu0 0.0
    %5312 = vmatpush1.msra.mxu0 0.0
    %5313 = vmatprep.subr.mxu0 0.0
    %5314 = vmatpush1.msra.mxu0 0.0
    %5315 = vmatprep.subr.mxu0 0.0
    %5316 = vmatpush1.msra.mxu0 0.0
    %5317 = vmatprep.subr.mxu0 0.0
    %5318 = vmatpush1.msra.mxu0 0.0
    %5319 = vmatprep.subr.mxu0 0.0
    %5320 = vmatpush1.msra.mxu0 0.0
    %5321 = vmatprep.subr.mxu0 0.0
    %5322 = vmatpush1.msra.mxu0 0.0
    %5323 = vmatprep.subr.mxu0 0.0
    %5324 = vmatpush1.msra.mxu0 0.0
    %5325 = vmatprep.subr.mxu0 0.0
    %5326 = vmatpush1.msra.mxu0 0.0
    %5327 = vmatprep.subr.mxu0 0.0
    %5328 = vmatpush1.msra.mxu0 0.0
    %5329 = vmatprep.subr.mxu0 0.0
    %5330 = vmatpush1.msra.mxu0 0.0
    %5331 = vmatprep.subr.mxu0 0.0
    %5332 = vmatpush1.msra.mxu0 0.0
    %5333 = vmatprep.subr.mxu0 0.0
    %5334 = vmatpush1.msra.mxu0 0.0
    %5335 = vmatprep.subr.mxu0 0.0
    %5336 = vmatpush1.msra.mxu0 0.0
    %5337 = vmatprep.subr.mxu0 0.0
    %5338 = vmatpush1.msra.mxu0 0.0
    %5339 = vmatprep.subr.mxu0 0.0
    %5340 = vmatpush1.msra.mxu0 0.0
    %5341 = vmatprep.subr.mxu0 0.0
    %5342 = vmatpush1.msra.mxu0 0.0
    %5343 = vmatprep.mubr.f32.mxu0 0.0
    %5344 = vmatmul.mubr.f32.gmra.mrb[0].mxu0 %v5271
    %v5345 = vpop.f32.mrb[0].mxu0
    %v5346 = vadd.f32 %v5185, %v5345
    %v5347 = vpop.f32.mrb[0].mxu0
    %5348 = vmatprep.mubr.f32.mxu0 0.0
    %5349 = vmatmul.mubr.f32.gmra.mrb[0].mxu0 %v5273
    %v5350 = vpop.f32.mrb[0].mxu0
    %v5351 = vadd.f32 %v5185, %v5350
    %v5352 = vpop.f32.mrb[0].mxu0
    %5353 = vmatprep.mubr.f32.mxu0 0.0
    %5354 = vmatmul.mubr.f32.gmra.mrb[0].mxu0 %v5275
    %v5355 = vpop.f32.mrb[0].mxu0
    %v5356 = vadd.f32 %v5185, %v5355
    %v5357 = vpop.f32.mrb[0].mxu0
    %5358 = vmatprep.mubr.f32.mxu0 0.0
    %5359 = vmatmul.mubr.f32.gmra.mrb[0].mxu0 %v5277
    %v5360 = vpop.f32.mrb[0].mxu0
    %v5361 = vadd.f32 %v5185, %v5360
    %v5362 = vpop.f32.mrb[0].mxu0
    %5363 = vdwg.mxu0
    %s5364 = scalar_lea.vmem %s11, 32
    %v5365 = vld [vmem:[%s5364] sm:$0xff]
    %v5366 = vld [vmem:[%s5364 + $0x8] sm:$0xff]
    %v5367 = vld [vmem:[%s5364 + $0x10] sm:$0xff]
    %v5368 = vld [vmem:[%s5364 + $0x18] sm:$0xff]
    %s5369 = scalar_lea.vmem %s13, 1
    %v5370 = vld [vmem:[%s5369] sm:$0x1]
    %v5372 = vlaneseq
    %v5373 = vshrl.u32 %v5372, 7
    %v5374 = vsub.s32 0, %v5373
    %v5375 = vrot.slane %v5370, %v5374
    %5377 = vmatprep.subr.mxu0 0.0
    %5378 = vmatpush1.msra.mxu0 %v5365
    %5379 = vmatprep.subr.mxu0 0.0
    %5380 = vmatpush1.msra.mxu0 %v5366
    %5381 = vmatprep.subr.mxu0 0.0
    %5382 = vmatpush1.msra.mxu0 %v5367
    %5383 = vmatprep.subr.mxu0 0.0
    %5384 = vmatpush1.msra.mxu0 %v5368
    %5385 = vmatprep.subr.mxu0 0.0
    %5386 = vmatpush1.msra.mxu0 0.0
    %5387 = vmatprep.subr.mxu0 0.0
    %5388 = vmatpush1.msra.mxu0 0.0
    %5389 = vmatprep.subr.mxu0 0.0
    %5390 = vmatpush1.msra.mxu0 0.0
    %5391 = vmatprep.subr.mxu0 0.0
    %5392 = vmatpush1.msra.mxu0 0.0
    %5393 = vmatprep.subr.mxu0 0.0
    %5394 = vmatpush1.msra.mxu0 0.0
    %5395 = vmatprep.subr.mxu0 0.0
    %5396 = vmatpush1.msra.mxu0 0.0
    %5397 = vmatprep.subr.mxu0 0.0
    %5398 = vmatpush1.msra.mxu0 0.0
    %5399 = vmatprep.subr.mxu0 0.0
    %5400 = vmatpush1.msra.mxu0 0.0
    %5401 = vmatprep.subr.mxu0 0.0
    %5402 = vmatpush1.msra.mxu0 0.0
    %5403 = vmatprep.subr.mxu0 0.0
    %5404 = vmatpush1.msra.mxu0 0.0
    %5405 = vmatprep.subr.mxu0 0.0
    %5406 = vmatpush1.msra.mxu0 0.0
    %5407 = vmatprep.subr.mxu0 0.0
    %5408 = vmatpush1.msra.mxu0 0.0
    %5409 = vmatprep.subr.mxu0 0.0
    %5410 = vmatpush1.msra.mxu0 0.0
    %5411 = vmatprep.subr.mxu0 0.0
    %5412 = vmatpush1.msra.mxu0 0.0
    %5413 = vmatprep.subr.mxu0 0.0
    %5414 = vmatpush1.msra.mxu0 0.0
    %5415 = vmatprep.subr.mxu0 0.0
    %5416 = vmatpush1.msra.mxu0 0.0
    %5417 = vmatprep.subr.mxu0 0.0
    %5418 = vmatpush1.msra.mxu0 0.0
    %5419 = vmatprep.subr.mxu0 0.0
    %5420 = vmatpush1.msra.mxu0 0.0
    %5421 = vmatprep.subr.mxu0 0.0
    %5422 = vmatpush1.msra.mxu0 0.0
    %5423 = vmatprep.subr.mxu0 0.0
    %5424 = vmatpush1.msra.mxu0 0.0
    %5425 = vmatprep.subr.mxu0 0.0
    %5426 = vmatpush1.msra.mxu0 0.0
    %5427 = vmatprep.subr.mxu0 0.0
    %5428 = vmatpush1.msra.mxu0 0.0
    %5429 = vmatprep.subr.mxu0 0.0
    %5430 = vmatpush1.msra.mxu0 0.0
    %5431 = vmatprep.subr.mxu0 0.0
    %5432 = vmatpush1.msra.mxu0 0.0
    %5433 = vmatprep.subr.mxu0 0.0
    %5434 = vmatpush1.msra.mxu0 0.0
    %5435 = vmatprep.subr.mxu0 0.0
    %5436 = vmatpush1.msra.mxu0 0.0
    %5437 = vmatprep.subr.mxu0 0.0
    %5438 = vmatpush1.msra.mxu0 0.0
    %5439 = vmatprep.subr.mxu0 0.0
    %5440 = vmatpush1.msra.mxu0 0.0
    %5441 = vmatprep.mubr.f32.mxu0 0.0
    %5442 = vmatmul.mubr.f32.gmra.mrb[0].mxu0 %v5271
    %v5443 = vpop.f32.mrb[0].mxu0
    %v5444 = vadd.f32 %v5375, %v5443
    %v5445 = vpop.f32.mrb[0].mxu0
    %5446 = vmatprep.mubr.f32.mxu0 0.0
    %5447 = vmatmul.mubr.f32.gmra.mrb[0].mxu0 %v5273
    %v5448 = vpop.f32.mrb[0].mxu0
    %v5449 = vadd.f32 %v5375, %v5448
    %v5450 = vpop.f32.mrb[0].mxu0
    %5451 = vmatprep.mubr.f32.mxu0 0.0
    %5452 = vmatmul.mubr.f32.gmra.mrb[0].mxu0 %v5275
    %v5453 = vpop.f32.mrb[0].mxu0
    %v5454 = vadd.f32 %v5375, %v5453
    %v5455 = vpop.f32.mrb[0].mxu0
    %5456 = vmatprep.mubr.f32.mxu0 0.0
    %5457 = vmatmul.mubr.f32.gmra.mrb[0].mxu0 %v5277
    %v5458 = vpop.f32.mrb[0].mxu0
    %v5459 = vadd.f32 %v5375, %v5458
    %v5460 = vpop.f32.mrb[0].mxu0
    %5461 = vdwg.mxu0
    %s5462 = scalar_lea.vmem %s11, 64
    %v5463 = vld [vmem:[%s5462] sm:$0xff]
    %v5464 = vld [vmem:[%s5462 + $0x8] sm:$0xff]
    %v5465 = vld [vmem:[%s5462 + $0x10] sm:$0xff]
    %v5466 = vld [vmem:[%s5462 + $0x18] sm:$0xff]
    %s5467 = scalar_lea.vmem %s13, 2
    %v5468 = vld [vmem:[%s5467] sm:$0x1]
    %v5470 = vlaneseq
    %v5471 = vshrl.u32 %v5470, 7
    %v5472 = vsub.s32 0, %v5471
    %v5473 = vrot.slane %v5468, %v5472
    %5475 = vmatprep.subr.mxu0 0.0
    %5476 = vmatpush1.msra.mxu0 %v5463
    %5477 = vmatprep.subr.mxu0 0.0
    %5478 = vmatpush1.msra.mxu0 %v5464
    %5479 = vmatprep.subr.mxu0 0.0
    %5480 = vmatpush1.msra.mxu0 %v5465
    %5481 = vmatprep.subr.mxu0 0.0
    %5482 = vmatpush1.msra.mxu0 %v5466
    %5483 = vmatprep.subr.mxu0 0.0
    %5484 = vmatpush1.msra.mxu0 0.0
    %5485 = vmatprep.subr.mxu0 0.0
    %5486 = vmatpush1.msra.mxu0 0.0
    %5487 = vmatprep.subr.mxu0 0.0
    %5488 = vmatpush1.msra.mxu0 0.0
    %5489 = vmatprep.subr.mxu0 0.0
    %5490 = vmatpush1.msra.mxu0 0.0
    %5491 = vmatprep.subr.mxu0 0.0
    %5492 = vmatpush1.msra.mxu0 0.0
    %5493 = vmatprep.subr.mxu0 0.0
    %5494 = vmatpush1.msra.mxu0 0.0
    %5495 = vmatprep.subr.mxu0 0.0
    %5496 = vmatpush1.msra.mxu0 0.0
    %5497 = vmatprep.subr.mxu0 0.0
    %5498 = vmatpush1.msra.mxu0 0.0
    %5499 = vmatprep.subr.mxu0 0.0
    %5500 = vmatpush1.msra.mxu0 0.0
    %5501 = vmatprep.subr.mxu0 0.0
    %5502 = vmatpush1.msra.mxu0 0.0
    %5503 = vmatprep.subr.mxu0 0.0
    %5504 = vmatpush1.msra.mxu0 0.0
    %5505 = vmatprep.subr.mxu0 0.0
    %5506 = vmatpush1.msra.mxu0 0.0
    %5507 = vmatprep.subr.mxu0 0.0
    %5508 = vmatpush1.msra.mxu0 0.0
    %5509 = vmatprep.subr.mxu0 0.0
    %5510 = vmatpush1.msra.mxu0 0.0
    %5511 = vmatprep.subr.mxu0 0.0
    %5512 = vmatpush1.msra.mxu0 0.0
    %5513 = vmatprep.subr.mxu0 0.0
    %5514 = vmatpush1.msra.mxu0 0.0
    %5515 = vmatprep.subr.mxu0 0.0
    %5516 = vmatpush1.msra.mxu0 0.0
    %5517 = vmatprep.subr.mxu0 0.0
    %5518 = vmatpush1.msra.mxu0 0.0
    %5519 = vmatprep.subr.mxu0 0.0
    %5520 = vmatpush1.msra.mxu0 0.0
    %5521 = vmatprep.subr.mxu0 0.0
    %5522 = vmatpush1.msra.mxu0 0.0
    %5523 = vmatprep.subr.mxu0 0.0
    %5524 = vmatpush1.msra.mxu0 0.0
    %5525 = vmatprep.subr.mxu0 0.0
    %5526 = vmatpush1.msra.mxu0 0.0
    %5527 = vmatprep.subr.mxu0 0.0
    %5528 = vmatpush1.msra.mxu0 0.0
    %5529 = vmatprep.subr.mxu0 0.0
    %5530 = vmatpush1.msra.mxu0 0.0
    %5531 = vmatprep.subr.mxu0 0.0
    %5532 = vmatpush1.msra.mxu0 0.0
    %5533 = vmatprep.subr.mxu0 0.0
    %5534 = vmatpush1.msra.mxu0 0.0
    %5535 = vmatprep.subr.mxu0 0.0
    %5536 = vmatpush1.msra.mxu0 0.0
    %5537 = vmatprep.subr.mxu0 0.0
    %5538 = vmatpush1.msra.mxu0 0.0
    %5539 = vmatprep.mubr.f32.mxu0 0.0
    %5540 = vmatmul.mubr.f32.gmra.mrb[0].mxu0 %v5271
    %v5541 = vpop.f32.mrb[0].mxu0
    %v5542 = vadd.f32 %v5473, %v5541
    %v5543 = vpop.f32.mrb[0].mxu0
    %5544 = vmatprep.mubr.f32.mxu0 0.0
    %5545 = vmatmul.mubr.f32.gmra.mrb[0].mxu0 %v5273
    %v5546 = vpop.f32.mrb[0].mxu0
    %v5547 = vadd.f32 %v5473, %v5546
    %v5548 = vpop.f32.mrb[0].mxu0
    %5549 = vmatprep.mubr.f32.mxu0 0.0
    %5550 = vmatmul.mubr.f32.gmra.mrb[0].mxu0 %v5275
    %v5551 = vpop.f32.mrb[0].mxu0
    %v5552 = vadd.f32 %v5473, %v5551
    %v5553 = vpop.f32.mrb[0].mxu0
    %5554 = vmatprep.mubr.f32.mxu0 0.0
    %5555 = vmatmul.mubr.f32.gmra.mrb[0].mxu0 %v5277
    %v5556 = vpop.f32.mrb[0].mxu0
    %v5557 = vadd.f32 %v5473, %v5556
    %v5558 = vpop.f32.mrb[0].mxu0
    %5559 = vdwg.mxu0
    %v5560 = vld [vmem:[%s12] sm:$0xff]
    %v5561 = vld [vmem:[%s12 + $0x8] sm:$0xff]
    %v5562 = vld [vmem:[%s12 + $0x10] sm:$0xff]
    %v5563 = vld [vmem:[%s12 + $0x18] sm:$0xff]
    %s5564 = scalar_lea.vmem %s12, 32
    %v5565 = vld [vmem:[%s5564] sm:$0xff]
    %v5566 = vld [vmem:[%s5564 + $0x8] sm:$0xff]
    %v5567 = vld [vmem:[%s5564 + $0x10] sm:$0xff]
    %v5568 = vld [vmem:[%s5564 + $0x18] sm:$0xff]
    %s5569 = scalar_lea.vmem %s12, 64
    %v5570 = vld [vmem:[%s5569] sm:$0xff]
    %v5571 = vld [vmem:[%s5569 + $0x8] sm:$0xff]
    %v5572 = vld [vmem:[%s5569 + $0x10] sm:$0xff]
    %v5573 = vld [vmem:[%s5569 + $0x18] sm:$0xff]
    %v5574 = vld [vmem:[%s14] sm:$0x1]
    %v5576 = vlaneseq
    %v5577 = vshrl.u32 %v5576, 7
    %v5578 = vsub.s32 0, %v5577
    %v5579 = vrot.slane %v5574, %v5578
    %s5581 = scalar_lea.vmem %s14, 1
    %v5582 = vld [vmem:[%s5581] sm:$0x1]
    %v5584 = vlaneseq
    %v5585 = vshrl.u32 %v5584, 7
    %v5586 = vsub.s32 0, %v5585
    %v5587 = vrot.slane %v5582, %v5586
    %s5589 = scalar_lea.vmem %s14, 2
    %v5590 = vld [vmem:[%s5589] sm:$0x1]
    %v5592 = vlaneseq
    %v5593 = vshrl.u32 %v5592, 7
    %v5594 = vsub.s32 0, %v5593
    %v5595 = vrot.slane %v5590, %v5594
    %5597 = vmatprep.subr.mxu0 0.0
    %5598 = vmatpush1.msra.mxu0 %v5560
    %5599 = vmatprep.subr.mxu0 0.0
    %5600 = vmatpush1.msra.mxu0 %v5561
    %5601 = vmatprep.subr.mxu0 0.0
    %5602 = vmatpush1.msra.mxu0 %v5562
    %5603 = vmatprep.subr.mxu0 0.0
    %5604 = vmatpush1.msra.mxu0 %v5563
    %5605 = vmatprep.subr.mxu0 0.0
    %5606 = vmatpush1.msra.mxu0 0.0
    %5607 = vmatprep.subr.mxu0 0.0
    %5608 = vmatpush1.msra.mxu0 0.0
    %5609 = vmatprep.subr.mxu0 0.0
    %5610 = vmatpush1.msra.mxu0 0.0
    %5611 = vmatprep.subr.mxu0 0.0
    %5612 = vmatpush1.msra.mxu0 0.0
    %5613 = vmatprep.subr.mxu0 0.0
    %5614 = vmatpush1.msra.mxu0 0.0
    %5615 = vmatprep.subr.mxu0 0.0
    %5616 = vmatpush1.msra.mxu0 0.0
    %5617 = vmatprep.subr.mxu0 0.0
    %5618 = vmatpush1.msra.mxu0 0.0
    %5619 = vmatprep.subr.mxu0 0.0
    %5620 = vmatpush1.msra.mxu0 0.0
    %5621 = vmatprep.subr.mxu0 0.0
    %5622 = vmatpush1.msra.mxu0 0.0
    %5623 = vmatprep.subr.mxu0 0.0
    %5624 = vmatpush1.msra.mxu0 0.0
    %5625 = vmatprep.subr.mxu0 0.0
    %5626 = vmatpush1.msra.mxu0 0.0
    %5627 = vmatprep.subr.mxu0 0.0
    %5628 = vmatpush1.msra.mxu0 0.0
    %5629 = vmatprep.subr.mxu0 0.0
    %5630 = vmatpush1.msra.mxu0 0.0
    %5631 = vmatprep.subr.mxu0 0.0
    %5632 = vmatpush1.msra.mxu0 0.0
    %5633 = vmatprep.subr.mxu0 0.0
    %5634 = vmatpush1.msra.mxu0 0.0
    %5635 = vmatprep.subr.mxu0 0.0
    %5636 = vmatpush1.msra.mxu0 0.0
    %5637 = vmatprep.subr.mxu0 0.0
    %5638 = vmatpush1.msra.mxu0 0.0
    %5639 = vmatprep.subr.mxu0 0.0
    %5640 = vmatpush1.msra.mxu0 0.0
    %5641 = vmatprep.subr.mxu0 0.0
    %5642 = vmatpush1.msra.mxu0 0.0
    %5643 = vmatprep.subr.mxu0 0.0
    %5644 = vmatpush1.msra.mxu0 0.0
    %5645 = vmatprep.subr.mxu0 0.0
    %5646 = vmatpush1.msra.mxu0 0.0
    %5647 = vmatprep.subr.mxu0 0.0
    %5648 = vmatpush1.msra.mxu0 0.0
    %5649 = vmatprep.subr.mxu0 0.0
    %5650 = vmatpush1.msra.mxu0 0.0
    %5651 = vmatprep.subr.mxu0 0.0
    %5652 = vmatpush1.msra.mxu0 0.0
    %5653 = vmatprep.subr.mxu0 0.0
    %5654 = vmatpush1.msra.mxu0 0.0
    %5655 = vmatprep.subr.mxu0 0.0
    %5656 = vmatpush1.msra.mxu0 0.0
    %5657 = vmatprep.subr.mxu0 0.0
    %5658 = vmatpush1.msra.mxu0 0.0
    %5659 = vmatprep.subr.mxu0 0.0
    %5660 = vmatpush1.msra.mxu0 0.0
    %5661 = vmatprep.mubr.f32.mxu0 0.0
    %5662 = vmatmul.mubr.f32.gmra.mrb[0].mxu0 %v605
    %v5663 = vpop.f32.mrb[0].mxu0
    %v5664 = vadd.f32 %v5579, %v5663
    %v5665 = vpop.f32.mrb[0].mxu0
    %5666 = vdwg.mxu0
    %5667 = vmatprep.subr.mxu0 0.0
    %5668 = vmatpush1.msra.mxu0 %v5565
    %5669 = vmatprep.subr.mxu0 0.0
    %5670 = vmatpush1.msra.mxu0 %v5566
    %5671 = vmatprep.subr.mxu0 0.0
    %5672 = vmatpush1.msra.mxu0 %v5567
    %5673 = vmatprep.subr.mxu0 0.0
    %5674 = vmatpush1.msra.mxu0 %v5568
    %5675 = vmatprep.subr.mxu0 0.0
    %5676 = vmatpush1.msra.mxu0 0.0
    %5677 = vmatprep.subr.mxu0 0.0
    %5678 = vmatpush1.msra.mxu0 0.0
    %5679 = vmatprep.subr.mxu0 0.0
    %5680 = vmatpush1.msra.mxu0 0.0
    %5681 = vmatprep.subr.mxu0 0.0
    %5682 = vmatpush1.msra.mxu0 0.0
    %5683 = vmatprep.subr.mxu0 0.0
    %5684 = vmatpush1.msra.mxu0 0.0
    %5685 = vmatprep.subr.mxu0 0.0
    %5686 = vmatpush1.msra.mxu0 0.0
    %5687 = vmatprep.subr.mxu0 0.0
    %5688 = vmatpush1.msra.mxu0 0.0
    %5689 = vmatprep.subr.mxu0 0.0
    %5690 = vmatpush1.msra.mxu0 0.0
    %5691 = vmatprep.subr.mxu0 0.0
    %5692 = vmatpush1.msra.mxu0 0.0
    %5693 = vmatprep.subr.mxu0 0.0
    %5694 = vmatpush1.msra.mxu0 0.0
    %5695 = vmatprep.subr.mxu0 0.0
    %5696 = vmatpush1.msra.mxu0 0.0
    %5697 = vmatprep.subr.mxu0 0.0
    %5698 = vmatpush1.msra.mxu0 0.0
    %5699 = vmatprep.subr.mxu0 0.0
    %5700 = vmatpush1.msra.mxu0 0.0
    %5701 = vmatprep.subr.mxu0 0.0
    %5702 = vmatpush1.msra.mxu0 0.0
    %5703 = vmatprep.subr.mxu0 0.0
    %5704 = vmatpush1.msra.mxu0 0.0
    %5705 = vmatprep.subr.mxu0 0.0
    %5706 = vmatpush1.msra.mxu0 0.0
    %5707 = vmatprep.subr.mxu0 0.0
    %5708 = vmatpush1.msra.mxu0 0.0
    %5709 = vmatprep.subr.mxu0 0.0
    %5710 = vmatpush1.msra.mxu0 0.0
    %5711 = vmatprep.subr.mxu0 0.0
    %5712 = vmatpush1.msra.mxu0 0.0
    %5713 = vmatprep.subr.mxu0 0.0
    %5714 = vmatpush1.msra.mxu0 0.0
    %5715 = vmatprep.subr.mxu0 0.0
    %5716 = vmatpush1.msra.mxu0 0.0
    %5717 = vmatprep.subr.mxu0 0.0
    %5718 = vmatpush1.msra.mxu0 0.0
    %5719 = vmatprep.subr.mxu0 0.0
    %5720 = vmatpush1.msra.mxu0 0.0
    %5721 = vmatprep.subr.mxu0 0.0
    %5722 = vmatpush1.msra.mxu0 0.0
    %5723 = vmatprep.subr.mxu0 0.0
    %5724 = vmatpush1.msra.mxu0 0.0
    %5725 = vmatprep.subr.mxu0 0.0
    %5726 = vmatpush1.msra.mxu0 0.0
    %5727 = vmatprep.subr.mxu0 0.0
    %5728 = vmatpush1.msra.mxu0 0.0
    %5729 = vmatprep.subr.mxu0 0.0
    %5730 = vmatpush1.msra.mxu0 0.0
    %5731 = vmatprep.mubr.f32.mxu0 0.0
    %5732 = vmatmul.mubr.f32.gmra.mrb[0].mxu0 %v605
    %v5733 = vpop.f32.mrb[0].mxu0
    %v5734 = vadd.f32 %v5587, %v5733
    %v5735 = vpop.f32.mrb[0].mxu0
    %5736 = vdwg.mxu0
    %5737 = vmatprep.subr.mxu0 0.0
    %5738 = vmatpush1.msra.mxu0 %v5570
    %5739 = vmatprep.subr.mxu0 0.0
    %5740 = vmatpush1.msra.mxu0 %v5571
    %5741 = vmatprep.subr.mxu0 0.0
    %5742 = vmatpush1.msra.mxu0 %v5572
    %5743 = vmatprep.subr.mxu0 0.0
    %5744 = vmatpush1.msra.mxu0 %v5573
    %5745 = vmatprep.subr.mxu0 0.0
    %5746 = vmatpush1.msra.mxu0 0.0
    %5747 = vmatprep.subr.mxu0 0.0
    %5748 = vmatpush1.msra.mxu0 0.0
    %5749 = vmatprep.subr.mxu0 0.0
    %5750 = vmatpush1.msra.mxu0 0.0
    %5751 = vmatprep.subr.mxu0 0.0
    %5752 = vmatpush1.msra.mxu0 0.0
    %5753 = vmatprep.subr.mxu0 0.0
    %5754 = vmatpush1.msra.mxu0 0.0
    %5755 = vmatprep.subr.mxu0 0.0
    %5756 = vmatpush1.msra.mxu0 0.0
    %5757 = vmatprep.subr.mxu0 0.0
    %5758 = vmatpush1.msra.mxu0 0.0
    %5759 = vmatprep.subr.mxu0 0.0
    %5760 = vmatpush1.msra.mxu0 0.0
    %5761 = vmatprep.subr.mxu0 0.0
    %5762 = vmatpush1.msra.mxu0 0.0
    %5763 = vmatprep.subr.mxu0 0.0
    %5764 = vmatpush1.msra.mxu0 0.0
    %5765 = vmatprep.subr.mxu0 0.0
    %5766 = vmatpush1.msra.mxu0 0.0
    %5767 = vmatprep.subr.mxu0 0.0
    %5768 = vmatpush1.msra.mxu0 0.0
    %5769 = vmatprep.subr.mxu0 0.0
    %5770 = vmatpush1.msra.mxu0 0.0
    %5771 = vmatprep.subr.mxu0 0.0
    %5772 = vmatpush1.msra.mxu0 0.0
    %5773 = vmatprep.subr.mxu0 0.0
    %5774 = vmatpush1.msra.mxu0 0.0
    %5775 = vmatprep.subr.mxu0 0.0
    %5776 = vmatpush1.msra.mxu0 0.0
    %5777 = vmatprep.subr.mxu0 0.0
    %5778 = vmatpush1.msra.mxu0 0.0
    %5779 = vmatprep.subr.mxu0 0.0
    %5780 = vmatpush1.msra.mxu0 0.0
    %5781 = vmatprep.subr.mxu0 0.0
    %5782 = vmatpush1.msra.mxu0 0.0
    %5783 = vmatprep.subr.mxu0 0.0
    %5784 = vmatpush1.msra.mxu0 0.0
    %5785 = vmatprep.subr.mxu0 0.0
    %5786 = vmatpush1.msra.mxu0 0.0
    %5787 = vmatprep.subr.mxu0 0.0
    %5788 = vmatpush1.msra.mxu0 0.0
    %5789 = vmatprep.subr.mxu0 0.0
    %5790 = vmatpush1.msra.mxu0 0.0
    %5791 = vmatprep.subr.mxu0 0.0
    %5792 = vmatpush1.msra.mxu0 0.0
    %5793 = vmatprep.subr.mxu0 0.0
    %5794 = vmatpush1.msra.mxu0 0.0
    %5795 = vmatprep.subr.mxu0 0.0
    %5796 = vmatpush1.msra.mxu0 0.0
    %5797 = vmatprep.subr.mxu0 0.0
    %5798 = vmatpush1.msra.mxu0 0.0
    %5799 = vmatprep.subr.mxu0 0.0
    %5800 = vmatpush1.msra.mxu0 0.0
    %5801 = vmatprep.mubr.f32.mxu0 0.0
    %5802 = vmatmul.mubr.f32.gmra.mrb[0].mxu0 %v605
    %v5803 = vpop.f32.mrb[0].mxu0
    %v5804 = vadd.f32 %v5595, %v5803
    %v5805 = vpop.f32.mrb[0].mxu0
    %5806 = vdwg.mxu0
    %v5807 = vadd.f32 %v5346, %v5664
    %v5808 = vxor.u32 %v5807, 2147483648
    %v5809 = vmul.f32 %v5808, 1.442695
    %v5810 = vpow.pop %v5809
    %v5811 = vadd.f32 %v5810, 1.0
    %v5812 = vrcp.pop %v5811
    %v5813 = vmul.f32 1.0, %v5812
    %v5814 = vadd.f32 %v5444, %v5734
    %v5815 = vxor.u32 %v5814, 2147483648
    %v5816 = vmul.f32 %v5815, 1.442695
    %v5817 = vpow.pop %v5816
    %v5818 = vadd.f32 %v5817, 1.0
    %v5819 = vrcp.pop %v5818
    %v5820 = vmul.f32 1.0, %v5819
    %v5821 = vmul.f32 %v5813, %v5804
    %v5822 = vadd.f32 %v5542, %v5821
    %v5823 = vtanh.pop %v5822
    %v5824 = vsub.f32 1.0, %v5820
    %v5825 = vmul.f32 %v5824, %v5823
    %v5826 = vmul.f32 %v5820, 0.0
    %v5827 = vadd.f32 %v5825, %v5826
    %5828 = vst.msk [vmem:[#allocation2] sm:$0x3] %vm838, %v5827
    %v5830 = vsel %vm603, %v5827, 0
    %5832 = vmatprep.subr.mxu0 0.0
    %5833 = vmatpush1.msra.mxu0 %v5560
    %5834 = vmatprep.subr.mxu0 0.0
    %5835 = vmatpush1.msra.mxu0 %v5561
    %5836 = vmatprep.subr.mxu0 0.0
    %5837 = vmatpush1.msra.mxu0 %v5562
    %5838 = vmatprep.subr.mxu0 0.0
    %5839 = vmatpush1.msra.mxu0 %v5563
    %5840 = vmatprep.subr.mxu0 0.0
    %5841 = vmatpush1.msra.mxu0 0.0
    %5842 = vmatprep.subr.mxu0 0.0
    %5843 = vmatpush1.msra.mxu0 0.0
    %5844 = vmatprep.subr.mxu0 0.0
    %5845 = vmatpush1.msra.mxu0 0.0
    %5846 = vmatprep.subr.mxu0 0.0
    %5847 = vmatpush1.msra.mxu0 0.0
    %5848 = vmatprep.subr.mxu0 0.0
    %5849 = vmatpush1.msra.mxu0 0.0
    %5850 = vmatprep.subr.mxu0 0.0
    %5851 = vmatpush1.msra.mxu0 0.0
    %5852 = vmatprep.subr.mxu0 0.0
    %5853 = vmatpush1.msra.mxu0 0.0
    %5854 = vmatprep.subr.mxu0 0.0
    %5855 = vmatpush1.msra.mxu0 0.0
    %5856 = vmatprep.subr.mxu0 0.0
    %5857 = vmatpush1.msra.mxu0 0.0
    %5858 = vmatprep.subr.mxu0 0.0
    %5859 = vmatpush1.msra.mxu0 0.0
    %5860 = vmatprep.subr.mxu0 0.0
    %5861 = vmatpush1.msra.mxu0 0.0
    %5862 = vmatprep.subr.mxu0 0.0
    %5863 = vmatpush1.msra.mxu0 0.0
    %5864 = vmatprep.subr.mxu0 0.0
    %5865 = vmatpush1.msra.mxu0 0.0
    %5866 = vmatprep.subr.mxu0 0.0
    %5867 = vmatpush1.msra.mxu0 0.0
    %5868 = vmatprep.subr.mxu0 0.0
    %5869 = vmatpush1.msra.mxu0 0.0
    %5870 = vmatprep.subr.mxu0 0.0
    %5871 = vmatpush1.msra.mxu0 0.0
    %5872 = vmatprep.subr.mxu0 0.0
    %5873 = vmatpush1.msra.mxu0 0.0
    %5874 = vmatprep.subr.mxu0 0.0
    %5875 = vmatpush1.msra.mxu0 0.0
    %5876 = vmatprep.subr.mxu0 0.0
    %5877 = vmatpush1.msra.mxu0 0.0
    %5878 = vmatprep.subr.mxu0 0.0
    %5879 = vmatpush1.msra.mxu0 0.0
    %5880 = vmatprep.subr.mxu0 0.0
    %5881 = vmatpush1.msra.mxu0 0.0
    %5882 = vmatprep.subr.mxu0 0.0
    %5883 = vmatpush1.msra.mxu0 0.0
    %5884 = vmatprep.subr.mxu0 0.0
    %5885 = vmatpush1.msra.mxu0 0.0
    %5886 = vmatprep.subr.mxu0 0.0
    %5887 = vmatpush1.msra.mxu0 0.0
    %5888 = vmatprep.subr.mxu0 0.0
    %5889 = vmatpush1.msra.mxu0 0.0
    %5890 = vmatprep.subr.mxu0 0.0
    %5891 = vmatpush1.msra.mxu0 0.0
    %5892 = vmatprep.subr.mxu0 0.0
    %5893 = vmatpush1.msra.mxu0 0.0
    %5894 = vmatprep.subr.mxu0 0.0
    %5895 = vmatpush1.msra.mxu0 0.0
    %5896 = vmatprep.mubr.f32.mxu0 0.0
    %5897 = vmatmul.mubr.f32.gmra.mrb[0].mxu0 %v5830
    %v5898 = vpop.f32.mrb[0].mxu0
    %v5899 = vadd.f32 %v5579, %v5898
    %v5900 = vpop.f32.mrb[0].mxu0
    %5901 = vdwg.mxu0
    %5902 = vmatprep.subr.mxu0 0.0
    %5903 = vmatpush1.msra.mxu0 %v5565
    %5904 = vmatprep.subr.mxu0 0.0
    %5905 = vmatpush1.msra.mxu0 %v5566
    %5906 = vmatprep.subr.mxu0 0.0
    %5907 = vmatpush1.msra.mxu0 %v5567
    %5908 = vmatprep.subr.mxu0 0.0
    %5909 = vmatpush1.msra.mxu0 %v5568
    %5910 = vmatprep.subr.mxu0 0.0
    %5911 = vmatpush1.msra.mxu0 0.0
    %5912 = vmatprep.subr.mxu0 0.0
    %5913 = vmatpush1.msra.mxu0 0.0
    %5914 = vmatprep.subr.mxu0 0.0
    %5915 = vmatpush1.msra.mxu0 0.0
    %5916 = vmatprep.subr.mxu0 0.0
    %5917 = vmatpush1.msra.mxu0 0.0
    %5918 = vmatprep.subr.mxu0 0.0
    %5919 = vmatpush1.msra.mxu0 0.0
    %5920 = vmatprep.subr.mxu0 0.0
    %5921 = vmatpush1.msra.mxu0 0.0
    %5922 = vmatprep.subr.mxu0 0.0
    %5923 = vmatpush1.msra.mxu0 0.0
    %5924 = vmatprep.subr.mxu0 0.0
    %5925 = vmatpush1.msra.mxu0 0.0
    %5926 = vmatprep.subr.mxu0 0.0
    %5927 = vmatpush1.msra.mxu0 0.0
    %5928 = vmatprep.subr.mxu0 0.0
    %5929 = vmatpush1.msra.mxu0 0.0
    %5930 = vmatprep.subr.mxu0 0.0
    %5931 = vmatpush1.msra.mxu0 0.0
    %5932 = vmatprep.subr.mxu0 0.0
    %5933 = vmatpush1.msra.mxu0 0.0
    %5934 = vmatprep.subr.mxu0 0.0
    %5935 = vmatpush1.msra.mxu0 0.0
    %5936 = vmatprep.subr.mxu0 0.0
    %5937 = vmatpush1.msra.mxu0 0.0
    %5938 = vmatprep.subr.mxu0 0.0
    %5939 = vmatpush1.msra.mxu0 0.0
    %5940 = vmatprep.subr.mxu0 0.0
    %5941 = vmatpush1.msra.mxu0 0.0
    %5942 = vmatprep.subr.mxu0 0.0
    %5943 = vmatpush1.msra.mxu0 0.0
    %5944 = vmatprep.subr.mxu0 0.0
    %5945 = vmatpush1.msra.mxu0 0.0
    %5946 = vmatprep.subr.mxu0 0.0
    %5947 = vmatpush1.msra.mxu0 0.0
    %5948 = vmatprep.subr.mxu0 0.0
    %5949 = vmatpush1.msra.mxu0 0.0
    %5950 = vmatprep.subr.mxu0 0.0
    %5951 = vmatpush1.msra.mxu0 0.0
    %5952 = vmatprep.subr.mxu0 0.0
    %5953 = vmatpush1.msra.mxu0 0.0
    %5954 = vmatprep.subr.mxu0 0.0
    %5955 = vmatpush1.msra.mxu0 0.0
    %5956 = vmatprep.subr.mxu0 0.0
    %5957 = vmatpush1.msra.mxu0 0.0
    %5958 = vmatprep.subr.mxu0 0.0
    %5959 = vmatpush1.msra.mxu0 0.0
    %5960 = vmatprep.subr.mxu0 0.0
    %5961 = vmatpush1.msra.mxu0 0.0
    %5962 = vmatprep.subr.mxu0 0.0
    %5963 = vmatpush1.msra.mxu0 0.0
    %5964 = vmatprep.subr.mxu0 0.0
    %5965 = vmatpush1.msra.mxu0 0.0
    %5966 = vmatprep.mubr.f32.mxu0 0.0
    %5967 = vmatmul.mubr.f32.gmra.mrb[0].mxu0 %v5830
    %v5968 = vpop.f32.mrb[0].mxu0
    %v5969 = vadd.f32 %v5587, %v5968
    %v5970 = vpop.f32.mrb[0].mxu0
    %5971 = vdwg.mxu0
    %5972 = vmatprep.subr.mxu0 0.0
    %5973 = vmatpush1.msra.mxu0 %v5570
    %5974 = vmatprep.subr.mxu0 0.0
    %5975 = vmatpush1.msra.mxu0 %v5571
    %5976 = vmatprep.subr.mxu0 0.0
    %5977 = vmatpush1.msra.mxu0 %v5572
    %5978 = vmatprep.subr.mxu0 0.0
    %5979 = vmatpush1.msra.mxu0 %v5573
    %5980 = vmatprep.subr.mxu0 0.0
    %5981 = vmatpush1.msra.mxu0 0.0
    %5982 = vmatprep.subr.mxu0 0.0
    %5983 = vmatpush1.msra.mxu0 0.0
    %5984 = vmatprep.subr.mxu0 0.0
    %5985 = vmatpush1.msra.mxu0 0.0
    %5986 = vmatprep.subr.mxu0 0.0
    %5987 = vmatpush1.msra.mxu0 0.0
    %5988 = vmatprep.subr.mxu0 0.0
    %5989 = vmatpush1.msra.mxu0 0.0
    %5990 = vmatprep.subr.mxu0 0.0
    %5991 = vmatpush1.msra.mxu0 0.0
    %5992 = vmatprep.subr.mxu0 0.0
    %5993 = vmatpush1.msra.mxu0 0.0
    %5994 = vmatprep.subr.mxu0 0.0
    %5995 = vmatpush1.msra.mxu0 0.0
    %5996 = vmatprep.subr.mxu0 0.0
    %5997 = vmatpush1.msra.mxu0 0.0
    %5998 = vmatprep.subr.mxu0 0.0
    %5999 = vmatpush1.msra.mxu0 0.0
    %6000 = vmatprep.subr.mxu0 0.0
    %6001 = vmatpush1.msra.mxu0 0.0
    %6002 = vmatprep.subr.mxu0 0.0
    %6003 = vmatpush1.msra.mxu0 0.0
    %6004 = vmatprep.subr.mxu0 0.0
    %6005 = vmatpush1.msra.mxu0 0.0
    %6006 = vmatprep.subr.mxu0 0.0
    %6007 = vmatpush1.msra.mxu0 0.0
    %6008 = vmatprep.subr.mxu0 0.0
    %6009 = vmatpush1.msra.mxu0 0.0
    %6010 = vmatprep.subr.mxu0 0.0
    %6011 = vmatpush1.msra.mxu0 0.0
    %6012 = vmatprep.subr.mxu0 0.0
    %6013 = vmatpush1.msra.mxu0 0.0
    %6014 = vmatprep.subr.mxu0 0.0
    %6015 = vmatpush1.msra.mxu0 0.0
    %6016 = vmatprep.subr.mxu0 0.0
    %6017 = vmatpush1.msra.mxu0 0.0
    %6018 = vmatprep.subr.mxu0 0.0
    %6019 = vmatpush1.msra.mxu0 0.0
    %6020 = vmatprep.subr.mxu0 0.0
    %6021 = vmatpush1.msra.mxu0 0.0
    %6022 = vmatprep.subr.mxu0 0.0
    %6023 = vmatpush1.msra.mxu0 0.0
    %6024 = vmatprep.subr.mxu0 0.0
    %6025 = vmatpush1.msra.mxu0 0.0
    %6026 = vmatprep.subr.mxu0 0.0
    %6027 = vmatpush1.msra.mxu0 0.0
    %6028 = vmatprep.subr.mxu0 0.0
    %6029 = vmatpush1.msra.mxu0 0.0
    %6030 = vmatprep.subr.mxu0 0.0
    %6031 = vmatpush1.msra.mxu0 0.0
    %6032 = vmatprep.subr.mxu0 0.0
    %6033 = vmatpush1.msra.mxu0 0.0
    %6034 = vmatprep.subr.mxu0 0.0
    %6035 = vmatpush1.msra.mxu0 0.0
    %6036 = vmatprep.mubr.f32.mxu0 0.0
    %6037 = vmatmul.mubr.f32.gmra.mrb[0].mxu0 %v5830
    %v6038 = vpop.f32.mrb[0].mxu0
    %v6039 = vadd.f32 %v5595, %v6038
    %v6040 = vpop.f32.mrb[0].mxu0
    %6041 = vdwg.mxu0
    %v6043 = vrot.slane %v5899, 6
    %v6045 = vadd.f32 %v5346, %v6043
    %v6046 = vxor.u32 %v6045, 2147483648
    %v6047 = vmul.f32 %v6046, 1.442695
    %v6048 = vpow.pop %v6047
    %v6049 = vadd.f32 %v6048, 1.0
    %v6050 = vrcp.pop %v6049
    %v6051 = vmul.f32 1.0, %v6050
    %v6053 = vrot.slane %v5969, 6
    %v6055 = vadd.f32 %v5444, %v6053
    %v6056 = vxor.u32 %v6055, 2147483648
    %v6057 = vmul.f32 %v6056, 1.442695
    %v6058 = vpow.pop %v6057
    %v6059 = vadd.f32 %v6058, 1.0
    %v6060 = vrcp.pop %v6059
    %v6061 = vmul.f32 1.0, %v6060
    %v6063 = vrot.slane %v6039, 6
    %v6065 = vmul.f32 %v6051, %v6063
    %v6066 = vadd.f32 %v5542, %v6065
    %v6067 = vtanh.pop %v6066
    %v6068 = vsub.f32 1.0, %v6061
    %v6069 = vmul.f32 %v6068, %v6067
    %v6070 = vrot.slane %v5827, 6
    %v6072 = vmul.f32 %v6061, %v6070
    %v6073 = vadd.f32 %v6069, %v6072
    %6074 = vst.msk [vmem:[%s1085 - $0x2] sm:$0xc] %vm1086, %v6073
    %v6076 = vrot.slane %v6073, 2
    %v6077 = vsel %vm603, %v6076, 0
    %6079 = vmatprep.subr.mxu0 0.0
    %6080 = vmatpush1.msra.mxu0 %v5560
    %6081 = vmatprep.subr.mxu0 0.0
    %6082 = vmatpush1.msra.mxu0 %v5561
    %6083 = vmatprep.subr.mxu0 0.0
    %6084 = vmatpush1.msra.mxu0 %v5562
    %6085 = vmatprep.subr.mxu0 0.0
    %6086 = vmatpush1.msra.mxu0 %v5563
    %6087 = vmatprep.subr.mxu0 0.0
    %6088 = vmatpush1.msra.mxu0 0.0
    %6089 = vmatprep.subr.mxu0 0.0
    %6090 = vmatpush1.msra.mxu0 0.0
    %6091 = vmatprep.subr.mxu0 0.0
    %6092 = vmatpush1.msra.mxu0 0.0
    %6093 = vmatprep.subr.mxu0 0.0
    %6094 = vmatpush1.msra.mxu0 0.0
    %6095 = vmatprep.subr.mxu0 0.0
    %6096 = vmatpush1.msra.mxu0 0.0
    %6097 = vmatprep.subr.mxu0 0.0
    %6098 = vmatpush1.msra.mxu0 0.0
    %6099 = vmatprep.subr.mxu0 0.0
    %6100 = vmatpush1.msra.mxu0 0.0
    %6101 = vmatprep.subr.mxu0 0.0
    %6102 = vmatpush1.msra.mxu0 0.0
    %6103 = vmatprep.subr.mxu0 0.0
    %6104 = vmatpush1.msra.mxu0 0.0
    %6105 = vmatprep.subr.mxu0 0.0
    %6106 = vmatpush1.msra.mxu0 0.0
    %6107 = vmatprep.subr.mxu0 0.0
    %6108 = vmatpush1.msra.mxu0 0.0
    %6109 = vmatprep.subr.mxu0 0.0
    %6110 = vmatpush1.msra.mxu0 0.0
    %6111 = vmatprep.subr.mxu0 0.0
    %6112 = vmatpush1.msra.mxu0 0.0
    %6113 = vmatprep.subr.mxu0 0.0
    %6114 = vmatpush1.msra.mxu0 0.0
    %6115 = vmatprep.subr.mxu0 0.0
    %6116 = vmatpush1.msra.mxu0 0.0
    %6117 = vmatprep.subr.mxu0 0.0
    %6118 = vmatpush1.msra.mxu0 0.0
    %6119 = vmatprep.subr.mxu0 0.0
    %6120 = vmatpush1.msra.mxu0 0.0
    %6121 = vmatprep.subr.mxu0 0.0
    %6122 = vmatpush1.msra.mxu0 0.0
    %6123 = vmatprep.subr.mxu0 0.0
    %6124 = vmatpush1.msra.mxu0 0.0
    %6125 = vmatprep.subr.mxu0 0.0
    %6126 = vmatpush1.msra.mxu0 0.0
    %6127 = vmatprep.subr.mxu0 0.0
    %6128 = vmatpush1.msra.mxu0 0.0
    %6129 = vmatprep.subr.mxu0 0.0
    %6130 = vmatpush1.msra.mxu0 0.0
    %6131 = vmatprep.subr.mxu0 0.0
    %6132 = vmatpush1.msra.mxu0 0.0
    %6133 = vmatprep.subr.mxu0 0.0
    %6134 = vmatpush1.msra.mxu0 0.0
    %6135 = vmatprep.subr.mxu0 0.0
    %6136 = vmatpush1.msra.mxu0 0.0
    %6137 = vmatprep.subr.mxu0 0.0
    %6138 = vmatpush1.msra.mxu0 0.0
    %6139 = vmatprep.subr.mxu0 0.0
    %6140 = vmatpush1.msra.mxu0 0.0
    %6141 = vmatprep.subr.mxu0 0.0
    %6142 = vmatpush1.msra.mxu0 0.0
    %6143 = vmatprep.mubr.f32.mxu0 0.0
    %6144 = vmatmul.mubr.f32.gmra.mrb[0].mxu0 %v6077
    %v6145 = vpop.f32.mrb[0].mxu0
    %v6146 = vadd.f32 %v5579, %v6145
    %v6147 = vpop.f32.mrb[0].mxu0
    %6148 = vdwg.mxu0
    %6149 = vmatprep.subr.mxu0 0.0
    %6150 = vmatpush1.msra.mxu0 %v5565
    %6151 = vmatprep.subr.mxu0 0.0
    %6152 = vmatpush1.msra.mxu0 %v5566
    %6153 = vmatprep.subr.mxu0 0.0
    %6154 = vmatpush1.msra.mxu0 %v5567
    %6155 = vmatprep.subr.mxu0 0.0
    %6156 = vmatpush1.msra.mxu0 %v5568
    %6157 = vmatprep.subr.mxu0 0.0
    %6158 = vmatpush1.msra.mxu0 0.0
    %6159 = vmatprep.subr.mxu0 0.0
    %6160 = vmatpush1.msra.mxu0 0.0
    %6161 = vmatprep.subr.mxu0 0.0
    %6162 = vmatpush1.msra.mxu0 0.0
    %6163 = vmatprep.subr.mxu0 0.0
    %6164 = vmatpush1.msra.mxu0 0.0
    %6165 = vmatprep.subr.mxu0 0.0
    %6166 = vmatpush1.msra.mxu0 0.0
    %6167 = vmatprep.subr.mxu0 0.0
    %6168 = vmatpush1.msra.mxu0 0.0
    %6169 = vmatprep.subr.mxu0 0.0
    %6170 = vmatpush1.msra.mxu0 0.0
    %6171 = vmatprep.subr.mxu0 0.0
    %6172 = vmatpush1.msra.mxu0 0.0
    %6173 = vmatprep.subr.mxu0 0.0
    %6174 = vmatpush1.msra.mxu0 0.0
    %6175 = vmatprep.subr.mxu0 0.0
    %6176 = vmatpush1.msra.mxu0 0.0
    %6177 = vmatprep.subr.mxu0 0.0
    %6178 = vmatpush1.msra.mxu0 0.0
    %6179 = vmatprep.subr.mxu0 0.0
    %6180 = vmatpush1.msra.mxu0 0.0
    %6181 = vmatprep.subr.mxu0 0.0
    %6182 = vmatpush1.msra.mxu0 0.0
    %6183 = vmatprep.subr.mxu0 0.0
    %6184 = vmatpush1.msra.mxu0 0.0
    %6185 = vmatprep.subr.mxu0 0.0
    %6186 = vmatpush1.msra.mxu0 0.0
    %6187 = vmatprep.subr.mxu0 0.0
    %6188 = vmatpush1.msra.mxu0 0.0
    %6189 = vmatprep.subr.mxu0 0.0
    %6190 = vmatpush1.msra.mxu0 0.0
    %6191 = vmatprep.subr.mxu0 0.0
    %6192 = vmatpush1.msra.mxu0 0.0
    %6193 = vmatprep.subr.mxu0 0.0
    %6194 = vmatpush1.msra.mxu0 0.0
    %6195 = vmatprep.subr.mxu0 0.0
    %6196 = vmatpush1.msra.mxu0 0.0
    %6197 = vmatprep.subr.mxu0 0.0
    %6198 = vmatpush1.msra.mxu0 0.0
    %6199 = vmatprep.subr.mxu0 0.0
    %6200 = vmatpush1.msra.mxu0 0.0
    %6201 = vmatprep.subr.mxu0 0.0
    %6202 = vmatpush1.msra.mxu0 0.0
    %6203 = vmatprep.subr.mxu0 0.0
    %6204 = vmatpush1.msra.mxu0 0.0
    %6205 = vmatprep.subr.mxu0 0.0
    %6206 = vmatpush1.msra.mxu0 0.0
    %6207 = vmatprep.subr.mxu0 0.0
    %6208 = vmatpush1.msra.mxu0 0.0
    %6209 = vmatprep.subr.mxu0 0.0
    %6210 = vmatpush1.msra.mxu0 0.0
    %6211 = vmatprep.subr.mxu0 0.0
    %6212 = vmatpush1.msra.mxu0 0.0
    %6213 = vmatprep.mubr.f32.mxu0 0.0
    %6214 = vmatmul.mubr.f32.gmra.mrb[0].mxu0 %v6077
    %v6215 = vpop.f32.mrb[0].mxu0
    %v6216 = vadd.f32 %v5587, %v6215
    %v6217 = vpop.f32.mrb[0].mxu0
    %6218 = vdwg.mxu0
    %6219 = vmatprep.subr.mxu0 0.0
    %6220 = vmatpush1.msra.mxu0 %v5570
    %6221 = vmatprep.subr.mxu0 0.0
    %6222 = vmatpush1.msra.mxu0 %v5571
    %6223 = vmatprep.subr.mxu0 0.0
    %6224 = vmatpush1.msra.mxu0 %v5572
    %6225 = vmatprep.subr.mxu0 0.0
    %6226 = vmatpush1.msra.mxu0 %v5573
    %6227 = vmatprep.subr.mxu0 0.0
    %6228 = vmatpush1.msra.mxu0 0.0
    %6229 = vmatprep.subr.mxu0 0.0
    %6230 = vmatpush1.msra.mxu0 0.0
    %6231 = vmatprep.subr.mxu0 0.0
    %6232 = vmatpush1.msra.mxu0 0.0
    %6233 = vmatprep.subr.mxu0 0.0
    %6234 = vmatpush1.msra.mxu0 0.0
    %6235 = vmatprep.subr.mxu0 0.0
    %6236 = vmatpush1.msra.mxu0 0.0
    %6237 = vmatprep.subr.mxu0 0.0
    %6238 = vmatpush1.msra.mxu0 0.0
    %6239 = vmatprep.subr.mxu0 0.0
    %6240 = vmatpush1.msra.mxu0 0.0
    %6241 = vmatprep.subr.mxu0 0.0
    %6242 = vmatpush1.msra.mxu0 0.0
    %6243 = vmatprep.subr.mxu0 0.0
    %6244 = vmatpush1.msra.mxu0 0.0
    %6245 = vmatprep.subr.mxu0 0.0
    %6246 = vmatpush1.msra.mxu0 0.0
    %6247 = vmatprep.subr.mxu0 0.0
    %6248 = vmatpush1.msra.mxu0 0.0
    %6249 = vmatprep.subr.mxu0 0.0
    %6250 = vmatpush1.msra.mxu0 0.0
    %6251 = vmatprep.subr.mxu0 0.0
    %6252 = vmatpush1.msra.mxu0 0.0
    %6253 = vmatprep.subr.mxu0 0.0
    %6254 = vmatpush1.msra.mxu0 0.0
    %6255 = vmatprep.subr.mxu0 0.0
    %6256 = vmatpush1.msra.mxu0 0.0
    %6257 = vmatprep.subr.mxu0 0.0
    %6258 = vmatpush1.msra.mxu0 0.0
    %6259 = vmatprep.subr.mxu0 0.0
    %6260 = vmatpush1.msra.mxu0 0.0
    %6261 = vmatprep.subr.mxu0 0.0
    %6262 = vmatpush1.msra.mxu0 0.0
    %6263 = vmatprep.subr.mxu0 0.0
    %6264 = vmatpush1.msra.mxu0 0.0
    %6265 = vmatprep.subr.mxu0 0.0
    %6266 = vmatpush1.msra.mxu0 0.0
    %6267 = vmatprep.subr.mxu0 0.0
    %6268 = vmatpush1.msra.mxu0 0.0
    %6269 = vmatprep.subr.mxu0 0.0
    %6270 = vmatpush1.msra.mxu0 0.0
    %6271 = vmatprep.subr.mxu0 0.0
    %6272 = vmatpush1.msra.mxu0 0.0
    %6273 = vmatprep.subr.mxu0 0.0
    %6274 = vmatpush1.msra.mxu0 0.0
    %6275 = vmatprep.subr.mxu0 0.0
    %6276 = vmatpush1.msra.mxu0 0.0
    %6277 = vmatprep.subr.mxu0 0.0
    %6278 = vmatpush1.msra.mxu0 0.0
    %6279 = vmatprep.subr.mxu0 0.0
    %6280 = vmatpush1.msra.mxu0 0.0
    %6281 = vmatprep.subr.mxu0 0.0
    %6282 = vmatpush1.msra.mxu0 0.0
    %6283 = vmatprep.mubr.f32.mxu0 0.0
    %6284 = vmatmul.mubr.f32.gmra.mrb[0].mxu0 %v6077
    %v6285 = vpop.f32.mrb[0].mxu0
    %v6286 = vadd.f32 %v5595, %v6285
    %v6287 = vpop.f32.mrb[0].mxu0
    %6288 = vdwg.mxu0
    %v6290 = vrot.slane %v6146, 4
    %v6292 = vadd.f32 %v5346, %v6290
    %v6293 = vxor.u32 %v6292, 2147483648
    %v6294 = vmul.f32 %v6293, 1.442695
    %v6295 = vpow.pop %v6294
    %v6296 = vadd.f32 %v6295, 1.0
    %v6297 = vrcp.pop %v6296
    %v6298 = vmul.f32 1.0, %v6297
    %v6300 = vrot.slane %v6216, 4
    %v6302 = vadd.f32 %v5444, %v6300
    %v6303 = vxor.u32 %v6302, 2147483648
    %v6304 = vmul.f32 %v6303, 1.442695
    %v6305 = vpow.pop %v6304
    %v6306 = vadd.f32 %v6305, 1.0
    %v6307 = vrcp.pop %v6306
    %v6308 = vmul.f32 1.0, %v6307
    %v6310 = vrot.slane %v6286, 4
    %v6312 = vmul.f32 %v6298, %v6310
    %v6313 = vadd.f32 %v5542, %v6312
    %v6314 = vtanh.pop %v6313
    %v6315 = vsub.f32 1.0, %v6308
    %v6316 = vmul.f32 %v6315, %v6314
    %v6317 = vrot.slane %v6073, 6
    %v6319 = vmul.f32 %v6308, %v6317
    %v6320 = vadd.f32 %v6316, %v6319
    %6321 = vst.msk [vmem:[%s1334 - $0x4] sm:$0x30] %vm1335, %v6320
    %v6323 = vrot.slane %v6320, 4
    %v6324 = vsel %vm603, %v6323, 0
    %6326 = vmatprep.subr.mxu0 0.0
    %6327 = vmatpush1.msra.mxu0 %v5560
    %6328 = vmatprep.subr.mxu0 0.0
    %6329 = vmatpush1.msra.mxu0 %v5561
    %6330 = vmatprep.subr.mxu0 0.0
    %6331 = vmatpush1.msra.mxu0 %v5562
    %6332 = vmatprep.subr.mxu0 0.0
    %6333 = vmatpush1.msra.mxu0 %v5563
    %6334 = vmatprep.subr.mxu0 0.0
    %6335 = vmatpush1.msra.mxu0 0.0
    %6336 = vmatprep.subr.mxu0 0.0
    %6337 = vmatpush1.msra.mxu0 0.0
    %6338 = vmatprep.subr.mxu0 0.0
    %6339 = vmatpush1.msra.mxu0 0.0
    %6340 = vmatprep.subr.mxu0 0.0
    %6341 = vmatpush1.msra.mxu0 0.0
    %6342 = vmatprep.subr.mxu0 0.0
    %6343 = vmatpush1.msra.mxu0 0.0
    %6344 = vmatprep.subr.mxu0 0.0
    %6345 = vmatpush1.msra.mxu0 0.0
    %6346 = vmatprep.subr.mxu0 0.0
    %6347 = vmatpush1.msra.mxu0 0.0
    %6348 = vmatprep.subr.mxu0 0.0
    %6349 = vmatpush1.msra.mxu0 0.0
    %6350 = vmatprep.subr.mxu0 0.0
    %6351 = vmatpush1.msra.mxu0 0.0
    %6352 = vmatprep.subr.mxu0 0.0
    %6353 = vmatpush1.msra.mxu0 0.0
    %6354 = vmatprep.subr.mxu0 0.0
    %6355 = vmatpush1.msra.mxu0 0.0
    %6356 = vmatprep.subr.mxu0 0.0
    %6357 = vmatpush1.msra.mxu0 0.0
    %6358 = vmatprep.subr.mxu0 0.0
    %6359 = vmatpush1.msra.mxu0 0.0
    %6360 = vmatprep.subr.mxu0 0.0
    %6361 = vmatpush1.msra.mxu0 0.0
    %6362 = vmatprep.subr.mxu0 0.0
    %6363 = vmatpush1.msra.mxu0 0.0
    %6364 = vmatprep.subr.mxu0 0.0
    %6365 = vmatpush1.msra.mxu0 0.0
    %6366 = vmatprep.subr.mxu0 0.0
    %6367 = vmatpush1.msra.mxu0 0.0
    %6368 = vmatprep.subr.mxu0 0.0
    %6369 = vmatpush1.msra.mxu0 0.0
    %6370 = vmatprep.subr.mxu0 0.0
    %6371 = vmatpush1.msra.mxu0 0.0
    %6372 = vmatprep.subr.mxu0 0.0
    %6373 = vmatpush1.msra.mxu0 0.0
    %6374 = vmatprep.subr.mxu0 0.0
    %6375 = vmatpush1.msra.mxu0 0.0
    %6376 = vmatprep.subr.mxu0 0.0
    %6377 = vmatpush1.msra.mxu0 0.0
    %6378 = vmatprep.subr.mxu0 0.0
    %6379 = vmatpush1.msra.mxu0 0.0
    %6380 = vmatprep.subr.mxu0 0.0
    %6381 = vmatpush1.msra.mxu0 0.0
    %6382 = vmatprep.subr.mxu0 0.0
    %6383 = vmatpush1.msra.mxu0 0.0
    %6384 = vmatprep.subr.mxu0 0.0
    %6385 = vmatpush1.msra.mxu0 0.0
    %6386 = vmatprep.subr.mxu0 0.0
    %6387 = vmatpush1.msra.mxu0 0.0
    %6388 = vmatprep.subr.mxu0 0.0
    %6389 = vmatpush1.msra.mxu0 0.0
    %6390 = vmatprep.mubr.f32.mxu0 0.0
    %6391 = vmatmul.mubr.f32.gmra.mrb[0].mxu0 %v6324
    %v6392 = vpop.f32.mrb[0].mxu0
    %v6393 = vadd.f32 %v5579, %v6392
    %v6394 = vpop.f32.mrb[0].mxu0
    %6395 = vdwg.mxu0
    %6396 = vmatprep.subr.mxu0 0.0
    %6397 = vmatpush1.msra.mxu0 %v5565
    %6398 = vmatprep.subr.mxu0 0.0
    %6399 = vmatpush1.msra.mxu0 %v5566
    %6400 = vmatprep.subr.mxu0 0.0
    %6401 = vmatpush1.msra.mxu0 %v5567
    %6402 = vmatprep.subr.mxu0 0.0
    %6403 = vmatpush1.msra.mxu0 %v5568
    %6404 = vmatprep.subr.mxu0 0.0
    %6405 = vmatpush1.msra.mxu0 0.0
    %6406 = vmatprep.subr.mxu0 0.0
    %6407 = vmatpush1.msra.mxu0 0.0
    %6408 = vmatprep.subr.mxu0 0.0
    %6409 = vmatpush1.msra.mxu0 0.0
    %6410 = vmatprep.subr.mxu0 0.0
    %6411 = vmatpush1.msra.mxu0 0.0
    %6412 = vmatprep.subr.mxu0 0.0
    %6413 = vmatpush1.msra.mxu0 0.0
    %6414 = vmatprep.subr.mxu0 0.0
    %6415 = vmatpush1.msra.mxu0 0.0
    %6416 = vmatprep.subr.mxu0 0.0
    %6417 = vmatpush1.msra.mxu0 0.0
    %6418 = vmatprep.subr.mxu0 0.0
    %6419 = vmatpush1.msra.mxu0 0.0
    %6420 = vmatprep.subr.mxu0 0.0
    %6421 = vmatpush1.msra.mxu0 0.0
    %6422 = vmatprep.subr.mxu0 0.0
    %6423 = vmatpush1.msra.mxu0 0.0
    %6424 = vmatprep.subr.mxu0 0.0
    %6425 = vmatpush1.msra.mxu0 0.0
    %6426 = vmatprep.subr.mxu0 0.0
    %6427 = vmatpush1.msra.mxu0 0.0
    %6428 = vmatprep.subr.mxu0 0.0
    %6429 = vmatpush1.msra.mxu0 0.0
    %6430 = vmatprep.subr.mxu0 0.0
    %6431 = vmatpush1.msra.mxu0 0.0
    %6432 = vmatprep.subr.mxu0 0.0
    %6433 = vmatpush1.msra.mxu0 0.0
    %6434 = vmatprep.subr.mxu0 0.0
    %6435 = vmatpush1.msra.mxu0 0.0
    %6436 = vmatprep.subr.mxu0 0.0
    %6437 = vmatpush1.msra.mxu0 0.0
    %6438 = vmatprep.subr.mxu0 0.0
    %6439 = vmatpush1.msra.mxu0 0.0
    %6440 = vmatprep.subr.mxu0 0.0
    %6441 = vmatpush1.msra.mxu0 0.0
    %6442 = vmatprep.subr.mxu0 0.0
    %6443 = vmatpush1.msra.mxu0 0.0
    %6444 = vmatprep.subr.mxu0 0.0
    %6445 = vmatpush1.msra.mxu0 0.0
    %6446 = vmatprep.subr.mxu0 0.0
    %6447 = vmatpush1.msra.mxu0 0.0
    %6448 = vmatprep.subr.mxu0 0.0
    %6449 = vmatpush1.msra.mxu0 0.0
    %6450 = vmatprep.subr.mxu0 0.0
    %6451 = vmatpush1.msra.mxu0 0.0
    %6452 = vmatprep.subr.mxu0 0.0
    %6453 = vmatpush1.msra.mxu0 0.0
    %6454 = vmatprep.subr.mxu0 0.0
    %6455 = vmatpush1.msra.mxu0 0.0
    %6456 = vmatprep.subr.mxu0 0.0
    %6457 = vmatpush1.msra.mxu0 0.0
    %6458 = vmatprep.subr.mxu0 0.0
    %6459 = vmatpush1.msra.mxu0 0.0
    %6460 = vmatprep.mubr.f32.mxu0 0.0
    %6461 = vmatmul.mubr.f32.gmra.mrb[0].mxu0 %v6324
    %v6462 = vpop.f32.mrb[0].mxu0
    %v6463 = vadd.f32 %v5587, %v6462
    %v6464 = vpop.f32.mrb[0].mxu0
    %6465 = vdwg.mxu0
    %6466 = vmatprep.subr.mxu0 0.0
    %6467 = vmatpush1.msra.mxu0 %v5570
    %6468 = vmatprep.subr.mxu0 0.0
    %6469 = vmatpush1.msra.mxu0 %v5571
    %6470 = vmatprep.subr.mxu0 0.0
    %6471 = vmatpush1.msra.mxu0 %v5572
    %6472 = vmatprep.subr.mxu0 0.0
    %6473 = vmatpush1.msra.mxu0 %v5573
    %6474 = vmatprep.subr.mxu0 0.0
    %6475 = vmatpush1.msra.mxu0 0.0
    %6476 = vmatprep.subr.mxu0 0.0
    %6477 = vmatpush1.msra.mxu0 0.0
    %6478 = vmatprep.subr.mxu0 0.0
    %6479 = vmatpush1.msra.mxu0 0.0
    %6480 = vmatprep.subr.mxu0 0.0
    %6481 = vmatpush1.msra.mxu0 0.0
    %6482 = vmatprep.subr.mxu0 0.0
    %6483 = vmatpush1.msra.mxu0 0.0
    %6484 = vmatprep.subr.mxu0 0.0
    %6485 = vmatpush1.msra.mxu0 0.0
    %6486 = vmatprep.subr.mxu0 0.0
    %6487 = vmatpush1.msra.mxu0 0.0
    %6488 = vmatprep.subr.mxu0 0.0
    %6489 = vmatpush1.msra.mxu0 0.0
    %6490 = vmatprep.subr.mxu0 0.0
    %6491 = vmatpush1.msra.mxu0 0.0
    %6492 = vmatprep.subr.mxu0 0.0
    %6493 = vmatpush1.msra.mxu0 0.0
    %6494 = vmatprep.subr.mxu0 0.0
    %6495 = vmatpush1.msra.mxu0 0.0
    %6496 = vmatprep.subr.mxu0 0.0
    %6497 = vmatpush1.msra.mxu0 0.0
    %6498 = vmatprep.subr.mxu0 0.0
    %6499 = vmatpush1.msra.mxu0 0.0
    %6500 = vmatprep.subr.mxu0 0.0
    %6501 = vmatpush1.msra.mxu0 0.0
    %6502 = vmatprep.subr.mxu0 0.0
    %6503 = vmatpush1.msra.mxu0 0.0
    %6504 = vmatprep.subr.mxu0 0.0
    %6505 = vmatpush1.msra.mxu0 0.0
    %6506 = vmatprep.subr.mxu0 0.0
    %6507 = vmatpush1.msra.mxu0 0.0
    %6508 = vmatprep.subr.mxu0 0.0
    %6509 = vmatpush1.msra.mxu0 0.0
    %6510 = vmatprep.subr.mxu0 0.0
    %6511 = vmatpush1.msra.mxu0 0.0
    %6512 = vmatprep.subr.mxu0 0.0
    %6513 = vmatpush1.msra.mxu0 0.0
    %6514 = vmatprep.subr.mxu0 0.0
    %6515 = vmatpush1.msra.mxu0 0.0
    %6516 = vmatprep.subr.mxu0 0.0
    %6517 = vmatpush1.msra.mxu0 0.0
    %6518 = vmatprep.subr.mxu0 0.0
    %6519 = vmatpush1.msra.mxu0 0.0
    %6520 = vmatprep.subr.mxu0 0.0
    %6521 = vmatpush1.msra.mxu0 0.0
    %6522 = vmatprep.subr.mxu0 0.0
    %6523 = vmatpush1.msra.mxu0 0.0
    %6524 = vmatprep.subr.mxu0 0.0
    %6525 = vmatpush1.msra.mxu0 0.0
    %6526 = vmatprep.subr.mxu0 0.0
    %6527 = vmatpush1.msra.mxu0 0.0
    %6528 = vmatprep.subr.mxu0 0.0
    %6529 = vmatpush1.msra.mxu0 0.0
    %6530 = vmatprep.mubr.f32.mxu0 0.0
    %6531 = vmatmul.mubr.f32.gmra.mrb[0].mxu0 %v6324
    %v6532 = vpop.f32.mrb[0].mxu0
    %v6533 = vadd.f32 %v5595, %v6532
    %v6534 = vpop.f32.mrb[0].mxu0
    %6535 = vdwg.mxu0
    %v6537 = vrot.slane %v6393, 2
    %v6539 = vadd.f32 %v5346, %v6537
    %v6540 = vxor.u32 %v6539, 2147483648
    %v6541 = vmul.f32 %v6540, 1.442695
    %v6542 = vpow.pop %v6541
    %v6543 = vadd.f32 %v6542, 1.0
    %v6544 = vrcp.pop %v6543
    %v6545 = vmul.f32 1.0, %v6544
    %v6547 = vrot.slane %v6463, 2
    %v6549 = vadd.f32 %v5444, %v6547
    %v6550 = vxor.u32 %v6549, 2147483648
    %v6551 = vmul.f32 %v6550, 1.442695
    %v6552 = vpow.pop %v6551
    %v6553 = vadd.f32 %v6552, 1.0
    %v6554 = vrcp.pop %v6553
    %v6555 = vmul.f32 1.0, %v6554
    %v6557 = vrot.slane %v6533, 2
    %v6559 = vmul.f32 %v6545, %v6557
    %v6560 = vadd.f32 %v5542, %v6559
    %v6561 = vtanh.pop %v6560
    %v6562 = vsub.f32 1.0, %v6555
    %v6563 = vmul.f32 %v6562, %v6561
    %v6564 = vrot.slane %v6320, 6
    %v6566 = vmul.f32 %v6555, %v6564
    %v6567 = vadd.f32 %v6563, %v6566
    %6568 = vst.msk [vmem:[%s1583 - $0x6] sm:$0xc0] %vm1584, %v6567
    %v6570 = vrot.slane %v6567, 6
    %v6571 = vsel %vm603, %v6570, 0
    %6573 = vmatprep.subr.mxu0 0.0
    %6574 = vmatpush1.msra.mxu0 %v5560
    %6575 = vmatprep.subr.mxu0 0.0
    %6576 = vmatpush1.msra.mxu0 %v5561
    %6577 = vmatprep.subr.mxu0 0.0
    %6578 = vmatpush1.msra.mxu0 %v5562
    %6579 = vmatprep.subr.mxu0 0.0
    %6580 = vmatpush1.msra.mxu0 %v5563
    %6581 = vmatprep.subr.mxu0 0.0
    %6582 = vmatpush1.msra.mxu0 0.0
    %6583 = vmatprep.subr.mxu0 0.0
    %6584 = vmatpush1.msra.mxu0 0.0
    %6585 = vmatprep.subr.mxu0 0.0
    %6586 = vmatpush1.msra.mxu0 0.0
    %6587 = vmatprep.subr.mxu0 0.0
    %6588 = vmatpush1.msra.mxu0 0.0
    %6589 = vmatprep.subr.mxu0 0.0
    %6590 = vmatpush1.msra.mxu0 0.0
    %6591 = vmatprep.subr.mxu0 0.0
    %6592 = vmatpush1.msra.mxu0 0.0
    %6593 = vmatprep.subr.mxu0 0.0
    %6594 = vmatpush1.msra.mxu0 0.0
    %6595 = vmatprep.subr.mxu0 0.0
    %6596 = vmatpush1.msra.mxu0 0.0
    %6597 = vmatprep.subr.mxu0 0.0
    %6598 = vmatpush1.msra.mxu0 0.0
    %6599 = vmatprep.subr.mxu0 0.0
    %6600 = vmatpush1.msra.mxu0 0.0
    %6601 = vmatprep.subr.mxu0 0.0
    %6602 = vmatpush1.msra.mxu0 0.0
    %6603 = vmatprep.subr.mxu0 0.0
    %6604 = vmatpush1.msra.mxu0 0.0
    %6605 = vmatprep.subr.mxu0 0.0
    %6606 = vmatpush1.msra.mxu0 0.0
    %6607 = vmatprep.subr.mxu0 0.0
    %6608 = vmatpush1.msra.mxu0 0.0
    %6609 = vmatprep.subr.mxu0 0.0
    %6610 = vmatpush1.msra.mxu0 0.0
    %6611 = vmatprep.subr.mxu0 0.0
    %6612 = vmatpush1.msra.mxu0 0.0
    %6613 = vmatprep.subr.mxu0 0.0
    %6614 = vmatpush1.msra.mxu0 0.0
    %6615 = vmatprep.subr.mxu0 0.0
    %6616 = vmatpush1.msra.mxu0 0.0
    %6617 = vmatprep.subr.mxu0 0.0
    %6618 = vmatpush1.msra.mxu0 0.0
    %6619 = vmatprep.subr.mxu0 0.0
    %6620 = vmatpush1.msra.mxu0 0.0
    %6621 = vmatprep.subr.mxu0 0.0
    %6622 = vmatpush1.msra.mxu0 0.0
    %6623 = vmatprep.subr.mxu0 0.0
    %6624 = vmatpush1.msra.mxu0 0.0
    %6625 = vmatprep.subr.mxu0 0.0
    %6626 = vmatpush1.msra.mxu0 0.0
    %6627 = vmatprep.subr.mxu0 0.0
    %6628 = vmatpush1.msra.mxu0 0.0
    %6629 = vmatprep.subr.mxu0 0.0
    %6630 = vmatpush1.msra.mxu0 0.0
    %6631 = vmatprep.subr.mxu0 0.0
    %6632 = vmatpush1.msra.mxu0 0.0
    %6633 = vmatprep.subr.mxu0 0.0
    %6634 = vmatpush1.msra.mxu0 0.0
    %6635 = vmatprep.subr.mxu0 0.0
    %6636 = vmatpush1.msra.mxu0 0.0
    %6637 = vmatprep.mubr.f32.mxu0 0.0
    %6638 = vmatmul.mubr.f32.gmra.mrb[0].mxu0 %v6571
    %v6639 = vpop.f32.mrb[0].mxu0
    %v6640 = vadd.f32 %v5579, %v6639
    %v6641 = vpop.f32.mrb[0].mxu0
    %6642 = vdwg.mxu0
    %6643 = vmatprep.subr.mxu0 0.0
    %6644 = vmatpush1.msra.mxu0 %v5565
    %6645 = vmatprep.subr.mxu0 0.0
    %6646 = vmatpush1.msra.mxu0 %v5566
    %6647 = vmatprep.subr.mxu0 0.0
    %6648 = vmatpush1.msra.mxu0 %v5567
    %6649 = vmatprep.subr.mxu0 0.0
    %6650 = vmatpush1.msra.mxu0 %v5568
    %6651 = vmatprep.subr.mxu0 0.0
    %6652 = vmatpush1.msra.mxu0 0.0
    %6653 = vmatprep.subr.mxu0 0.0
    %6654 = vmatpush1.msra.mxu0 0.0
    %6655 = vmatprep.subr.mxu0 0.0
    %6656 = vmatpush1.msra.mxu0 0.0
    %6657 = vmatprep.subr.mxu0 0.0
    %6658 = vmatpush1.msra.mxu0 0.0
    %6659 = vmatprep.subr.mxu0 0.0
    %6660 = vmatpush1.msra.mxu0 0.0
    %6661 = vmatprep.subr.mxu0 0.0
    %6662 = vmatpush1.msra.mxu0 0.0
    %6663 = vmatprep.subr.mxu0 0.0
    %6664 = vmatpush1.msra.mxu0 0.0
    %6665 = vmatprep.subr.mxu0 0.0
    %6666 = vmatpush1.msra.mxu0 0.0
    %6667 = vmatprep.subr.mxu0 0.0
    %6668 = vmatpush1.msra.mxu0 0.0
    %6669 = vmatprep.subr.mxu0 0.0
    %6670 = vmatpush1.msra.mxu0 0.0
    %6671 = vmatprep.subr.mxu0 0.0
    %6672 = vmatpush1.msra.mxu0 0.0
    %6673 = vmatprep.subr.mxu0 0.0
    %6674 = vmatpush1.msra.mxu0 0.0
    %6675 = vmatprep.subr.mxu0 0.0
    %6676 = vmatpush1.msra.mxu0 0.0
    %6677 = vmatprep.subr.mxu0 0.0
    %6678 = vmatpush1.msra.mxu0 0.0
    %6679 = vmatprep.subr.mxu0 0.0
    %6680 = vmatpush1.msra.mxu0 0.0
    %6681 = vmatprep.subr.mxu0 0.0
    %6682 = vmatpush1.msra.mxu0 0.0
    %6683 = vmatprep.subr.mxu0 0.0
    %6684 = vmatpush1.msra.mxu0 0.0
    %6685 = vmatprep.subr.mxu0 0.0
    %6686 = vmatpush1.msra.mxu0 0.0
    %6687 = vmatprep.subr.mxu0 0.0
    %6688 = vmatpush1.msra.mxu0 0.0
    %6689 = vmatprep.subr.mxu0 0.0
    %6690 = vmatpush1.msra.mxu0 0.0
    %6691 = vmatprep.subr.mxu0 0.0
    %6692 = vmatpush1.msra.mxu0 0.0
    %6693 = vmatprep.subr.mxu0 0.0
    %6694 = vmatpush1.msra.mxu0 0.0
    %6695 = vmatprep.subr.mxu0 0.0
    %6696 = vmatpush1.msra.mxu0 0.0
    %6697 = vmatprep.subr.mxu0 0.0
    %6698 = vmatpush1.msra.mxu0 0.0
    %6699 = vmatprep.subr.mxu0 0.0
    %6700 = vmatpush1.msra.mxu0 0.0
    %6701 = vmatprep.subr.mxu0 0.0
    %6702 = vmatpush1.msra.mxu0 0.0
    %6703 = vmatprep.subr.mxu0 0.0
    %6704 = vmatpush1.msra.mxu0 0.0
    %6705 = vmatprep.subr.mxu0 0.0
    %6706 = vmatpush1.msra.mxu0 0.0
    %6707 = vmatprep.mubr.f32.mxu0 0.0
    %6708 = vmatmul.mubr.f32.gmra.mrb[0].mxu0 %v6571
    %v6709 = vpop.f32.mrb[0].mxu0
    %v6710 = vadd.f32 %v5587, %v6709
    %v6711 = vpop.f32.mrb[0].mxu0
    %6712 = vdwg.mxu0
    %6713 = vmatprep.subr.mxu0 0.0
    %6714 = vmatpush1.msra.mxu0 %v5570
    %6715 = vmatprep.subr.mxu0 0.0
    %6716 = vmatpush1.msra.mxu0 %v5571
    %6717 = vmatprep.subr.mxu0 0.0
    %6718 = vmatpush1.msra.mxu0 %v5572
    %6719 = vmatprep.subr.mxu0 0.0
    %6720 = vmatpush1.msra.mxu0 %v5573
    %6721 = vmatprep.subr.mxu0 0.0
    %6722 = vmatpush1.msra.mxu0 0.0
    %6723 = vmatprep.subr.mxu0 0.0
    %6724 = vmatpush1.msra.mxu0 0.0
    %6725 = vmatprep.subr.mxu0 0.0
    %6726 = vmatpush1.msra.mxu0 0.0
    %6727 = vmatprep.subr.mxu0 0.0
    %6728 = vmatpush1.msra.mxu0 0.0
    %6729 = vmatprep.subr.mxu0 0.0
    %6730 = vmatpush1.msra.mxu0 0.0
    %6731 = vmatprep.subr.mxu0 0.0
    %6732 = vmatpush1.msra.mxu0 0.0
    %6733 = vmatprep.subr.mxu0 0.0
    %6734 = vmatpush1.msra.mxu0 0.0
    %6735 = vmatprep.subr.mxu0 0.0
    %6736 = vmatpush1.msra.mxu0 0.0
    %6737 = vmatprep.subr.mxu0 0.0
    %6738 = vmatpush1.msra.mxu0 0.0
    %6739 = vmatprep.subr.mxu0 0.0
    %6740 = vmatpush1.msra.mxu0 0.0
    %6741 = vmatprep.subr.mxu0 0.0
    %6742 = vmatpush1.msra.mxu0 0.0
    %6743 = vmatprep.subr.mxu0 0.0
    %6744 = vmatpush1.msra.mxu0 0.0
    %6745 = vmatprep.subr.mxu0 0.0
    %6746 = vmatpush1.msra.mxu0 0.0
    %6747 = vmatprep.subr.mxu0 0.0
    %6748 = vmatpush1.msra.mxu0 0.0
    %6749 = vmatprep.subr.mxu0 0.0
    %6750 = vmatpush1.msra.mxu0 0.0
    %6751 = vmatprep.subr.mxu0 0.0
    %6752 = vmatpush1.msra.mxu0 0.0
    %6753 = vmatprep.subr.mxu0 0.0
    %6754 = vmatpush1.msra.mxu0 0.0
    %6755 = vmatprep.subr.mxu0 0.0
    %6756 = vmatpush1.msra.mxu0 0.0
    %6757 = vmatprep.subr.mxu0 0.0
    %6758 = vmatpush1.msra.mxu0 0.0
    %6759 = vmatprep.subr.mxu0 0.0
    %6760 = vmatpush1.msra.mxu0 0.0
    %6761 = vmatprep.subr.mxu0 0.0
    %6762 = vmatpush1.msra.mxu0 0.0
    %6763 = vmatprep.subr.mxu0 0.0
    %6764 = vmatpush1.msra.mxu0 0.0
    %6765 = vmatprep.subr.mxu0 0.0
    %6766 = vmatpush1.msra.mxu0 0.0
    %6767 = vmatprep.subr.mxu0 0.0
    %6768 = vmatpush1.msra.mxu0 0.0
    %6769 = vmatprep.subr.mxu0 0.0
    %6770 = vmatpush1.msra.mxu0 0.0
    %6771 = vmatprep.subr.mxu0 0.0
    %6772 = vmatpush1.msra.mxu0 0.0
    %6773 = vmatprep.subr.mxu0 0.0
    %6774 = vmatpush1.msra.mxu0 0.0
    %6775 = vmatprep.subr.mxu0 0.0
    %6776 = vmatpush1.msra.mxu0 0.0
    %6777 = vmatprep.mubr.f32.mxu0 0.0
    %6778 = vmatmul.mubr.f32.gmra.mrb[0].mxu0 %v6571
    %v6779 = vpop.f32.mrb[0].mxu0
    %v6780 = vadd.f32 %v5595, %v6779
    %v6781 = vpop.f32.mrb[0].mxu0
    %6782 = vdwg.mxu0
    %v6783 = vadd.f32 %v5351, %v6640
    %v6784 = vxor.u32 %v6783, 2147483648
    %v6785 = vmul.f32 %v6784, 1.442695
    %v6786 = vpow.pop %v6785
    %v6787 = vadd.f32 %v6786, 1.0
    %v6788 = vrcp.pop %v6787
    %v6789 = vmul.f32 1.0, %v6788
    %v6790 = vadd.f32 %v5449, %v6710
    %v6791 = vxor.u32 %v6790, 2147483648
    %v6792 = vmul.f32 %v6791, 1.442695
    %v6793 = vpow.pop %v6792
    %v6794 = vadd.f32 %v6793, 1.0
    %v6795 = vrcp.pop %v6794
    %v6796 = vmul.f32 1.0, %v6795
    %v6797 = vmul.f32 %v6789, %v6780
    %v6798 = vadd.f32 %v5547, %v6797
    %v6799 = vtanh.pop %v6798
    %v6800 = vsub.f32 1.0, %v6796
    %v6801 = vmul.f32 %v6800, %v6799
    %v6803 = vmul.f32 %v6796, %v6570
    %v6804 = vadd.f32 %v6801, %v6803
    %6805 = vst.msk [vmem:[%s1822] sm:$0x3] %vm838, %v6804
    %v6807 = vsel %vm603, %v6804, 0
    %6809 = vmatprep.subr.mxu0 0.0
    %6810 = vmatpush1.msra.mxu0 %v5560
    %6811 = vmatprep.subr.mxu0 0.0
    %6812 = vmatpush1.msra.mxu0 %v5561
    %6813 = vmatprep.subr.mxu0 0.0
    %6814 = vmatpush1.msra.mxu0 %v5562
    %6815 = vmatprep.subr.mxu0 0.0
    %6816 = vmatpush1.msra.mxu0 %v5563
    %6817 = vmatprep.subr.mxu0 0.0
    %6818 = vmatpush1.msra.mxu0 0.0
    %6819 = vmatprep.subr.mxu0 0.0
    %6820 = vmatpush1.msra.mxu0 0.0
    %6821 = vmatprep.subr.mxu0 0.0
    %6822 = vmatpush1.msra.mxu0 0.0
    %6823 = vmatprep.subr.mxu0 0.0
    %6824 = vmatpush1.msra.mxu0 0.0
    %6825 = vmatprep.subr.mxu0 0.0
    %6826 = vmatpush1.msra.mxu0 0.0
    %6827 = vmatprep.subr.mxu0 0.0
    %6828 = vmatpush1.msra.mxu0 0.0
    %6829 = vmatprep.subr.mxu0 0.0
    %6830 = vmatpush1.msra.mxu0 0.0
    %6831 = vmatprep.subr.mxu0 0.0
    %6832 = vmatpush1.msra.mxu0 0.0
    %6833 = vmatprep.subr.mxu0 0.0
    %6834 = vmatpush1.msra.mxu0 0.0
    %6835 = vmatprep.subr.mxu0 0.0
    %6836 = vmatpush1.msra.mxu0 0.0
    %6837 = vmatprep.subr.mxu0 0.0
    %6838 = vmatpush1.msra.mxu0 0.0
    %6839 = vmatprep.subr.mxu0 0.0
    %6840 = vmatpush1.msra.mxu0 0.0
    %6841 = vmatprep.subr.mxu0 0.0
    %6842 = vmatpush1.msra.mxu0 0.0
    %6843 = vmatprep.subr.mxu0 0.0
    %6844 = vmatpush1.msra.mxu0 0.0
    %6845 = vmatprep.subr.mxu0 0.0
    %6846 = vmatpush1.msra.mxu0 0.0
    %6847 = vmatprep.subr.mxu0 0.0
    %6848 = vmatpush1.msra.mxu0 0.0
    %6849 = vmatprep.subr.mxu0 0.0
    %6850 = vmatpush1.msra.mxu0 0.0
    %6851 = vmatprep.subr.mxu0 0.0
    %6852 = vmatpush1.msra.mxu0 0.0
    %6853 = vmatprep.subr.mxu0 0.0
    %6854 = vmatpush1.msra.mxu0 0.0
    %6855 = vmatprep.subr.mxu0 0.0
    %6856 = vmatpush1.msra.mxu0 0.0
    %6857 = vmatprep.subr.mxu0 0.0
    %6858 = vmatpush1.msra.mxu0 0.0
    %6859 = vmatprep.subr.mxu0 0.0
    %6860 = vmatpush1.msra.mxu0 0.0
    %6861 = vmatprep.subr.mxu0 0.0
    %6862 = vmatpush1.msra.mxu0 0.0
    %6863 = vmatprep.subr.mxu0 0.0
    %6864 = vmatpush1.msra.mxu0 0.0
    %6865 = vmatprep.subr.mxu0 0.0
    %6866 = vmatpush1.msra.mxu0 0.0
    %6867 = vmatprep.subr.mxu0 0.0
    %6868 = vmatpush1.msra.mxu0 0.0
    %6869 = vmatprep.subr.mxu0 0.0
    %6870 = vmatpush1.msra.mxu0 0.0
    %6871 = vmatprep.subr.mxu0 0.0
    %6872 = vmatpush1.msra.mxu0 0.0
    %6873 = vmatprep.mubr.f32.mxu0 0.0
    %6874 = vmatmul.mubr.f32.gmra.mrb[0].mxu0 %v6807
    %v6875 = vpop.f32.mrb[0].mxu0
    %v6876 = vadd.f32 %v5579, %v6875
    %v6877 = vpop.f32.mrb[0].mxu0
    %6878 = vdwg.mxu0
    %6879 = vmatprep.subr.mxu0 0.0
    %6880 = vmatpush1.msra.mxu0 %v5565
    %6881 = vmatprep.subr.mxu0 0.0
    %6882 = vmatpush1.msra.mxu0 %v5566
    %6883 = vmatprep.subr.mxu0 0.0
    %6884 = vmatpush1.msra.mxu0 %v5567
    %6885 = vmatprep.subr.mxu0 0.0
    %6886 = vmatpush1.msra.mxu0 %v5568
    %6887 = vmatprep.subr.mxu0 0.0
    %6888 = vmatpush1.msra.mxu0 0.0
    %6889 = vmatprep.subr.mxu0 0.0
    %6890 = vmatpush1.msra.mxu0 0.0
    %6891 = vmatprep.subr.mxu0 0.0
    %6892 = vmatpush1.msra.mxu0 0.0
    %6893 = vmatprep.subr.mxu0 0.0
    %6894 = vmatpush1.msra.mxu0 0.0
    %6895 = vmatprep.subr.mxu0 0.0
    %6896 = vmatpush1.msra.mxu0 0.0
    %6897 = vmatprep.subr.mxu0 0.0
    %6898 = vmatpush1.msra.mxu0 0.0
    %6899 = vmatprep.subr.mxu0 0.0
    %6900 = vmatpush1.msra.mxu0 0.0
    %6901 = vmatprep.subr.mxu0 0.0
    %6902 = vmatpush1.msra.mxu0 0.0
    %6903 = vmatprep.subr.mxu0 0.0
    %6904 = vmatpush1.msra.mxu0 0.0
    %6905 = vmatprep.subr.mxu0 0.0
    %6906 = vmatpush1.msra.mxu0 0.0
    %6907 = vmatprep.subr.mxu0 0.0
    %6908 = vmatpush1.msra.mxu0 0.0
    %6909 = vmatprep.subr.mxu0 0.0
    %6910 = vmatpush1.msra.mxu0 0.0
    %6911 = vmatprep.subr.mxu0 0.0
    %6912 = vmatpush1.msra.mxu0 0.0
    %6913 = vmatprep.subr.mxu0 0.0
    %6914 = vmatpush1.msra.mxu0 0.0
    %6915 = vmatprep.subr.mxu0 0.0
    %6916 = vmatpush1.msra.mxu0 0.0
    %6917 = vmatprep.subr.mxu0 0.0
    %6918 = vmatpush1.msra.mxu0 0.0
    %6919 = vmatprep.subr.mxu0 0.0
    %6920 = vmatpush1.msra.mxu0 0.0
    %6921 = vmatprep.subr.mxu0 0.0
    %6922 = vmatpush1.msra.mxu0 0.0
    %6923 = vmatprep.subr.mxu0 0.0
    %6924 = vmatpush1.msra.mxu0 0.0
    %6925 = vmatprep.subr.mxu0 0.0
    %6926 = vmatpush1.msra.mxu0 0.0
    %6927 = vmatprep.subr.mxu0 0.0
    %6928 = vmatpush1.msra.mxu0 0.0
    %6929 = vmatprep.subr.mxu0 0.0
    %6930 = vmatpush1.msra.mxu0 0.0
    %6931 = vmatprep.subr.mxu0 0.0
    %6932 = vmatpush1.msra.mxu0 0.0
    %6933 = vmatprep.subr.mxu0 0.0
    %6934 = vmatpush1.msra.mxu0 0.0
    %6935 = vmatprep.subr.mxu0 0.0
    %6936 = vmatpush1.msra.mxu0 0.0
    %6937 = vmatprep.subr.mxu0 0.0
    %6938 = vmatpush1.msra.mxu0 0.0
    %6939 = vmatprep.subr.mxu0 0.0
    %6940 = vmatpush1.msra.mxu0 0.0
    %6941 = vmatprep.subr.mxu0 0.0
    %6942 = vmatpush1.msra.mxu0 0.0
    %6943 = vmatprep.mubr.f32.mxu0 0.0
    %6944 = vmatmul.mubr.f32.gmra.mrb[0].mxu0 %v6807
    %v6945 = vpop.f32.mrb[0].mxu0
    %v6946 = vadd.f32 %v5587, %v6945
    %v6947 = vpop.f32.mrb[0].mxu0
    %6948 = vdwg.mxu0
    %6949 = vmatprep.subr.mxu0 0.0
    %6950 = vmatpush1.msra.mxu0 %v5570
    %6951 = vmatprep.subr.mxu0 0.0
    %6952 = vmatpush1.msra.mxu0 %v5571
    %6953 = vmatprep.subr.mxu0 0.0
    %6954 = vmatpush1.msra.mxu0 %v5572
    %6955 = vmatprep.subr.mxu0 0.0
    %6956 = vmatpush1.msra.mxu0 %v5573
    %6957 = vmatprep.subr.mxu0 0.0
    %6958 = vmatpush1.msra.mxu0 0.0
    %6959 = vmatprep.subr.mxu0 0.0
    %6960 = vmatpush1.msra.mxu0 0.0
    %6961 = vmatprep.subr.mxu0 0.0
    %6962 = vmatpush1.msra.mxu0 0.0
    %6963 = vmatprep.subr.mxu0 0.0
    %6964 = vmatpush1.msra.mxu0 0.0
    %6965 = vmatprep.subr.mxu0 0.0
    %6966 = vmatpush1.msra.mxu0 0.0
    %6967 = vmatprep.subr.mxu0 0.0
    %6968 = vmatpush1.msra.mxu0 0.0
    %6969 = vmatprep.subr.mxu0 0.0
    %6970 = vmatpush1.msra.mxu0 0.0
    %6971 = vmatprep.subr.mxu0 0.0
    %6972 = vmatpush1.msra.mxu0 0.0
    %6973 = vmatprep.subr.mxu0 0.0
    %6974 = vmatpush1.msra.mxu0 0.0
    %6975 = vmatprep.subr.mxu0 0.0
    %6976 = vmatpush1.msra.mxu0 0.0
    %6977 = vmatprep.subr.mxu0 0.0
    %6978 = vmatpush1.msra.mxu0 0.0
    %6979 = vmatprep.subr.mxu0 0.0
    %6980 = vmatpush1.msra.mxu0 0.0
    %6981 = vmatprep.subr.mxu0 0.0
    %6982 = vmatpush1.msra.mxu0 0.0
    %6983 = vmatprep.subr.mxu0 0.0
    %6984 = vmatpush1.msra.mxu0 0.0
    %6985 = vmatprep.subr.mxu0 0.0
    %6986 = vmatpush1.msra.mxu0 0.0
    %6987 = vmatprep.subr.mxu0 0.0
    %6988 = vmatpush1.msra.mxu0 0.0
    %6989 = vmatprep.subr.mxu0 0.0
    %6990 = vmatpush1.msra.mxu0 0.0
    %6991 = vmatprep.subr.mxu0 0.0
    %6992 = vmatpush1.msra.mxu0 0.0
    %6993 = vmatprep.subr.mxu0 0.0
    %6994 = vmatpush1.msra.mxu0 0.0
    %6995 = vmatprep.subr.mxu0 0.0
    %6996 = vmatpush1.msra.mxu0 0.0
    %6997 = vmatprep.subr.mxu0 0.0
    %6998 = vmatpush1.msra.mxu0 0.0
    %6999 = vmatprep.subr.mxu0 0.0
    %7000 = vmatpush1.msra.mxu0 0.0
    %7001 = vmatprep.subr.mxu0 0.0
    %7002 = vmatpush1.msra.mxu0 0.0
    %7003 = vmatprep.subr.mxu0 0.0
    %7004 = vmatpush1.msra.mxu0 0.0
    %7005 = vmatprep.subr.mxu0 0.0
    %7006 = vmatpush1.msra.mxu0 0.0
    %7007 = vmatprep.subr.mxu0 0.0
    %7008 = vmatpush1.msra.mxu0 0.0
    %7009 = vmatprep.subr.mxu0 0.0
    %7010 = vmatpush1.msra.mxu0 0.0
    %7011 = vmatprep.subr.mxu0 0.0
    %7012 = vmatpush1.msra.mxu0 0.0
    %7013 = vmatprep.mubr.f32.mxu0 0.0
    %7014 = vmatmul.mubr.f32.gmra.mrb[0].mxu0 %v6807
    %v7015 = vpop.f32.mrb[0].mxu0
    %v7016 = vadd.f32 %v5595, %v7015
    %v7017 = vpop.f32.mrb[0].mxu0
    %7018 = vdwg.mxu0
    %v7020 = vrot.slane %v6876, 6
    %v7022 = vadd.f32 %v5351, %v7020
    %v7023 = vxor.u32 %v7022, 2147483648
    %v7024 = vmul.f32 %v7023, 1.442695
    %v7025 = vpow.pop %v7024
    %v7026 = vadd.f32 %v7025, 1.0
    %v7027 = vrcp.pop %v7026
    %v7028 = vmul.f32 1.0, %v7027
    %v7030 = vrot.slane %v6946, 6
    %v7032 = vadd.f32 %v5449, %v7030
    %v7033 = vxor.u32 %v7032, 2147483648
    %v7034 = vmul.f32 %v7033, 1.442695
    %v7035 = vpow.pop %v7034
    %v7036 = vadd.f32 %v7035, 1.0
    %v7037 = vrcp.pop %v7036
    %v7038 = vmul.f32 1.0, %v7037
    %v7040 = vrot.slane %v7016, 6
    %v7042 = vmul.f32 %v7028, %v7040
    %v7043 = vadd.f32 %v5547, %v7042
    %v7044 = vtanh.pop %v7043
    %v7045 = vsub.f32 1.0, %v7038
    %v7046 = vmul.f32 %v7045, %v7044
    %v7047 = vrot.slane %v6804, 6
    %v7049 = vmul.f32 %v7038, %v7047
    %v7050 = vadd.f32 %v7046, %v7049
    %7051 = vst.msk [vmem:[%s2069 - $0x2] sm:$0xc] %vm1086, %v7050
    %v7053 = vrot.slane %v7050, 2
    %v7054 = vsel %vm603, %v7053, 0
    %7056 = vmatprep.subr.mxu0 0.0
    %7057 = vmatpush1.msra.mxu0 %v5560
    %7058 = vmatprep.subr.mxu0 0.0
    %7059 = vmatpush1.msra.mxu0 %v5561
    %7060 = vmatprep.subr.mxu0 0.0
    %7061 = vmatpush1.msra.mxu0 %v5562
    %7062 = vmatprep.subr.mxu0 0.0
    %7063 = vmatpush1.msra.mxu0 %v5563
    %7064 = vmatprep.subr.mxu0 0.0
    %7065 = vmatpush1.msra.mxu0 0.0
    %7066 = vmatprep.subr.mxu0 0.0
    %7067 = vmatpush1.msra.mxu0 0.0
    %7068 = vmatprep.subr.mxu0 0.0
    %7069 = vmatpush1.msra.mxu0 0.0
    %7070 = vmatprep.subr.mxu0 0.0
    %7071 = vmatpush1.msra.mxu0 0.0
    %7072 = vmatprep.subr.mxu0 0.0
    %7073 = vmatpush1.msra.mxu0 0.0
    %7074 = vmatprep.subr.mxu0 0.0
    %7075 = vmatpush1.msra.mxu0 0.0
    %7076 = vmatprep.subr.mxu0 0.0
    %7077 = vmatpush1.msra.mxu0 0.0
    %7078 = vmatprep.subr.mxu0 0.0
    %7079 = vmatpush1.msra.mxu0 0.0
    %7080 = vmatprep.subr.mxu0 0.0
    %7081 = vmatpush1.msra.mxu0 0.0
    %7082 = vmatprep.subr.mxu0 0.0
    %7083 = vmatpush1.msra.mxu0 0.0
    %7084 = vmatprep.subr.mxu0 0.0
    %7085 = vmatpush1.msra.mxu0 0.0
    %7086 = vmatprep.subr.mxu0 0.0
    %7087 = vmatpush1.msra.mxu0 0.0
    %7088 = vmatprep.subr.mxu0 0.0
    %7089 = vmatpush1.msra.mxu0 0.0
    %7090 = vmatprep.subr.mxu0 0.0
    %7091 = vmatpush1.msra.mxu0 0.0
    %7092 = vmatprep.subr.mxu0 0.0
    %7093 = vmatpush1.msra.mxu0 0.0
    %7094 = vmatprep.subr.mxu0 0.0
    %7095 = vmatpush1.msra.mxu0 0.0
    %7096 = vmatprep.subr.mxu0 0.0
    %7097 = vmatpush1.msra.mxu0 0.0
    %7098 = vmatprep.subr.mxu0 0.0
    %7099 = vmatpush1.msra.mxu0 0.0
    %7100 = vmatprep.subr.mxu0 0.0
    %7101 = vmatpush1.msra.mxu0 0.0
    %7102 = vmatprep.subr.mxu0 0.0
    %7103 = vmatpush1.msra.mxu0 0.0
    %7104 = vmatprep.subr.mxu0 0.0
    %7105 = vmatpush1.msra.mxu0 0.0
    %7106 = vmatprep.subr.mxu0 0.0
    %7107 = vmatpush1.msra.mxu0 0.0
    %7108 = vmatprep.subr.mxu0 0.0
    %7109 = vmatpush1.msra.mxu0 0.0
    %7110 = vmatprep.subr.mxu0 0.0
    %7111 = vmatpush1.msra.mxu0 0.0
    %7112 = vmatprep.subr.mxu0 0.0
    %7113 = vmatpush1.msra.mxu0 0.0
    %7114 = vmatprep.subr.mxu0 0.0
    %7115 = vmatpush1.msra.mxu0 0.0
    %7116 = vmatprep.subr.mxu0 0.0
    %7117 = vmatpush1.msra.mxu0 0.0
    %7118 = vmatprep.subr.mxu0 0.0
    %7119 = vmatpush1.msra.mxu0 0.0
    %7120 = vmatprep.mubr.f32.mxu0 0.0
    %7121 = vmatmul.mubr.f32.gmra.mrb[0].mxu0 %v7054
    %v7122 = vpop.f32.mrb[0].mxu0
    %v7123 = vadd.f32 %v5579, %v7122
    %v7124 = vpop.f32.mrb[0].mxu0
    %7125 = vdwg.mxu0
    %7126 = vmatprep.subr.mxu0 0.0
    %7127 = vmatpush1.msra.mxu0 %v5565
    %7128 = vmatprep.subr.mxu0 0.0
    %7129 = vmatpush1.msra.mxu0 %v5566
    %7130 = vmatprep.subr.mxu0 0.0
    %7131 = vmatpush1.msra.mxu0 %v5567
    %7132 = vmatprep.subr.mxu0 0.0
    %7133 = vmatpush1.msra.mxu0 %v5568
    %7134 = vmatprep.subr.mxu0 0.0
    %7135 = vmatpush1.msra.mxu0 0.0
    %7136 = vmatprep.subr.mxu0 0.0
    %7137 = vmatpush1.msra.mxu0 0.0
    %7138 = vmatprep.subr.mxu0 0.0
    %7139 = vmatpush1.msra.mxu0 0.0
    %7140 = vmatprep.subr.mxu0 0.0
    %7141 = vmatpush1.msra.mxu0 0.0
    %7142 = vmatprep.subr.mxu0 0.0
    %7143 = vmatpush1.msra.mxu0 0.0
    %7144 = vmatprep.subr.mxu0 0.0
    %7145 = vmatpush1.msra.mxu0 0.0
    %7146 = vmatprep.subr.mxu0 0.0
    %7147 = vmatpush1.msra.mxu0 0.0
    %7148 = vmatprep.subr.mxu0 0.0
    %7149 = vmatpush1.msra.mxu0 0.0
    %7150 = vmatprep.subr.mxu0 0.0
    %7151 = vmatpush1.msra.mxu0 0.0
    %7152 = vmatprep.subr.mxu0 0.0
    %7153 = vmatpush1.msra.mxu0 0.0
    %7154 = vmatprep.subr.mxu0 0.0
    %7155 = vmatpush1.msra.mxu0 0.0
    %7156 = vmatprep.subr.mxu0 0.0
    %7157 = vmatpush1.msra.mxu0 0.0
    %7158 = vmatprep.subr.mxu0 0.0
    %7159 = vmatpush1.msra.mxu0 0.0
    %7160 = vmatprep.subr.mxu0 0.0
    %7161 = vmatpush1.msra.mxu0 0.0
    %7162 = vmatprep.subr.mxu0 0.0
    %7163 = vmatpush1.msra.mxu0 0.0
    %7164 = vmatprep.subr.mxu0 0.0
    %7165 = vmatpush1.msra.mxu0 0.0
    %7166 = vmatprep.subr.mxu0 0.0
    %7167 = vmatpush1.msra.mxu0 0.0
    %7168 = vmatprep.subr.mxu0 0.0
    %7169 = vmatpush1.msra.mxu0 0.0
    %7170 = vmatprep.subr.mxu0 0.0
    %7171 = vmatpush1.msra.mxu0 0.0
    %7172 = vmatprep.subr.mxu0 0.0
    %7173 = vmatpush1.msra.mxu0 0.0
    %7174 = vmatprep.subr.mxu0 0.0
    %7175 = vmatpush1.msra.mxu0 0.0
    %7176 = vmatprep.subr.mxu0 0.0
    %7177 = vmatpush1.msra.mxu0 0.0
    %7178 = vmatprep.subr.mxu0 0.0
    %7179 = vmatpush1.msra.mxu0 0.0
    %7180 = vmatprep.subr.mxu0 0.0
    %7181 = vmatpush1.msra.mxu0 0.0
    %7182 = vmatprep.subr.mxu0 0.0
    %7183 = vmatpush1.msra.mxu0 0.0
    %7184 = vmatprep.subr.mxu0 0.0
    %7185 = vmatpush1.msra.mxu0 0.0
    %7186 = vmatprep.subr.mxu0 0.0
    %7187 = vmatpush1.msra.mxu0 0.0
    %7188 = vmatprep.subr.mxu0 0.0
    %7189 = vmatpush1.msra.mxu0 0.0
    %7190 = vmatprep.mubr.f32.mxu0 0.0
    %7191 = vmatmul.mubr.f32.gmra.mrb[0].mxu0 %v7054
    %v7192 = vpop.f32.mrb[0].mxu0
    %v7193 = vadd.f32 %v5587, %v7192
    %v7194 = vpop.f32.mrb[0].mxu0
    %7195 = vdwg.mxu0
    %7196 = vmatprep.subr.mxu0 0.0
    %7197 = vmatpush1.msra.mxu0 %v5570
    %7198 = vmatprep.subr.mxu0 0.0
    %7199 = vmatpush1.msra.mxu0 %v5571
    %7200 = vmatprep.subr.mxu0 0.0
    %7201 = vmatpush1.msra.mxu0 %v5572
    %7202 = vmatprep.subr.mxu0 0.0
    %7203 = vmatpush1.msra.mxu0 %v5573
    %7204 = vmatprep.subr.mxu0 0.0
    %7205 = vmatpush1.msra.mxu0 0.0
    %7206 = vmatprep.subr.mxu0 0.0
    %7207 = vmatpush1.msra.mxu0 0.0
    %7208 = vmatprep.subr.mxu0 0.0
    %7209 = vmatpush1.msra.mxu0 0.0
    %7210 = vmatprep.subr.mxu0 0.0
    %7211 = vmatpush1.msra.mxu0 0.0
    %7212 = vmatprep.subr.mxu0 0.0
    %7213 = vmatpush1.msra.mxu0 0.0
    %7214 = vmatprep.subr.mxu0 0.0
    %7215 = vmatpush1.msra.mxu0 0.0
    %7216 = vmatprep.subr.mxu0 0.0
    %7217 = vmatpush1.msra.mxu0 0.0
    %7218 = vmatprep.subr.mxu0 0.0
    %7219 = vmatpush1.msra.mxu0 0.0
    %7220 = vmatprep.subr.mxu0 0.0
    %7221 = vmatpush1.msra.mxu0 0.0
    %7222 = vmatprep.subr.mxu0 0.0
    %7223 = vmatpush1.msra.mxu0 0.0
    %7224 = vmatprep.subr.mxu0 0.0
    %7225 = vmatpush1.msra.mxu0 0.0
    %7226 = vmatprep.subr.mxu0 0.0
    %7227 = vmatpush1.msra.mxu0 0.0
    %7228 = vmatprep.subr.mxu0 0.0
    %7229 = vmatpush1.msra.mxu0 0.0
    %7230 = vmatprep.subr.mxu0 0.0
    %7231 = vmatpush1.msra.mxu0 0.0
    %7232 = vmatprep.subr.mxu0 0.0
    %7233 = vmatpush1.msra.mxu0 0.0
    %7234 = vmatprep.subr.mxu0 0.0
    %7235 = vmatpush1.msra.mxu0 0.0
    %7236 = vmatprep.subr.mxu0 0.0
    %7237 = vmatpush1.msra.mxu0 0.0
    %7238 = vmatprep.subr.mxu0 0.0
    %7239 = vmatpush1.msra.mxu0 0.0
    %7240 = vmatprep.subr.mxu0 0.0
    %7241 = vmatpush1.msra.mxu0 0.0
    %7242 = vmatprep.subr.mxu0 0.0
    %7243 = vmatpush1.msra.mxu0 0.0
    %7244 = vmatprep.subr.mxu0 0.0
    %7245 = vmatpush1.msra.mxu0 0.0
    %7246 = vmatprep.subr.mxu0 0.0
    %7247 = vmatpush1.msra.mxu0 0.0
    %7248 = vmatprep.subr.mxu0 0.0
    %7249 = vmatpush1.msra.mxu0 0.0
    %7250 = vmatprep.subr.mxu0 0.0
    %7251 = vmatpush1.msra.mxu0 0.0
    %7252 = vmatprep.subr.mxu0 0.0
    %7253 = vmatpush1.msra.mxu0 0.0
    %7254 = vmatprep.subr.mxu0 0.0
    %7255 = vmatpush1.msra.mxu0 0.0
    %7256 = vmatprep.subr.mxu0 0.0
    %7257 = vmatpush1.msra.mxu0 0.0
    %7258 = vmatprep.subr.mxu0 0.0
    %7259 = vmatpush1.msra.mxu0 0.0
    %7260 = vmatprep.mubr.f32.mxu0 0.0
    %7261 = vmatmul.mubr.f32.gmra.mrb[0].mxu0 %v7054
    %v7262 = vpop.f32.mrb[0].mxu0
    %v7263 = vadd.f32 %v5595, %v7262
    %v7264 = vpop.f32.mrb[0].mxu0
    %7265 = vdwg.mxu0
    %v7267 = vrot.slane %v7123, 4
    %v7269 = vadd.f32 %v5351, %v7267
    %v7270 = vxor.u32 %v7269, 2147483648
    %v7271 = vmul.f32 %v7270, 1.442695
    %v7272 = vpow.pop %v7271
    %v7273 = vadd.f32 %v7272, 1.0
    %v7274 = vrcp.pop %v7273
    %v7275 = vmul.f32 1.0, %v7274
    %v7277 = vrot.slane %v7193, 4
    %v7279 = vadd.f32 %v5449, %v7277
    %v7280 = vxor.u32 %v7279, 2147483648
    %v7281 = vmul.f32 %v7280, 1.442695
    %v7282 = vpow.pop %v7281
    %v7283 = vadd.f32 %v7282, 1.0
    %v7284 = vrcp.pop %v7283
    %v7285 = vmul.f32 1.0, %v7284
    %v7287 = vrot.slane %v7263, 4
    %v7289 = vmul.f32 %v7275, %v7287
    %v7290 = vadd.f32 %v5547, %v7289
    %v7291 = vtanh.pop %v7290
    %v7292 = vsub.f32 1.0, %v7285
    %v7293 = vmul.f32 %v7292, %v7291
    %v7294 = vrot.slane %v7050, 6
    %v7296 = vmul.f32 %v7285, %v7294
    %v7297 = vadd.f32 %v7293, %v7296
    %7298 = vst.msk [vmem:[%s2317 - $0x4] sm:$0x30] %vm1335, %v7297
    %v7300 = vrot.slane %v7297, 4
    %v7301 = vsel %vm603, %v7300, 0
    %7303 = vmatprep.subr.mxu0 0.0
    %7304 = vmatpush1.msra.mxu0 %v5560
    %7305 = vmatprep.subr.mxu0 0.0
    %7306 = vmatpush1.msra.mxu0 %v5561
    %7307 = vmatprep.subr.mxu0 0.0
    %7308 = vmatpush1.msra.mxu0 %v5562
    %7309 = vmatprep.subr.mxu0 0.0
    %7310 = vmatpush1.msra.mxu0 %v5563
    %7311 = vmatprep.subr.mxu0 0.0
    %7312 = vmatpush1.msra.mxu0 0.0
    %7313 = vmatprep.subr.mxu0 0.0
    %7314 = vmatpush1.msra.mxu0 0.0
    %7315 = vmatprep.subr.mxu0 0.0
    %7316 = vmatpush1.msra.mxu0 0.0
    %7317 = vmatprep.subr.mxu0 0.0
    %7318 = vmatpush1.msra.mxu0 0.0
    %7319 = vmatprep.subr.mxu0 0.0
    %7320 = vmatpush1.msra.mxu0 0.0
    %7321 = vmatprep.subr.mxu0 0.0
    %7322 = vmatpush1.msra.mxu0 0.0
    %7323 = vmatprep.subr.mxu0 0.0
    %7324 = vmatpush1.msra.mxu0 0.0
    %7325 = vmatprep.subr.mxu0 0.0
    %7326 = vmatpush1.msra.mxu0 0.0
    %7327 = vmatprep.subr.mxu0 0.0
    %7328 = vmatpush1.msra.mxu0 0.0
    %7329 = vmatprep.subr.mxu0 0.0
    %7330 = vmatpush1.msra.mxu0 0.0
    %7331 = vmatprep.subr.mxu0 0.0
    %7332 = vmatpush1.msra.mxu0 0.0
    %7333 = vmatprep.subr.mxu0 0.0
    %7334 = vmatpush1.msra.mxu0 0.0
    %7335 = vmatprep.subr.mxu0 0.0
    %7336 = vmatpush1.msra.mxu0 0.0
    %7337 = vmatprep.subr.mxu0 0.0
    %7338 = vmatpush1.msra.mxu0 0.0
    %7339 = vmatprep.subr.mxu0 0.0
    %7340 = vmatpush1.msra.mxu0 0.0
    %7341 = vmatprep.subr.mxu0 0.0
    %7342 = vmatpush1.msra.mxu0 0.0
    %7343 = vmatprep.subr.mxu0 0.0
    %7344 = vmatpush1.msra.mxu0 0.0
    %7345 = vmatprep.subr.mxu0 0.0
    %7346 = vmatpush1.msra.mxu0 0.0
    %7347 = vmatprep.subr.mxu0 0.0
    %7348 = vmatpush1.msra.mxu0 0.0
    %7349 = vmatprep.subr.mxu0 0.0
    %7350 = vmatpush1.msra.mxu0 0.0
    %7351 = vmatprep.subr.mxu0 0.0
    %7352 = vmatpush1.msra.mxu0 0.0
    %7353 = vmatprep.subr.mxu0 0.0
    %7354 = vmatpush1.msra.mxu0 0.0
    %7355 = vmatprep.subr.mxu0 0.0
    %7356 = vmatpush1.msra.mxu0 0.0
    %7357 = vmatprep.subr.mxu0 0.0
    %7358 = vmatpush1.msra.mxu0 0.0
    %7359 = vmatprep.subr.mxu0 0.0
    %7360 = vmatpush1.msra.mxu0 0.0
    %7361 = vmatprep.subr.mxu0 0.0
    %7362 = vmatpush1.msra.mxu0 0.0
    %7363 = vmatprep.subr.mxu0 0.0
    %7364 = vmatpush1.msra.mxu0 0.0
    %7365 = vmatprep.subr.mxu0 0.0
    %7366 = vmatpush1.msra.mxu0 0.0
    %7367 = vmatprep.mubr.f32.mxu0 0.0
    %7368 = vmatmul.mubr.f32.gmra.mrb[0].mxu0 %v7301
    %v7369 = vpop.f32.mrb[0].mxu0
    %v7370 = vadd.f32 %v5579, %v7369
    %v7371 = vpop.f32.mrb[0].mxu0
    %7372 = vdwg.mxu0
    %7373 = vmatprep.subr.mxu0 0.0
    %7374 = vmatpush1.msra.mxu0 %v5565
    %7375 = vmatprep.subr.mxu0 0.0
    %7376 = vmatpush1.msra.mxu0 %v5566
    %7377 = vmatprep.subr.mxu0 0.0
    %7378 = vmatpush1.msra.mxu0 %v5567
    %7379 = vmatprep.subr.mxu0 0.0
    %7380 = vmatpush1.msra.mxu0 %v5568
    %7381 = vmatprep.subr.mxu0 0.0
    %7382 = vmatpush1.msra.mxu0 0.0
    %7383 = vmatprep.subr.mxu0 0.0
    %7384 = vmatpush1.msra.mxu0 0.0
    %7385 = vmatprep.subr.mxu0 0.0
    %7386 = vmatpush1.msra.mxu0 0.0
    %7387 = vmatprep.subr.mxu0 0.0
    %7388 = vmatpush1.msra.mxu0 0.0
    %7389 = vmatprep.subr.mxu0 0.0
    %7390 = vmatpush1.msra.mxu0 0.0
    %7391 = vmatprep.subr.mxu0 0.0
    %7392 = vmatpush1.msra.mxu0 0.0
    %7393 = vmatprep.subr.mxu0 0.0
    %7394 = vmatpush1.msra.mxu0 0.0
    %7395 = vmatprep.subr.mxu0 0.0
    %7396 = vmatpush1.msra.mxu0 0.0
    %7397 = vmatprep.subr.mxu0 0.0
    %7398 = vmatpush1.msra.mxu0 0.0
    %7399 = vmatprep.subr.mxu0 0.0
    %7400 = vmatpush1.msra.mxu0 0.0
    %7401 = vmatprep.subr.mxu0 0.0
    %7402 = vmatpush1.msra.mxu0 0.0
    %7403 = vmatprep.subr.mxu0 0.0
    %7404 = vmatpush1.msra.mxu0 0.0
    %7405 = vmatprep.subr.mxu0 0.0
    %7406 = vmatpush1.msra.mxu0 0.0
    %7407 = vmatprep.subr.mxu0 0.0
    %7408 = vmatpush1.msra.mxu0 0.0
    %7409 = vmatprep.subr.mxu0 0.0
    %7410 = vmatpush1.msra.mxu0 0.0
    %7411 = vmatprep.subr.mxu0 0.0
    %7412 = vmatpush1.msra.mxu0 0.0
    %7413 = vmatprep.subr.mxu0 0.0
    %7414 = vmatpush1.msra.mxu0 0.0
    %7415 = vmatprep.subr.mxu0 0.0
    %7416 = vmatpush1.msra.mxu0 0.0
    %7417 = vmatprep.subr.mxu0 0.0
    %7418 = vmatpush1.msra.mxu0 0.0
    %7419 = vmatprep.subr.mxu0 0.0
    %7420 = vmatpush1.msra.mxu0 0.0
    %7421 = vmatprep.subr.mxu0 0.0
    %7422 = vmatpush1.msra.mxu0 0.0
    %7423 = vmatprep.subr.mxu0 0.0
    %7424 = vmatpush1.msra.mxu0 0.0
    %7425 = vmatprep.subr.mxu0 0.0
    %7426 = vmatpush1.msra.mxu0 0.0
    %7427 = vmatprep.subr.mxu0 0.0
    %7428 = vmatpush1.msra.mxu0 0.0
    %7429 = vmatprep.subr.mxu0 0.0
    %7430 = vmatpush1.msra.mxu0 0.0
    %7431 = vmatprep.subr.mxu0 0.0
    %7432 = vmatpush1.msra.mxu0 0.0
    %7433 = vmatprep.subr.mxu0 0.0
    %7434 = vmatpush1.msra.mxu0 0.0
    %7435 = vmatprep.subr.mxu0 0.0
    %7436 = vmatpush1.msra.mxu0 0.0
    %7437 = vmatprep.mubr.f32.mxu0 0.0
    %7438 = vmatmul.mubr.f32.gmra.mrb[0].mxu0 %v7301
    %v7439 = vpop.f32.mrb[0].mxu0
    %v7440 = vadd.f32 %v5587, %v7439
    %v7441 = vpop.f32.mrb[0].mxu0
    %7442 = vdwg.mxu0
    %7443 = vmatprep.subr.mxu0 0.0
    %7444 = vmatpush1.msra.mxu0 %v5570
    %7445 = vmatprep.subr.mxu0 0.0
    %7446 = vmatpush1.msra.mxu0 %v5571
    %7447 = vmatprep.subr.mxu0 0.0
    %7448 = vmatpush1.msra.mxu0 %v5572
    %7449 = vmatprep.subr.mxu0 0.0
    %7450 = vmatpush1.msra.mxu0 %v5573
    %7451 = vmatprep.subr.mxu0 0.0
    %7452 = vmatpush1.msra.mxu0 0.0
    %7453 = vmatprep.subr.mxu0 0.0
    %7454 = vmatpush1.msra.mxu0 0.0
    %7455 = vmatprep.subr.mxu0 0.0
    %7456 = vmatpush1.msra.mxu0 0.0
    %7457 = vmatprep.subr.mxu0 0.0
    %7458 = vmatpush1.msra.mxu0 0.0
    %7459 = vmatprep.subr.mxu0 0.0
    %7460 = vmatpush1.msra.mxu0 0.0
    %7461 = vmatprep.subr.mxu0 0.0
    %7462 = vmatpush1.msra.mxu0 0.0
    %7463 = vmatprep.subr.mxu0 0.0
    %7464 = vmatpush1.msra.mxu0 0.0
    %7465 = vmatprep.subr.mxu0 0.0
    %7466 = vmatpush1.msra.mxu0 0.0
    %7467 = vmatprep.subr.mxu0 0.0
    %7468 = vmatpush1.msra.mxu0 0.0
    %7469 = vmatprep.subr.mxu0 0.0
    %7470 = vmatpush1.msra.mxu0 0.0
    %7471 = vmatprep.subr.mxu0 0.0
    %7472 = vmatpush1.msra.mxu0 0.0
    %7473 = vmatprep.subr.mxu0 0.0
    %7474 = vmatpush1.msra.mxu0 0.0
    %7475 = vmatprep.subr.mxu0 0.0
    %7476 = vmatpush1.msra.mxu0 0.0
    %7477 = vmatprep.subr.mxu0 0.0
    %7478 = vmatpush1.msra.mxu0 0.0
    %7479 = vmatprep.subr.mxu0 0.0
    %7480 = vmatpush1.msra.mxu0 0.0
    %7481 = vmatprep.subr.mxu0 0.0
    %7482 = vmatpush1.msra.mxu0 0.0
    %7483 = vmatprep.subr.mxu0 0.0
    %7484 = vmatpush1.msra.mxu0 0.0
    %7485 = vmatprep.subr.mxu0 0.0
    %7486 = vmatpush1.msra.mxu0 0.0
    %7487 = vmatprep.subr.mxu0 0.0
    %7488 = vmatpush1.msra.mxu0 0.0
    %7489 = vmatprep.subr.mxu0 0.0
    %7490 = vmatpush1.msra.mxu0 0.0
    %7491 = vmatprep.subr.mxu0 0.0
    %7492 = vmatpush1.msra.mxu0 0.0
    %7493 = vmatprep.subr.mxu0 0.0
    %7494 = vmatpush1.msra.mxu0 0.0
    %7495 = vmatprep.subr.mxu0 0.0
    %7496 = vmatpush1.msra.mxu0 0.0
    %7497 = vmatprep.subr.mxu0 0.0
    %7498 = vmatpush1.msra.mxu0 0.0
    %7499 = vmatprep.subr.mxu0 0.0
    %7500 = vmatpush1.msra.mxu0 0.0
    %7501 = vmatprep.subr.mxu0 0.0
    %7502 = vmatpush1.msra.mxu0 0.0
    %7503 = vmatprep.subr.mxu0 0.0
    %7504 = vmatpush1.msra.mxu0 0.0
    %7505 = vmatprep.subr.mxu0 0.0
    %7506 = vmatpush1.msra.mxu0 0.0
    %7507 = vmatprep.mubr.f32.mxu0 0.0
    %7508 = vmatmul.mubr.f32.gmra.mrb[0].mxu0 %v7301
    %v7509 = vpop.f32.mrb[0].mxu0
    %v7510 = vadd.f32 %v5595, %v7509
    %v7511 = vpop.f32.mrb[0].mxu0
    %7512 = vdwg.mxu0
    %v7514 = vrot.slane %v7370, 2
    %v7516 = vadd.f32 %v5351, %v7514
    %v7517 = vxor.u32 %v7516, 2147483648
    %v7518 = vmul.f32 %v7517, 1.442695
    %v7519 = vpow.pop %v7518
    %v7520 = vadd.f32 %v7519, 1.0
    %v7521 = vrcp.pop %v7520
    %v7522 = vmul.f32 1.0, %v7521
    %v7524 = vrot.slane %v7440, 2
    %v7526 = vadd.f32 %v5449, %v7524
    %v7527 = vxor.u32 %v7526, 2147483648
    %v7528 = vmul.f32 %v7527, 1.442695
    %v7529 = vpow.pop %v7528
    %v7530 = vadd.f32 %v7529, 1.0
    %v7531 = vrcp.pop %v7530
    %v7532 = vmul.f32 1.0, %v7531
    %v7534 = vrot.slane %v7510, 2
    %v7536 = vmul.f32 %v7522, %v7534
    %v7537 = vadd.f32 %v5547, %v7536
    %v7538 = vtanh.pop %v7537
    %v7539 = vsub.f32 1.0, %v7532
    %v7540 = vmul.f32 %v7539, %v7538
    %v7541 = vrot.slane %v7297, 6
    %v7543 = vmul.f32 %v7532, %v7541
    %v7544 = vadd.f32 %v7540, %v7543
    %7545 = vst.msk [vmem:[%s2565 - $0x6] sm:$0xc0] %vm1584, %v7544
    %v7547 = vrot.slane %v7544, 6
    %v7548 = vsel %vm603, %v7547, 0
    %7550 = vmatprep.subr.mxu0 0.0
    %7551 = vmatpush1.msra.mxu0 %v5560
    %7552 = vmatprep.subr.mxu0 0.0
    %7553 = vmatpush1.msra.mxu0 %v5561
    %7554 = vmatprep.subr.mxu0 0.0
    %7555 = vmatpush1.msra.mxu0 %v5562
    %7556 = vmatprep.subr.mxu0 0.0
    %7557 = vmatpush1.msra.mxu0 %v5563
    %7558 = vmatprep.subr.mxu0 0.0
    %7559 = vmatpush1.msra.mxu0 0.0
    %7560 = vmatprep.subr.mxu0 0.0
    %7561 = vmatpush1.msra.mxu0 0.0
    %7562 = vmatprep.subr.mxu0 0.0
    %7563 = vmatpush1.msra.mxu0 0.0
    %7564 = vmatprep.subr.mxu0 0.0
    %7565 = vmatpush1.msra.mxu0 0.0
    %7566 = vmatprep.subr.mxu0 0.0
    %7567 = vmatpush1.msra.mxu0 0.0
    %7568 = vmatprep.subr.mxu0 0.0
    %7569 = vmatpush1.msra.mxu0 0.0
    %7570 = vmatprep.subr.mxu0 0.0
    %7571 = vmatpush1.msra.mxu0 0.0
    %7572 = vmatprep.subr.mxu0 0.0
    %7573 = vmatpush1.msra.mxu0 0.0
    %7574 = vmatprep.subr.mxu0 0.0
    %7575 = vmatpush1.msra.mxu0 0.0
    %7576 = vmatprep.subr.mxu0 0.0
    %7577 = vmatpush1.msra.mxu0 0.0
    %7578 = vmatprep.subr.mxu0 0.0
    %7579 = vmatpush1.msra.mxu0 0.0
    %7580 = vmatprep.subr.mxu0 0.0
    %7581 = vmatpush1.msra.mxu0 0.0
    %7582 = vmatprep.subr.mxu0 0.0
    %7583 = vmatpush1.msra.mxu0 0.0
    %7584 = vmatprep.subr.mxu0 0.0
    %7585 = vmatpush1.msra.mxu0 0.0
    %7586 = vmatprep.subr.mxu0 0.0
    %7587 = vmatpush1.msra.mxu0 0.0
    %7588 = vmatprep.subr.mxu0 0.0
    %7589 = vmatpush1.msra.mxu0 0.0
    %7590 = vmatprep.subr.mxu0 0.0
    %7591 = vmatpush1.msra.mxu0 0.0
    %7592 = vmatprep.subr.mxu0 0.0
    %7593 = vmatpush1.msra.mxu0 0.0
    %7594 = vmatprep.subr.mxu0 0.0
    %7595 = vmatpush1.msra.mxu0 0.0
    %7596 = vmatprep.subr.mxu0 0.0
    %7597 = vmatpush1.msra.mxu0 0.0
    %7598 = vmatprep.subr.mxu0 0.0
    %7599 = vmatpush1.msra.mxu0 0.0
    %7600 = vmatprep.subr.mxu0 0.0
    %7601 = vmatpush1.msra.mxu0 0.0
    %7602 = vmatprep.subr.mxu0 0.0
    %7603 = vmatpush1.msra.mxu0 0.0
    %7604 = vmatprep.subr.mxu0 0.0
    %7605 = vmatpush1.msra.mxu0 0.0
    %7606 = vmatprep.subr.mxu0 0.0
    %7607 = vmatpush1.msra.mxu0 0.0
    %7608 = vmatprep.subr.mxu0 0.0
    %7609 = vmatpush1.msra.mxu0 0.0
    %7610 = vmatprep.subr.mxu0 0.0
    %7611 = vmatpush1.msra.mxu0 0.0
    %7612 = vmatprep.subr.mxu0 0.0
    %7613 = vmatpush1.msra.mxu0 0.0
    %7614 = vmatprep.mubr.f32.mxu0 0.0
    %7615 = vmatmul.mubr.f32.gmra.mrb[0].mxu0 %v7548
    %v7616 = vpop.f32.mrb[0].mxu0
    %v7617 = vadd.f32 %v5579, %v7616
    %v7618 = vpop.f32.mrb[0].mxu0
    %7619 = vdwg.mxu0
    %7620 = vmatprep.subr.mxu0 0.0
    %7621 = vmatpush1.msra.mxu0 %v5565
    %7622 = vmatprep.subr.mxu0 0.0
    %7623 = vmatpush1.msra.mxu0 %v5566
    %7624 = vmatprep.subr.mxu0 0.0
    %7625 = vmatpush1.msra.mxu0 %v5567
    %7626 = vmatprep.subr.mxu0 0.0
    %7627 = vmatpush1.msra.mxu0 %v5568
    %7628 = vmatprep.subr.mxu0 0.0
    %7629 = vmatpush1.msra.mxu0 0.0
    %7630 = vmatprep.subr.mxu0 0.0
    %7631 = vmatpush1.msra.mxu0 0.0
    %7632 = vmatprep.subr.mxu0 0.0
    %7633 = vmatpush1.msra.mxu0 0.0
    %7634 = vmatprep.subr.mxu0 0.0
    %7635 = vmatpush1.msra.mxu0 0.0
    %7636 = vmatprep.subr.mxu0 0.0
    %7637 = vmatpush1.msra.mxu0 0.0
    %7638 = vmatprep.subr.mxu0 0.0
    %7639 = vmatpush1.msra.mxu0 0.0
    %7640 = vmatprep.subr.mxu0 0.0
    %7641 = vmatpush1.msra.mxu0 0.0
    %7642 = vmatprep.subr.mxu0 0.0
    %7643 = vmatpush1.msra.mxu0 0.0
    %7644 = vmatprep.subr.mxu0 0.0
    %7645 = vmatpush1.msra.mxu0 0.0
    %7646 = vmatprep.subr.mxu0 0.0
    %7647 = vmatpush1.msra.mxu0 0.0
    %7648 = vmatprep.subr.mxu0 0.0
    %7649 = vmatpush1.msra.mxu0 0.0
    %7650 = vmatprep.subr.mxu0 0.0
    %7651 = vmatpush1.msra.mxu0 0.0
    %7652 = vmatprep.subr.mxu0 0.0
    %7653 = vmatpush1.msra.mxu0 0.0
    %7654 = vmatprep.subr.mxu0 0.0
    %7655 = vmatpush1.msra.mxu0 0.0
    %7656 = vmatprep.subr.mxu0 0.0
    %7657 = vmatpush1.msra.mxu0 0.0
    %7658 = vmatprep.subr.mxu0 0.0
    %7659 = vmatpush1.msra.mxu0 0.0
    %7660 = vmatprep.subr.mxu0 0.0
    %7661 = vmatpush1.msra.mxu0 0.0
    %7662 = vmatprep.subr.mxu0 0.0
    %7663 = vmatpush1.msra.mxu0 0.0
    %7664 = vmatprep.subr.mxu0 0.0
    %7665 = vmatpush1.msra.mxu0 0.0
    %7666 = vmatprep.subr.mxu0 0.0
    %7667 = vmatpush1.msra.mxu0 0.0
    %7668 = vmatprep.subr.mxu0 0.0
    %7669 = vmatpush1.msra.mxu0 0.0
    %7670 = vmatprep.subr.mxu0 0.0
    %7671 = vmatpush1.msra.mxu0 0.0
    %7672 = vmatprep.subr.mxu0 0.0
    %7673 = vmatpush1.msra.mxu0 0.0
    %7674 = vmatprep.subr.mxu0 0.0
    %7675 = vmatpush1.msra.mxu0 0.0
    %7676 = vmatprep.subr.mxu0 0.0
    %7677 = vmatpush1.msra.mxu0 0.0
    %7678 = vmatprep.subr.mxu0 0.0
    %7679 = vmatpush1.msra.mxu0 0.0
    %7680 = vmatprep.subr.mxu0 0.0
    %7681 = vmatpush1.msra.mxu0 0.0
    %7682 = vmatprep.subr.mxu0 0.0
    %7683 = vmatpush1.msra.mxu0 0.0
    %7684 = vmatprep.mubr.f32.mxu0 0.0
    %7685 = vmatmul.mubr.f32.gmra.mrb[0].mxu0 %v7548
    %v7686 = vpop.f32.mrb[0].mxu0
    %v7687 = vadd.f32 %v5587, %v7686
    %v7688 = vpop.f32.mrb[0].mxu0
    %7689 = vdwg.mxu0
    %7690 = vmatprep.subr.mxu0 0.0
    %7691 = vmatpush1.msra.mxu0 %v5570
    %7692 = vmatprep.subr.mxu0 0.0
    %7693 = vmatpush1.msra.mxu0 %v5571
    %7694 = vmatprep.subr.mxu0 0.0
    %7695 = vmatpush1.msra.mxu0 %v5572
    %7696 = vmatprep.subr.mxu0 0.0
    %7697 = vmatpush1.msra.mxu0 %v5573
    %7698 = vmatprep.subr.mxu0 0.0
    %7699 = vmatpush1.msra.mxu0 0.0
    %7700 = vmatprep.subr.mxu0 0.0
    %7701 = vmatpush1.msra.mxu0 0.0
    %7702 = vmatprep.subr.mxu0 0.0
    %7703 = vmatpush1.msra.mxu0 0.0
    %7704 = vmatprep.subr.mxu0 0.0
    %7705 = vmatpush1.msra.mxu0 0.0
    %7706 = vmatprep.subr.mxu0 0.0
    %7707 = vmatpush1.msra.mxu0 0.0
    %7708 = vmatprep.subr.mxu0 0.0
    %7709 = vmatpush1.msra.mxu0 0.0
    %7710 = vmatprep.subr.mxu0 0.0
    %7711 = vmatpush1.msra.mxu0 0.0
    %7712 = vmatprep.subr.mxu0 0.0
    %7713 = vmatpush1.msra.mxu0 0.0
    %7714 = vmatprep.subr.mxu0 0.0
    %7715 = vmatpush1.msra.mxu0 0.0
    %7716 = vmatprep.subr.mxu0 0.0
    %7717 = vmatpush1.msra.mxu0 0.0
    %7718 = vmatprep.subr.mxu0 0.0
    %7719 = vmatpush1.msra.mxu0 0.0
    %7720 = vmatprep.subr.mxu0 0.0
    %7721 = vmatpush1.msra.mxu0 0.0
    %7722 = vmatprep.subr.mxu0 0.0
    %7723 = vmatpush1.msra.mxu0 0.0
    %7724 = vmatprep.subr.mxu0 0.0
    %7725 = vmatpush1.msra.mxu0 0.0
    %7726 = vmatprep.subr.mxu0 0.0
    %7727 = vmatpush1.msra.mxu0 0.0
    %7728 = vmatprep.subr.mxu0 0.0
    %7729 = vmatpush1.msra.mxu0 0.0
    %7730 = vmatprep.subr.mxu0 0.0
    %7731 = vmatpush1.msra.mxu0 0.0
    %7732 = vmatprep.subr.mxu0 0.0
    %7733 = vmatpush1.msra.mxu0 0.0
    %7734 = vmatprep.subr.mxu0 0.0
    %7735 = vmatpush1.msra.mxu0 0.0
    %7736 = vmatprep.subr.mxu0 0.0
    %7737 = vmatpush1.msra.mxu0 0.0
    %7738 = vmatprep.subr.mxu0 0.0
    %7739 = vmatpush1.msra.mxu0 0.0
    %7740 = vmatprep.subr.mxu0 0.0
    %7741 = vmatpush1.msra.mxu0 0.0
    %7742 = vmatprep.subr.mxu0 0.0
    %7743 = vmatpush1.msra.mxu0 0.0
    %7744 = vmatprep.subr.mxu0 0.0
    %7745 = vmatpush1.msra.mxu0 0.0
    %7746 = vmatprep.subr.mxu0 0.0
    %7747 = vmatpush1.msra.mxu0 0.0
    %7748 = vmatprep.subr.mxu0 0.0
    %7749 = vmatpush1.msra.mxu0 0.0
    %7750 = vmatprep.subr.mxu0 0.0
    %7751 = vmatpush1.msra.mxu0 0.0
    %7752 = vmatprep.subr.mxu0 0.0
    %7753 = vmatpush1.msra.mxu0 0.0
    %7754 = vmatprep.mubr.f32.mxu0 0.0
    %7755 = vmatmul.mubr.f32.gmra.mrb[0].mxu0 %v7548
    %v7756 = vpop.f32.mrb[0].mxu0
    %v7757 = vadd.f32 %v5595, %v7756
    %v7758 = vpop.f32.mrb[0].mxu0
    %7759 = vdwg.mxu0
    %v7760 = vadd.f32 %v5356, %v7617
    %v7761 = vxor.u32 %v7760, 2147483648
    %v7762 = vmul.f32 %v7761, 1.442695
    %v7763 = vpow.pop %v7762
    %v7764 = vadd.f32 %v7763, 1.0
    %v7765 = vrcp.pop %v7764
    %v7766 = vmul.f32 1.0, %v7765
    %v7767 = vadd.f32 %v5454, %v7687
    %v7768 = vxor.u32 %v7767, 2147483648
    %v7769 = vmul.f32 %v7768, 1.442695
    %v7770 = vpow.pop %v7769
    %v7771 = vadd.f32 %v7770, 1.0
    %v7772 = vrcp.pop %v7771
    %v7773 = vmul.f32 1.0, %v7772
    %v7774 = vmul.f32 %v7766, %v7757
    %v7775 = vadd.f32 %v5552, %v7774
    %v7776 = vtanh.pop %v7775
    %v7777 = vsub.f32 1.0, %v7773
    %v7778 = vmul.f32 %v7777, %v7776
    %v7780 = vmul.f32 %v7773, %v7547
    %v7781 = vadd.f32 %v7778, %v7780
    %7782 = vst.msk [vmem:[%s2803] sm:$0x3] %vm838, %v7781
    %v7784 = vsel %vm603, %v7781, 0
    %7786 = vmatprep.subr.mxu0 0.0
    %7787 = vmatpush1.msra.mxu0 %v5560
    %7788 = vmatprep.subr.mxu0 0.0
    %7789 = vmatpush1.msra.mxu0 %v5561
    %7790 = vmatprep.subr.mxu0 0.0
    %7791 = vmatpush1.msra.mxu0 %v5562
    %7792 = vmatprep.subr.mxu0 0.0
    %7793 = vmatpush1.msra.mxu0 %v5563
    %7794 = vmatprep.subr.mxu0 0.0
    %7795 = vmatpush1.msra.mxu0 0.0
    %7796 = vmatprep.subr.mxu0 0.0
    %7797 = vmatpush1.msra.mxu0 0.0
    %7798 = vmatprep.subr.mxu0 0.0
    %7799 = vmatpush1.msra.mxu0 0.0
    %7800 = vmatprep.subr.mxu0 0.0
    %7801 = vmatpush1.msra.mxu0 0.0
    %7802 = vmatprep.subr.mxu0 0.0
    %7803 = vmatpush1.msra.mxu0 0.0
    %7804 = vmatprep.subr.mxu0 0.0
    %7805 = vmatpush1.msra.mxu0 0.0
    %7806 = vmatprep.subr.mxu0 0.0
    %7807 = vmatpush1.msra.mxu0 0.0
    %7808 = vmatprep.subr.mxu0 0.0
    %7809 = vmatpush1.msra.mxu0 0.0
    %7810 = vmatprep.subr.mxu0 0.0
    %7811 = vmatpush1.msra.mxu0 0.0
    %7812 = vmatprep.subr.mxu0 0.0
    %7813 = vmatpush1.msra.mxu0 0.0
    %7814 = vmatprep.subr.mxu0 0.0
    %7815 = vmatpush1.msra.mxu0 0.0
    %7816 = vmatprep.subr.mxu0 0.0
    %7817 = vmatpush1.msra.mxu0 0.0
    %7818 = vmatprep.subr.mxu0 0.0
    %7819 = vmatpush1.msra.mxu0 0.0
    %7820 = vmatprep.subr.mxu0 0.0
    %7821 = vmatpush1.msra.mxu0 0.0
    %7822 = vmatprep.subr.mxu0 0.0
    %7823 = vmatpush1.msra.mxu0 0.0
    %7824 = vmatprep.subr.mxu0 0.0
    %7825 = vmatpush1.msra.mxu0 0.0
    %7826 = vmatprep.subr.mxu0 0.0
    %7827 = vmatpush1.msra.mxu0 0.0
    %7828 = vmatprep.subr.mxu0 0.0
    %7829 = vmatpush1.msra.mxu0 0.0
    %7830 = vmatprep.subr.mxu0 0.0
    %7831 = vmatpush1.msra.mxu0 0.0
    %7832 = vmatprep.subr.mxu0 0.0
    %7833 = vmatpush1.msra.mxu0 0.0
    %7834 = vmatprep.subr.mxu0 0.0
    %7835 = vmatpush1.msra.mxu0 0.0
    %7836 = vmatprep.subr.mxu0 0.0
    %7837 = vmatpush1.msra.mxu0 0.0
    %7838 = vmatprep.subr.mxu0 0.0
    %7839 = vmatpush1.msra.mxu0 0.0
    %7840 = vmatprep.subr.mxu0 0.0
    %7841 = vmatpush1.msra.mxu0 0.0
    %7842 = vmatprep.subr.mxu0 0.0
    %7843 = vmatpush1.msra.mxu0 0.0
    %7844 = vmatprep.subr.mxu0 0.0
    %7845 = vmatpush1.msra.mxu0 0.0
    %7846 = vmatprep.subr.mxu0 0.0
    %7847 = vmatpush1.msra.mxu0 0.0
    %7848 = vmatprep.subr.mxu0 0.0
    %7849 = vmatpush1.msra.mxu0 0.0
    %7850 = vmatprep.mubr.f32.mxu0 0.0
    %7851 = vmatmul.mubr.f32.gmra.mrb[0].mxu0 %v7784
    %v7852 = vpop.f32.mrb[0].mxu0
    %v7853 = vadd.f32 %v5579, %v7852
    %v7854 = vpop.f32.mrb[0].mxu0
    %7855 = vdwg.mxu0
    %7856 = vmatprep.subr.mxu0 0.0
    %7857 = vmatpush1.msra.mxu0 %v5565
    %7858 = vmatprep.subr.mxu0 0.0
    %7859 = vmatpush1.msra.mxu0 %v5566
    %7860 = vmatprep.subr.mxu0 0.0
    %7861 = vmatpush1.msra.mxu0 %v5567
    %7862 = vmatprep.subr.mxu0 0.0
    %7863 = vmatpush1.msra.mxu0 %v5568
    %7864 = vmatprep.subr.mxu0 0.0
    %7865 = vmatpush1.msra.mxu0 0.0
    %7866 = vmatprep.subr.mxu0 0.0
    %7867 = vmatpush1.msra.mxu0 0.0
    %7868 = vmatprep.subr.mxu0 0.0
    %7869 = vmatpush1.msra.mxu0 0.0
    %7870 = vmatprep.subr.mxu0 0.0
    %7871 = vmatpush1.msra.mxu0 0.0
    %7872 = vmatprep.subr.mxu0 0.0
    %7873 = vmatpush1.msra.mxu0 0.0
    %7874 = vmatprep.subr.mxu0 0.0
    %7875 = vmatpush1.msra.mxu0 0.0
    %7876 = vmatprep.subr.mxu0 0.0
    %7877 = vmatpush1.msra.mxu0 0.0
    %7878 = vmatprep.subr.mxu0 0.0
    %7879 = vmatpush1.msra.mxu0 0.0
    %7880 = vmatprep.subr.mxu0 0.0
    %7881 = vmatpush1.msra.mxu0 0.0
    %7882 = vmatprep.subr.mxu0 0.0
    %7883 = vmatpush1.msra.mxu0 0.0
    %7884 = vmatprep.subr.mxu0 0.0
    %7885 = vmatpush1.msra.mxu0 0.0
    %7886 = vmatprep.subr.mxu0 0.0
    %7887 = vmatpush1.msra.mxu0 0.0
    %7888 = vmatprep.subr.mxu0 0.0
    %7889 = vmatpush1.msra.mxu0 0.0
    %7890 = vmatprep.subr.mxu0 0.0
    %7891 = vmatpush1.msra.mxu0 0.0
    %7892 = vmatprep.subr.mxu0 0.0
    %7893 = vmatpush1.msra.mxu0 0.0
    %7894 = vmatprep.subr.mxu0 0.0
    %7895 = vmatpush1.msra.mxu0 0.0
    %7896 = vmatprep.subr.mxu0 0.0
    %7897 = vmatpush1.msra.mxu0 0.0
    %7898 = vmatprep.subr.mxu0 0.0
    %7899 = vmatpush1.msra.mxu0 0.0
    %7900 = vmatprep.subr.mxu0 0.0
    %7901 = vmatpush1.msra.mxu0 0.0
    %7902 = vmatprep.subr.mxu0 0.0
    %7903 = vmatpush1.msra.mxu0 0.0
    %7904 = vmatprep.subr.mxu0 0.0
    %7905 = vmatpush1.msra.mxu0 0.0
    %7906 = vmatprep.subr.mxu0 0.0
    %7907 = vmatpush1.msra.mxu0 0.0
    %7908 = vmatprep.subr.mxu0 0.0
    %7909 = vmatpush1.msra.mxu0 0.0
    %7910 = vmatprep.subr.mxu0 0.0
    %7911 = vmatpush1.msra.mxu0 0.0
    %7912 = vmatprep.subr.mxu0 0.0
    %7913 = vmatpush1.msra.mxu0 0.0
    %7914 = vmatprep.subr.mxu0 0.0
    %7915 = vmatpush1.msra.mxu0 0.0
    %7916 = vmatprep.subr.mxu0 0.0
    %7917 = vmatpush1.msra.mxu0 0.0
    %7918 = vmatprep.subr.mxu0 0.0
    %7919 = vmatpush1.msra.mxu0 0.0
    %7920 = vmatprep.mubr.f32.mxu0 0.0
    %7921 = vmatmul.mubr.f32.gmra.mrb[0].mxu0 %v7784
    %v7922 = vpop.f32.mrb[0].mxu0
    %v7923 = vadd.f32 %v5587, %v7922
    %v7924 = vpop.f32.mrb[0].mxu0
    %7925 = vdwg.mxu0
    %7926 = vmatprep.subr.mxu0 0.0
    %7927 = vmatpush1.msra.mxu0 %v5570
    %7928 = vmatprep.subr.mxu0 0.0
    %7929 = vmatpush1.msra.mxu0 %v5571
    %7930 = vmatprep.subr.mxu0 0.0
    %7931 = vmatpush1.msra.mxu0 %v5572
    %7932 = vmatprep.subr.mxu0 0.0
    %7933 = vmatpush1.msra.mxu0 %v5573
    %7934 = vmatprep.subr.mxu0 0.0
    %7935 = vmatpush1.msra.mxu0 0.0
    %7936 = vmatprep.subr.mxu0 0.0
    %7937 = vmatpush1.msra.mxu0 0.0
    %7938 = vmatprep.subr.mxu0 0.0
    %7939 = vmatpush1.msra.mxu0 0.0
    %7940 = vmatprep.subr.mxu0 0.0
    %7941 = vmatpush1.msra.mxu0 0.0
    %7942 = vmatprep.subr.mxu0 0.0
    %7943 = vmatpush1.msra.mxu0 0.0
    %7944 = vmatprep.subr.mxu0 0.0
    %7945 = vmatpush1.msra.mxu0 0.0
    %7946 = vmatprep.subr.mxu0 0.0
    %7947 = vmatpush1.msra.mxu0 0.0
    %7948 = vmatprep.subr.mxu0 0.0
    %7949 = vmatpush1.msra.mxu0 0.0
    %7950 = vmatprep.subr.mxu0 0.0
    %7951 = vmatpush1.msra.mxu0 0.0
    %7952 = vmatprep.subr.mxu0 0.0
    %7953 = vmatpush1.msra.mxu0 0.0
    %7954 = vmatprep.subr.mxu0 0.0
    %7955 = vmatpush1.msra.mxu0 0.0
    %7956 = vmatprep.subr.mxu0 0.0
    %7957 = vmatpush1.msra.mxu0 0.0
    %7958 = vmatprep.subr.mxu0 0.0
    %7959 = vmatpush1.msra.mxu0 0.0
    %7960 = vmatprep.subr.mxu0 0.0
    %7961 = vmatpush1.msra.mxu0 0.0
    %7962 = vmatprep.subr.mxu0 0.0
    %7963 = vmatpush1.msra.mxu0 0.0
    %7964 = vmatprep.subr.mxu0 0.0
    %7965 = vmatpush1.msra.mxu0 0.0
    %7966 = vmatprep.subr.mxu0 0.0
    %7967 = vmatpush1.msra.mxu0 0.0
    %7968 = vmatprep.subr.mxu0 0.0
    %7969 = vmatpush1.msra.mxu0 0.0
    %7970 = vmatprep.subr.mxu0 0.0
    %7971 = vmatpush1.msra.mxu0 0.0
    %7972 = vmatprep.subr.mxu0 0.0
    %7973 = vmatpush1.msra.mxu0 0.0
    %7974 = vmatprep.subr.mxu0 0.0
    %7975 = vmatpush1.msra.mxu0 0.0
    %7976 = vmatprep.subr.mxu0 0.0
    %7977 = vmatpush1.msra.mxu0 0.0
    %7978 = vmatprep.subr.mxu0 0.0
    %7979 = vmatpush1.msra.mxu0 0.0
    %7980 = vmatprep.subr.mxu0 0.0
    %7981 = vmatpush1.msra.mxu0 0.0
    %7982 = vmatprep.subr.mxu0 0.0
    %7983 = vmatpush1.msra.mxu0 0.0
    %7984 = vmatprep.subr.mxu0 0.0
    %7985 = vmatpush1.msra.mxu0 0.0
    %7986 = vmatprep.subr.mxu0 0.0
    %7987 = vmatpush1.msra.mxu0 0.0
    %7988 = vmatprep.subr.mxu0 0.0
    %7989 = vmatpush1.msra.mxu0 0.0
    %7990 = vmatprep.mubr.f32.mxu0 0.0
    %7991 = vmatmul.mubr.f32.gmra.mrb[0].mxu0 %v7784
    %v7992 = vpop.f32.mrb[0].mxu0
    %v7993 = vadd.f32 %v5595, %v7992
    %v7994 = vpop.f32.mrb[0].mxu0
    %7995 = vdwg.mxu0
    %v7997 = vrot.slane %v7853, 6
    %v7999 = vadd.f32 %v5356, %v7997
    %v8000 = vxor.u32 %v7999, 2147483648
    %v8001 = vmul.f32 %v8000, 1.442695
    %v8002 = vpow.pop %v8001
    %v8003 = vadd.f32 %v8002, 1.0
    %v8004 = vrcp.pop %v8003
    %v8005 = vmul.f32 1.0, %v8004
    %v8007 = vrot.slane %v7923, 6
    %v8009 = vadd.f32 %v5454, %v8007
    %v8010 = vxor.u32 %v8009, 2147483648
    %v8011 = vmul.f32 %v8010, 1.442695
    %v8012 = vpow.pop %v8011
    %v8013 = vadd.f32 %v8012, 1.0
    %v8014 = vrcp.pop %v8013
    %v8015 = vmul.f32 1.0, %v8014
    %v8017 = vrot.slane %v7993, 6
    %v8019 = vmul.f32 %v8005, %v8017
    %v8020 = vadd.f32 %v5552, %v8019
    %v8021 = vtanh.pop %v8020
    %v8022 = vsub.f32 1.0, %v8015
    %v8023 = vmul.f32 %v8022, %v8021
    %v8024 = vrot.slane %v7781, 6
    %v8026 = vmul.f32 %v8015, %v8024
    %v8027 = vadd.f32 %v8023, %v8026
    %8028 = vst.msk [vmem:[%s3050 - $0x2] sm:$0xc] %vm1086, %v8027
    %v8030 = vrot.slane %v8027, 2
    %v8031 = vsel %vm603, %v8030, 0
    %8033 = vmatprep.subr.mxu0 0.0
    %8034 = vmatpush1.msra.mxu0 %v5560
    %8035 = vmatprep.subr.mxu0 0.0
    %8036 = vmatpush1.msra.mxu0 %v5561
    %8037 = vmatprep.subr.mxu0 0.0
    %8038 = vmatpush1.msra.mxu0 %v5562
    %8039 = vmatprep.subr.mxu0 0.0
    %8040 = vmatpush1.msra.mxu0 %v5563
    %8041 = vmatprep.subr.mxu0 0.0
    %8042 = vmatpush1.msra.mxu0 0.0
    %8043 = vmatprep.subr.mxu0 0.0
    %8044 = vmatpush1.msra.mxu0 0.0
    %8045 = vmatprep.subr.mxu0 0.0
    %8046 = vmatpush1.msra.mxu0 0.0
    %8047 = vmatprep.subr.mxu0 0.0
    %8048 = vmatpush1.msra.mxu0 0.0
    %8049 = vmatprep.subr.mxu0 0.0
    %8050 = vmatpush1.msra.mxu0 0.0
    %8051 = vmatprep.subr.mxu0 0.0
    %8052 = vmatpush1.msra.mxu0 0.0
    %8053 = vmatprep.subr.mxu0 0.0
    %8054 = vmatpush1.msra.mxu0 0.0
    %8055 = vmatprep.subr.mxu0 0.0
    %8056 = vmatpush1.msra.mxu0 0.0
    %8057 = vmatprep.subr.mxu0 0.0
    %8058 = vmatpush1.msra.mxu0 0.0
    %8059 = vmatprep.subr.mxu0 0.0
    %8060 = vmatpush1.msra.mxu0 0.0
    %8061 = vmatprep.subr.mxu0 0.0
    %8062 = vmatpush1.msra.mxu0 0.0
    %8063 = vmatprep.subr.mxu0 0.0
    %8064 = vmatpush1.msra.mxu0 0.0
    %8065 = vmatprep.subr.mxu0 0.0
    %8066 = vmatpush1.msra.mxu0 0.0
    %8067 = vmatprep.subr.mxu0 0.0
    %8068 = vmatpush1.msra.mxu0 0.0
    %8069 = vmatprep.subr.mxu0 0.0
    %8070 = vmatpush1.msra.mxu0 0.0
    %8071 = vmatprep.subr.mxu0 0.0
    %8072 = vmatpush1.msra.mxu0 0.0
    %8073 = vmatprep.subr.mxu0 0.0
    %8074 = vmatpush1.msra.mxu0 0.0
    %8075 = vmatprep.subr.mxu0 0.0
    %8076 = vmatpush1.msra.mxu0 0.0
    %8077 = vmatprep.subr.mxu0 0.0
    %8078 = vmatpush1.msra.mxu0 0.0
    %8079 = vmatprep.subr.mxu0 0.0
    %8080 = vmatpush1.msra.mxu0 0.0
    %8081 = vmatprep.subr.mxu0 0.0
    %8082 = vmatpush1.msra.mxu0 0.0
    %8083 = vmatprep.subr.mxu0 0.0
    %8084 = vmatpush1.msra.mxu0 0.0
    %8085 = vmatprep.subr.mxu0 0.0
    %8086 = vmatpush1.msra.mxu0 0.0
    %8087 = vmatprep.subr.mxu0 0.0
    %8088 = vmatpush1.msra.mxu0 0.0
    %8089 = vmatprep.subr.mxu0 0.0
    %8090 = vmatpush1.msra.mxu0 0.0
    %8091 = vmatprep.subr.mxu0 0.0
    %8092 = vmatpush1.msra.mxu0 0.0
    %8093 = vmatprep.subr.mxu0 0.0
    %8094 = vmatpush1.msra.mxu0 0.0
    %8095 = vmatprep.subr.mxu0 0.0
    %8096 = vmatpush1.msra.mxu0 0.0
    %8097 = vmatprep.mubr.f32.mxu0 0.0
    %8098 = vmatmul.mubr.f32.gmra.mrb[0].mxu0 %v8031
    %v8099 = vpop.f32.mrb[0].mxu0
    %v8100 = vadd.f32 %v5579, %v8099
    %v8101 = vpop.f32.mrb[0].mxu0
    %8102 = vdwg.mxu0
    %8103 = vmatprep.subr.mxu0 0.0
    %8104 = vmatpush1.msra.mxu0 %v5565
    %8105 = vmatprep.subr.mxu0 0.0
    %8106 = vmatpush1.msra.mxu0 %v5566
    %8107 = vmatprep.subr.mxu0 0.0
    %8108 = vmatpush1.msra.mxu0 %v5567
    %8109 = vmatprep.subr.mxu0 0.0
    %8110 = vmatpush1.msra.mxu0 %v5568
    %8111 = vmatprep.subr.mxu0 0.0
    %8112 = vmatpush1.msra.mxu0 0.0
    %8113 = vmatprep.subr.mxu0 0.0
    %8114 = vmatpush1.msra.mxu0 0.0
    %8115 = vmatprep.subr.mxu0 0.0
    %8116 = vmatpush1.msra.mxu0 0.0
    %8117 = vmatprep.subr.mxu0 0.0
    %8118 = vmatpush1.msra.mxu0 0.0
    %8119 = vmatprep.subr.mxu0 0.0
    %8120 = vmatpush1.msra.mxu0 0.0
    %8121 = vmatprep.subr.mxu0 0.0
    %8122 = vmatpush1.msra.mxu0 0.0
    %8123 = vmatprep.subr.mxu0 0.0
    %8124 = vmatpush1.msra.mxu0 0.0
    %8125 = vmatprep.subr.mxu0 0.0
    %8126 = vmatpush1.msra.mxu0 0.0
    %8127 = vmatprep.subr.mxu0 0.0
    %8128 = vmatpush1.msra.mxu0 0.0
    %8129 = vmatprep.subr.mxu0 0.0
    %8130 = vmatpush1.msra.mxu0 0.0
    %8131 = vmatprep.subr.mxu0 0.0
    %8132 = vmatpush1.msra.mxu0 0.0
    %8133 = vmatprep.subr.mxu0 0.0
    %8134 = vmatpush1.msra.mxu0 0.0
    %8135 = vmatprep.subr.mxu0 0.0
    %8136 = vmatpush1.msra.mxu0 0.0
    %8137 = vmatprep.subr.mxu0 0.0
    %8138 = vmatpush1.msra.mxu0 0.0
    %8139 = vmatprep.subr.mxu0 0.0
    %8140 = vmatpush1.msra.mxu0 0.0
    %8141 = vmatprep.subr.mxu0 0.0
    %8142 = vmatpush1.msra.mxu0 0.0
    %8143 = vmatprep.subr.mxu0 0.0
    %8144 = vmatpush1.msra.mxu0 0.0
    %8145 = vmatprep.subr.mxu0 0.0
    %8146 = vmatpush1.msra.mxu0 0.0
    %8147 = vmatprep.subr.mxu0 0.0
    %8148 = vmatpush1.msra.mxu0 0.0
    %8149 = vmatprep.subr.mxu0 0.0
    %8150 = vmatpush1.msra.mxu0 0.0
    %8151 = vmatprep.subr.mxu0 0.0
    %8152 = vmatpush1.msra.mxu0 0.0
    %8153 = vmatprep.subr.mxu0 0.0
    %8154 = vmatpush1.msra.mxu0 0.0
    %8155 = vmatprep.subr.mxu0 0.0
    %8156 = vmatpush1.msra.mxu0 0.0
    %8157 = vmatprep.subr.mxu0 0.0
    %8158 = vmatpush1.msra.mxu0 0.0
    %8159 = vmatprep.subr.mxu0 0.0
    %8160 = vmatpush1.msra.mxu0 0.0
    %8161 = vmatprep.subr.mxu0 0.0
    %8162 = vmatpush1.msra.mxu0 0.0
    %8163 = vmatprep.subr.mxu0 0.0
    %8164 = vmatpush1.msra.mxu0 0.0
    %8165 = vmatprep.subr.mxu0 0.0
    %8166 = vmatpush1.msra.mxu0 0.0
    %8167 = vmatprep.mubr.f32.mxu0 0.0
    %8168 = vmatmul.mubr.f32.gmra.mrb[0].mxu0 %v8031
    %v8169 = vpop.f32.mrb[0].mxu0
    %v8170 = vadd.f32 %v5587, %v8169
    %v8171 = vpop.f32.mrb[0].mxu0
    %8172 = vdwg.mxu0
    %8173 = vmatprep.subr.mxu0 0.0
    %8174 = vmatpush1.msra.mxu0 %v5570
    %8175 = vmatprep.subr.mxu0 0.0
    %8176 = vmatpush1.msra.mxu0 %v5571
    %8177 = vmatprep.subr.mxu0 0.0
    %8178 = vmatpush1.msra.mxu0 %v5572
    %8179 = vmatprep.subr.mxu0 0.0
    %8180 = vmatpush1.msra.mxu0 %v5573
    %8181 = vmatprep.subr.mxu0 0.0
    %8182 = vmatpush1.msra.mxu0 0.0
    %8183 = vmatprep.subr.mxu0 0.0
    %8184 = vmatpush1.msra.mxu0 0.0
    %8185 = vmatprep.subr.mxu0 0.0
    %8186 = vmatpush1.msra.mxu0 0.0
    %8187 = vmatprep.subr.mxu0 0.0
    %8188 = vmatpush1.msra.mxu0 0.0
    %8189 = vmatprep.subr.mxu0 0.0
    %8190 = vmatpush1.msra.mxu0 0.0
    %8191 = vmatprep.subr.mxu0 0.0
    %8192 = vmatpush1.msra.mxu0 0.0
    %8193 = vmatprep.subr.mxu0 0.0
    %8194 = vmatpush1.msra.mxu0 0.0
    %8195 = vmatprep.subr.mxu0 0.0
    %8196 = vmatpush1.msra.mxu0 0.0
    %8197 = vmatprep.subr.mxu0 0.0
    %8198 = vmatpush1.msra.mxu0 0.0
    %8199 = vmatprep.subr.mxu0 0.0
    %8200 = vmatpush1.msra.mxu0 0.0
    %8201 = vmatprep.subr.mxu0 0.0
    %8202 = vmatpush1.msra.mxu0 0.0
    %8203 = vmatprep.subr.mxu0 0.0
    %8204 = vmatpush1.msra.mxu0 0.0
    %8205 = vmatprep.subr.mxu0 0.0
    %8206 = vmatpush1.msra.mxu0 0.0
    %8207 = vmatprep.subr.mxu0 0.0
    %8208 = vmatpush1.msra.mxu0 0.0
    %8209 = vmatprep.subr.mxu0 0.0
    %8210 = vmatpush1.msra.mxu0 0.0
    %8211 = vmatprep.subr.mxu0 0.0
    %8212 = vmatpush1.msra.mxu0 0.0
    %8213 = vmatprep.subr.mxu0 0.0
    %8214 = vmatpush1.msra.mxu0 0.0
    %8215 = vmatprep.subr.mxu0 0.0
    %8216 = vmatpush1.msra.mxu0 0.0
    %8217 = vmatprep.subr.mxu0 0.0
    %8218 = vmatpush1.msra.mxu0 0.0
    %8219 = vmatprep.subr.mxu0 0.0
    %8220 = vmatpush1.msra.mxu0 0.0
    %8221 = vmatprep.subr.mxu0 0.0
    %8222 = vmatpush1.msra.mxu0 0.0
    %8223 = vmatprep.subr.mxu0 0.0
    %8224 = vmatpush1.msra.mxu0 0.0
    %8225 = vmatprep.subr.mxu0 0.0
    %8226 = vmatpush1.msra.mxu0 0.0
    %8227 = vmatprep.subr.mxu0 0.0
    %8228 = vmatpush1.msra.mxu0 0.0
    %8229 = vmatprep.subr.mxu0 0.0
    %8230 = vmatpush1.msra.mxu0 0.0
    %8231 = vmatprep.subr.mxu0 0.0
    %8232 = vmatpush1.msra.mxu0 0.0
    %8233 = vmatprep.subr.mxu0 0.0
    %8234 = vmatpush1.msra.mxu0 0.0
    %8235 = vmatprep.subr.mxu0 0.0
    %8236 = vmatpush1.msra.mxu0 0.0
    %8237 = vmatprep.mubr.f32.mxu0 0.0
    %8238 = vmatmul.mubr.f32.gmra.mrb[0].mxu0 %v8031
    %v8239 = vpop.f32.mrb[0].mxu0
    %v8240 = vadd.f32 %v5595, %v8239
    %v8241 = vpop.f32.mrb[0].mxu0
    %8242 = vdwg.mxu0
    %v8244 = vrot.slane %v8100, 4
    %v8246 = vadd.f32 %v5356, %v8244
    %v8247 = vxor.u32 %v8246, 2147483648
    %v8248 = vmul.f32 %v8247, 1.442695
    %v8249 = vpow.pop %v8248
    %v8250 = vadd.f32 %v8249, 1.0
    %v8251 = vrcp.pop %v8250
    %v8252 = vmul.f32 1.0, %v8251
    %v8254 = vrot.slane %v8170, 4
    %v8256 = vadd.f32 %v5454, %v8254
    %v8257 = vxor.u32 %v8256, 2147483648
    %v8258 = vmul.f32 %v8257, 1.442695
    %v8259 = vpow.pop %v8258
    %v8260 = vadd.f32 %v8259, 1.0
    %v8261 = vrcp.pop %v8260
    %v8262 = vmul.f32 1.0, %v8261
    %v8264 = vrot.slane %v8240, 4
    %v8266 = vmul.f32 %v8252, %v8264
    %v8267 = vadd.f32 %v5552, %v8266
    %v8268 = vtanh.pop %v8267
    %v8269 = vsub.f32 1.0, %v8262
    %v8270 = vmul.f32 %v8269, %v8268
    %v8271 = vrot.slane %v8027, 6
    %v8273 = vmul.f32 %v8262, %v8271
    %v8274 = vadd.f32 %v8270, %v8273
    %8275 = vst.msk [vmem:[%s3298 - $0x4] sm:$0x30] %vm1335, %v8274
    %v8277 = vrot.slane %v8274, 4
    %v8278 = vsel %vm603, %v8277, 0
    %8280 = vmatprep.subr.mxu0 0.0
    %8281 = vmatpush1.msra.mxu0 %v5560
    %8282 = vmatprep.subr.mxu0 0.0
    %8283 = vmatpush1.msra.mxu0 %v5561
    %8284 = vmatprep.subr.mxu0 0.0
    %8285 = vmatpush1.msra.mxu0 %v5562
    %8286 = vmatprep.subr.mxu0 0.0
    %8287 = vmatpush1.msra.mxu0 %v5563
    %8288 = vmatprep.subr.mxu0 0.0
    %8289 = vmatpush1.msra.mxu0 0.0
    %8290 = vmatprep.subr.mxu0 0.0
    %8291 = vmatpush1.msra.mxu0 0.0
    %8292 = vmatprep.subr.mxu0 0.0
    %8293 = vmatpush1.msra.mxu0 0.0
    %8294 = vmatprep.subr.mxu0 0.0
    %8295 = vmatpush1.msra.mxu0 0.0
    %8296 = vmatprep.subr.mxu0 0.0
    %8297 = vmatpush1.msra.mxu0 0.0
    %8298 = vmatprep.subr.mxu0 0.0
    %8299 = vmatpush1.msra.mxu0 0.0
    %8300 = vmatprep.subr.mxu0 0.0
    %8301 = vmatpush1.msra.mxu0 0.0
    %8302 = vmatprep.subr.mxu0 0.0
    %8303 = vmatpush1.msra.mxu0 0.0
    %8304 = vmatprep.subr.mxu0 0.0
    %8305 = vmatpush1.msra.mxu0 0.0
    %8306 = vmatprep.subr.mxu0 0.0
    %8307 = vmatpush1.msra.mxu0 0.0
    %8308 = vmatprep.subr.mxu0 0.0
    %8309 = vmatpush1.msra.mxu0 0.0
    %8310 = vmatprep.subr.mxu0 0.0
    %8311 = vmatpush1.msra.mxu0 0.0
    %8312 = vmatprep.subr.mxu0 0.0
    %8313 = vmatpush1.msra.mxu0 0.0
    %8314 = vmatprep.subr.mxu0 0.0
    %8315 = vmatpush1.msra.mxu0 0.0
    %8316 = vmatprep.subr.mxu0 0.0
    %8317 = vmatpush1.msra.mxu0 0.0
    %8318 = vmatprep.subr.mxu0 0.0
    %8319 = vmatpush1.msra.mxu0 0.0
    %8320 = vmatprep.subr.mxu0 0.0
    %8321 = vmatpush1.msra.mxu0 0.0
    %8322 = vmatprep.subr.mxu0 0.0
    %8323 = vmatpush1.msra.mxu0 0.0
    %8324 = vmatprep.subr.mxu0 0.0
    %8325 = vmatpush1.msra.mxu0 0.0
    %8326 = vmatprep.subr.mxu0 0.0
    %8327 = vmatpush1.msra.mxu0 0.0
    %8328 = vmatprep.subr.mxu0 0.0
    %8329 = vmatpush1.msra.mxu0 0.0
    %8330 = vmatprep.subr.mxu0 0.0
    %8331 = vmatpush1.msra.mxu0 0.0
    %8332 = vmatprep.subr.mxu0 0.0
    %8333 = vmatpush1.msra.mxu0 0.0
    %8334 = vmatprep.subr.mxu0 0.0
    %8335 = vmatpush1.msra.mxu0 0.0
    %8336 = vmatprep.subr.mxu0 0.0
    %8337 = vmatpush1.msra.mxu0 0.0
    %8338 = vmatprep.subr.mxu0 0.0
    %8339 = vmatpush1.msra.mxu0 0.0
    %8340 = vmatprep.subr.mxu0 0.0
    %8341 = vmatpush1.msra.mxu0 0.0
    %8342 = vmatprep.subr.mxu0 0.0
    %8343 = vmatpush1.msra.mxu0 0.0
    %8344 = vmatprep.mubr.f32.mxu0 0.0
    %8345 = vmatmul.mubr.f32.gmra.mrb[0].mxu0 %v8278
    %v8346 = vpop.f32.mrb[0].mxu0
    %v8347 = vadd.f32 %v5579, %v8346
    %v8348 = vpop.f32.mrb[0].mxu0
    %8349 = vdwg.mxu0
    %8350 = vmatprep.subr.mxu0 0.0
    %8351 = vmatpush1.msra.mxu0 %v5565
    %8352 = vmatprep.subr.mxu0 0.0
    %8353 = vmatpush1.msra.mxu0 %v5566
    %8354 = vmatprep.subr.mxu0 0.0
    %8355 = vmatpush1.msra.mxu0 %v5567
    %8356 = vmatprep.subr.mxu0 0.0
    %8357 = vmatpush1.msra.mxu0 %v5568
    %8358 = vmatprep.subr.mxu0 0.0
    %8359 = vmatpush1.msra.mxu0 0.0
    %8360 = vmatprep.subr.mxu0 0.0
    %8361 = vmatpush1.msra.mxu0 0.0
    %8362 = vmatprep.subr.mxu0 0.0
    %8363 = vmatpush1.msra.mxu0 0.0
    %8364 = vmatprep.subr.mxu0 0.0
    %8365 = vmatpush1.msra.mxu0 0.0
    %8366 = vmatprep.subr.mxu0 0.0
    %8367 = vmatpush1.msra.mxu0 0.0
    %8368 = vmatprep.subr.mxu0 0.0
    %8369 = vmatpush1.msra.mxu0 0.0
    %8370 = vmatprep.subr.mxu0 0.0
    %8371 = vmatpush1.msra.mxu0 0.0
    %8372 = vmatprep.subr.mxu0 0.0
    %8373 = vmatpush1.msra.mxu0 0.0
    %8374 = vmatprep.subr.mxu0 0.0
    %8375 = vmatpush1.msra.mxu0 0.0
    %8376 = vmatprep.subr.mxu0 0.0
    %8377 = vmatpush1.msra.mxu0 0.0
    %8378 = vmatprep.subr.mxu0 0.0
    %8379 = vmatpush1.msra.mxu0 0.0
    %8380 = vmatprep.subr.mxu0 0.0
    %8381 = vmatpush1.msra.mxu0 0.0
    %8382 = vmatprep.subr.mxu0 0.0
    %8383 = vmatpush1.msra.mxu0 0.0
    %8384 = vmatprep.subr.mxu0 0.0
    %8385 = vmatpush1.msra.mxu0 0.0
    %8386 = vmatprep.subr.mxu0 0.0
    %8387 = vmatpush1.msra.mxu0 0.0
    %8388 = vmatprep.subr.mxu0 0.0
    %8389 = vmatpush1.msra.mxu0 0.0
    %8390 = vmatprep.subr.mxu0 0.0
    %8391 = vmatpush1.msra.mxu0 0.0
    %8392 = vmatprep.subr.mxu0 0.0
    %8393 = vmatpush1.msra.mxu0 0.0
    %8394 = vmatprep.subr.mxu0 0.0
    %8395 = vmatpush1.msra.mxu0 0.0
    %8396 = vmatprep.subr.mxu0 0.0
    %8397 = vmatpush1.msra.mxu0 0.0
    %8398 = vmatprep.subr.mxu0 0.0
    %8399 = vmatpush1.msra.mxu0 0.0
    %8400 = vmatprep.subr.mxu0 0.0
    %8401 = vmatpush1.msra.mxu0 0.0
    %8402 = vmatprep.subr.mxu0 0.0
    %8403 = vmatpush1.msra.mxu0 0.0
    %8404 = vmatprep.subr.mxu0 0.0
    %8405 = vmatpush1.msra.mxu0 0.0
    %8406 = vmatprep.subr.mxu0 0.0
    %8407 = vmatpush1.msra.mxu0 0.0
    %8408 = vmatprep.subr.mxu0 0.0
    %8409 = vmatpush1.msra.mxu0 0.0
    %8410 = vmatprep.subr.mxu0 0.0
    %8411 = vmatpush1.msra.mxu0 0.0
    %8412 = vmatprep.subr.mxu0 0.0
    %8413 = vmatpush1.msra.mxu0 0.0
    %8414 = vmatprep.mubr.f32.mxu0 0.0
    %8415 = vmatmul.mubr.f32.gmra.mrb[0].mxu0 %v8278
    %v8416 = vpop.f32.mrb[0].mxu0
    %v8417 = vadd.f32 %v5587, %v8416
    %v8418 = vpop.f32.mrb[0].mxu0
    %8419 = vdwg.mxu0
    %8420 = vmatprep.subr.mxu0 0.0
    %8421 = vmatpush1.msra.mxu0 %v5570
    %8422 = vmatprep.subr.mxu0 0.0
    %8423 = vmatpush1.msra.mxu0 %v5571
    %8424 = vmatprep.subr.mxu0 0.0
    %8425 = vmatpush1.msra.mxu0 %v5572
    %8426 = vmatprep.subr.mxu0 0.0
    %8427 = vmatpush1.msra.mxu0 %v5573
    %8428 = vmatprep.subr.mxu0 0.0
    %8429 = vmatpush1.msra.mxu0 0.0
    %8430 = vmatprep.subr.mxu0 0.0
    %8431 = vmatpush1.msra.mxu0 0.0
    %8432 = vmatprep.subr.mxu0 0.0
    %8433 = vmatpush1.msra.mxu0 0.0
    %8434 = vmatprep.subr.mxu0 0.0
    %8435 = vmatpush1.msra.mxu0 0.0
    %8436 = vmatprep.subr.mxu0 0.0
    %8437 = vmatpush1.msra.mxu0 0.0
    %8438 = vmatprep.subr.mxu0 0.0
    %8439 = vmatpush1.msra.mxu0 0.0
    %8440 = vmatprep.subr.mxu0 0.0
    %8441 = vmatpush1.msra.mxu0 0.0
    %8442 = vmatprep.subr.mxu0 0.0
    %8443 = vmatpush1.msra.mxu0 0.0
    %8444 = vmatprep.subr.mxu0 0.0
    %8445 = vmatpush1.msra.mxu0 0.0
    %8446 = vmatprep.subr.mxu0 0.0
    %8447 = vmatpush1.msra.mxu0 0.0
    %8448 = vmatprep.subr.mxu0 0.0
    %8449 = vmatpush1.msra.mxu0 0.0
    %8450 = vmatprep.subr.mxu0 0.0
    %8451 = vmatpush1.msra.mxu0 0.0
    %8452 = vmatprep.subr.mxu0 0.0
    %8453 = vmatpush1.msra.mxu0 0.0
    %8454 = vmatprep.subr.mxu0 0.0
    %8455 = vmatpush1.msra.mxu0 0.0
    %8456 = vmatprep.subr.mxu0 0.0
    %8457 = vmatpush1.msra.mxu0 0.0
    %8458 = vmatprep.subr.mxu0 0.0
    %8459 = vmatpush1.msra.mxu0 0.0
    %8460 = vmatprep.subr.mxu0 0.0
    %8461 = vmatpush1.msra.mxu0 0.0
    %8462 = vmatprep.subr.mxu0 0.0
    %8463 = vmatpush1.msra.mxu0 0.0
    %8464 = vmatprep.subr.mxu0 0.0
    %8465 = vmatpush1.msra.mxu0 0.0
    %8466 = vmatprep.subr.mxu0 0.0
    %8467 = vmatpush1.msra.mxu0 0.0
    %8468 = vmatprep.subr.mxu0 0.0
    %8469 = vmatpush1.msra.mxu0 0.0
    %8470 = vmatprep.subr.mxu0 0.0
    %8471 = vmatpush1.msra.mxu0 0.0
    %8472 = vmatprep.subr.mxu0 0.0
    %8473 = vmatpush1.msra.mxu0 0.0
    %8474 = vmatprep.subr.mxu0 0.0
    %8475 = vmatpush1.msra.mxu0 0.0
    %8476 = vmatprep.subr.mxu0 0.0
    %8477 = vmatpush1.msra.mxu0 0.0
    %8478 = vmatprep.subr.mxu0 0.0
    %8479 = vmatpush1.msra.mxu0 0.0
    %8480 = vmatprep.subr.mxu0 0.0
    %8481 = vmatpush1.msra.mxu0 0.0
    %8482 = vmatprep.subr.mxu0 0.0
    %8483 = vmatpush1.msra.mxu0 0.0
    %8484 = vmatprep.mubr.f32.mxu0 0.0
    %8485 = vmatmul.mubr.f32.gmra.mrb[0].mxu0 %v8278
    %v8486 = vpop.f32.mrb[0].mxu0
    %v8487 = vadd.f32 %v5595, %v8486
    %v8488 = vpop.f32.mrb[0].mxu0
    %8489 = vdwg.mxu0
    %v8491 = vrot.slane %v8347, 2
    %v8493 = vadd.f32 %v5356, %v8491
    %v8494 = vxor.u32 %v8493, 2147483648
    %v8495 = vmul.f32 %v8494, 1.442695
    %v8496 = vpow.pop %v8495
    %v8497 = vadd.f32 %v8496, 1.0
    %v8498 = vrcp.pop %v8497
    %v8499 = vmul.f32 1.0, %v8498
    %v8501 = vrot.slane %v8417, 2
    %v8503 = vadd.f32 %v5454, %v8501
    %v8504 = vxor.u32 %v8503, 2147483648
    %v8505 = vmul.f32 %v8504, 1.442695
    %v8506 = vpow.pop %v8505
    %v8507 = vadd.f32 %v8506, 1.0
    %v8508 = vrcp.pop %v8507
    %v8509 = vmul.f32 1.0, %v8508
    %v8511 = vrot.slane %v8487, 2
    %v8513 = vmul.f32 %v8499, %v8511
    %v8514 = vadd.f32 %v5552, %v8513
    %v8515 = vtanh.pop %v8514
    %v8516 = vsub.f32 1.0, %v8509
    %v8517 = vmul.f32 %v8516, %v8515
    %v8518 = vrot.slane %v8274, 6
    %v8520 = vmul.f32 %v8509, %v8518
    %v8521 = vadd.f32 %v8517, %v8520
    %8522 = vst.msk [vmem:[%s3546 - $0x6] sm:$0xc0] %vm1584, %v8521
    %v8524 = vrot.slane %v8521, 6
    %v8525 = vsel %vm603, %v8524, 0
    %8527 = vmatprep.subr.mxu0 0.0
    %8528 = vmatpush1.msra.mxu0 %v5560
    %8529 = vmatprep.subr.mxu0 0.0
    %8530 = vmatpush1.msra.mxu0 %v5561
    %8531 = vmatprep.subr.mxu0 0.0
    %8532 = vmatpush1.msra.mxu0 %v5562
    %8533 = vmatprep.subr.mxu0 0.0
    %8534 = vmatpush1.msra.mxu0 %v5563
    %8535 = vmatprep.subr.mxu0 0.0
    %8536 = vmatpush1.msra.mxu0 0.0
    %8537 = vmatprep.subr.mxu0 0.0
    %8538 = vmatpush1.msra.mxu0 0.0
    %8539 = vmatprep.subr.mxu0 0.0
    %8540 = vmatpush1.msra.mxu0 0.0
    %8541 = vmatprep.subr.mxu0 0.0
    %8542 = vmatpush1.msra.mxu0 0.0
    %8543 = vmatprep.subr.mxu0 0.0
    %8544 = vmatpush1.msra.mxu0 0.0
    %8545 = vmatprep.subr.mxu0 0.0
    %8546 = vmatpush1.msra.mxu0 0.0
    %8547 = vmatprep.subr.mxu0 0.0
    %8548 = vmatpush1.msra.mxu0 0.0
    %8549 = vmatprep.subr.mxu0 0.0
    %8550 = vmatpush1.msra.mxu0 0.0
    %8551 = vmatprep.subr.mxu0 0.0
    %8552 = vmatpush1.msra.mxu0 0.0
    %8553 = vmatprep.subr.mxu0 0.0
    %8554 = vmatpush1.msra.mxu0 0.0
    %8555 = vmatprep.subr.mxu0 0.0
    %8556 = vmatpush1.msra.mxu0 0.0
    %8557 = vmatprep.subr.mxu0 0.0
    %8558 = vmatpush1.msra.mxu0 0.0
    %8559 = vmatprep.subr.mxu0 0.0
    %8560 = vmatpush1.msra.mxu0 0.0
    %8561 = vmatprep.subr.mxu0 0.0
    %8562 = vmatpush1.msra.mxu0 0.0
    %8563 = vmatprep.subr.mxu0 0.0
    %8564 = vmatpush1.msra.mxu0 0.0
    %8565 = vmatprep.subr.mxu0 0.0
    %8566 = vmatpush1.msra.mxu0 0.0
    %8567 = vmatprep.subr.mxu0 0.0
    %8568 = vmatpush1.msra.mxu0 0.0
    %8569 = vmatprep.subr.mxu0 0.0
    %8570 = vmatpush1.msra.mxu0 0.0
    %8571 = vmatprep.subr.mxu0 0.0
    %8572 = vmatpush1.msra.mxu0 0.0
    %8573 = vmatprep.subr.mxu0 0.0
    %8574 = vmatpush1.msra.mxu0 0.0
    %8575 = vmatprep.subr.mxu0 0.0
    %8576 = vmatpush1.msra.mxu0 0.0
    %8577 = vmatprep.subr.mxu0 0.0
    %8578 = vmatpush1.msra.mxu0 0.0
    %8579 = vmatprep.subr.mxu0 0.0
    %8580 = vmatpush1.msra.mxu0 0.0
    %8581 = vmatprep.subr.mxu0 0.0
    %8582 = vmatpush1.msra.mxu0 0.0
    %8583 = vmatprep.subr.mxu0 0.0
    %8584 = vmatpush1.msra.mxu0 0.0
    %8585 = vmatprep.subr.mxu0 0.0
    %8586 = vmatpush1.msra.mxu0 0.0
    %8587 = vmatprep.subr.mxu0 0.0
    %8588 = vmatpush1.msra.mxu0 0.0
    %8589 = vmatprep.subr.mxu0 0.0
    %8590 = vmatpush1.msra.mxu0 0.0
    %8591 = vmatprep.mubr.f32.mxu0 0.0
    %8592 = vmatmul.mubr.f32.gmra.mrb[0].mxu0 %v8525
    %v8593 = vpop.f32.mrb[0].mxu0
    %v8594 = vadd.f32 %v5579, %v8593
    %v8595 = vpop.f32.mrb[0].mxu0
    %8596 = vdwg.mxu0
    %8597 = vmatprep.subr.mxu0 0.0
    %8598 = vmatpush1.msra.mxu0 %v5565
    %8599 = vmatprep.subr.mxu0 0.0
    %8600 = vmatpush1.msra.mxu0 %v5566
    %8601 = vmatprep.subr.mxu0 0.0
    %8602 = vmatpush1.msra.mxu0 %v5567
    %8603 = vmatprep.subr.mxu0 0.0
    %8604 = vmatpush1.msra.mxu0 %v5568
    %8605 = vmatprep.subr.mxu0 0.0
    %8606 = vmatpush1.msra.mxu0 0.0
    %8607 = vmatprep.subr.mxu0 0.0
    %8608 = vmatpush1.msra.mxu0 0.0
    %8609 = vmatprep.subr.mxu0 0.0
    %8610 = vmatpush1.msra.mxu0 0.0
    %8611 = vmatprep.subr.mxu0 0.0
    %8612 = vmatpush1.msra.mxu0 0.0
    %8613 = vmatprep.subr.mxu0 0.0
    %8614 = vmatpush1.msra.mxu0 0.0
    %8615 = vmatprep.subr.mxu0 0.0
    %8616 = vmatpush1.msra.mxu0 0.0
    %8617 = vmatprep.subr.mxu0 0.0
    %8618 = vmatpush1.msra.mxu0 0.0
    %8619 = vmatprep.subr.mxu0 0.0
    %8620 = vmatpush1.msra.mxu0 0.0
    %8621 = vmatprep.subr.mxu0 0.0
    %8622 = vmatpush1.msra.mxu0 0.0
    %8623 = vmatprep.subr.mxu0 0.0
    %8624 = vmatpush1.msra.mxu0 0.0
    %8625 = vmatprep.subr.mxu0 0.0
    %8626 = vmatpush1.msra.mxu0 0.0
    %8627 = vmatprep.subr.mxu0 0.0
    %8628 = vmatpush1.msra.mxu0 0.0
    %8629 = vmatprep.subr.mxu0 0.0
    %8630 = vmatpush1.msra.mxu0 0.0
    %8631 = vmatprep.subr.mxu0 0.0
    %8632 = vmatpush1.msra.mxu0 0.0
    %8633 = vmatprep.subr.mxu0 0.0
    %8634 = vmatpush1.msra.mxu0 0.0
    %8635 = vmatprep.subr.mxu0 0.0
    %8636 = vmatpush1.msra.mxu0 0.0
    %8637 = vmatprep.subr.mxu0 0.0
    %8638 = vmatpush1.msra.mxu0 0.0
    %8639 = vmatprep.subr.mxu0 0.0
    %8640 = vmatpush1.msra.mxu0 0.0
    %8641 = vmatprep.subr.mxu0 0.0
    %8642 = vmatpush1.msra.mxu0 0.0
    %8643 = vmatprep.subr.mxu0 0.0
    %8644 = vmatpush1.msra.mxu0 0.0
    %8645 = vmatprep.subr.mxu0 0.0
    %8646 = vmatpush1.msra.mxu0 0.0
    %8647 = vmatprep.subr.mxu0 0.0
    %8648 = vmatpush1.msra.mxu0 0.0
    %8649 = vmatprep.subr.mxu0 0.0
    %8650 = vmatpush1.msra.mxu0 0.0
    %8651 = vmatprep.subr.mxu0 0.0
    %8652 = vmatpush1.msra.mxu0 0.0
    %8653 = vmatprep.subr.mxu0 0.0
    %8654 = vmatpush1.msra.mxu0 0.0
    %8655 = vmatprep.subr.mxu0 0.0
    %8656 = vmatpush1.msra.mxu0 0.0
    %8657 = vmatprep.subr.mxu0 0.0
    %8658 = vmatpush1.msra.mxu0 0.0
    %8659 = vmatprep.subr.mxu0 0.0
    %8660 = vmatpush1.msra.mxu0 0.0
    %8661 = vmatprep.mubr.f32.mxu0 0.0
    %8662 = vmatmul.mubr.f32.gmra.mrb[0].mxu0 %v8525
    %v8663 = vpop.f32.mrb[0].mxu0
    %v8664 = vadd.f32 %v5587, %v8663
    %v8665 = vpop.f32.mrb[0].mxu0
    %8666 = vdwg.mxu0
    %8667 = vmatprep.subr.mxu0 0.0
    %8668 = vmatpush1.msra.mxu0 %v5570
    %8669 = vmatprep.subr.mxu0 0.0
    %8670 = vmatpush1.msra.mxu0 %v5571
    %8671 = vmatprep.subr.mxu0 0.0
    %8672 = vmatpush1.msra.mxu0 %v5572
    %8673 = vmatprep.subr.mxu0 0.0
    %8674 = vmatpush1.msra.mxu0 %v5573
    %8675 = vmatprep.subr.mxu0 0.0
    %8676 = vmatpush1.msra.mxu0 0.0
    %8677 = vmatprep.subr.mxu0 0.0
    %8678 = vmatpush1.msra.mxu0 0.0
    %8679 = vmatprep.subr.mxu0 0.0
    %8680 = vmatpush1.msra.mxu0 0.0
    %8681 = vmatprep.subr.mxu0 0.0
    %8682 = vmatpush1.msra.mxu0 0.0
    %8683 = vmatprep.subr.mxu0 0.0
    %8684 = vmatpush1.msra.mxu0 0.0
    %8685 = vmatprep.subr.mxu0 0.0
    %8686 = vmatpush1.msra.mxu0 0.0
    %8687 = vmatprep.subr.mxu0 0.0
    %8688 = vmatpush1.msra.mxu0 0.0
    %8689 = vmatprep.subr.mxu0 0.0
    %8690 = vmatpush1.msra.mxu0 0.0
    %8691 = vmatprep.subr.mxu0 0.0
    %8692 = vmatpush1.msra.mxu0 0.0
    %8693 = vmatprep.subr.mxu0 0.0
    %8694 = vmatpush1.msra.mxu0 0.0
    %8695 = vmatprep.subr.mxu0 0.0
    %8696 = vmatpush1.msra.mxu0 0.0
    %8697 = vmatprep.subr.mxu0 0.0
    %8698 = vmatpush1.msra.mxu0 0.0
    %8699 = vmatprep.subr.mxu0 0.0
    %8700 = vmatpush1.msra.mxu0 0.0
    %8701 = vmatprep.subr.mxu0 0.0
    %8702 = vmatpush1.msra.mxu0 0.0
    %8703 = vmatprep.subr.mxu0 0.0
    %8704 = vmatpush1.msra.mxu0 0.0
    %8705 = vmatprep.subr.mxu0 0.0
    %8706 = vmatpush1.msra.mxu0 0.0
    %8707 = vmatprep.subr.mxu0 0.0
    %8708 = vmatpush1.msra.mxu0 0.0
    %8709 = vmatprep.subr.mxu0 0.0
    %8710 = vmatpush1.msra.mxu0 0.0
    %8711 = vmatprep.subr.mxu0 0.0
    %8712 = vmatpush1.msra.mxu0 0.0
    %8713 = vmatprep.subr.mxu0 0.0
    %8714 = vmatpush1.msra.mxu0 0.0
    %8715 = vmatprep.subr.mxu0 0.0
    %8716 = vmatpush1.msra.mxu0 0.0
    %8717 = vmatprep.subr.mxu0 0.0
    %8718 = vmatpush1.msra.mxu0 0.0
    %8719 = vmatprep.subr.mxu0 0.0
    %8720 = vmatpush1.msra.mxu0 0.0
    %8721 = vmatprep.subr.mxu0 0.0
    %8722 = vmatpush1.msra.mxu0 0.0
    %8723 = vmatprep.subr.mxu0 0.0
    %8724 = vmatpush1.msra.mxu0 0.0
    %8725 = vmatprep.subr.mxu0 0.0
    %8726 = vmatpush1.msra.mxu0 0.0
    %8727 = vmatprep.subr.mxu0 0.0
    %8728 = vmatpush1.msra.mxu0 0.0
    %8729 = vmatprep.subr.mxu0 0.0
    %8730 = vmatpush1.msra.mxu0 0.0
    %8731 = vmatprep.mubr.f32.mxu0 0.0
    %8732 = vmatmul.mubr.f32.gmra.mrb[0].mxu0 %v8525
    %v8733 = vpop.f32.mrb[0].mxu0
    %v8734 = vadd.f32 %v5595, %v8733
    %v8735 = vpop.f32.mrb[0].mxu0
    %8736 = vdwg.mxu0
    %v8737 = vadd.f32 %v5361, %v8594
    %v8738 = vxor.u32 %v8737, 2147483648
    %v8739 = vmul.f32 %v8738, 1.442695
    %v8740 = vpow.pop %v8739
    %v8741 = vadd.f32 %v8740, 1.0
    %v8742 = vrcp.pop %v8741
    %v8743 = vmul.f32 1.0, %v8742
    %v8744 = vadd.f32 %v5459, %v8664
    %v8745 = vxor.u32 %v8744, 2147483648
    %v8746 = vmul.f32 %v8745, 1.442695
    %v8747 = vpow.pop %v8746
    %v8748 = vadd.f32 %v8747, 1.0
    %v8749 = vrcp.pop %v8748
    %v8750 = vmul.f32 1.0, %v8749
    %v8751 = vmul.f32 %v8743, %v8734
    %v8752 = vadd.f32 %v5557, %v8751
    %v8753 = vtanh.pop %v8752
    %v8754 = vsub.f32 1.0, %v8750
    %v8755 = vmul.f32 %v8754, %v8753
    %v8757 = vmul.f32 %v8750, %v8524
    %v8758 = vadd.f32 %v8755, %v8757
    %8759 = vst.msk [vmem:[%s3784] sm:$0x3] %vm838, %v8758
    %v8761 = vsel %vm603, %v8758, 0
    %8763 = vmatprep.subr.mxu0 0.0
    %8764 = vmatpush1.msra.mxu0 %v5560
    %8765 = vmatprep.subr.mxu0 0.0
    %8766 = vmatpush1.msra.mxu0 %v5561
    %8767 = vmatprep.subr.mxu0 0.0
    %8768 = vmatpush1.msra.mxu0 %v5562
    %8769 = vmatprep.subr.mxu0 0.0
    %8770 = vmatpush1.msra.mxu0 %v5563
    %8771 = vmatprep.subr.mxu0 0.0
    %8772 = vmatpush1.msra.mxu0 0.0
    %8773 = vmatprep.subr.mxu0 0.0
    %8774 = vmatpush1.msra.mxu0 0.0
    %8775 = vmatprep.subr.mxu0 0.0
    %8776 = vmatpush1.msra.mxu0 0.0
    %8777 = vmatprep.subr.mxu0 0.0
    %8778 = vmatpush1.msra.mxu0 0.0
    %8779 = vmatprep.subr.mxu0 0.0
    %8780 = vmatpush1.msra.mxu0 0.0
    %8781 = vmatprep.subr.mxu0 0.0
    %8782 = vmatpush1.msra.mxu0 0.0
    %8783 = vmatprep.subr.mxu0 0.0
    %8784 = vmatpush1.msra.mxu0 0.0
    %8785 = vmatprep.subr.mxu0 0.0
    %8786 = vmatpush1.msra.mxu0 0.0
    %8787 = vmatprep.subr.mxu0 0.0
    %8788 = vmatpush1.msra.mxu0 0.0
    %8789 = vmatprep.subr.mxu0 0.0
    %8790 = vmatpush1.msra.mxu0 0.0
    %8791 = vmatprep.subr.mxu0 0.0
    %8792 = vmatpush1.msra.mxu0 0.0
    %8793 = vmatprep.subr.mxu0 0.0
    %8794 = vmatpush1.msra.mxu0 0.0
    %8795 = vmatprep.subr.mxu0 0.0
    %8796 = vmatpush1.msra.mxu0 0.0
    %8797 = vmatprep.subr.mxu0 0.0
    %8798 = vmatpush1.msra.mxu0 0.0
    %8799 = vmatprep.subr.mxu0 0.0
    %8800 = vmatpush1.msra.mxu0 0.0
    %8801 = vmatprep.subr.mxu0 0.0
    %8802 = vmatpush1.msra.mxu0 0.0
    %8803 = vmatprep.subr.mxu0 0.0
    %8804 = vmatpush1.msra.mxu0 0.0
    %8805 = vmatprep.subr.mxu0 0.0
    %8806 = vmatpush1.msra.mxu0 0.0
    %8807 = vmatprep.subr.mxu0 0.0
    %8808 = vmatpush1.msra.mxu0 0.0
    %8809 = vmatprep.subr.mxu0 0.0
    %8810 = vmatpush1.msra.mxu0 0.0
    %8811 = vmatprep.subr.mxu0 0.0
    %8812 = vmatpush1.msra.mxu0 0.0
    %8813 = vmatprep.subr.mxu0 0.0
    %8814 = vmatpush1.msra.mxu0 0.0
    %8815 = vmatprep.subr.mxu0 0.0
    %8816 = vmatpush1.msra.mxu0 0.0
    %8817 = vmatprep.subr.mxu0 0.0
    %8818 = vmatpush1.msra.mxu0 0.0
    %8819 = vmatprep.subr.mxu0 0.0
    %8820 = vmatpush1.msra.mxu0 0.0
    %8821 = vmatprep.subr.mxu0 0.0
    %8822 = vmatpush1.msra.mxu0 0.0
    %8823 = vmatprep.subr.mxu0 0.0
    %8824 = vmatpush1.msra.mxu0 0.0
    %8825 = vmatprep.subr.mxu0 0.0
    %8826 = vmatpush1.msra.mxu0 0.0
    %8827 = vmatprep.mubr.f32.mxu0 0.0
    %8828 = vmatmul.mubr.f32.gmra.mrb[0].mxu0 %v8761
    %v8829 = vpop.f32.mrb[0].mxu0
    %v8830 = vadd.f32 %v5579, %v8829
    %v8831 = vpop.f32.mrb[0].mxu0
    %8832 = vdwg.mxu0
    %8833 = vmatprep.subr.mxu0 0.0
    %8834 = vmatpush1.msra.mxu0 %v5565
    %8835 = vmatprep.subr.mxu0 0.0
    %8836 = vmatpush1.msra.mxu0 %v5566
    %8837 = vmatprep.subr.mxu0 0.0
    %8838 = vmatpush1.msra.mxu0 %v5567
    %8839 = vmatprep.subr.mxu0 0.0
    %8840 = vmatpush1.msra.mxu0 %v5568
    %8841 = vmatprep.subr.mxu0 0.0
    %8842 = vmatpush1.msra.mxu0 0.0
    %8843 = vmatprep.subr.mxu0 0.0
    %8844 = vmatpush1.msra.mxu0 0.0
    %8845 = vmatprep.subr.mxu0 0.0
    %8846 = vmatpush1.msra.mxu0 0.0
    %8847 = vmatprep.subr.mxu0 0.0
    %8848 = vmatpush1.msra.mxu0 0.0
    %8849 = vmatprep.subr.mxu0 0.0
    %8850 = vmatpush1.msra.mxu0 0.0
    %8851 = vmatprep.subr.mxu0 0.0
    %8852 = vmatpush1.msra.mxu0 0.0
    %8853 = vmatprep.subr.mxu0 0.0
    %8854 = vmatpush1.msra.mxu0 0.0
    %8855 = vmatprep.subr.mxu0 0.0
    %8856 = vmatpush1.msra.mxu0 0.0
    %8857 = vmatprep.subr.mxu0 0.0
    %8858 = vmatpush1.msra.mxu0 0.0
    %8859 = vmatprep.subr.mxu0 0.0
    %8860 = vmatpush1.msra.mxu0 0.0
    %8861 = vmatprep.subr.mxu0 0.0
    %8862 = vmatpush1.msra.mxu0 0.0
    %8863 = vmatprep.subr.mxu0 0.0
    %8864 = vmatpush1.msra.mxu0 0.0
    %8865 = vmatprep.subr.mxu0 0.0
    %8866 = vmatpush1.msra.mxu0 0.0
    %8867 = vmatprep.subr.mxu0 0.0
    %8868 = vmatpush1.msra.mxu0 0.0
    %8869 = vmatprep.subr.mxu0 0.0
    %8870 = vmatpush1.msra.mxu0 0.0
    %8871 = vmatprep.subr.mxu0 0.0
    %8872 = vmatpush1.msra.mxu0 0.0
    %8873 = vmatprep.subr.mxu0 0.0
    %8874 = vmatpush1.msra.mxu0 0.0
    %8875 = vmatprep.subr.mxu0 0.0
    %8876 = vmatpush1.msra.mxu0 0.0
    %8877 = vmatprep.subr.mxu0 0.0
    %8878 = vmatpush1.msra.mxu0 0.0
    %8879 = vmatprep.subr.mxu0 0.0
    %8880 = vmatpush1.msra.mxu0 0.0
    %8881 = vmatprep.subr.mxu0 0.0
    %8882 = vmatpush1.msra.mxu0 0.0
    %8883 = vmatprep.subr.mxu0 0.0
    %8884 = vmatpush1.msra.mxu0 0.0
    %8885 = vmatprep.subr.mxu0 0.0
    %8886 = vmatpush1.msra.mxu0 0.0
    %8887 = vmatprep.subr.mxu0 0.0
    %8888 = vmatpush1.msra.mxu0 0.0
    %8889 = vmatprep.subr.mxu0 0.0
    %8890 = vmatpush1.msra.mxu0 0.0
    %8891 = vmatprep.subr.mxu0 0.0
    %8892 = vmatpush1.msra.mxu0 0.0
    %8893 = vmatprep.subr.mxu0 0.0
    %8894 = vmatpush1.msra.mxu0 0.0
    %8895 = vmatprep.subr.mxu0 0.0
    %8896 = vmatpush1.msra.mxu0 0.0
    %8897 = vmatprep.mubr.f32.mxu0 0.0
    %8898 = vmatmul.mubr.f32.gmra.mrb[0].mxu0 %v8761
    %v8899 = vpop.f32.mrb[0].mxu0
    %v8900 = vadd.f32 %v5587, %v8899
    %v8901 = vpop.f32.mrb[0].mxu0
    %8902 = vdwg.mxu0
    %8903 = vmatprep.subr.mxu0 0.0
    %8904 = vmatpush1.msra.mxu0 %v5570
    %8905 = vmatprep.subr.mxu0 0.0
    %8906 = vmatpush1.msra.mxu0 %v5571
    %8907 = vmatprep.subr.mxu0 0.0
    %8908 = vmatpush1.msra.mxu0 %v5572
    %8909 = vmatprep.subr.mxu0 0.0
    %8910 = vmatpush1.msra.mxu0 %v5573
    %8911 = vmatprep.subr.mxu0 0.0
    %8912 = vmatpush1.msra.mxu0 0.0
    %8913 = vmatprep.subr.mxu0 0.0
    %8914 = vmatpush1.msra.mxu0 0.0
    %8915 = vmatprep.subr.mxu0 0.0
    %8916 = vmatpush1.msra.mxu0 0.0
    %8917 = vmatprep.subr.mxu0 0.0
    %8918 = vmatpush1.msra.mxu0 0.0
    %8919 = vmatprep.subr.mxu0 0.0
    %8920 = vmatpush1.msra.mxu0 0.0
    %8921 = vmatprep.subr.mxu0 0.0
    %8922 = vmatpush1.msra.mxu0 0.0
    %8923 = vmatprep.subr.mxu0 0.0
    %8924 = vmatpush1.msra.mxu0 0.0
    %8925 = vmatprep.subr.mxu0 0.0
    %8926 = vmatpush1.msra.mxu0 0.0
    %8927 = vmatprep.subr.mxu0 0.0
    %8928 = vmatpush1.msra.mxu0 0.0
    %8929 = vmatprep.subr.mxu0 0.0
    %8930 = vmatpush1.msra.mxu0 0.0
    %8931 = vmatprep.subr.mxu0 0.0
    %8932 = vmatpush1.msra.mxu0 0.0
    %8933 = vmatprep.subr.mxu0 0.0
    %8934 = vmatpush1.msra.mxu0 0.0
    %8935 = vmatprep.subr.mxu0 0.0
    %8936 = vmatpush1.msra.mxu0 0.0
    %8937 = vmatprep.subr.mxu0 0.0
    %8938 = vmatpush1.msra.mxu0 0.0
    %8939 = vmatprep.subr.mxu0 0.0
    %8940 = vmatpush1.msra.mxu0 0.0
    %8941 = vmatprep.subr.mxu0 0.0
    %8942 = vmatpush1.msra.mxu0 0.0
    %8943 = vmatprep.subr.mxu0 0.0
    %8944 = vmatpush1.msra.mxu0 0.0
    %8945 = vmatprep.subr.mxu0 0.0
    %8946 = vmatpush1.msra.mxu0 0.0
    %8947 = vmatprep.subr.mxu0 0.0
    %8948 = vmatpush1.msra.mxu0 0.0
    %8949 = vmatprep.subr.mxu0 0.0
    %8950 = vmatpush1.msra.mxu0 0.0
    %8951 = vmatprep.subr.mxu0 0.0
    %8952 = vmatpush1.msra.mxu0 0.0
    %8953 = vmatprep.subr.mxu0 0.0
    %8954 = vmatpush1.msra.mxu0 0.0
    %8955 = vmatprep.subr.mxu0 0.0
    %8956 = vmatpush1.msra.mxu0 0.0
    %8957 = vmatprep.subr.mxu0 0.0
    %8958 = vmatpush1.msra.mxu0 0.0
    %8959 = vmatprep.subr.mxu0 0.0
    %8960 = vmatpush1.msra.mxu0 0.0
    %8961 = vmatprep.subr.mxu0 0.0
    %8962 = vmatpush1.msra.mxu0 0.0
    %8963 = vmatprep.subr.mxu0 0.0
    %8964 = vmatpush1.msra.mxu0 0.0
    %8965 = vmatprep.subr.mxu0 0.0
    %8966 = vmatpush1.msra.mxu0 0.0
    %8967 = vmatprep.mubr.f32.mxu0 0.0
    %8968 = vmatmul.mubr.f32.gmra.mrb[0].mxu0 %v8761
    %v8969 = vpop.f32.mrb[0].mxu0
    %v8970 = vadd.f32 %v5595, %v8969
    %v8971 = vpop.f32.mrb[0].mxu0
    %8972 = vdwg.mxu0
    %v8974 = vrot.slane %v8830, 6
    %v8976 = vadd.f32 %v5361, %v8974
    %v8977 = vxor.u32 %v8976, 2147483648
    %v8978 = vmul.f32 %v8977, 1.442695
    %v8979 = vpow.pop %v8978
    %v8980 = vadd.f32 %v8979, 1.0
    %v8981 = vrcp.pop %v8980
    %v8982 = vmul.f32 1.0, %v8981
    %v8984 = vrot.slane %v8900, 6
    %v8986 = vadd.f32 %v5459, %v8984
    %v8987 = vxor.u32 %v8986, 2147483648
    %v8988 = vmul.f32 %v8987, 1.442695
    %v8989 = vpow.pop %v8988
    %v8990 = vadd.f32 %v8989, 1.0
    %v8991 = vrcp.pop %v8990
    %v8992 = vmul.f32 1.0, %v8991
    %v8994 = vrot.slane %v8970, 6
    %v8996 = vmul.f32 %v8982, %v8994
    %v8997 = vadd.f32 %v5557, %v8996
    %v8998 = vtanh.pop %v8997
    %v8999 = vsub.f32 1.0, %v8992
    %v9000 = vmul.f32 %v8999, %v8998
    %v9001 = vrot.slane %v8758, 6
    %v9003 = vmul.f32 %v8992, %v9001
    %v9004 = vadd.f32 %v9000, %v9003
    %9005 = vst.msk [vmem:[%s4031 - $0x2] sm:$0xc] %vm1086, %v9004
    %v9007 = vrot.slane %v9004, 2
    %v9008 = vsel %vm603, %v9007, 0
    %9010 = vmatprep.subr.mxu0 0.0
    %9011 = vmatpush1.msra.mxu0 %v5560
    %9012 = vmatprep.subr.mxu0 0.0
    %9013 = vmatpush1.msra.mxu0 %v5561
    %9014 = vmatprep.subr.mxu0 0.0
    %9015 = vmatpush1.msra.mxu0 %v5562
    %9016 = vmatprep.subr.mxu0 0.0
    %9017 = vmatpush1.msra.mxu0 %v5563
    %9018 = vmatprep.subr.mxu0 0.0
    %9019 = vmatpush1.msra.mxu0 0.0
    %9020 = vmatprep.subr.mxu0 0.0
    %9021 = vmatpush1.msra.mxu0 0.0
    %9022 = vmatprep.subr.mxu0 0.0
    %9023 = vmatpush1.msra.mxu0 0.0
    %9024 = vmatprep.subr.mxu0 0.0
    %9025 = vmatpush1.msra.mxu0 0.0
    %9026 = vmatprep.subr.mxu0 0.0
    %9027 = vmatpush1.msra.mxu0 0.0
    %9028 = vmatprep.subr.mxu0 0.0
    %9029 = vmatpush1.msra.mxu0 0.0
    %9030 = vmatprep.subr.mxu0 0.0
    %9031 = vmatpush1.msra.mxu0 0.0
    %9032 = vmatprep.subr.mxu0 0.0
    %9033 = vmatpush1.msra.mxu0 0.0
    %9034 = vmatprep.subr.mxu0 0.0
    %9035 = vmatpush1.msra.mxu0 0.0
    %9036 = vmatprep.subr.mxu0 0.0
    %9037 = vmatpush1.msra.mxu0 0.0
    %9038 = vmatprep.subr.mxu0 0.0
    %9039 = vmatpush1.msra.mxu0 0.0
    %9040 = vmatprep.subr.mxu0 0.0
    %9041 = vmatpush1.msra.mxu0 0.0
    %9042 = vmatprep.subr.mxu0 0.0
    %9043 = vmatpush1.msra.mxu0 0.0
    %9044 = vmatprep.subr.mxu0 0.0
    %9045 = vmatpush1.msra.mxu0 0.0
    %9046 = vmatprep.subr.mxu0 0.0
    %9047 = vmatpush1.msra.mxu0 0.0
    %9048 = vmatprep.subr.mxu0 0.0
    %9049 = vmatpush1.msra.mxu0 0.0
    %9050 = vmatprep.subr.mxu0 0.0
    %9051 = vmatpush1.msra.mxu0 0.0
    %9052 = vmatprep.subr.mxu0 0.0
    %9053 = vmatpush1.msra.mxu0 0.0
    %9054 = vmatprep.subr.mxu0 0.0
    %9055 = vmatpush1.msra.mxu0 0.0
    %9056 = vmatprep.subr.mxu0 0.0
    %9057 = vmatpush1.msra.mxu0 0.0
    %9058 = vmatprep.subr.mxu0 0.0
    %9059 = vmatpush1.msra.mxu0 0.0
    %9060 = vmatprep.subr.mxu0 0.0
    %9061 = vmatpush1.msra.mxu0 0.0
    %9062 = vmatprep.subr.mxu0 0.0
    %9063 = vmatpush1.msra.mxu0 0.0
    %9064 = vmatprep.subr.mxu0 0.0
    %9065 = vmatpush1.msra.mxu0 0.0
    %9066 = vmatprep.subr.mxu0 0.0
    %9067 = vmatpush1.msra.mxu0 0.0
    %9068 = vmatprep.subr.mxu0 0.0
    %9069 = vmatpush1.msra.mxu0 0.0
    %9070 = vmatprep.subr.mxu0 0.0
    %9071 = vmatpush1.msra.mxu0 0.0
    %9072 = vmatprep.subr.mxu0 0.0
    %9073 = vmatpush1.msra.mxu0 0.0
    %9074 = vmatprep.mubr.f32.mxu0 0.0
    %9075 = vmatmul.mubr.f32.gmra.mrb[0].mxu0 %v9008
    %v9076 = vpop.f32.mrb[0].mxu0
    %v9077 = vadd.f32 %v5579, %v9076
    %v9078 = vpop.f32.mrb[0].mxu0
    %9079 = vdwg.mxu0
    %9080 = vmatprep.subr.mxu0 0.0
    %9081 = vmatpush1.msra.mxu0 %v5565
    %9082 = vmatprep.subr.mxu0 0.0
    %9083 = vmatpush1.msra.mxu0 %v5566
    %9084 = vmatprep.subr.mxu0 0.0
    %9085 = vmatpush1.msra.mxu0 %v5567
    %9086 = vmatprep.subr.mxu0 0.0
    %9087 = vmatpush1.msra.mxu0 %v5568
    %9088 = vmatprep.subr.mxu0 0.0
    %9089 = vmatpush1.msra.mxu0 0.0
    %9090 = vmatprep.subr.mxu0 0.0
    %9091 = vmatpush1.msra.mxu0 0.0
    %9092 = vmatprep.subr.mxu0 0.0
    %9093 = vmatpush1.msra.mxu0 0.0
    %9094 = vmatprep.subr.mxu0 0.0
    %9095 = vmatpush1.msra.mxu0 0.0
    %9096 = vmatprep.subr.mxu0 0.0
    %9097 = vmatpush1.msra.mxu0 0.0
    %9098 = vmatprep.subr.mxu0 0.0
    %9099 = vmatpush1.msra.mxu0 0.0
    %9100 = vmatprep.subr.mxu0 0.0
    %9101 = vmatpush1.msra.mxu0 0.0
    %9102 = vmatprep.subr.mxu0 0.0
    %9103 = vmatpush1.msra.mxu0 0.0
    %9104 = vmatprep.subr.mxu0 0.0
    %9105 = vmatpush1.msra.mxu0 0.0
    %9106 = vmatprep.subr.mxu0 0.0
    %9107 = vmatpush1.msra.mxu0 0.0
    %9108 = vmatprep.subr.mxu0 0.0
    %9109 = vmatpush1.msra.mxu0 0.0
    %9110 = vmatprep.subr.mxu0 0.0
    %9111 = vmatpush1.msra.mxu0 0.0
    %9112 = vmatprep.subr.mxu0 0.0
    %9113 = vmatpush1.msra.mxu0 0.0
    %9114 = vmatprep.subr.mxu0 0.0
    %9115 = vmatpush1.msra.mxu0 0.0
    %9116 = vmatprep.subr.mxu0 0.0
    %9117 = vmatpush1.msra.mxu0 0.0
    %9118 = vmatprep.subr.mxu0 0.0
    %9119 = vmatpush1.msra.mxu0 0.0
    %9120 = vmatprep.subr.mxu0 0.0
    %9121 = vmatpush1.msra.mxu0 0.0
    %9122 = vmatprep.subr.mxu0 0.0
    %9123 = vmatpush1.msra.mxu0 0.0
    %9124 = vmatprep.subr.mxu0 0.0
    %9125 = vmatpush1.msra.mxu0 0.0
    %9126 = vmatprep.subr.mxu0 0.0
    %9127 = vmatpush1.msra.mxu0 0.0
    %9128 = vmatprep.subr.mxu0 0.0
    %9129 = vmatpush1.msra.mxu0 0.0
    %9130 = vmatprep.subr.mxu0 0.0
    %9131 = vmatpush1.msra.mxu0 0.0
    %9132 = vmatprep.subr.mxu0 0.0
    %9133 = vmatpush1.msra.mxu0 0.0
    %9134 = vmatprep.subr.mxu0 0.0
    %9135 = vmatpush1.msra.mxu0 0.0
    %9136 = vmatprep.subr.mxu0 0.0
    %9137 = vmatpush1.msra.mxu0 0.0
    %9138 = vmatprep.subr.mxu0 0.0
    %9139 = vmatpush1.msra.mxu0 0.0
    %9140 = vmatprep.subr.mxu0 0.0
    %9141 = vmatpush1.msra.mxu0 0.0
    %9142 = vmatprep.subr.mxu0 0.0
    %9143 = vmatpush1.msra.mxu0 0.0
    %9144 = vmatprep.mubr.f32.mxu0 0.0
    %9145 = vmatmul.mubr.f32.gmra.mrb[0].mxu0 %v9008
    %v9146 = vpop.f32.mrb[0].mxu0
    %v9147 = vadd.f32 %v5587, %v9146
    %v9148 = vpop.f32.mrb[0].mxu0
    %9149 = vdwg.mxu0
    %9150 = vmatprep.subr.mxu0 0.0
    %9151 = vmatpush1.msra.mxu0 %v5570
    %9152 = vmatprep.subr.mxu0 0.0
    %9153 = vmatpush1.msra.mxu0 %v5571
    %9154 = vmatprep.subr.mxu0 0.0
    %9155 = vmatpush1.msra.mxu0 %v5572
    %9156 = vmatprep.subr.mxu0 0.0
    %9157 = vmatpush1.msra.mxu0 %v5573
    %9158 = vmatprep.subr.mxu0 0.0
    %9159 = vmatpush1.msra.mxu0 0.0
    %9160 = vmatprep.subr.mxu0 0.0
    %9161 = vmatpush1.msra.mxu0 0.0
    %9162 = vmatprep.subr.mxu0 0.0
    %9163 = vmatpush1.msra.mxu0 0.0
    %9164 = vmatprep.subr.mxu0 0.0
    %9165 = vmatpush1.msra.mxu0 0.0
    %9166 = vmatprep.subr.mxu0 0.0
    %9167 = vmatpush1.msra.mxu0 0.0
    %9168 = vmatprep.subr.mxu0 0.0
    %9169 = vmatpush1.msra.mxu0 0.0
    %9170 = vmatprep.subr.mxu0 0.0
    %9171 = vmatpush1.msra.mxu0 0.0
    %9172 = vmatprep.subr.mxu0 0.0
    %9173 = vmatpush1.msra.mxu0 0.0
    %9174 = vmatprep.subr.mxu0 0.0
    %9175 = vmatpush1.msra.mxu0 0.0
    %9176 = vmatprep.subr.mxu0 0.0
    %9177 = vmatpush1.msra.mxu0 0.0
    %9178 = vmatprep.subr.mxu0 0.0
    %9179 = vmatpush1.msra.mxu0 0.0
    %9180 = vmatprep.subr.mxu0 0.0
    %9181 = vmatpush1.msra.mxu0 0.0
    %9182 = vmatprep.subr.mxu0 0.0
    %9183 = vmatpush1.msra.mxu0 0.0
    %9184 = vmatprep.subr.mxu0 0.0
    %9185 = vmatpush1.msra.mxu0 0.0
    %9186 = vmatprep.subr.mxu0 0.0
    %9187 = vmatpush1.msra.mxu0 0.0
    %9188 = vmatprep.subr.mxu0 0.0
    %9189 = vmatpush1.msra.mxu0 0.0
    %9190 = vmatprep.subr.mxu0 0.0
    %9191 = vmatpush1.msra.mxu0 0.0
    %9192 = vmatprep.subr.mxu0 0.0
    %9193 = vmatpush1.msra.mxu0 0.0
    %9194 = vmatprep.subr.mxu0 0.0
    %9195 = vmatpush1.msra.mxu0 0.0
    %9196 = vmatprep.subr.mxu0 0.0
    %9197 = vmatpush1.msra.mxu0 0.0
    %9198 = vmatprep.subr.mxu0 0.0
    %9199 = vmatpush1.msra.mxu0 0.0
    %9200 = vmatprep.subr.mxu0 0.0
    %9201 = vmatpush1.msra.mxu0 0.0
    %9202 = vmatprep.subr.mxu0 0.0
    %9203 = vmatpush1.msra.mxu0 0.0
    %9204 = vmatprep.subr.mxu0 0.0
    %9205 = vmatpush1.msra.mxu0 0.0
    %9206 = vmatprep.subr.mxu0 0.0
    %9207 = vmatpush1.msra.mxu0 0.0
    %9208 = vmatprep.subr.mxu0 0.0
    %9209 = vmatpush1.msra.mxu0 0.0
    %9210 = vmatprep.subr.mxu0 0.0
    %9211 = vmatpush1.msra.mxu0 0.0
    %9212 = vmatprep.subr.mxu0 0.0
    %9213 = vmatpush1.msra.mxu0 0.0
    %9214 = vmatprep.mubr.f32.mxu0 0.0
    %9215 = vmatmul.mubr.f32.gmra.mrb[0].mxu0 %v9008
    %v9216 = vpop.f32.mrb[0].mxu0
    %v9217 = vadd.f32 %v5595, %v9216
    %v9218 = vpop.f32.mrb[0].mxu0
    %9219 = vdwg.mxu0
    %v9221 = vrot.slane %v9077, 4
    %v9223 = vadd.f32 %v5361, %v9221
    %v9224 = vxor.u32 %v9223, 2147483648
    %v9225 = vmul.f32 %v9224, 1.442695
    %v9226 = vpow.pop %v9225
    %v9227 = vadd.f32 %v9226, 1.0
    %v9228 = vrcp.pop %v9227
    %v9229 = vmul.f32 1.0, %v9228
    %v9231 = vrot.slane %v9147, 4
    %v9233 = vadd.f32 %v5459, %v9231
    %v9234 = vxor.u32 %v9233, 2147483648
    %v9235 = vmul.f32 %v9234, 1.442695
    %v9236 = vpow.pop %v9235
    %v9237 = vadd.f32 %v9236, 1.0
    %v9238 = vrcp.pop %v9237
    %v9239 = vmul.f32 1.0, %v9238
    %v9241 = vrot.slane %v9217, 4
    %v9243 = vmul.f32 %v9229, %v9241
    %v9244 = vadd.f32 %v5557, %v9243
    %v9245 = vtanh.pop %v9244
    %v9246 = vsub.f32 1.0, %v9239
    %v9247 = vmul.f32 %v9246, %v9245
    %v9248 = vrot.slane %v9004, 6
    %v9250 = vmul.f32 %v9239, %v9248
    %v9251 = vadd.f32 %v9247, %v9250
    %9252 = vst.msk [vmem:[%s4279 - $0x4] sm:$0x30] %vm1335, %v9251
    %v9254 = vrot.slane %v9251, 4
    %v9255 = vsel %vm603, %v9254, 0
    %9257 = vmatprep.subr.mxu0 0.0
    %9258 = vmatpush1.msra.mxu0 %v5560
    %9259 = vmatprep.subr.mxu0 0.0
    %9260 = vmatpush1.msra.mxu0 %v5561
    %9261 = vmatprep.subr.mxu0 0.0
    %9262 = vmatpush1.msra.mxu0 %v5562
    %9263 = vmatprep.subr.mxu0 0.0
    %9264 = vmatpush1.msra.mxu0 %v5563
    %9265 = vmatprep.subr.mxu0 0.0
    %9266 = vmatpush1.msra.mxu0 0.0
    %9267 = vmatprep.subr.mxu0 0.0
    %9268 = vmatpush1.msra.mxu0 0.0
    %9269 = vmatprep.subr.mxu0 0.0
    %9270 = vmatpush1.msra.mxu0 0.0
    %9271 = vmatprep.subr.mxu0 0.0
    %9272 = vmatpush1.msra.mxu0 0.0
    %9273 = vmatprep.subr.mxu0 0.0
    %9274 = vmatpush1.msra.mxu0 0.0
    %9275 = vmatprep.subr.mxu0 0.0
    %9276 = vmatpush1.msra.mxu0 0.0
    %9277 = vmatprep.subr.mxu0 0.0
    %9278 = vmatpush1.msra.mxu0 0.0
    %9279 = vmatprep.subr.mxu0 0.0
    %9280 = vmatpush1.msra.mxu0 0.0
    %9281 = vmatprep.subr.mxu0 0.0
    %9282 = vmatpush1.msra.mxu0 0.0
    %9283 = vmatprep.subr.mxu0 0.0
    %9284 = vmatpush1.msra.mxu0 0.0
    %9285 = vmatprep.subr.mxu0 0.0
    %9286 = vmatpush1.msra.mxu0 0.0
    %9287 = vmatprep.subr.mxu0 0.0
    %9288 = vmatpush1.msra.mxu0 0.0
    %9289 = vmatprep.subr.mxu0 0.0
    %9290 = vmatpush1.msra.mxu0 0.0
    %9291 = vmatprep.subr.mxu0 0.0
    %9292 = vmatpush1.msra.mxu0 0.0
    %9293 = vmatprep.subr.mxu0 0.0
    %9294 = vmatpush1.msra.mxu0 0.0
    %9295 = vmatprep.subr.mxu0 0.0
    %9296 = vmatpush1.msra.mxu0 0.0
    %9297 = vmatprep.subr.mxu0 0.0
    %9298 = vmatpush1.msra.mxu0 0.0
    %9299 = vmatprep.subr.mxu0 0.0
    %9300 = vmatpush1.msra.mxu0 0.0
    %9301 = vmatprep.subr.mxu0 0.0
    %9302 = vmatpush1.msra.mxu0 0.0
    %9303 = vmatprep.subr.mxu0 0.0
    %9304 = vmatpush1.msra.mxu0 0.0
    %9305 = vmatprep.subr.mxu0 0.0
    %9306 = vmatpush1.msra.mxu0 0.0
    %9307 = vmatprep.subr.mxu0 0.0
    %9308 = vmatpush1.msra.mxu0 0.0
    %9309 = vmatprep.subr.mxu0 0.0
    %9310 = vmatpush1.msra.mxu0 0.0
    %9311 = vmatprep.subr.mxu0 0.0
    %9312 = vmatpush1.msra.mxu0 0.0
    %9313 = vmatprep.subr.mxu0 0.0
    %9314 = vmatpush1.msra.mxu0 0.0
    %9315 = vmatprep.subr.mxu0 0.0
    %9316 = vmatpush1.msra.mxu0 0.0
    %9317 = vmatprep.subr.mxu0 0.0
    %9318 = vmatpush1.msra.mxu0 0.0
    %9319 = vmatprep.subr.mxu0 0.0
    %9320 = vmatpush1.msra.mxu0 0.0
    %9321 = vmatprep.mubr.f32.mxu0 0.0
    %9322 = vmatmul.mubr.f32.gmra.mrb[0].mxu0 %v9255
    %v9323 = vpop.f32.mrb[0].mxu0
    %v9324 = vadd.f32 %v5579, %v9323
    %v9325 = vpop.f32.mrb[0].mxu0
    %9326 = vdwg.mxu0
    %9327 = vmatprep.subr.mxu0 0.0
    %9328 = vmatpush1.msra.mxu0 %v5565
    %9329 = vmatprep.subr.mxu0 0.0
    %9330 = vmatpush1.msra.mxu0 %v5566
    %9331 = vmatprep.subr.mxu0 0.0
    %9332 = vmatpush1.msra.mxu0 %v5567
    %9333 = vmatprep.subr.mxu0 0.0
    %9334 = vmatpush1.msra.mxu0 %v5568
    %9335 = vmatprep.subr.mxu0 0.0
    %9336 = vmatpush1.msra.mxu0 0.0
    %9337 = vmatprep.subr.mxu0 0.0
    %9338 = vmatpush1.msra.mxu0 0.0
    %9339 = vmatprep.subr.mxu0 0.0
    %9340 = vmatpush1.msra.mxu0 0.0
    %9341 = vmatprep.subr.mxu0 0.0
    %9342 = vmatpush1.msra.mxu0 0.0
    %9343 = vmatprep.subr.mxu0 0.0
    %9344 = vmatpush1.msra.mxu0 0.0
    %9345 = vmatprep.subr.mxu0 0.0
    %9346 = vmatpush1.msra.mxu0 0.0
    %9347 = vmatprep.subr.mxu0 0.0
    %9348 = vmatpush1.msra.mxu0 0.0
    %9349 = vmatprep.subr.mxu0 0.0
    %9350 = vmatpush1.msra.mxu0 0.0
    %9351 = vmatprep.subr.mxu0 0.0
    %9352 = vmatpush1.msra.mxu0 0.0
    %9353 = vmatprep.subr.mxu0 0.0
    %9354 = vmatpush1.msra.mxu0 0.0
    %9355 = vmatprep.subr.mxu0 0.0
    %9356 = vmatpush1.msra.mxu0 0.0
    %9357 = vmatprep.subr.mxu0 0.0
    %9358 = vmatpush1.msra.mxu0 0.0
    %9359 = vmatprep.subr.mxu0 0.0
    %9360 = vmatpush1.msra.mxu0 0.0
    %9361 = vmatprep.subr.mxu0 0.0
    %9362 = vmatpush1.msra.mxu0 0.0
    %9363 = vmatprep.subr.mxu0 0.0
    %9364 = vmatpush1.msra.mxu0 0.0
    %9365 = vmatprep.subr.mxu0 0.0
    %9366 = vmatpush1.msra.mxu0 0.0
    %9367 = vmatprep.subr.mxu0 0.0
    %9368 = vmatpush1.msra.mxu0 0.0
    %9369 = vmatprep.subr.mxu0 0.0
    %9370 = vmatpush1.msra.mxu0 0.0
    %9371 = vmatprep.subr.mxu0 0.0
    %9372 = vmatpush1.msra.mxu0 0.0
    %9373 = vmatprep.subr.mxu0 0.0
    %9374 = vmatpush1.msra.mxu0 0.0
    %9375 = vmatprep.subr.mxu0 0.0
    %9376 = vmatpush1.msra.mxu0 0.0
    %9377 = vmatprep.subr.mxu0 0.0
    %9378 = vmatpush1.msra.mxu0 0.0
    %9379 = vmatprep.subr.mxu0 0.0
    %9380 = vmatpush1.msra.mxu0 0.0
    %9381 = vmatprep.subr.mxu0 0.0
    %9382 = vmatpush1.msra.mxu0 0.0
    %9383 = vmatprep.subr.mxu0 0.0
    %9384 = vmatpush1.msra.mxu0 0.0
    %9385 = vmatprep.subr.mxu0 0.0
    %9386 = vmatpush1.msra.mxu0 0.0
    %9387 = vmatprep.subr.mxu0 0.0
    %9388 = vmatpush1.msra.mxu0 0.0
    %9389 = vmatprep.subr.mxu0 0.0
    %9390 = vmatpush1.msra.mxu0 0.0
    %9391 = vmatprep.mubr.f32.mxu0 0.0
    %9392 = vmatmul.mubr.f32.gmra.mrb[0].mxu0 %v9255
    %v9393 = vpop.f32.mrb[0].mxu0
    %v9394 = vadd.f32 %v5587, %v9393
    %v9395 = vpop.f32.mrb[0].mxu0
    %9396 = vdwg.mxu0
    %9397 = vmatprep.subr.mxu0 0.0
    %9398 = vmatpush1.msra.mxu0 %v5570
    %9399 = vmatprep.subr.mxu0 0.0
    %9400 = vmatpush1.msra.mxu0 %v5571
    %9401 = vmatprep.subr.mxu0 0.0
    %9402 = vmatpush1.msra.mxu0 %v5572
    %9403 = vmatprep.subr.mxu0 0.0
    %9404 = vmatpush1.msra.mxu0 %v5573
    %9405 = vmatprep.subr.mxu0 0.0
    %9406 = vmatpush1.msra.mxu0 0.0
    %9407 = vmatprep.subr.mxu0 0.0
    %9408 = vmatpush1.msra.mxu0 0.0
    %9409 = vmatprep.subr.mxu0 0.0
    %9410 = vmatpush1.msra.mxu0 0.0
    %9411 = vmatprep.subr.mxu0 0.0
    %9412 = vmatpush1.msra.mxu0 0.0
    %9413 = vmatprep.subr.mxu0 0.0
    %9414 = vmatpush1.msra.mxu0 0.0
    %9415 = vmatprep.subr.mxu0 0.0
    %9416 = vmatpush1.msra.mxu0 0.0
    %9417 = vmatprep.subr.mxu0 0.0
    %9418 = vmatpush1.msra.mxu0 0.0
    %9419 = vmatprep.subr.mxu0 0.0
    %9420 = vmatpush1.msra.mxu0 0.0
    %9421 = vmatprep.subr.mxu0 0.0
    %9422 = vmatpush1.msra.mxu0 0.0
    %9423 = vmatprep.subr.mxu0 0.0
    %9424 = vmatpush1.msra.mxu0 0.0
    %9425 = vmatprep.subr.mxu0 0.0
    %9426 = vmatpush1.msra.mxu0 0.0
    %9427 = vmatprep.subr.mxu0 0.0
    %9428 = vmatpush1.msra.mxu0 0.0
    %9429 = vmatprep.subr.mxu0 0.0
    %9430 = vmatpush1.msra.mxu0 0.0
    %9431 = vmatprep.subr.mxu0 0.0
    %9432 = vmatpush1.msra.mxu0 0.0
    %9433 = vmatprep.subr.mxu0 0.0
    %9434 = vmatpush1.msra.mxu0 0.0
    %9435 = vmatprep.subr.mxu0 0.0
    %9436 = vmatpush1.msra.mxu0 0.0
    %9437 = vmatprep.subr.mxu0 0.0
    %9438 = vmatpush1.msra.mxu0 0.0
    %9439 = vmatprep.subr.mxu0 0.0
    %9440 = vmatpush1.msra.mxu0 0.0
    %9441 = vmatprep.subr.mxu0 0.0
    %9442 = vmatpush1.msra.mxu0 0.0
    %9443 = vmatprep.subr.mxu0 0.0
    %9444 = vmatpush1.msra.mxu0 0.0
    %9445 = vmatprep.subr.mxu0 0.0
    %9446 = vmatpush1.msra.mxu0 0.0
    %9447 = vmatprep.subr.mxu0 0.0
    %9448 = vmatpush1.msra.mxu0 0.0
    %9449 = vmatprep.subr.mxu0 0.0
    %9450 = vmatpush1.msra.mxu0 0.0
    %9451 = vmatprep.subr.mxu0 0.0
    %9452 = vmatpush1.msra.mxu0 0.0
    %9453 = vmatprep.subr.mxu0 0.0
    %9454 = vmatpush1.msra.mxu0 0.0
    %9455 = vmatprep.subr.mxu0 0.0
    %9456 = vmatpush1.msra.mxu0 0.0
    %9457 = vmatprep.subr.mxu0 0.0
    %9458 = vmatpush1.msra.mxu0 0.0
    %9459 = vmatprep.subr.mxu0 0.0
    %9460 = vmatpush1.msra.mxu0 0.0
    %9461 = vmatprep.mubr.f32.mxu0 0.0
    %9462 = vmatmul.mubr.f32.gmra.mrb[0].mxu0 %v9255
    %v9463 = vpop.f32.mrb[0].mxu0
    %v9464 = vadd.f32 %v5595, %v9463
    %v9465 = vpop.f32.mrb[0].mxu0
    %9466 = vdwg.mxu0
    %v9468 = vrot.slane %v9324, 2
    %v9470 = vadd.f32 %v5361, %v9468
    %v9471 = vxor.u32 %v9470, 2147483648
    %v9472 = vmul.f32 %v9471, 1.442695
    %v9473 = vpow.pop %v9472
    %v9474 = vadd.f32 %v9473, 1.0
    %v9475 = vrcp.pop %v9474
    %v9476 = vmul.f32 1.0, %v9475
    %v9478 = vrot.slane %v9394, 2
    %v9480 = vadd.f32 %v5459, %v9478
    %v9481 = vxor.u32 %v9480, 2147483648
    %v9482 = vmul.f32 %v9481, 1.442695
    %v9483 = vpow.pop %v9482
    %v9484 = vadd.f32 %v9483, 1.0
    %v9485 = vrcp.pop %v9484
    %v9486 = vmul.f32 1.0, %v9485
    %v9488 = vrot.slane %v9464, 2
    %v9490 = vmul.f32 %v9476, %v9488
    %v9491 = vadd.f32 %v5557, %v9490
    %v9492 = vtanh.pop %v9491
    %v9493 = vsub.f32 1.0, %v9486
    %v9494 = vmul.f32 %v9493, %v9492
    %v9495 = vrot.slane %v9251, 6
    %v9497 = vmul.f32 %v9486, %v9495
    %v9498 = vadd.f32 %v9494, %v9497
    %9499 = vst.msk [vmem:[%s4527 - $0x6] sm:$0xc0] %vm1584, %v9498
    %v9500 = vld [vmem:[#allocation2] sm:$0x3]
    %v9501 = vld [vmem:[#allocation2 + $0x2] sm:$0x3]
    %v9502 = vld [vmem:[#allocation2 + $0x4] sm:$0x3]
    %v9503 = vld [vmem:[#allocation2 + $0x6] sm:$0x3]
    %v9504 = vld [vmem:[#allocation2 + $0x8] sm:$0x3]
    %v9505 = vld [vmem:[#allocation2 + $0xa] sm:$0x3]
    %v9506 = vld [vmem:[#allocation2 + $0xc] sm:$0x3]
    %v9507 = vld [vmem:[#allocation2 + $0xe] sm:$0x3]
    %v9508 = vld [vmem:[#allocation2 + $0x10] sm:$0x3]
    %v9509 = vld [vmem:[#allocation2 + $0x12] sm:$0x3]
    %v9510 = vld [vmem:[#allocation2 + $0x14] sm:$0x3]
    %v9511 = vld [vmem:[#allocation2 + $0x16] sm:$0x3]
    %v9512 = vld [vmem:[#allocation2 + $0x18] sm:$0x3]
    %v9513 = vld [vmem:[#allocation2 + $0x1a] sm:$0x3]
    %v9514 = vld [vmem:[#allocation2 + $0x1c] sm:$0x3]
    %v9515 = vld [vmem:[#allocation2 + $0x1e] sm:$0x3]
    %v9516 = vtanh.pop %v9500
    %v9517 = vtanh.pop %v9501
    %v9518 = vtanh.pop %v9502
    %v9519 = vtanh.pop %v9503
    %v9520 = vtanh.pop %v9504
    %v9521 = vtanh.pop %v9505
    %v9522 = vtanh.pop %v9506
    %v9523 = vtanh.pop %v9507
    %v9524 = vtanh.pop %v9508
    %v9525 = vtanh.pop %v9509
    %v9526 = vtanh.pop %v9510
    %v9527 = vtanh.pop %v9511
    %v9528 = vtanh.pop %v9512
    %v9529 = vtanh.pop %v9513
    %v9530 = vtanh.pop %v9514
    %v9531 = vtanh.pop %v9515
    %v9532 = vld [vmem:[%s15] sm:$0x1]
    %v9533 = vld [vmem:[%s16] sm:$0x1]
    %v9550 = vcombine.low %v9516, %v9517
    %v9551 = vcombine.low %v9518, %v9519
    %v9553 = vunpack.c.l.s4 1983009808
    %v9554 = vunpack.c.0.s8 %v9553
    %v9555 = vlaneseq
    %v9556 = vshrl.u32 %v9555, 7
    %v9557 = vsub.s32 %v9554, %v9556
    %v9558 = vrot.slane %v9550, %v9557
    %v9560 = vunpack.c.l.s4 1983009808
    %v9561 = vunpack.c.0.s8 %v9560
    %v9562 = vlaneseq
    %v9563 = vshrl.u32 %v9562, 7
    %v9564 = vsub.s32 %v9561, %v9563
    %v9565 = vrot.slane %v9551, %v9564
    %v9566 = vcombine.low %v9558, %v9565
    %v9567 = vcombine.low %v9520, %v9521
    %v9568 = vcombine.low %v9522, %v9523
    %v9570 = vunpack.c.l.s4 1983009808
    %v9571 = vunpack.c.0.s8 %v9570
    %v9572 = vlaneseq
    %v9573 = vshrl.u32 %v9572, 7
    %v9574 = vsub.s32 %v9571, %v9573
    %v9575 = vrot.slane %v9567, %v9574
    %v9577 = vunpack.c.l.s4 1983009808
    %v9578 = vunpack.c.0.s8 %v9577
    %v9579 = vlaneseq
    %v9580 = vshrl.u32 %v9579, 7
    %v9581 = vsub.s32 %v9578, %v9580
    %v9582 = vrot.slane %v9568, %v9581
    %v9583 = vcombine.low %v9575, %v9582
    %v9584 = vcombine.low %v9524, %v9525
    %v9585 = vcombine.low %v9526, %v9527
    %v9587 = vunpack.c.l.s4 1983009808
    %v9588 = vunpack.c.0.s8 %v9587
    %v9589 = vlaneseq
    %v9590 = vshrl.u32 %v9589, 7
    %v9591 = vsub.s32 %v9588, %v9590
    %v9592 = vrot.slane %v9584, %v9591
    %v9594 = vunpack.c.l.s4 1983009808
    %v9595 = vunpack.c.0.s8 %v9594
    %v9596 = vlaneseq
    %v9597 = vshrl.u32 %v9596, 7
    %v9598 = vsub.s32 %v9595, %v9597
    %v9599 = vrot.slane %v9585, %v9598
    %v9600 = vcombine.low %v9592, %v9599
    %v9601 = vcombine.low %v9528, %v9529
    %v9602 = vcombine.low %v9530, %v9531
    %v9604 = vunpack.c.l.s4 1983009808
    %v9605 = vunpack.c.0.s8 %v9604
    %v9606 = vlaneseq
    %v9607 = vshrl.u32 %v9606, 7
    %v9608 = vsub.s32 %v9605, %v9607
    %v9609 = vrot.slane %v9601, %v9608
    %v9611 = vunpack.c.l.s4 1983009808
    %v9612 = vunpack.c.0.s8 %v9611
    %v9613 = vlaneseq
    %v9614 = vshrl.u32 %v9613, 7
    %v9615 = vsub.s32 %v9612, %v9614
    %v9616 = vrot.slane %v9602, %v9615
    %v9617 = vcombine.low %v9609, %v9616
    %v9622 = vsel %vm603, %v9566, 0.0
    %9623 = vadd.xlane.f32.xlu0 %v9622
    %v9624 = vpop.xlane.xlu0 %9623
    %v9625 = vsel %vm603, %v9583, 0.0
    %9626 = vadd.xlane.f32.xlu0 %v9625
    %v9627 = vpop.xlane.xlu0 %9626
    %v9628 = vsel %vm603, %v9600, 0.0
    %9629 = vadd.xlane.f32.xlu0 %v9628
    %v9630 = vpop.xlane.xlu0 %9629
    %v9631 = vsel %vm603, %v9617, 0.0
    %9632 = vadd.xlane.f32.xlu0 %v9631
    %v9633 = vpop.xlane.xlu0 %9632
    %v9634 = vmul.f32 %v9624, %v4663
    %v9635 = vmul.f32 %v9627, %v4663
    %v9636 = vmul.f32 %v9630, %v4663
    %v9637 = vmul.f32 %v9633, %v4663
    %v9643 = vunpack.c.l.s4 269488144
    %v9644 = vunpack.c.0.s8 %v9643
    %v9645 = vlaneseq
    %v9646 = vshrl.u32 %v9645, 7
    %v9647 = vsub.s32 %v9644, %v9646
    %v9648 = vrot.slane %v9634, %v9647
    %v9650 = vunpack.c.l.s4 842150450
    %v9651 = vunpack.c.0.s8 %v9650
    %v9652 = vlaneseq
    %v9653 = vshrl.u32 %v9652, 7
    %v9654 = vsub.s32 %v9651, %v9653
    %v9655 = vrot.slane %v9634, %v9654
    %v9657 = vunpack.c.l.s4 1414812756
    %v9658 = vunpack.c.0.s8 %v9657
    %v9659 = vlaneseq
    %v9660 = vshrl.u32 %v9659, 7
    %v9661 = vsub.s32 %v9658, %v9660
    %v9662 = vrot.slane %v9634, %v9661
    %v9664 = vunpack.c.l.s4 1987475062
    %v9665 = vunpack.c.0.s8 %v9664
    %v9666 = vlaneseq
    %v9667 = vshrl.u32 %v9666, 7
    %v9668 = vsub.s32 %v9665, %v9667
    %v9669 = vrot.slane %v9634, %v9668
    %v9671 = vunpack.c.l.s4 269488144
    %v9672 = vunpack.c.0.s8 %v9671
    %v9673 = vlaneseq
    %v9674 = vshrl.u32 %v9673, 7
    %v9675 = vsub.s32 %v9672, %v9674
    %v9676 = vrot.slane %v9635, %v9675
    %v9678 = vunpack.c.l.s4 842150450
    %v9679 = vunpack.c.0.s8 %v9678
    %v9680 = vlaneseq
    %v9681 = vshrl.u32 %v9680, 7
    %v9682 = vsub.s32 %v9679, %v9681
    %v9683 = vrot.slane %v9635, %v9682
    %v9685 = vunpack.c.l.s4 1414812756
    %v9686 = vunpack.c.0.s8 %v9685
    %v9687 = vlaneseq
    %v9688 = vshrl.u32 %v9687, 7
    %v9689 = vsub.s32 %v9686, %v9688
    %v9690 = vrot.slane %v9635, %v9689
    %v9692 = vunpack.c.l.s4 1987475062
    %v9693 = vunpack.c.0.s8 %v9692
    %v9694 = vlaneseq
    %v9695 = vshrl.u32 %v9694, 7
    %v9696 = vsub.s32 %v9693, %v9695
    %v9697 = vrot.slane %v9635, %v9696
    %v9699 = vunpack.c.l.s4 269488144
    %v9700 = vunpack.c.0.s8 %v9699
    %v9701 = vlaneseq
    %v9702 = vshrl.u32 %v9701, 7
    %v9703 = vsub.s32 %v9700, %v9702
    %v9704 = vrot.slane %v9636, %v9703
    %v9706 = vunpack.c.l.s4 842150450
    %v9707 = vunpack.c.0.s8 %v9706
    %v9708 = vlaneseq
    %v9709 = vshrl.u32 %v9708, 7
    %v9710 = vsub.s32 %v9707, %v9709
    %v9711 = vrot.slane %v9636, %v9710
    %v9713 = vunpack.c.l.s4 1414812756
    %v9714 = vunpack.c.0.s8 %v9713
    %v9715 = vlaneseq
    %v9716 = vshrl.u32 %v9715, 7
    %v9717 = vsub.s32 %v9714, %v9716
    %v9718 = vrot.slane %v9636, %v9717
    %v9720 = vunpack.c.l.s4 1987475062
    %v9721 = vunpack.c.0.s8 %v9720
    %v9722 = vlaneseq
    %v9723 = vshrl.u32 %v9722, 7
    %v9724 = vsub.s32 %v9721, %v9723
    %v9725 = vrot.slane %v9636, %v9724
    %v9727 = vunpack.c.l.s4 269488144
    %v9728 = vunpack.c.0.s8 %v9727
    %v9729 = vlaneseq
    %v9730 = vshrl.u32 %v9729, 7
    %v9731 = vsub.s32 %v9728, %v9730
    %v9732 = vrot.slane %v9637, %v9731
    %v9734 = vunpack.c.l.s4 842150450
    %v9735 = vunpack.c.0.s8 %v9734
    %v9736 = vlaneseq
    %v9737 = vshrl.u32 %v9736, 7
    %v9738 = vsub.s32 %v9735, %v9737
    %v9739 = vrot.slane %v9637, %v9738
    %v9741 = vunpack.c.l.s4 1414812756
    %v9742 = vunpack.c.0.s8 %v9741
    %v9743 = vlaneseq
    %v9744 = vshrl.u32 %v9743, 7
    %v9745 = vsub.s32 %v9742, %v9744
    %v9746 = vrot.slane %v9637, %v9745
    %v9748 = vunpack.c.l.s4 1987475062
    %v9749 = vunpack.c.0.s8 %v9748
    %v9750 = vlaneseq
    %v9751 = vshrl.u32 %v9750, 7
    %v9752 = vsub.s32 %v9749, %v9751
    %v9753 = vrot.slane %v9637, %v9752
    %v9770 = vsub.f32 %v9516, %v9648
    %v9771 = vsub.f32 %v9517, %v9655
    %v9772 = vsub.f32 %v9518, %v9662
    %v9773 = vsub.f32 %v9519, %v9669
    %v9774 = vsub.f32 %v9520, %v9676
    %v9775 = vsub.f32 %v9521, %v9683
    %v9776 = vsub.f32 %v9522, %v9690
    %v9777 = vsub.f32 %v9523, %v9697
    %v9778 = vsub.f32 %v9524, %v9704
    %v9779 = vsub.f32 %v9525, %v9711
    %v9780 = vsub.f32 %v9526, %v9718
    %v9781 = vsub.f32 %v9527, %v9725
    %v9782 = vsub.f32 %v9528, %v9732
    %v9783 = vsub.f32 %v9529, %v9739
    %v9784 = vsub.f32 %v9530, %v9746
    %v9785 = vsub.f32 %v9531, %v9753
    %v9786 = vmul.f32 %v9770, %v9770
    %v9787 = vmul.f32 %v9771, %v9771
    %v9788 = vmul.f32 %v9772, %v9772
    %v9789 = vmul.f32 %v9773, %v9773
    %v9790 = vmul.f32 %v9774, %v9774
    %v9791 = vmul.f32 %v9775, %v9775
    %v9792 = vmul.f32 %v9776, %v9776
    %v9793 = vmul.f32 %v9777, %v9777
    %v9794 = vmul.f32 %v9778, %v9778
    %v9795 = vmul.f32 %v9779, %v9779
    %v9796 = vmul.f32 %v9780, %v9780
    %v9797 = vmul.f32 %v9781, %v9781
    %v9798 = vmul.f32 %v9782, %v9782
    %v9799 = vmul.f32 %v9783, %v9783
    %v9800 = vmul.f32 %v9784, %v9784
    %v9801 = vmul.f32 %v9785, %v9785
    %v9818 = vcombine.low %v9786, %v9787
    %v9819 = vcombine.low %v9788, %v9789
    %v9821 = vunpack.c.l.s4 1983009808
    %v9822 = vunpack.c.0.s8 %v9821
    %v9823 = vlaneseq
    %v9824 = vshrl.u32 %v9823, 7
    %v9825 = vsub.s32 %v9822, %v9824
    %v9826 = vrot.slane %v9818, %v9825
    %v9828 = vunpack.c.l.s4 1983009808
    %v9829 = vunpack.c.0.s8 %v9828
    %v9830 = vlaneseq
    %v9831 = vshrl.u32 %v9830, 7
    %v9832 = vsub.s32 %v9829, %v9831
    %v9833 = vrot.slane %v9819, %v9832
    %v9834 = vcombine.low %v9826, %v9833
    %v9835 = vcombine.low %v9790, %v9791
    %v9836 = vcombine.low %v9792, %v9793
    %v9838 = vunpack.c.l.s4 1983009808
    %v9839 = vunpack.c.0.s8 %v9838
    %v9840 = vlaneseq
    %v9841 = vshrl.u32 %v9840, 7
    %v9842 = vsub.s32 %v9839, %v9841
    %v9843 = vrot.slane %v9835, %v9842
    %v9845 = vunpack.c.l.s4 1983009808
    %v9846 = vunpack.c.0.s8 %v9845
    %v9847 = vlaneseq
    %v9848 = vshrl.u32 %v9847, 7
    %v9849 = vsub.s32 %v9846, %v9848
    %v9850 = vrot.slane %v9836, %v9849
    %v9851 = vcombine.low %v9843, %v9850
    %v9852 = vcombine.low %v9794, %v9795
    %v9853 = vcombine.low %v9796, %v9797
    %v9855 = vunpack.c.l.s4 1983009808
    %v9856 = vunpack.c.0.s8 %v9855
    %v9857 = vlaneseq
    %v9858 = vshrl.u32 %v9857, 7
    %v9859 = vsub.s32 %v9856, %v9858
    %v9860 = vrot.slane %v9852, %v9859
    %v9862 = vunpack.c.l.s4 1983009808
    %v9863 = vunpack.c.0.s8 %v9862
    %v9864 = vlaneseq
    %v9865 = vshrl.u32 %v9864, 7
    %v9866 = vsub.s32 %v9863, %v9865
    %v9867 = vrot.slane %v9853, %v9866
    %v9868 = vcombine.low %v9860, %v9867
    %v9869 = vcombine.low %v9798, %v9799
    %v9870 = vcombine.low %v9800, %v9801
    %v9872 = vunpack.c.l.s4 1983009808
    %v9873 = vunpack.c.0.s8 %v9872
    %v9874 = vlaneseq
    %v9875 = vshrl.u32 %v9874, 7
    %v9876 = vsub.s32 %v9873, %v9875
    %v9877 = vrot.slane %v9869, %v9876
    %v9879 = vunpack.c.l.s4 1983009808
    %v9880 = vunpack.c.0.s8 %v9879
    %v9881 = vlaneseq
    %v9882 = vshrl.u32 %v9881, 7
    %v9883 = vsub.s32 %v9880, %v9882
    %v9884 = vrot.slane %v9870, %v9883
    %v9885 = vcombine.low %v9877, %v9884
    %v9890 = vsel %vm603, %v9834, 0.0
    %9891 = vadd.xlane.f32.xlu0 %v9890
    %v9892 = vpop.xlane.xlu0 %9891
    %v9893 = vsel %vm603, %v9851, 0.0
    %9894 = vadd.xlane.f32.xlu0 %v9893
    %v9895 = vpop.xlane.xlu0 %9894
    %v9896 = vsel %vm603, %v9868, 0.0
    %9897 = vadd.xlane.f32.xlu0 %v9896
    %v9898 = vpop.xlane.xlu0 %9897
    %v9899 = vsel %vm603, %v9885, 0.0
    %9900 = vadd.xlane.f32.xlu0 %v9899
    %v9901 = vpop.xlane.xlu0 %9900
    %v9902 = vmul.f32 %v9892, %v4663
    %v9903 = vmul.f32 %v9895, %v4663
    %v9904 = vmul.f32 %v9898, %v4663
    %v9905 = vmul.f32 %v9901, %v4663
    %v9906 = vadd.f32 %v9902, 1e-05
    %v9907 = vadd.f32 %v9903, 1e-05
    %v9908 = vadd.f32 %v9904, 1e-05
    %v9909 = vadd.f32 %v9905, 1e-05
    %v9910 = vrsqrt.pop %v9906
    %v9911 = vrsqrt.pop %v9907
    %v9912 = vrsqrt.pop %v9908
    %v9913 = vrsqrt.pop %v9909
    %v9919 = vunpack.c.l.s4 269488144
    %v9920 = vunpack.c.0.s8 %v9919
    %v9921 = vlaneseq
    %v9922 = vshrl.u32 %v9921, 7
    %v9923 = vsub.s32 %v9920, %v9922
    %v9924 = vrot.slane %v9910, %v9923
    %v9926 = vunpack.c.l.s4 842150450
    %v9927 = vunpack.c.0.s8 %v9926
    %v9928 = vlaneseq
    %v9929 = vshrl.u32 %v9928, 7
    %v9930 = vsub.s32 %v9927, %v9929
    %v9931 = vrot.slane %v9910, %v9930
    %v9933 = vunpack.c.l.s4 1414812756
    %v9934 = vunpack.c.0.s8 %v9933
    %v9935 = vlaneseq
    %v9936 = vshrl.u32 %v9935, 7
    %v9937 = vsub.s32 %v9934, %v9936
    %v9938 = vrot.slane %v9910, %v9937
    %v9940 = vunpack.c.l.s4 1987475062
    %v9941 = vunpack.c.0.s8 %v9940
    %v9942 = vlaneseq
    %v9943 = vshrl.u32 %v9942, 7
    %v9944 = vsub.s32 %v9941, %v9943
    %v9945 = vrot.slane %v9910, %v9944
    %v9947 = vunpack.c.l.s4 269488144
    %v9948 = vunpack.c.0.s8 %v9947
    %v9949 = vlaneseq
    %v9950 = vshrl.u32 %v9949, 7
    %v9951 = vsub.s32 %v9948, %v9950
    %v9952 = vrot.slane %v9911, %v9951
    %v9954 = vunpack.c.l.s4 842150450
    %v9955 = vunpack.c.0.s8 %v9954
    %v9956 = vlaneseq
    %v9957 = vshrl.u32 %v9956, 7
    %v9958 = vsub.s32 %v9955, %v9957
    %v9959 = vrot.slane %v9911, %v9958
    %v9961 = vunpack.c.l.s4 1414812756
    %v9962 = vunpack.c.0.s8 %v9961
    %v9963 = vlaneseq
    %v9964 = vshrl.u32 %v9963, 7
    %v9965 = vsub.s32 %v9962, %v9964
    %v9966 = vrot.slane %v9911, %v9965
    %v9968 = vunpack.c.l.s4 1987475062
    %v9969 = vunpack.c.0.s8 %v9968
    %v9970 = vlaneseq
    %v9971 = vshrl.u32 %v9970, 7
    %v9972 = vsub.s32 %v9969, %v9971
    %v9973 = vrot.slane %v9911, %v9972
    %v9975 = vunpack.c.l.s4 269488144
    %v9976 = vunpack.c.0.s8 %v9975
    %v9977 = vlaneseq
    %v9978 = vshrl.u32 %v9977, 7
    %v9979 = vsub.s32 %v9976, %v9978
    %v9980 = vrot.slane %v9912, %v9979
    %v9982 = vunpack.c.l.s4 842150450
    %v9983 = vunpack.c.0.s8 %v9982
    %v9984 = vlaneseq
    %v9985 = vshrl.u32 %v9984, 7
    %v9986 = vsub.s32 %v9983, %v9985
    %v9987 = vrot.slane %v9912, %v9986
    %v9989 = vunpack.c.l.s4 1414812756
    %v9990 = vunpack.c.0.s8 %v9989
    %v9991 = vlaneseq
    %v9992 = vshrl.u32 %v9991, 7
    %v9993 = vsub.s32 %v9990, %v9992
    %v9994 = vrot.slane %v9912, %v9993
    %v9996 = vunpack.c.l.s4 1987475062
    %v9997 = vunpack.c.0.s8 %v9996
    %v9998 = vlaneseq
    %v9999 = vshrl.u32 %v9998, 7
    %v10000 = vsub.s32 %v9997, %v9999
    %v10001 = vrot.slane %v9912, %v10000
    %v10003 = vunpack.c.l.s4 269488144
    %v10004 = vunpack.c.0.s8 %v10003
    %v10005 = vlaneseq
    %v10006 = vshrl.u32 %v10005, 7
    %v10007 = vsub.s32 %v10004, %v10006
    %v10008 = vrot.slane %v9913, %v10007
    %v10010 = vunpack.c.l.s4 842150450
    %v10011 = vunpack.c.0.s8 %v10010
    %v10012 = vlaneseq
    %v10013 = vshrl.u32 %v10012, 7
    %v10014 = vsub.s32 %v10011, %v10013
    %v10015 = vrot.slane %v9913, %v10014
    %v10017 = vunpack.c.l.s4 1414812756
    %v10018 = vunpack.c.0.s8 %v10017
    %v10019 = vlaneseq
    %v10020 = vshrl.u32 %v10019, 7
    %v10021 = vsub.s32 %v10018, %v10020
    %v10022 = vrot.slane %v9913, %v10021
    %v10024 = vunpack.c.l.s4 1987475062
    %v10025 = vunpack.c.0.s8 %v10024
    %v10026 = vlaneseq
    %v10027 = vshrl.u32 %v10026, 7
    %v10028 = vsub.s32 %v10025, %v10027
    %v10029 = vrot.slane %v9913, %v10028
    %v10046 = vmul.f32 %v9770, %v9924
    %v10047 = vmul.f32 %v9771, %v9931
    %v10048 = vmul.f32 %v9772, %v9938
    %v10049 = vmul.f32 %v9773, %v9945
    %v10050 = vmul.f32 %v9774, %v9952
    %v10051 = vmul.f32 %v9775, %v9959
    %v10052 = vmul.f32 %v9776, %v9966
    %v10053 = vmul.f32 %v9777, %v9973
    %v10054 = vmul.f32 %v9778, %v9980
    %v10055 = vmul.f32 %v9779, %v9987
    %v10056 = vmul.f32 %v9780, %v9994
    %v10057 = vmul.f32 %v9781, %v10001
    %v10058 = vmul.f32 %v9782, %v10008
    %v10059 = vmul.f32 %v9783, %v10015
    %v10060 = vmul.f32 %v9784, %v10022
    %v10061 = vmul.f32 %v9785, %v10029
    %v10063 = vlaneseq
    %v10064 = vshrl.u32 %v10063, 7
    %v10065 = vsub.s32 0, %v10064
    %v10066 = vrot.slane %v9532, %v10065
    %v10067 = vcombine.high %v10066, %v10066
    %v10069 = vunpack.c.l.s4 1983009808
    %v10070 = vunpack.c.0.s8 %v10069
    %v10071 = vlaneseq
    %v10072 = vshrl.u32 %v10071, 7
    %v10073 = vsub.s32 %v10070, %v10072
    %v10074 = vrot.slane %v10066, %v10073
    %v10076 = vunpack.c.l.s4 1983009808
    %v10077 = vunpack.c.0.s8 %v10076
    %v10078 = vlaneseq
    %v10079 = vshrl.u32 %v10078, 7
    %v10080 = vsub.s32 %v10077, %v10079
    %v10081 = vrot.slane %v10067, %v10080
    %v10082 = vcombine.high %v10074, %v10074
    %v10083 = vcombine.high %v10081, %v10081
    %v10088 = vmul.f32 %v10046, %v10074
    %v10089 = vmul.f32 %v10047, %v10082
    %v10090 = vmul.f32 %v10048, %v10081
    %v10091 = vmul.f32 %v10049, %v10083
    %v10092 = vmul.f32 %v10050, %v10074
    %v10093 = vmul.f32 %v10051, %v10082
    %v10094 = vmul.f32 %v10052, %v10081
    %v10095 = vmul.f32 %v10053, %v10083
    %v10096 = vmul.f32 %v10054, %v10074
    %v10097 = vmul.f32 %v10055, %v10082
    %v10098 = vmul.f32 %v10056, %v10081
    %v10099 = vmul.f32 %v10057, %v10083
    %v10100 = vmul.f32 %v10058, %v10074
    %v10101 = vmul.f32 %v10059, %v10082
    %v10102 = vmul.f32 %v10060, %v10081
    %v10103 = vmul.f32 %v10061, %v10083
    %v10105 = vlaneseq
    %v10106 = vshrl.u32 %v10105, 7
    %v10107 = vsub.s32 0, %v10106
    %v10108 = vrot.slane %v9533, %v10107
    %v10109 = vcombine.high %v10108, %v10108
    %v10111 = vunpack.c.l.s4 1983009808
    %v10112 = vunpack.c.0.s8 %v10111
    %v10113 = vlaneseq
    %v10114 = vshrl.u32 %v10113, 7
    %v10115 = vsub.s32 %v10112, %v10114
    %v10116 = vrot.slane %v10108, %v10115
    %v10118 = vunpack.c.l.s4 1983009808
    %v10119 = vunpack.c.0.s8 %v10118
    %v10120 = vlaneseq
    %v10121 = vshrl.u32 %v10120, 7
    %v10122 = vsub.s32 %v10119, %v10121
    %v10123 = vrot.slane %v10109, %v10122
    %v10124 = vcombine.high %v10116, %v10116
    %v10125 = vcombine.high %v10123, %v10123
    %v10130 = vadd.f32 %v10088, %v10116
    %v10131 = vadd.f32 %v10089, %v10124
    %v10132 = vadd.f32 %v10090, %v10123
    %v10133 = vadd.f32 %v10091, %v10125
    %v10134 = vadd.f32 %v10092, %v10116
    %v10135 = vadd.f32 %v10093, %v10124
    %v10136 = vadd.f32 %v10094, %v10123
    %v10137 = vadd.f32 %v10095, %v10125
    %v10138 = vadd.f32 %v10096, %v10116
    %v10139 = vadd.f32 %v10097, %v10124
    %v10140 = vadd.f32 %v10098, %v10123
    %v10141 = vadd.f32 %v10099, %v10125
    %v10142 = vadd.f32 %v10100, %v10116
    %v10143 = vadd.f32 %v10101, %v10124
    %v10144 = vadd.f32 %v10102, %v10123
    %v10145 = vadd.f32 %v10103, %v10125
    %v10146 = vld [vmem:[%s17] sm:$0xff]
    %v10147 = vld [vmem:[%s17 + $0x8] sm:$0xff]
    %v10148 = vld [vmem:[%s17 + $0x10] sm:$0xff]
    %v10149 = vld [vmem:[%s17 + $0x18] sm:$0xff]
    %v10150 = vld [vmem:[%s18] sm:$0x1]
    %v10152 = vlaneseq
    %v10153 = vshrl.u32 %v10152, 7
    %v10154 = vsub.s32 0, %v10153
    %v10155 = vrot.slane %v10150, %v10154
    %v10173 = vcombine.low %v10130, %v10131
    %v10174 = vcombine.low %v10132, %v10133
    %v10176 = vunpack.c.l.s4 1983009808
    %v10177 = vunpack.c.0.s8 %v10176
    %v10178 = vlaneseq
    %v10179 = vshrl.u32 %v10178, 7
    %v10180 = vsub.s32 %v10177, %v10179
    %v10181 = vrot.slane %v10173, %v10180
    %v10183 = vunpack.c.l.s4 1983009808
    %v10184 = vunpack.c.0.s8 %v10183
    %v10185 = vlaneseq
    %v10186 = vshrl.u32 %v10185, 7
    %v10187 = vsub.s32 %v10184, %v10186
    %v10188 = vrot.slane %v10174, %v10187
    %v10189 = vcombine.low %v10181, %v10188
    %v10190 = vcombine.low %v10134, %v10135
    %v10191 = vcombine.low %v10136, %v10137
    %v10193 = vunpack.c.l.s4 1983009808
    %v10194 = vunpack.c.0.s8 %v10193
    %v10195 = vlaneseq
    %v10196 = vshrl.u32 %v10195, 7
    %v10197 = vsub.s32 %v10194, %v10196
    %v10198 = vrot.slane %v10190, %v10197
    %v10200 = vunpack.c.l.s4 1983009808
    %v10201 = vunpack.c.0.s8 %v10200
    %v10202 = vlaneseq
    %v10203 = vshrl.u32 %v10202, 7
    %v10204 = vsub.s32 %v10201, %v10203
    %v10205 = vrot.slane %v10191, %v10204
    %v10206 = vcombine.low %v10198, %v10205
    %v10207 = vcombine.low %v10138, %v10139
    %v10208 = vcombine.low %v10140, %v10141
    %v10210 = vunpack.c.l.s4 1983009808
    %v10211 = vunpack.c.0.s8 %v10210
    %v10212 = vlaneseq
    %v10213 = vshrl.u32 %v10212, 7
    %v10214 = vsub.s32 %v10211, %v10213
    %v10215 = vrot.slane %v10207, %v10214
    %v10217 = vunpack.c.l.s4 1983009808
    %v10218 = vunpack.c.0.s8 %v10217
    %v10219 = vlaneseq
    %v10220 = vshrl.u32 %v10219, 7
    %v10221 = vsub.s32 %v10218, %v10220
    %v10222 = vrot.slane %v10208, %v10221
    %v10223 = vcombine.low %v10215, %v10222
    %v10224 = vcombine.low %v10142, %v10143
    %v10225 = vcombine.low %v10144, %v10145
    %v10227 = vunpack.c.l.s4 1983009808
    %v10228 = vunpack.c.0.s8 %v10227
    %v10229 = vlaneseq
    %v10230 = vshrl.u32 %v10229, 7
    %v10231 = vsub.s32 %v10228, %v10230
    %v10232 = vrot.slane %v10224, %v10231
    %v10234 = vunpack.c.l.s4 1983009808
    %v10235 = vunpack.c.0.s8 %v10234
    %v10236 = vlaneseq
    %v10237 = vshrl.u32 %v10236, 7
    %v10238 = vsub.s32 %v10235, %v10237
    %v10239 = vrot.slane %v10225, %v10238
    %v10240 = vcombine.low %v10232, %v10239
    %v10241 = vsel %vm603, %v10189, 0
    %v10243 = vsel %vm603, %v10206, 0
    %v10245 = vsel %vm603, %v10223, 0
    %v10247 = vsel %vm603, %v10240, 0
    %10249 = vmatprep.subr.mxu0 0.0
    %10250 = vmatpush1.msra.mxu0 %v10146
    %10251 = vmatprep.subr.mxu0 0.0
    %10252 = vmatpush1.msra.mxu0 %v10147
    %10253 = vmatprep.subr.mxu0 0.0
    %10254 = vmatpush1.msra.mxu0 %v10148
    %10255 = vmatprep.subr.mxu0 0.0
    %10256 = vmatpush1.msra.mxu0 %v10149
    %10257 = vmatprep.subr.mxu0 0.0
    %10258 = vmatpush1.msra.mxu0 0.0
    %10259 = vmatprep.subr.mxu0 0.0
    %10260 = vmatpush1.msra.mxu0 0.0
    %10261 = vmatprep.subr.mxu0 0.0
    %10262 = vmatpush1.msra.mxu0 0.0
    %10263 = vmatprep.subr.mxu0 0.0
    %10264 = vmatpush1.msra.mxu0 0.0
    %10265 = vmatprep.subr.mxu0 0.0
    %10266 = vmatpush1.msra.mxu0 0.0
    %10267 = vmatprep.subr.mxu0 0.0
    %10268 = vmatpush1.msra.mxu0 0.0
    %10269 = vmatprep.subr.mxu0 0.0
    %10270 = vmatpush1.msra.mxu0 0.0
    %10271 = vmatprep.subr.mxu0 0.0
    %10272 = vmatpush1.msra.mxu0 0.0
    %10273 = vmatprep.subr.mxu0 0.0
    %10274 = vmatpush1.msra.mxu0 0.0
    %10275 = vmatprep.subr.mxu0 0.0
    %10276 = vmatpush1.msra.mxu0 0.0
    %10277 = vmatprep.subr.mxu0 0.0
    %10278 = vmatpush1.msra.mxu0 0.0
    %10279 = vmatprep.subr.mxu0 0.0
    %10280 = vmatpush1.msra.mxu0 0.0
    %10281 = vmatprep.subr.mxu0 0.0
    %10282 = vmatpush1.msra.mxu0 0.0
    %10283 = vmatprep.subr.mxu0 0.0
    %10284 = vmatpush1.msra.mxu0 0.0
    %10285 = vmatprep.subr.mxu0 0.0
    %10286 = vmatpush1.msra.mxu0 0.0
    %10287 = vmatprep.subr.mxu0 0.0
    %10288 = vmatpush1.msra.mxu0 0.0
    %10289 = vmatprep.subr.mxu0 0.0
    %10290 = vmatpush1.msra.mxu0 0.0
    %10291 = vmatprep.subr.mxu0 0.0
    %10292 = vmatpush1.msra.mxu0 0.0
    %10293 = vmatprep.subr.mxu0 0.0
    %10294 = vmatpush1.msra.mxu0 0.0
    %10295 = vmatprep.subr.mxu0 0.0
    %10296 = vmatpush1.msra.mxu0 0.0
    %10297 = vmatprep.subr.mxu0 0.0
    %10298 = vmatpush1.msra.mxu0 0.0
    %10299 = vmatprep.subr.mxu0 0.0
    %10300 = vmatpush1.msra.mxu0 0.0
    %10301 = vmatprep.subr.mxu0 0.0
    %10302 = vmatpush1.msra.mxu0 0.0
    %10303 = vmatprep.subr.mxu0 0.0
    %10304 = vmatpush1.msra.mxu0 0.0
    %10305 = vmatprep.subr.mxu0 0.0
    %10306 = vmatpush1.msra.mxu0 0.0
    %10307 = vmatprep.subr.mxu0 0.0
    %10308 = vmatpush1.msra.mxu0 0.0
    %10309 = vmatprep.subr.mxu0 0.0
    %10310 = vmatpush1.msra.mxu0 0.0
    %10311 = vmatprep.subr.mxu0 0.0
    %10312 = vmatpush1.msra.mxu0 0.0
    %10313 = vmatprep.mubr.f32.mxu0 0.0
    %10314 = vmatmul.mubr.f32.gmra.mrb[0].mxu0 %v10241
    %v10315 = vpop.f32.mrb[0].mxu0
    %v10316 = vadd.f32 %v10155, %v10315
    %v10317 = vpop.f32.mrb[0].mxu0
    %10318 = vmatprep.mubr.f32.mxu0 0.0
    %10319 = vmatmul.mubr.f32.gmra.mrb[0].mxu0 %v10243
    %v10320 = vpop.f32.mrb[0].mxu0
    %v10321 = vadd.f32 %v10155, %v10320
    %v10322 = vpop.f32.mrb[0].mxu0
    %10323 = vmatprep.mubr.f32.mxu0 0.0
    %10324 = vmatmul.mubr.f32.gmra.mrb[0].mxu0 %v10245
    %v10325 = vpop.f32.mrb[0].mxu0
    %v10326 = vadd.f32 %v10155, %v10325
    %v10327 = vpop.f32.mrb[0].mxu0
    %10328 = vmatprep.mubr.f32.mxu0 0.0
    %10329 = vmatmul.mubr.f32.gmra.mrb[0].mxu0 %v10247
    %v10330 = vpop.f32.mrb[0].mxu0
    %v10331 = vadd.f32 %v10155, %v10330
    %v10332 = vpop.f32.mrb[0].mxu0
    %10333 = vdwg.mxu0
    %10334 = vmax.xlane.f32.xlu0 %v10316
    %v10335 = vpop.xlane.xlu0 %10334
    %10336 = vmax.xlane.f32.xlu0 %v10321
    %v10337 = vpop.xlane.xlu0 %10336
    %10338 = vmax.xlane.f32.xlu0 %v10326
    %v10339 = vpop.xlane.xlu0 %10338
    %10340 = vmax.xlane.f32.xlu0 %v10331
    %v10341 = vpop.xlane.xlu0 %10340
    %v10342 = vsub.f32 %v10316, %v10335
    %v10343 = vsub.f32 %v10321, %v10337
    %v10344 = vsub.f32 %v10326, %v10339
    %v10345 = vsub.f32 %v10331, %v10341
    %v10346 = vmul.f32 %v10342, 1.442695
    %v10347 = vpow.pop %v10346
    %v10348 = vmul.f32 %v10343, 1.442695
    %v10349 = vpow.pop %v10348
    %v10350 = vmul.f32 %v10344, 1.442695
    %v10351 = vpow.pop %v10350
    %v10352 = vmul.f32 %v10345, 1.442695
    %v10353 = vpow.pop %v10352
    %10354 = vadd.xlane.f32.xlu0 %v10347
    %v10355 = vpop.xlane.xlu0 %10354
    %10356 = vadd.xlane.f32.xlu0 %v10349
    %v10357 = vpop.xlane.xlu0 %10356
    %10358 = vadd.xlane.f32.xlu0 %v10351
    %v10359 = vpop.xlane.xlu0 %10358
    %10360 = vadd.xlane.f32.xlu0 %v10353
    %v10361 = vpop.xlane.xlu0 %10360
    %v10362 = vrcp.pop %v10355
    %v10363 = vmul.f32 %v10347, %v10362
    %v10364 = vrcp.pop %v10357
    %v10365 = vmul.f32 %v10349, %v10364
    %v10366 = vrcp.pop %v10359
    %v10367 = vmul.f32 %v10351, %v10366
    %v10368 = vrcp.pop %v10361
    %v10369 = vmul.f32 %v10353, %v10368
    %v10374 = vcombine.high %v10363, %v10363
    %v10376 = vunpack.c.l.s4 1983009808
    %v10377 = vunpack.c.0.s8 %v10376
    %v10378 = vlaneseq
    %v10379 = vshrl.u32 %v10378, 7
    %v10380 = vsub.s32 %v10377, %v10379
    %v10381 = vrot.slane %v10363, %v10380
    %v10383 = vunpack.c.l.s4 1983009808
    %v10384 = vunpack.c.0.s8 %v10383
    %v10385 = vlaneseq
    %v10386 = vshrl.u32 %v10385, 7
    %v10387 = vsub.s32 %v10384, %v10386
    %v10388 = vrot.slane %v10374, %v10387
    %v10389 = vcombine.high %v10381, %v10381
    %v10390 = vcombine.high %v10388, %v10388
    %v10391 = vcombine.high %v10365, %v10365
    %v10393 = vunpack.c.l.s4 1983009808
    %v10394 = vunpack.c.0.s8 %v10393
    %v10395 = vlaneseq
    %v10396 = vshrl.u32 %v10395, 7
    %v10397 = vsub.s32 %v10394, %v10396
    %v10398 = vrot.slane %v10365, %v10397
    %v10400 = vunpack.c.l.s4 1983009808
    %v10401 = vunpack.c.0.s8 %v10400
    %v10402 = vlaneseq
    %v10403 = vshrl.u32 %v10402, 7
    %v10404 = vsub.s32 %v10401, %v10403
    %v10405 = vrot.slane %v10391, %v10404
    %v10406 = vcombine.high %v10398, %v10398
    %v10407 = vcombine.high %v10405, %v10405
    %v10408 = vcombine.high %v10367, %v10367
    %v10410 = vunpack.c.l.s4 1983009808
    %v10411 = vunpack.c.0.s8 %v10410
    %v10412 = vlaneseq
    %v10413 = vshrl.u32 %v10412, 7
    %v10414 = vsub.s32 %v10411, %v10413
    %v10415 = vrot.slane %v10367, %v10414
    %v10417 = vunpack.c.l.s4 1983009808
    %v10418 = vunpack.c.0.s8 %v10417
    %v10419 = vlaneseq
    %v10420 = vshrl.u32 %v10419, 7
    %v10421 = vsub.s32 %v10418, %v10420
    %v10422 = vrot.slane %v10408, %v10421
    %v10423 = vcombine.high %v10415, %v10415
    %v10424 = vcombine.high %v10422, %v10422
    %v10425 = vcombine.high %v10369, %v10369
    %v10427 = vunpack.c.l.s4 1983009808
    %v10428 = vunpack.c.0.s8 %v10427
    %v10429 = vlaneseq
    %v10430 = vshrl.u32 %v10429, 7
    %v10431 = vsub.s32 %v10428, %v10430
    %v10432 = vrot.slane %v10369, %v10431
    %v10434 = vunpack.c.l.s4 1983009808
    %v10435 = vunpack.c.0.s8 %v10434
    %v10436 = vlaneseq
    %v10437 = vshrl.u32 %v10436, 7
    %v10438 = vsub.s32 %v10435, %v10437
    %v10439 = vrot.slane %v10425, %v10438
    %v10440 = vcombine.high %v10432, %v10432
    %v10441 = vcombine.high %v10439, %v10439
    %10458 = vst [vmem:[%s19] sm:$0x3] %v10381
    %10459 = vst [vmem:[%s19 + $0x2] sm:$0x3] %v10389
    %10460 = vst [vmem:[%s19 + $0x4] sm:$0x3] %v10388
    %10461 = vst [vmem:[%s19 + $0x6] sm:$0x3] %v10390
    %10462 = vst [vmem:[%s19 + $0x8] sm:$0x3] %v10398
    %10463 = vst [vmem:[%s19 + $0xa] sm:$0x3] %v10406
    %10464 = vst [vmem:[%s19 + $0xc] sm:$0x3] %v10405
    %10465 = vst [vmem:[%s19 + $0xe] sm:$0x3] %v10407
    %10466 = vst [vmem:[%s19 + $0x10] sm:$0x3] %v10415
    %10467 = vst [vmem:[%s19 + $0x12] sm:$0x3] %v10423
    %10468 = vst [vmem:[%s19 + $0x14] sm:$0x3] %v10422
    %10469 = vst [vmem:[%s19 + $0x16] sm:$0x3] %v10424
    %10470 = vst [vmem:[%s19 + $0x18] sm:$0x3] %v10432
    %10471 = vst [vmem:[%s19 + $0x1a] sm:$0x3] %v10440
    %10472 = vst [vmem:[%s19 + $0x1c] sm:$0x3] %v10439
    %10473 = vst [vmem:[%s19 + $0x1e] sm:$0x3] %v10441
    // Predicated region
    $region82: #{model_forward.1} parent=1 // pred_check
      _
    $region83: #{model_forward.1} parent=1 // pred_check_branch
      %10475 = sbr.rel (0) target = $region85
    $region84: #{model_forward.1} parent=1 // pred_region
      _
    $region85: #{model_forward.1} parent=1 // pred_fallthru
      _
    // Predicated region
    $region86: #{model_forward.1} parent=1 // pred_check
      _
    $region87: #{model_forward.1} parent=1 // pred_check_branch
      %10477 = sbr.rel (0) target = $region89
    $region88: #{model_forward.1} parent=1 // pred_region
      _
    $region89: #{model_forward.1} parent=1 // pred_fallthru
      _
    %10478 = vsyncpa [#allocation4], 1

</llo_original>
